<compile_context>
chip_gen: v7x
topology: tpu7x:2x2x1
jax: 0.10.0
libtpu: 0.0.40
codegen_flags: <defaults>
</compile_context>

<pallas_src>
import functools

import jax
import jax.numpy as jnp
from jax.experimental import pallas as pl
from jax.experimental.pallas import tpu as pltpu

# ----------------------------- small config ---------------------------------
BATCH = 2
IN_CHANS = 1
IMG_T, IMG_F = 64, 32          # (1024, 128) in the real model
PATCH = 16
EMBED_DIM = 128                # 768 in the real model
NUM_HEADS = 2                  # 12 in the real model
HEAD_DIM = EMBED_DIM // NUM_HEADS   # 64, same as the real model
MLP_DIM = 4 * EMBED_DIM
DEPTH = 4                      # 12 in the real model
CONTEXTUAL_DEPTH = 1           # 8 in the real model (blocks n > this are averaged)
LN_EPS = 1e-6

GRID_H = IMG_T // PATCH
GRID_W = IMG_F // PATCH
NUM_PATCHES = GRID_H * GRID_W
SEQ = NUM_PATCHES + 1          # +1 cls token

# Heads processed per attention grid step so the Q/K/V / output slices are
# lane-dense (group width multiple of 128).  head_dim=64 -> 2 heads per group.
if 128 % HEAD_DIM == 0:
    HEADS_PER_GROUP = max(1, min(NUM_HEADS, 128 // HEAD_DIM))
else:
    HEADS_PER_GROUP = 1
assert NUM_HEADS % HEADS_PER_GROUP == 0
assert (HEADS_PER_GROUP * HEAD_DIM) % 128 == 0, "head-group width must be lane aligned"


# ------------------------------ tile helpers ---------------------------------
def _col_tile(n):
    """Output-column tile: largest 128-aligned tile (<=512) when n is large."""
    if n > 512:
        for t in (512, 256, 128):
            if n % t == 0:
                return t
    return n  # full dim (always legal)


def _hidden_tile(n):
    """MLP hidden-dim tile (contraction axis of fc2, accumulated in VMEM)."""
    if n > 1024:
        for t in (1024, 512, 256, 128):
            if n % t == 0:
                return t
    return n


def _layernorm(x, g, b, eps):
    """Row-wise LayerNorm on an in-kernel f32 value; g, b are (1, D)."""
    mu = jnp.mean(x, axis=-1, keepdims=True)
    xc = x - mu
    var = jnp.mean(xc * xc, axis=-1, keepdims=True)
    return xc * jax.lax.rsqrt(var + eps) * g + b


# ----------------------------- Pallas kernels --------------------------------
def _ln_matmul_kernel(x_ref, g_ref, b_ref, w_ref, bias_ref, o_ref, xn_ref, *, eps):
    """o = LayerNorm(x) @ w + bias.  LN is computed once (column tile 0) and
    cached in a bf16 VMEM scratch; matmul is bf16 with f32 accumulation."""
    @pl.when(pl.program_id(1) == 0)
    def _():
        x = x_ref[0].astype(jnp.float32)
        xn_ref[...] = _layernorm(x, g_ref[...], b_ref[...], eps).astype(jnp.bfloat16)

    y = jnp.dot(xn_ref[...], w_ref[...], preferred_element_type=jnp.float32)
    o_ref[0] = (y + bias_ref[...]).astype(o_ref.dtype)


def ln_matmul(x, g, b, w, bias, eps=LN_EPS, out_dtype=jnp.bfloat16):
    """x: [B,S,D] f32, w: [D,N] bf16 -> [B,S,N] (bf16 by default) = LN(x)@w + bias."""
    B, S, D = x.shape
    N = w.shape[1]
    tn = _col_tile(N)
    return pl.pallas_call(
        functools.partial(_ln_matmul_kernel, eps=eps),
        out_shape=jax.ShapeDtypeStruct((B, S, N), out_dtype),
        grid=(B, N // tn),
        in_specs=[
            pl.BlockSpec((1, S, D), lambda bi, j: (bi, 0, 0)),
            pl.BlockSpec((1, D), lambda bi, j: (0, 0)),
            pl.BlockSpec((1, D), lambda bi, j: (0, 0)),
            pl.BlockSpec((D, tn), lambda bi, j: (0, j)),
            pl.BlockSpec((1, tn), lambda bi, j: (0, j)),
        ],
        out_specs=pl.BlockSpec((1, S, tn), lambda bi, j: (bi, 0, j)),
        scratch_shapes=[pltpu.VMEM((S, D), jnp.bfloat16)],   # cached LN(x)
        compiler_params=pltpu.CompilerParams(
            dimension_semantics=("parallel", "arbitrary")),
    )(x, g.reshape(1, D), b.reshape(1, D), w, bias.reshape(1, N))


def _matmul_kernel(x_ref, w_ref, bias_ref, *rest, has_residual, has_pos):
    """o = [res +] [pos +] x @ w + bias   (bf16 operands, f32 accumulation)."""
    refs = list(rest)
    res_ref = refs.pop(0) if has_residual else None
    pos_ref = refs.pop(0) if has_pos else None
    o_ref = refs[0]
    x = x_ref[0].astype(jnp.bfloat16)
    y = jnp.dot(x, w_ref[...], preferred_element_type=jnp.float32) + bias_ref[...]
    if has_residual:
        y = y + res_ref[0]
    if has_pos:
        y = y + pos_ref[0]
    o_ref[0] = y.astype(o_ref.dtype)


def matmul_bias(x, w, bias, residual=None, pos=None, out_dtype=jnp.float32):
    """x: [B,S,K], w: [K,N] bf16 -> [B,S,N] = (residual +) (pos +) x @ w + bias.
    `residual` is per-batch [B,S,N]; `pos` is broadcast [1,S,N]."""
    B, S, K = x.shape
    N = w.shape[1]
    tn = _col_tile(N)
    in_specs = [
        pl.BlockSpec((1, S, K), lambda bi, j: (bi, 0, 0)),
        pl.BlockSpec((K, tn), lambda bi, j: (0, j)),
        pl.BlockSpec((1, tn), lambda bi, j: (0, j)),
    ]
    args = [x, w, bias.reshape(1, N)]
    if residual is not None:
        in_specs.append(pl.BlockSpec((1, S, tn), lambda bi, j: (bi, 0, j)))
        args.append(residual)
    if pos is not None:
        in_specs.append(pl.BlockSpec((1, S, tn), lambda bi, j: (0, 0, j)))
        args.append(pos)
    return pl.pallas_call(
        functools.partial(_matmul_kernel,
                          has_residual=residual is not None,
                          has_pos=pos is not None),
        out_shape=jax.ShapeDtypeStruct((B, S, N), out_dtype),
        grid=(B, N // tn),
        in_specs=in_specs,
        out_specs=pl.BlockSpec((1, S, tn), lambda bi, j: (bi, 0, j)),
        compiler_params=pltpu.CompilerParams(
            dimension_semantics=("parallel", "parallel")),
    )(*args)


def _attn_kernel(q_ref, k_ref, v_ref, o_ref, *, scale, heads_per_group, head_dim):
    """Softmax(q k^T * scale) v for one (batch, head-group).  Scale folded into
    q (exact for power-of-two head_dim); softmax denominator applied to the
    [S, head_dim] PV result instead of the SxS probability tile; per-head
    results written straight into the lane-aligned output group."""
    qg = q_ref[0]            # bf16 [S, group_w]
    kg = k_ref[0]
    vg = v_ref[0]
    for h in range(heads_per_group):
        lo, hi = h * head_dim, (h + 1) * head_dim
        q = qg[:, lo:hi] * scale                        # stays bf16; exact for 2^-k
        k = kg[:, lo:hi]
        v = vg[:, lo:hi]
        # Contract on the last dims directly (no explicit transpose of k).
        s = jax.lax.dot_general(q, k, (((1,), (1,)), ((), ())),
                                preferred_element_type=jnp.float32)
        m = jnp.max(s, axis=-1, keepdims=True)
        p = jnp.exp(s - m)                               # unnormalized probs (f32)
        num = jnp.dot(p.astype(jnp.bfloat16), v, preferred_element_type=jnp.float32)
        denom = jnp.sum(p, axis=-1, keepdims=True)
        out = num * pl.reciprocal(denom)                 # exact reciprocal (parity)
        o_ref[0, :, pl.ds(lo, head_dim)] = out.astype(o_ref.dtype)


def attention(qkv, num_heads, head_dim, heads_per_group):
    """qkv: [B, S, 3*D] bf16 (column layout Q | K | V, head-major inside each).

    Head split is pure BlockSpec addressing: grid (B, groups); Q group g at
    column-block g, K at d_blocks + g, V at 2*d_blocks + g."""
    B, S, three_d = qkv.shape
    D = num_heads * head_dim
    assert three_d == 3 * D
    group_w = heads_per_group * head_dim
    n_groups = num_heads // heads_per_group
    d_blocks = D // group_w
    # TODO(synk): flash-style key tiling (online softmax) for the real S=513.
    kern = functools.partial(_attn_kernel, scale=head_dim ** -0.5,
                             heads_per_group=heads_per_group, head_dim=head_dim)
    return pl.pallas_call(
        kern,
        out_shape=jax.ShapeDtypeStruct((B, S, D), jnp.bfloat16),
        grid=(B, n_groups),
        in_specs=[
            pl.BlockSpec((1, S, group_w), lambda b, g: (b, 0, g)),
            pl.BlockSpec((1, S, group_w), lambda b, g: (b, 0, d_blocks + g)),
            pl.BlockSpec((1, S, group_w), lambda b, g: (b, 0, 2 * d_blocks + g)),
        ],
        out_specs=pl.BlockSpec((1, S, group_w), lambda b, g: (b, 0, g)),
        compiler_params=pltpu.CompilerParams(
            dimension_semantics=("parallel", "parallel")),
    )(qkv, qkv, qkv)


def _mlp_kernel(x_ref, g_ref, b_ref, w1_ref, b1_ref, w2_ref, b2_ref, *rest,
                eps, acc_scale):
    """o = x + fc2(GELU(fc1(LN(x)))), accumulated over MLP-hidden tiles.
    When acc_scale is set, also accumulates scale * FinalLN(o) into the aliased
    running contextual-mean buffer in the finalize branch."""
    if acc_scale is not None:
        ng_ref, nb_ref, accin_ref, o_ref, accout_ref, xn_ref, acc_ref = rest
    else:
        o_ref, xn_ref, acc_ref = rest
    h = pl.program_id(1)

    @pl.when(h == 0)
    def _():
        x = x_ref[0].astype(jnp.float32)
        xn_ref[...] = _layernorm(x, g_ref[...], b_ref[...], eps).astype(jnp.bfloat16)
        acc_ref[...] = jnp.zeros_like(acc_ref)

    hid = jnp.dot(xn_ref[...], w1_ref[...], preferred_element_type=jnp.float32)
    hid = hid + b1_ref[...]
    # TODO(synk): PyTorch nn.GELU is exact (erf); tanh approximation used here.
    hid = jax.nn.gelu(hid, approximate=True)
    acc_ref[...] += jnp.dot(hid.astype(jnp.bfloat16), w2_ref[...],
                            preferred_element_type=jnp.float32)

    @pl.when(h == pl.num_programs(1) - 1)
    def _():
        y = x_ref[0] + acc_ref[...] + b2_ref[...]
        o_ref[0] = y.astype(o_ref.dtype)
        if acc_scale is not None:
            yn = _layernorm(y, ng_ref[...], nb_ref[...], eps)
            accout_ref[0] = (accin_ref[0] + acc_scale * yn).astype(accout_ref.dtype)


def ln_mlp_residual(x, g, b, w1, b1, w2, b2, *, norm_g=None, norm_b=None,
                    acc=None, acc_scale=None, eps=LN_EPS):
    """Fused pre-LN MLP block with residual: x + fc2(gelu(fc1(LN(x)))).
    If `acc` (running contextual mean, [B,S,D] f32) is given, the final-norm
    accumulation acc += acc_scale * LN_final(out) is fused into the finalize
    step and the updated acc is returned as a second (aliased) output."""
    B, S, D = x.shape
    Mh = w1.shape[1]
    th = _hidden_tile(Mh)
    fuse_acc = acc is not None

    in_specs = [
        pl.BlockSpec((1, S, D), lambda bi, h: (bi, 0, 0)),
        pl.BlockSpec((1, D), lambda bi, h: (0, 0)),
        pl.BlockSpec((1, D), lambda bi, h: (0, 0)),
        pl.BlockSpec((D, th), lambda bi, h: (0, h)),
        pl.BlockSpec((1, th), lambda bi, h: (0, h)),
        pl.BlockSpec((th, D), lambda bi, h: (h, 0)),
        pl.BlockSpec((1, D), lambda bi, h: (0, 0)),
    ]
    args = [x, g.reshape(1, D), b.reshape(1, D), w1, b1.reshape(1, Mh),
            w2, b2.reshape(1, D)]
    if fuse_acc:
        in_specs += [
            pl.BlockSpec((1, D), lambda bi, h: (0, 0)),
            pl.BlockSpec((1, D), lambda bi, h: (0, 0)),
            pl.BlockSpec((1, S, D), lambda bi, h: (bi, 0, 0)),
        ]
        args += [norm_g.reshape(1, D), norm_b.reshape(1, D), acc]
        out_shape = (jax.ShapeDtypeStruct((B, S, D), jnp.float32),
                     jax.ShapeDtypeStruct((B, S, D), jnp.float32))
        out_specs = (pl.BlockSpec((1, S, D), lambda bi, h: (bi, 0, 0)),
                     pl.BlockSpec((1, S, D), lambda bi, h: (bi, 0, 0)))
        io_alias = {9: 1}   # acc input -> acc output (in-place running mean)
    else:
        out_shape = jax.ShapeDtypeStruct((B, S, D), jnp.float32)
        out_specs = pl.BlockSpec((1, S, D), lambda bi, h: (bi, 0, 0))
        io_alias = {}

    return pl.pallas_call(
        functools.partial(_mlp_kernel, eps=eps,
                          acc_scale=acc_scale if fuse_acc else None),
        out_shape=out_shape,
        grid=(B, Mh // th),
        in_specs=in_specs,
        out_specs=out_specs,
        scratch_shapes=[
            pltpu.VMEM((S, D), jnp.bfloat16),   # cached LN(x) (bf16 MXU operand)
            pltpu.VMEM((S, D), jnp.float32),    # f32 accumulator over hidden tiles
        ],
        input_output_aliases=io_alias,
        compiler_params=pltpu.CompilerParams(
            dimension_semantics=("parallel", "arbitrary"),
            # Explicit VMEM budget: headroom under v7x's 64 MiB physical VMEM,
            # above the 16/32 MiB scoped defaults on v5e/v6e.
            vmem_limit_bytes=48 * 1024 * 1024),
    )(*args)


# ------------------------------ model glue -----------------------------------
def init_params(key):
    def w_init(k, shape, scale=0.02):
        # Matmul weights stored bf16 (MXU operand dtype); accumulation stays f32.
        # TODO(synk): when loading a real f32 checkpoint, keep an f32 master and
        # cast at the matmul operand (or validate the bf16 accuracy delta).
        return (scale * jax.random.normal(k, shape, dtype=jnp.float32)).astype(jnp.bfloat16)

    def f32_init(k, shape, scale=0.02):
        return scale * jax.random.normal(k, shape, dtype=jnp.float32)

    keys = iter(jax.random.split(key, 4 + 4 * DEPTH))
    params = {
        # Conv2d(1, D, 16, 16) weight flattened to [C*P*P, D] in (c, kh, kw) order.
        # TODO(synk): when loading the real checkpoint, reshape the PyTorch
        # Conv2d weight [D, C, kh, kw] -> [D, C*P*P] and transpose to match.
        "patch_w": w_init(next(keys), (IN_CHANS * PATCH * PATCH, EMBED_DIM)),
        "patch_b": jnp.zeros((EMBED_DIM,), jnp.float32),
        "cls_token": f32_init(next(keys), (1, 1, EMBED_DIM)),
        "pos_embed": f32_init(next(keys), (1, SEQ, EMBED_DIM)),
        "norm_g": jnp.ones((EMBED_DIM,), jnp.float32),
        "norm_b": jnp.zeros((EMBED_DIM,), jnp.float32),
        "blocks": [],
    }
    for _ in range(DEPTH):
        blk = {
            "ln1_g": jnp.ones((EMBED_DIM,), jnp.float32),
            "ln1_b": jnp.zeros((EMBED_DIM,), jnp.float32),
            "qkv_w": w_init(next(keys), (EMBED_DIM, 3 * EMBED_DIM)),
            "qkv_b": jnp.zeros((3 * EMBED_DIM,), jnp.float32),
            "proj_w": w_init(next(keys), (EMBED_DIM, EMBED_DIM)),
            "proj_b": jnp.zeros((EMBED_DIM,), jnp.float32),
            "ln2_g": jnp.ones((EMBED_DIM,), jnp.float32),
            "ln2_b": jnp.zeros((EMBED_DIM,), jnp.float32),
            "fc1_w": w_init(next(keys), (EMBED_DIM, MLP_DIM)),
            "fc1_b": jnp.zeros((MLP_DIM,), jnp.float32),
            "fc2_w": w_init(next(keys), (MLP_DIM, EMBED_DIM)),
            "fc2_b": jnp.zeros((EMBED_DIM,), jnp.float32),
        }
        params["blocks"].append(blk)
    return params


def audiomae_forward(x, params):
    """x: [B, 1, T, F] mel fbank -> contextual embedding [B, SEQ, D]."""
    B, C, H, W = x.shape
    n_h, n_w, P = H // PATCH, W // PATCH, PATCH
    L = n_h * n_w
    # Patch extraction (Conv2d k=16, s=16 == patchify + matmul).
    patches = x.reshape(B, C, n_h, P, n_w, P)
    patches = patches.transpose(0, 2, 4, 1, 3, 5).reshape(B, L, C * P * P)
    # Patch-embed matmul with "+ pos_embed[:, 1:, :]" fused into the epilogue.
    tok = matmul_bias(patches, params["patch_w"], params["patch_b"],
                      pos=params["pos_embed"][:, 1:, :],
                      out_dtype=jnp.float32)                             # [B, L, D]
    # no_mask path: random_masking(mask_ratio=0) keeps every token in order.
    cls = params["cls_token"] + params["pos_embed"][:, :1, :]
    xf = jnp.concatenate([jnp.broadcast_to(cls, (B, 1, EMBED_DIM)), tok], axis=1)
    S = L + 1

    n_ctx = max(1, sum(1 for n in range(DEPTH) if n > CONTEXTUAL_DEPTH))
    acc = jnp.zeros((B, S, EMBED_DIM), jnp.float32)
    for n, blk in enumerate(params["blocks"]):
        # --- attention: fused LN1+QKV (bf16 out), head split via index_maps,
        #     fused out-proj + residual (residual stream stays f32)
        qkv = ln_matmul(xf, blk["ln1_g"], blk["ln1_b"], blk["qkv_w"], blk["qkv_b"])
        attn_o = attention(qkv, NUM_HEADS, HEAD_DIM, HEADS_PER_GROUP)
        xf = matmul_bias(attn_o, blk["proj_w"], blk["proj_b"], residual=xf,
                         out_dtype=jnp.float32)
        # --- fused pre-LN MLP + residual; contextual-mean final-LN fused into
        #     the finalize step for blocks with n > contextual_depth.
        if n > CONTEXTUAL_DEPTH:
            xf, acc = ln_mlp_residual(
                xf, blk["ln2_g"], blk["ln2_b"],
                blk["fc1_w"], blk["fc1_b"], blk["fc2_w"], blk["fc2_b"],
                norm_g=params["norm_g"], norm_b=params["norm_b"],
                acc=acc, acc_scale=1.0 / n_ctx)
        else:
            xf = ln_mlp_residual(
                xf, blk["ln2_g"], blk["ln2_b"],
                blk["fc1_w"], blk["fc1_b"], blk["fc2_w"], blk["fc2_b"])
    return acc


if __name__ == "__main__":
    key = jax.random.PRNGKey(0)
    k_x, k_p = jax.random.split(key)
    x = jax.random.normal(k_x, (BATCH, IN_CHANS, IMG_T, IMG_F), dtype=jnp.float32)
    params = init_params(k_p)

    forward = jax.jit(audiomae_forward)
    out = forward(x, params)
    out = jax.block_until_ready(out)
    assert out.shape == (BATCH, SEQ, EMBED_DIM), out.shape
    assert bool(jnp.all(jnp.isfinite(out)))
    print("KERNEL_OK")
</pallas_src>

<mosaic_0001>
module attributes {stable_mosaic.version = 11 : i64} {
  func.func @_matmul_kernel(%arg0: i32, %arg1: i32, %arg2: memref<1x8x256xf32, #tpu.memory_space<vmem>>, %arg3: memref<256x128xbf16, #tpu.memory_space<vmem>>, %arg4: memref<1x128xf32, #tpu.memory_space<vmem>>, %arg5: memref<1x8x128xf32, #tpu.memory_space<vmem>>, %arg6: memref<1x8x128xf32, #tpu.memory_space<vmem>>) attributes {dimension_semantics = [#tpu.dimension_semantics<parallel>, #tpu.dimension_semantics<parallel>], iteration_bounds = array<i64: 2, 1>, scalar_prefetch = 0 : i64, scratch_operands = 0 : i64, tpu.core_type = #tpu.core_type<tc>, window_params = [{transform_indices = @transform_0, window_bounds = array<i64: 1, 8, 256>}, {transform_indices = @transform_1, window_bounds = array<i64: 256, 128>}, {transform_indices = @transform_2, window_bounds = array<i64: 1, 128>}, {transform_indices = @transform_3, window_bounds = array<i64: 1, 8, 128>}, {transform_indices = @transform_4, window_bounds = array<i64: 1, 8, 128>}]} {
    %c0 = arith.constant 0 : index
    %c0_0 = arith.constant 0 : index
    %c0_1 = arith.constant 0 : index
    %0 = vector.load %arg2[%c0, %c0_0, %c0_1] : memref<1x8x256xf32, #tpu.memory_space<vmem>>, vector<1x8x256xf32>
    %1 = vector.shape_cast %0 : vector<1x8x256xf32> to vector<8x256xf32>
    %2 = arith.truncf %1 : vector<8x256xf32> to vector<8x256xbf16>
    %c0_2 = arith.constant 0 : index
    %c0_3 = arith.constant 0 : index
    %3 = vector.load %arg3[%c0_2, %c0_3] : memref<256x128xbf16, #tpu.memory_space<vmem>>, vector<256x128xbf16>
    %cst = arith.constant dense<0.000000e+00> : vector<8x128xf32>
    %4 = tpu.matmul %2, %3, %cst {dimension_numbers = #tpu.dot_dimension_numbers<[1], [0], [0], [1], [0, 0, 1, 1], [], []>} : vector<8x256xbf16>, vector<256x128xbf16>, vector<8x128xf32> -> vector<8x128xf32>
    %c0_4 = arith.constant 0 : index
    %c0_5 = arith.constant 0 : index
    %5 = vector.load %arg4[%c0_4, %c0_5] : memref<1x128xf32, #tpu.memory_space<vmem>>, vector<1x128xf32>
    %6 = vector.broadcast %5 : vector<1x128xf32> to vector<8x128xf32>
    %7 = arith.addf %4, %6 : vector<8x128xf32>
    %c0_6 = arith.constant 0 : index
    %c0_7 = arith.constant 0 : index
    %c0_8 = arith.constant 0 : index
    %8 = vector.load %arg5[%c0_6, %c0_7, %c0_8] : memref<1x8x128xf32, #tpu.memory_space<vmem>>, vector<1x8x128xf32>
    %9 = vector.shape_cast %8 : vector<1x8x128xf32> to vector<8x128xf32>
    %10 = arith.addf %7, %9 : vector<8x128xf32>
    %c0_9 = arith.constant 0 : index
    %c0_10 = arith.constant 0 : index
    %c0_11 = arith.constant 0 : index
    %11 = vector.load %arg6[%c0_9, %c0_10, %c0_11] : memref<1x8x128xf32, #tpu.memory_space<vmem>>, vector<1x8x128xf32>
    %12 = vector.shape_cast %11 : vector<1x8x128xf32> to vector<8x128xf32>
    %13 = vector.shape_cast %10 : vector<8x128xf32> to vector<1x8x128xf32>
    tpu.vector_store %arg6[%c0_9, %c0_10, %c0_11], %13 {strides = array<i32>} : memref<1x8x128xf32, #tpu.memory_space<vmem>>, vector<1x8x128xf32>,
    return
  }
  func.func @transform_0(%arg0: i32, %arg1: i32) -> (i32, i32, i32) {
    %c0_i32 = arith.constant 0 : i32
    %c0_i32_0 = arith.constant 0 : i32
    %c0_i32_1 = arith.constant 0 : i32
    return %arg0, %c0_i32, %c0_i32_0 : i32, i32, i32
  }
  func.func @transform_1(%arg0: i32, %arg1: i32) -> (i32, i32) {
    %c0_i32 = arith.constant 0 : i32
    %c0_i32_0 = arith.constant 0 : i32
    return %c0_i32, %arg1 : i32, i32
  }
  func.func @transform_2(%arg0: i32, %arg1: i32) -> (i32, i32) {
    %c0_i32 = arith.constant 0 : i32
    %c0_i32_0 = arith.constant 0 : i32
    return %c0_i32, %arg1 : i32, i32
  }
  func.func @transform_3(%arg0: i32, %arg1: i32) -> (i32, i32, i32) {
    %c0_i32 = arith.constant 0 : i32
    %c0_i32_0 = arith.constant 0 : i32
    %c0_i32_1 = arith.constant 0 : i32
    return %c0_i32, %c0_i32_0, %arg1 : i32, i32, i32
  }
  func.func @transform_4(%arg0: i32, %arg1: i32) -> (i32, i32, i32) {
    %c0_i32 = arith.constant 0 : i32
    %c0_i32_0 = arith.constant 0 : i32
    return %arg0, %c0_i32, %arg1 : i32, i32, i32
  }
}

module attributes {stable_mosaic.version = 11 : i64} {
  func.func @_attn_kernel(%arg0: i32, %arg1: i32, %arg2: memref<1x9x128xbf16, #tpu.memory_space<vmem>>, %arg3: memref<1x9x128xbf16, #tpu.memory_space<vmem>>, %arg4: memref<1x9x128xbf16, #tpu.memory_space<vmem>>, %arg5: memref<1x9x128xbf16, #tpu.memory_space<vmem>>) attributes {dimension_semantics = [#tpu.dimension_semantics<parallel>, #tpu.dimension_semantics<parallel>], iteration_bounds = array<i64: 2, 1>, scalar_prefetch = 0 : i64, scratch_operands = 0 : i64, tpu.core_type = #tpu.core_type<tc>, window_params = [{transform_indices = @transform_0, window_bounds = array<i64: 1, 9, 128>}, {transform_indices = @transform_1, window_bounds = array<i64: 1, 9, 128>}, {transform_indices = @transform_2, window_bounds = array<i64: 1, 9, 128>}, {transform_indices = @transform_3, window_bounds = array<i64: 1, 9, 128>}]} {
    %c0 = arith.constant 0 : index
    %c0_0 = arith.constant 0 : index
    %c0_1 = arith.constant 0 : index
    %0 = vector.load %arg2[%c0, %c0_0, %c0_1] : memref<1x9x128xbf16, #tpu.memory_space<vmem>>, vector<1x9x128xbf16>
    %1 = vector.shape_cast %0 : vector<1x9x128xbf16> to vector<9x128xbf16>
    %c0_2 = arith.constant 0 : index
    %c0_3 = arith.constant 0 : index
    %c0_4 = arith.constant 0 : index
    %2 = vector.load %arg3[%c0_2, %c0_3, %c0_4] : memref<1x9x128xbf16, #tpu.memory_space<vmem>>, vector<1x9x128xbf16>
    %3 = vector.shape_cast %2 : vector<1x9x128xbf16> to vector<9x128xbf16>
    %c0_5 = arith.constant 0 : index
    %c0_6 = arith.constant 0 : index
    %c0_7 = arith.constant 0 : index
    %4 = vector.load %arg4[%c0_5, %c0_6, %c0_7] : memref<1x9x128xbf16, #tpu.memory_space<vmem>>, vector<1x9x128xbf16>
    %5 = vector.shape_cast %4 : vector<1x9x128xbf16> to vector<9x128xbf16>
    %6 = vector.extract_strided_slice %1 {offsets = [0, 0], sizes = [9, 64], strides = [1, 1]} : vector<9x128xbf16> to vector<9x64xbf16>
    %cst = arith.constant 1.250000e-01 : bf16
    %7 = vector.broadcast %cst : bf16 to vector<9x64xbf16>
    %8 = arith.mulf %6, %7 : vector<9x64xbf16>
    %9 = vector.extract_strided_slice %3 {offsets = [0, 0], sizes = [9, 64], strides = [1, 1]} : vector<9x128xbf16> to vector<9x64xbf16>
    %10 = vector.extract_strided_slice %5 {offsets = [0, 0], sizes = [9, 64], strides = [1, 1]} : vector<9x128xbf16> to vector<9x64xbf16>
    %cst_8 = arith.constant dense<0.000000e+00> : vector<9x9xf32>
    %11 = tpu.matmul %8, %9, %cst_8 {dimension_numbers = #tpu.dot_dimension_numbers<[1], [1], [0], [0], [0, 0, 1, 0], [], []>} : vector<9x64xbf16>, vector<9x64xbf16>, vector<9x9xf32> -> vector<9x9xf32>
    %cst_9 = arith.constant dense<0xFF800000> : vector<9xf32>
    %12 = vector.multi_reduction <maximumf>, %11, %cst_9 [1] : vector<9x9xf32> to vector<9xf32>
    %13 = vector.shape_cast %12 : vector<9xf32> to vector<9x1xf32>
    %14 = vector.broadcast %13 : vector<9x1xf32> to vector<9x9xf32>
    %15 = arith.subf %11, %14 : vector<9x9xf32>
    %16 = math.exp %15 : vector<9x9xf32>
    %17 = arith.truncf %16 : vector<9x9xf32> to vector<9x9xbf16>
    %cst_10 = arith.constant dense<0.000000e+00> : vector<9x64xf32>
    %18 = tpu.matmul %17, %10, %cst_10 {dimension_numbers = #tpu.dot_dimension_numbers<[1], [0], [0], [1], [0, 0, 1, 1], [], []>} : vector<9x9xbf16>, vector<9x64xbf16>, vector<9x64xf32> -> vector<9x64xf32>
    %cst_11 = arith.constant dense<0.000000e+00> : vector<9xf32>
    %19 = vector.multi_reduction <add>, %16, %cst_11 [1] : vector<9x9xf32> to vector<9xf32>
    %20 = vector.shape_cast %19 : vector<9xf32> to vector<9x1xf32>
    %21 = tpu.reciprocal %20 : vector<9x1xf32> -> vector<9x1xf32>
    %22 = vector.broadcast %21 : vector<9x1xf32> to vector<9x64xf32>
    %23 = arith.mulf %18, %22 : vector<9x64xf32>
    %24 = arith.truncf %23 : vector<9x64xf32> to vector<9x64xbf16>
    %c0_12 = arith.constant 0 : index
    %c0_13 = arith.constant 0 : index
    %c0_14 = arith.constant 0 : index
    %25 = vector.load %arg5[%c0_12, %c0_13, %c0_14] : memref<1x9x128xbf16, #tpu.memory_space<vmem>>, vector<1x9x64xbf16>
    %26 = vector.shape_cast %25 : vector<1x9x64xbf16> to vector<9x64xbf16>
    %27 = vector.shape_cast %24 : vector<9x64xbf16> to vector<1x9x64xbf16>
    tpu.vector_store %arg5[%c0_12, %c0_13, %c0_14], %27 {strides = array<i32>} : memref<1x9x128xbf16, #tpu.memory_space<vmem>>, vector<1x9x64xbf16>,
    %28 = vector.extract_strided_slice %1 {offsets = [0, 64], sizes = [9, 64], strides = [1, 1]} : vector<9x128xbf16> to vector<9x64xbf16>
    %cst_15 = arith.constant 1.250000e-01 : bf16
    %29 = vector.broadcast %cst_15 : bf16 to vector<9x64xbf16>
    %30 = arith.mulf %28, %29 : vector<9x64xbf16>
    %31 = vector.extract_strided_slice %3 {offsets = [0, 64], sizes = [9, 64], strides = [1, 1]} : vector<9x128xbf16> to vector<9x64xbf16>
    %32 = vector.extract_strided_slice %5 {offsets = [0, 64], sizes = [9, 64], strides = [1, 1]} : vector<9x128xbf16> to vector<9x64xbf16>
    %cst_16 = arith.constant dense<0.000000e+00> : vector<9x9xf32>
    %33 = tpu.matmul %30, %31, %cst_16 {dimension_numbers = #tpu.dot_dimension_numbers<[1], [1], [0], [0], [0, 0, 1, 0], [], []>} : vector<9x64xbf16>, vector<9x64xbf16>, vector<9x9xf32> -> vector<9x9xf32>
    %cst_17 = arith.constant dense<0xFF800000> : vector<9xf32>
    %34 = vector.multi_reduction <maximumf>, %33, %cst_17 [1] : vector<9x9xf32> to vector<9xf32>
    %35 = vector.shape_cast %34 : vector<9xf32> to vector<9x1xf32>
    %36 = vector.broadcast %35 : vector<9x1xf32> to vector<9x9xf32>
    %37 = arith.subf %33, %36 : vector<9x9xf32>
    %38 = math.exp %37 : vector<9x9xf32>
    %39 = arith.truncf %38 : vector<9x9xf32> to vector<9x9xbf16>
    %cst_18 = arith.constant dense<0.000000e+00> : vector<9x64xf32>
    %40 = tpu.matmul %39, %32, %cst_18 {dimension_numbers = #tpu.dot_dimension_numbers<[1], [0], [0], [1], [0, 0, 1, 1], [], []>} : vector<9x9xbf16>, vector<9x64xbf16>, vector<9x64xf32> -> vector<9x64xf32>
    %cst_19 = arith.constant dense<0.000000e+00> : vector<9xf32>
    %41 = vector.multi_reduction <add>, %38, %cst_19 [1] : vector<9x9xf32> to vector<9xf32>
    %42 = vector.shape_cast %41 : vector<9xf32> to vector<9x1xf32>
    %43 = tpu.reciprocal %42 : vector<9x1xf32> -> vector<9x1xf32>
    %44 = vector.broadcast %43 : vector<9x1xf32> to vector<9x64xf32>
    %45 = arith.mulf %40, %44 : vector<9x64xf32>
    %46 = arith.truncf %45 : vector<9x64xf32> to vector<9x64xbf16>
    %c0_20 = arith.constant 0 : index
    %c0_21 = arith.constant 0 : index
    %c64 = arith.constant 64 : index
    %47 = vector.load %arg5[%c0_20, %c0_21, %c64] : memref<1x9x128xbf16, #tpu.memory_space<vmem>>, vector<1x9x64xbf16>
    %48 = vector.shape_cast %47 : vector<1x9x64xbf16> to vector<9x64xbf16>
    %49 = vector.shape_cast %46 : vector<9x64xbf16> to vector<1x9x64xbf16>
    tpu.vector_store %arg5[%c0_20, %c0_21, %c64], %49 {strides = array<i32>} : memref<1x9x128xbf16, #tpu.memory_space<vmem>>, vector<1x9x64xbf16>,
    return
  }
  func.func @transform_0(%arg0: i32, %arg1: i32) -> (i32, i32, i32) {
    %c0_i32 = arith.constant 0 : i32
    %c0_i32_0 = arith.constant 0 : i32
    return %arg0, %c0_i32, %arg1 : i32, i32, i32
  }
  func.func @transform_1(%arg0: i32, %arg1: i32) -> (i32, i32, i32) {
    %c1_i32 = arith.constant 1 : i32
    %0 = arith.addi %c1_i32, %arg1 : i32
    %c0_i32 = arith.constant 0 : i32
    %c0_i32_0 = arith.constant 0 : i32
    return %arg0, %c0_i32, %0 : i32, i32, i32
  }
  func.func @transform_2(%arg0: i32, %arg1: i32) -> (i32, i32, i32) {
    %c2_i32 = arith.constant 2 : i32
    %0 = arith.addi %c2_i32, %arg1 : i32
    %c0_i32 = arith.constant 0 : i32
    %c0_i32_0 = arith.constant 0 : i32
    return %arg0, %c0_i32, %0 : i32, i32, i32
  }
  func.func @transform_3(%arg0: i32, %arg1: i32) -> (i32, i32, i32) {
    %c0_i32 = arith.constant 0 : i32
    %c0_i32_0 = arith.constant 0 : i32
    return %arg0, %c0_i32, %arg1 : i32, i32, i32
  }
}

module attributes {stable_mosaic.version = 11 : i64} {
  func.func @_matmul_kernel(%arg0: i32, %arg1: i32, %arg2: memref<1x9x128xbf16, #tpu.memory_space<vmem>>, %arg3: memref<128x128xbf16, #tpu.memory_space<vmem>>, %arg4: memref<1x128xf32, #tpu.memory_space<vmem>>, %arg5: memref<1x9x128xf32, #tpu.memory_space<vmem>>, %arg6: memref<1x9x128xf32, #tpu.memory_space<vmem>>) attributes {dimension_semantics = [#tpu.dimension_semantics<parallel>, #tpu.dimension_semantics<parallel>], iteration_bounds = array<i64: 2, 1>, scalar_prefetch = 0 : i64, scratch_operands = 0 : i64, tpu.core_type = #tpu.core_type<tc>, window_params = [{transform_indices = @transform_0, window_bounds = array<i64: 1, 9, 128>}, {transform_indices = @transform_1, window_bounds = array<i64: 128, 128>}, {transform_indices = @transform_2, window_bounds = array<i64: 1, 128>}, {transform_indices = @transform_3, window_bounds = array<i64: 1, 9, 128>}, {transform_indices = @transform_4, window_bounds = array<i64: 1, 9, 128>}]} {
    %c0 = arith.constant 0 : index
    %c0_0 = arith.constant 0 : index
    %c0_1 = arith.constant 0 : index
    %0 = vector.load %arg2[%c0, %c0_0, %c0_1] : memref<1x9x128xbf16, #tpu.memory_space<vmem>>, vector<1x9x128xbf16>
    %1 = vector.shape_cast %0 : vector<1x9x128xbf16> to vector<9x128xbf16>
    %c0_2 = arith.constant 0 : index
    %c0_3 = arith.constant 0 : index
    %2 = vector.load %arg3[%c0_2, %c0_3] : memref<128x128xbf16, #tpu.memory_space<vmem>>, vector<128x128xbf16>
    %cst = arith.constant dense<0.000000e+00> : vector<9x128xf32>
    %3 = tpu.matmul %1, %2, %cst {dimension_numbers = #tpu.dot_dimension_numbers<[1], [0], [0], [1], [0, 0, 1, 1], [], []>} : vector<9x128xbf16>, vector<128x128xbf16>, vector<9x128xf32> -> vector<9x128xf32>
    %c0_4 = arith.constant 0 : index
    %c0_5 = arith.constant 0 : index
    %4 = vector.load %arg4[%c0_4, %c0_5] : memref<1x128xf32, #tpu.memory_space<vmem>>, vector<1x128xf32>
    %5 = vector.broadcast %4 : vector<1x128xf32> to vector<9x128xf32>
    %6 = arith.addf %3, %5 : vector<9x128xf32>
    %c0_6 = arith.constant 0 : index
    %c0_7 = arith.constant 0 : index
    %c0_8 = arith.constant 0 : index
    %7 = vector.load %arg5[%c0_6, %c0_7, %c0_8] : memref<1x9x128xf32, #tpu.memory_space<vmem>>, vector<1x9x128xf32>
    %8 = vector.shape_cast %7 : vector<1x9x128xf32> to vector<9x128xf32>
    %9 = arith.addf %6, %8 : vector<9x128xf32>
    %c0_9 = arith.constant 0 : index
    %c0_10 = arith.constant 0 : index
    %c0_11 = arith.constant 0 : index
    %10 = vector.load %arg6[%c0_9, %c0_10, %c0_11] : memref<1x9x128xf32, #tpu.memory_space<vmem>>, vector<1x9x128xf32>
    %11 = vector.shape_cast %10 : vector<1x9x128xf32> to vector<9x128xf32>
    %12 = vector.shape_cast %9 : vector<9x128xf32> to vector<1x9x128xf32>
    tpu.vector_store %arg6[%c0_9, %c0_10, %c0_11], %12 {strides = array<i32>} : memref<1x9x128xf32, #tpu.memory_space<vmem>>, vector<1x9x128xf32>,
    return
  }
  func.func @transform_0(%arg0: i32, %arg1: i32) -> (i32, i32, i32) {
    %c0_i32 = arith.constant 0 : i32
    %c0_i32_0 = arith.constant 0 : i32
    %c0_i32_1 = arith.constant 0 : i32
    return %arg0, %c0_i32, %c0_i32_0 : i32, i32, i32
  }
  func.func @transform_1(%arg0: i32, %arg1: i32) -> (i32, i32) {
    %c0_i32 = arith.constant 0 : i32
    %c0_i32_0 = arith.constant 0 : i32
    return %c0_i32, %arg1 : i32, i32
  }
  func.func @transform_2(%arg0: i32, %arg1: i32) -> (i32, i32) {
    %c0_i32 = arith.constant 0 : i32
    %c0_i32_0 = arith.constant 0 : i32
    return %c0_i32, %arg1 : i32, i32
  }
  func.func @transform_3(%arg0: i32, %arg1: i32) -> (i32, i32, i32) {
    %c0_i32 = arith.constant 0 : i32
    %c0_i32_0 = arith.constant 0 : i32
    return %arg0, %c0_i32, %arg1 : i32, i32, i32
  }
  func.func @transform_4(%arg0: i32, %arg1: i32) -> (i32, i32, i32) {
    %c0_i32 = arith.constant 0 : i32
    %c0_i32_0 = arith.constant 0 : i32
    return %arg0, %c0_i32, %arg1 : i32, i32, i32
  }
}

module attributes {stable_mosaic.version = 11 : i64} {
  func.func @_ln_matmul_kernel(%arg0: i32, %arg1: i32, %arg2: memref<1x9x128xf32, #tpu.memory_space<vmem>>, %arg3: memref<1x128xf32, #tpu.memory_space<vmem>>, %arg4: memref<1x128xf32, #tpu.memory_space<vmem>>, %arg5: memref<128x384xbf16, #tpu.memory_space<vmem>>, %arg6: memref<1x384xf32, #tpu.memory_space<vmem>>, %arg7: memref<1x9x384xbf16, #tpu.memory_space<vmem>>, %arg8: memref<9x128xbf16, #tpu.memory_space<vmem>>) attributes {dimension_semantics = [#tpu.dimension_semantics<parallel>, #tpu.dimension_semantics<arbitrary>], iteration_bounds = array<i64: 2, 1>, scalar_prefetch = 0 : i64, scratch_operands = 1 : i64, tpu.core_type = #tpu.core_type<tc>, window_params = [{transform_indices = @transform_0, window_bounds = array<i64: 1, 9, 128>}, {pipeline_mode = #tpu.pipeline_mode<synchronous>, transform_indices = @transform_1, window_bounds = array<i64: 1, 128>}, {pipeline_mode = #tpu.pipeline_mode<synchronous>, transform_indices = @transform_2, window_bounds = array<i64: 1, 128>}, {transform_indices = @transform_3, window_bounds = array<i64: 128, 384>}, {transform_indices = @transform_4, window_bounds = array<i64: 1, 384>}, {transform_indices = @transform_5, window_bounds = array<i64: 1, 9, 384>}]} {
    %c0_i32 = arith.constant 0 : i32
    %0 = arith.cmpi eq, %arg1, %c0_i32 : i32
    %1 = arith.extui %0 : i1 to i32
    %c0_i32_0 = arith.constant 0 : i32
    %2 = arith.cmpi ne, %1, %c0_i32_0 : i32
    scf.if %2 {
      %c0_9 = arith.constant 0 : index
      %c0_10 = arith.constant 0 : index
      %c0_11 = arith.constant 0 : index
      %13 = vector.load %arg2[%c0_9, %c0_10, %c0_11] : memref<1x9x128xf32, #tpu.memory_space<vmem>>, vector<1x9x128xf32>
      %14 = vector.shape_cast %13 : vector<1x9x128xf32> to vector<9x128xf32>
      %c0_12 = arith.constant 0 : index
      %c0_13 = arith.constant 0 : index
      %15 = vector.load %arg3[%c0_12, %c0_13] : memref<1x128xf32, #tpu.memory_space<vmem>>, vector<1x128xf32>
      %c0_14 = arith.constant 0 : index
      %c0_15 = arith.constant 0 : index
      %16 = vector.load %arg4[%c0_14, %c0_15] : memref<1x128xf32, #tpu.memory_space<vmem>>, vector<1x128xf32>
      %cst_16 = arith.constant dense<0.000000e+00> : vector<9xf32>
      %17 = vector.multi_reduction <add>, %14, %cst_16 [1] : vector<9x128xf32> to vector<9xf32>
      %18 = vector.shape_cast %17 : vector<9xf32> to vector<9x1xf32>
      %cst_17 = arith.constant 1.280000e+02 : f32
      %19 = vector.broadcast %cst_17 : f32 to vector<9x1xf32>
      %20 = arith.divf %18, %19 : vector<9x1xf32>
      %21 = vector.broadcast %20 : vector<9x1xf32> to vector<9x128xf32>
      %22 = arith.subf %14, %21 : vector<9x128xf32>
      %23 = arith.mulf %22, %22 : vector<9x128xf32>
      %cst_18 = arith.constant dense<0.000000e+00> : vector<9xf32>
      %24 = vector.multi_reduction <add>, %23, %cst_18 [1] : vector<9x128xf32> to vector<9xf32>
      %25 = vector.shape_cast %24 : vector<9xf32> to vector<9x1xf32>
      %cst_19 = arith.constant 1.280000e+02 : f32
      %26 = vector.broadcast %cst_19 : f32 to vector<9x1xf32>
      %27 = arith.divf %25, %26 : vector<9x1xf32>
      %cst_20 = arith.constant 9.99999997E-7 : f32
      %28 = vector.broadcast %cst_20 : f32 to vector<9x1xf32>
      %29 = arith.addf %27, %28 : vector<9x1xf32>
      %30 = math.rsqrt %29 : vector<9x1xf32>
      %31 = vector.broadcast %30 : vector<9x1xf32> to vector<9x128xf32>
      %32 = arith.mulf %22, %31 : vector<9x128xf32>
      %33 = vector.broadcast %15 : vector<1x128xf32> to vector<9x128xf32>
      %34 = arith.mulf %32, %33 : vector<9x128xf32>
      %35 = vector.broadcast %16 : vector<1x128xf32> to vector<9x128xf32>
      %36 = arith.addf %34, %35 : vector<9x128xf32>
      %37 = arith.truncf %36 : vector<9x128xf32> to vector<9x128xbf16>
      %c0_21 = arith.constant 0 : index
      %c0_22 = arith.constant 0 : index
      %38 = vector.load %arg8[%c0_21, %c0_22] : memref<9x128xbf16, #tpu.memory_space<vmem>>, vector<9x128xbf16>
      tpu.vector_store %arg8[%c0_21, %c0_22], %37 {strides = array<i32>} : memref<9x128xbf16, #tpu.memory_space<vmem>>, vector<9x128xbf16>,
    } else {
    }
    %c0 = arith.constant 0 : index
    %c0_1 = arith.constant 0 : index
    %3 = vector.load %arg8[%c0, %c0_1] : memref<9x128xbf16, #tpu.memory_space<vmem>>, vector<9x128xbf16>
    %c0_2 = arith.constant 0 : index
    %c0_3 = arith.constant 0 : index
    %4 = vector.load %arg5[%c0_2, %c0_3] : memref<128x384xbf16, #tpu.memory_space<vmem>>, vector<128x384xbf16>
    %cst = arith.constant dense<0.000000e+00> : vector<9x384xf32>
    %5 = tpu.matmul %3, %4, %cst {dimension_numbers = #tpu.dot_dimension_numbers<[1], [0], [0], [1], [0, 0, 1, 1], [], []>} : vector<9x128xbf16>, vector<128x384xbf16>, vector<9x384xf32> -> vector<9x384xf32>
    %c0_4 = arith.constant 0 : index
    %c0_5 = arith.constant 0 : index
    %6 = vector.load %arg6[%c0_4, %c0_5] : memref<1x384xf32, #tpu.memory_space<vmem>>, vector<1x384xf32>
    %7 = vector.broadcast %6 : vector<1x384xf32> to vector<9x384xf32>
    %8 = arith.addf %5, %7 : vector<9x384xf32>
    %9 = arith.truncf %8 : vector<9x384xf32> to vector<9x384xbf16>
    %c0_6 = arith.constant 0 : index
    %c0_7 = arith.constant 0 : index
    %c0_8 = arith.constant 0 : index
    %10 = vector.load %arg7[%c0_6, %c0_7, %c0_8] : memref<1x9x384xbf16, #tpu.memory_space<vmem>>, vector<1x9x384xbf16>
    %11 = vector.shape_cast %10 : vector<1x9x384xbf16> to vector<9x384xbf16>
    %12 = vector.shape_cast %9 : vector<9x384xbf16> to vector<1x9x384xbf16>
    tpu.vector_store %arg7[%c0_6, %c0_7, %c0_8], %12 {strides = array<i32>} : memref<1x9x384xbf16, #tpu.memory_space<vmem>>, vector<1x9x384xbf16>,
    return
  }
  func.func @transform_0(%arg0: i32, %arg1: i32) -> (i32, i32, i32) {
    %c0_i32 = arith.constant 0 : i32
    %c0_i32_0 = arith.constant 0 : i32
    %c0_i32_1 = arith.constant 0 : i32
    return %arg0, %c0_i32, %c0_i32_0 : i32, i32, i32
  }
  func.func @transform_1(%arg0: i32, %arg1: i32) -> (i32, i32) {
    %c0_i32 = arith.constant 0 : i32
    %c0_i32_0 = arith.constant 0 : i32
    %c0_i32_1 = arith.constant 0 : i32
    return %c0_i32, %c0_i32_0 : i32, i32
  }
  func.func @transform_2(%arg0: i32, %arg1: i32) -> (i32, i32) {
    %c0_i32 = arith.constant 0 : i32
    %c0_i32_0 = arith.constant 0 : i32
    %c0_i32_1 = arith.constant 0 : i32
    return %c0_i32, %c0_i32_0 : i32, i32
  }
  func.func @transform_3(%arg0: i32, %arg1: i32) -> (i32, i32) {
    %c0_i32 = arith.constant 0 : i32
    %c0_i32_0 = arith.constant 0 : i32
    return %c0_i32, %arg1 : i32, i32
  }
  func.func @transform_4(%arg0: i32, %arg1: i32) -> (i32, i32) {
    %c0_i32 = arith.constant 0 : i32
    %c0_i32_0 = arith.constant 0 : i32
    return %c0_i32, %arg1 : i32, i32
  }
  func.func @transform_5(%arg0: i32, %arg1: i32) -> (i32, i32, i32) {
    %c0_i32 = arith.constant 0 : i32
    %c0_i32_0 = arith.constant 0 : i32
    return %arg0, %c0_i32, %arg1 : i32, i32, i32
  }
}

module attributes {stable_mosaic.version = 11 : i64} {
  func.func @_mlp_kernel(%arg0: i32, %arg1: i32, %arg2: memref<1x9x128xf32, #tpu.memory_space<vmem>>, %arg3: memref<1x128xf32, #tpu.memory_space<vmem>>, %arg4: memref<1x128xf32, #tpu.memory_space<vmem>>, %arg5: memref<128x512xbf16, #tpu.memory_space<vmem>>, %arg6: memref<1x512xf32, #tpu.memory_space<vmem>>, %arg7: memref<512x128xbf16, #tpu.memory_space<vmem>>, %arg8: memref<1x128xf32, #tpu.memory_space<vmem>>, %arg9: memref<1x9x128xf32, #tpu.memory_space<vmem>>, %arg10: memref<9x128xbf16, #tpu.memory_space<vmem>>, %arg11: memref<9x128xf32, #tpu.memory_space<vmem>>) attributes {dimension_semantics = [#tpu.dimension_semantics<parallel>, #tpu.dimension_semantics<arbitrary>], iteration_bounds = array<i64: 2, 1>, scalar_prefetch = 0 : i64, scratch_operands = 2 : i64, tpu.core_type = #tpu.core_type<tc>, window_params = [{transform_indices = @transform_0, window_bounds = array<i64: 1, 9, 128>}, {pipeline_mode = #tpu.pipeline_mode<synchronous>, transform_indices = @transform_1, window_bounds = array<i64: 1, 128>}, {pipeline_mode = #tpu.pipeline_mode<synchronous>, transform_indices = @transform_2, window_bounds = array<i64: 1, 128>}, {transform_indices = @transform_3, window_bounds = array<i64: 128, 512>}, {transform_indices = @transform_4, window_bounds = array<i64: 1, 512>}, {transform_indices = @transform_5, window_bounds = array<i64: 512, 128>}, {pipeline_mode = #tpu.pipeline_mode<synchronous>, transform_indices = @transform_6, window_bounds = array<i64: 1, 128>}, {transform_indices = @transform_7, window_bounds = array<i64: 1, 9, 128>}]} {
    %c0_i32 = arith.constant 0 : i32
    %0 = arith.cmpi eq, %arg1, %c0_i32 : i32
    %1 = arith.extui %0 : i1 to i32
    %c0_i32_0 = arith.constant 0 : i32
    %2 = arith.cmpi ne, %1, %c0_i32_0 : i32
    scf.if %2 {
      %c0_19 = arith.constant 0 : index
      %c0_20 = arith.constant 0 : index
      %c0_21 = arith.constant 0 : index
      %31 = vector.load %arg2[%c0_19, %c0_20, %c0_21] : memref<1x9x128xf32, #tpu.memory_space<vmem>>, vector<1x9x128xf32>
      %32 = vector.shape_cast %31 : vector<1x9x128xf32> to vector<9x128xf32>
      %c0_22 = arith.constant 0 : index
      %c0_23 = arith.constant 0 : index
      %33 = vector.load %arg3[%c0_22, %c0_23] : memref<1x128xf32, #tpu.memory_space<vmem>>, vector<1x128xf32>
      %c0_24 = arith.constant 0 : index
      %c0_25 = arith.constant 0 : index
      %34 = vector.load %arg4[%c0_24, %c0_25] : memref<1x128xf32, #tpu.memory_space<vmem>>, vector<1x128xf32>
      %cst_26 = arith.constant dense<0.000000e+00> : vector<9xf32>
      %35 = vector.multi_reduction <add>, %32, %cst_26 [1] : vector<9x128xf32> to vector<9xf32>
      %36 = vector.shape_cast %35 : vector<9xf32> to vector<9x1xf32>
      %cst_27 = arith.constant 1.280000e+02 : f32
      %37 = vector.broadcast %cst_27 : f32 to vector<9x1xf32>
      %38 = arith.divf %36, %37 : vector<9x1xf32>
      %39 = vector.broadcast %38 : vector<9x1xf32> to vector<9x128xf32>
      %40 = arith.subf %32, %39 : vector<9x128xf32>
      %41 = arith.mulf %40, %40 : vector<9x128xf32>
      %cst_28 = arith.constant dense<0.000000e+00> : vector<9xf32>
      %42 = vector.multi_reduction <add>, %41, %cst_28 [1] : vector<9x128xf32> to vector<9xf32>
      %43 = vector.shape_cast %42 : vector<9xf32> to vector<9x1xf32>
      %cst_29 = arith.constant 1.280000e+02 : f32
      %44 = vector.broadcast %cst_29 : f32 to vector<9x1xf32>
      %45 = arith.divf %43, %44 : vector<9x1xf32>
      %cst_30 = arith.constant 9.99999997E-7 : f32
      %46 = vector.broadcast %cst_30 : f32 to vector<9x1xf32>
      %47 = arith.addf %45, %46 : vector<9x1xf32>
      %48 = math.rsqrt %47 : vector<9x1xf32>
      %49 = vector.broadcast %48 : vector<9x1xf32> to vector<9x128xf32>
      %50 = arith.mulf %40, %49 : vector<9x128xf32>
      %51 = vector.broadcast %33 : vector<1x128xf32> to vector<9x128xf32>
      %52 = arith.mulf %50, %51 : vector<9x128xf32>
      %53 = vector.broadcast %34 : vector<1x128xf32> to vector<9x128xf32>
      %54 = arith.addf %52, %53 : vector<9x128xf32>
      %55 = arith.truncf %54 : vector<9x128xf32> to vector<9x128xbf16>
      %c0_31 = arith.constant 0 : index
      %c0_32 = arith.constant 0 : index
      %56 = vector.load %arg10[%c0_31, %c0_32] : memref<9x128xbf16, #tpu.memory_space<vmem>>, vector<9x128xbf16>
      tpu.vector_store %arg10[%c0_31, %c0_32], %55 {strides = array<i32>} : memref<9x128xbf16, #tpu.memory_space<vmem>>, vector<9x128xbf16>,
      %cst_33 = arith.constant 0.000000e+00 : f32
      %57 = vector.broadcast %cst_33 : f32 to vector<9x128xf32>
      %c0_34 = arith.constant 0 : index
      %c0_35 = arith.constant 0 : index
      %58 = vector.load %arg11[%c0_34, %c0_35] : memref<9x128xf32, #tpu.memory_space<vmem>>, vector<9x128xf32>
      tpu.vector_store %arg11[%c0_34, %c0_35], %57 {strides = array<i32>} : memref<9x128xf32, #tpu.memory_space<vmem>>, vector<9x128xf32>,
    } else {
    }
    %c0 = arith.constant 0 : index
    %c0_1 = arith.constant 0 : index
    %3 = vector.load %arg10[%c0, %c0_1] : memref<9x128xbf16, #tpu.memory_space<vmem>>, vector<9x128xbf16>
    %c0_2 = arith.constant 0 : index
    %c0_3 = arith.constant 0 : index
    %4 = vector.load %arg5[%c0_2, %c0_3] : memref<128x512xbf16, #tpu.memory_space<vmem>>, vector<128x512xbf16>
    %cst = arith.constant dense<0.000000e+00> : vector<9x512xf32>
    %5 = tpu.matmul %3, %4, %cst {dimension_numbers = #tpu.dot_dimension_numbers<[1], [0], [0], [1], [0, 0, 1, 1], [], []>} : vector<9x128xbf16>, vector<128x512xbf16>, vector<9x512xf32> -> vector<9x512xf32>
    %c0_4 = arith.constant 0 : index
    %c0_5 = arith.constant 0 : index
    %6 = vector.load %arg6[%c0_4, %c0_5] : memref<1x512xf32, #tpu.memory_space<vmem>>, vector<1x512xf32>
    %7 = vector.broadcast %6 : vector<1x512xf32> to vector<9x512xf32>
    %8 = arith.addf %5, %7 : vector<9x512xf32>
    %9 = arith.mulf %8, %8 : vector<9x512xf32>
    %10 = arith.mulf %8, %9 : vector<9x512xf32>
    %cst_6 = arith.constant 4.471500e-02 : f32
    %11 = vector.broadcast %cst_6 : f32 to vector<9x512xf32>
    %12 = arith.mulf %11, %10 : vector<9x512xf32>
    %13 = arith.addf %8, %12 : vector<9x512xf32>
    %cst_7 = arith.constant 0.797884583 : f32
    %14 = vector.broadcast %cst_7 : f32 to vector<9x512xf32>
    %15 = arith.mulf %14, %13 : vector<9x512xf32>
    %16 = math.tanh %15 : vector<9x512xf32>
    %cst_8 = arith.constant 1.000000e+00 : f32
    %17 = vector.broadcast %cst_8 : f32 to vector<9x512xf32>
    %18 = arith.addf %17, %16 : vector<9x512xf32>
    %cst_9 = arith.constant 5.000000e-01 : f32
    %19 = vector.broadcast %cst_9 : f32 to vector<9x512xf32>
    %20 = arith.mulf %19, %18 : vector<9x512xf32>
    %21 = arith.mulf %8, %20 : vector<9x512xf32>
    %c0_10 = arith.constant 0 : index
    %c0_11 = arith.constant 0 : index
    %22 = vector.load %arg11[%c0_10, %c0_11] : memref<9x128xf32, #tpu.memory_space<vmem>>, vector<9x128xf32>
    %23 = arith.truncf %21 : vector<9x512xf32> to vector<9x512xbf16>
    %c0_12 = arith.constant 0 : index
    %c0_13 = arith.constant 0 : index
    %24 = vector.load %arg7[%c0_12, %c0_13] : memref<512x128xbf16, #tpu.memory_space<vmem>>, vector<512x128xbf16>
    %cst_14 = arith.constant dense<0.000000e+00> : vector<9x128xf32>
    %25 = tpu.matmul %23, %24, %cst_14 {dimension_numbers = #tpu.dot_dimension_numbers<[1], [0], [0], [1], [0, 0, 1, 1], [], []>} : vector<9x512xbf16>, vector<512x128xbf16>, vector<9x128xf32> -> vector<9x128xf32>
    %26 = arith.addf %22, %25 : vector<9x128xf32>
    %c0_15 = arith.constant 0 : index
    %c0_16 = arith.constant 0 : index
    %27 = vector.load %arg11[%c0_15, %c0_16] : memref<9x128xf32, #tpu.memory_space<vmem>>, vector<9x128xf32>
    tpu.vector_store %arg11[%c0_15, %c0_16], %26 {strides = array<i32>} : memref<9x128xf32, #tpu.memory_space<vmem>>, vector<9x128xf32>,
    %c0_i32_17 = arith.constant 0 : i32
    %28 = arith.cmpi eq, %arg1, %c0_i32_17 : i32
    %29 = arith.extui %28 : i1 to i32
    %c0_i32_18 = arith.constant 0 : i32
    %30 = arith.cmpi ne, %29, %c0_i32_18 : i32
    scf.if %30 {
      %c0_19 = arith.constant 0 : index
      %c0_20 = arith.constant 0 : index
      %c0_21 = arith.constant 0 : index
      %31 = vector.load %arg2[%c0_19, %c0_20, %c0_21] : memref<1x9x128xf32, #tpu.memory_space<vmem>>, vector<1x9x128xf32>
      %32 = vector.shape_cast %31 : vector<1x9x128xf32> to vector<9x128xf32>
      %c0_22 = arith.constant 0 : index
      %c0_23 = arith.constant 0 : index
      %33 = vector.load %arg11[%c0_22, %c0_23] : memref<9x128xf32, #tpu.memory_space<vmem>>, vector<9x128xf32>
      %34 = arith.addf %32, %33 : vector<9x128xf32>
      %c0_24 = arith.constant 0 : index
      %c0_25 = arith.constant 0 : index
      %35 = vector.load %arg8[%c0_24, %c0_25] : memref<1x128xf32, #tpu.memory_space<vmem>>, vector<1x128xf32>
      %36 = vector.broadcast %35 : vector<1x128xf32> to vector<9x128xf32>
      %37 = arith.addf %34, %36 : vector<9x128xf32>
      %c0_26 = arith.constant 0 : index
      %c0_27 = arith.constant 0 : index
      %c0_28 = arith.constant 0 : index
      %38 = vector.load %arg9[%c0_26, %c0_27, %c0_28] : memref<1x9x128xf32, #tpu.memory_space<vmem>>, vector<1x9x128xf32>
      %39 = vector.shape_cast %38 : vector<1x9x128xf32> to vector<9x128xf32>
      %40 = vector.shape_cast %37 : vector<9x128xf32> to vector<1x9x128xf32>
      tpu.vector_store %arg9[%c0_26, %c0_27, %c0_28], %40 {strides = array<i32>} : memref<1x9x128xf32, #tpu.memory_space<vmem>>, vector<1x9x128xf32>,
    } else {
    }
    return
  }
  func.func @transform_0(%arg0: i32, %arg1: i32) -> (i32, i32, i32) {
    %c0_i32 = arith.constant 0 : i32
    %c0_i32_0 = arith.constant 0 : i32
    %c0_i32_1 = arith.constant 0 : i32
    return %arg0, %c0_i32, %c0_i32_0 : i32, i32, i32
  }
  func.func @transform_1(%arg0: i32, %arg1: i32) -> (i32, i32) {
    %c0_i32 = arith.constant 0 : i32
    %c0_i32_0 = arith.constant 0 : i32
    %c0_i32_1 = arith.constant 0 : i32
    return %c0_i32, %c0_i32_0 : i32, i32
  }
  func.func @transform_2(%arg0: i32, %arg1: i32) -> (i32, i32) {
    %c0_i32 = arith.constant 0 : i32
    %c0_i32_0 = arith.constant 0 : i32
    %c0_i32_1 = arith.constant 0 : i32
    return %c0_i32, %c0_i32_0 : i32, i32
  }
  func.func @transform_3(%arg0: i32, %arg1: i32) -> (i32, i32) {
    %c0_i32 = arith.constant 0 : i32
    %c0_i32_0 = arith.constant 0 : i32
    return %c0_i32, %arg1 : i32, i32
  }
  func.func @transform_4(%arg0: i32, %arg1: i32) -> (i32, i32) {
    %c0_i32 = arith.constant 0 : i32
    %c0_i32_0 = arith.constant 0 : i32
    return %c0_i32, %arg1 : i32, i32
  }
  func.func @transform_5(%arg0: i32, %arg1: i32) -> (i32, i32) {
    %c0_i32 = arith.constant 0 : i32
    %c0_i32_0 = arith.constant 0 : i32
    return %arg1, %c0_i32 : i32, i32
  }
  func.func @transform_6(%arg0: i32, %arg1: i32) -> (i32, i32) {
    %c0_i32 = arith.constant 0 : i32
    %c0_i32_0 = arith.constant 0 : i32
    %c0_i32_1 = arith.constant 0 : i32
    return %c0_i32, %c0_i32_0 : i32, i32
  }
  func.func @transform_7(%arg0: i32, %arg1: i32) -> (i32, i32, i32) {
    %c0_i32 = arith.constant 0 : i32
    %c0_i32_0 = arith.constant 0 : i32
    %c0_i32_1 = arith.constant 0 : i32
    return %arg0, %c0_i32, %c0_i32_0 : i32, i32, i32
  }
}

module attributes {stable_mosaic.version = 11 : i64} {
  func.func @_mlp_kernel(%arg0: i32, %arg1: i32, %arg2: memref<1x9x128xf32, #tpu.memory_space<vmem>>, %arg3: memref<1x128xf32, #tpu.memory_space<vmem>>, %arg4: memref<1x128xf32, #tpu.memory_space<vmem>>, %arg5: memref<128x512xbf16, #tpu.memory_space<vmem>>, %arg6: memref<1x512xf32, #tpu.memory_space<vmem>>, %arg7: memref<512x128xbf16, #tpu.memory_space<vmem>>, %arg8: memref<1x128xf32, #tpu.memory_space<vmem>>, %arg9: memref<1x128xf32, #tpu.memory_space<vmem>>, %arg10: memref<1x128xf32, #tpu.memory_space<vmem>>, %arg11: memref<1x9x128xf32, #tpu.memory_space<vmem>>, %arg12: memref<1x9x128xf32, #tpu.memory_space<vmem>>, %arg13: memref<1x9x128xf32, #tpu.memory_space<vmem>>, %arg14: memref<9x128xbf16, #tpu.memory_space<vmem>>, %arg15: memref<9x128xf32, #tpu.memory_space<vmem>>) attributes {dimension_semantics = [#tpu.dimension_semantics<parallel>, #tpu.dimension_semantics<arbitrary>], iteration_bounds = array<i64: 2, 1>, scalar_prefetch = 0 : i64, scratch_operands = 2 : i64, tpu.core_type = #tpu.core_type<tc>, window_params = [{transform_indices = @transform_0, window_bounds = array<i64: 1, 9, 128>}, {pipeline_mode = #tpu.pipeline_mode<synchronous>, transform_indices = @transform_1, window_bounds = array<i64: 1, 128>}, {pipeline_mode = #tpu.pipeline_mode<synchronous>, transform_indices = @transform_2, window_bounds = array<i64: 1, 128>}, {transform_indices = @transform_3, window_bounds = array<i64: 128, 512>}, {transform_indices = @transform_4, window_bounds = array<i64: 1, 512>}, {transform_indices = @transform_5, window_bounds = array<i64: 512, 128>}, {pipeline_mode = #tpu.pipeline_mode<synchronous>, transform_indices = @transform_6, window_bounds = array<i64: 1, 128>}, {pipeline_mode = #tpu.pipeline_mode<synchronous>, transform_indices = @transform_7, window_bounds = array<i64: 1, 128>}, {pipeline_mode = #tpu.pipeline_mode<synchronous>, transform_indices = @transform_8, window_bounds = array<i64: 1, 128>}, {transform_indices = @transform_9, window_bounds = array<i64: 1, 9, 128>}, {transform_indices = @transform_10, window_bounds = array<i64: 1, 9, 128>}, {transform_indices = @transform_11, window_bounds = array<i64: 1, 9, 128>}]} {
    %c0_i32 = arith.constant 0 : i32
    %0 = arith.cmpi eq, %arg1, %c0_i32 : i32
    %1 = arith.extui %0 : i1 to i32
    %c0_i32_0 = arith.constant 0 : i32
    %2 = arith.cmpi ne, %1, %c0_i32_0 : i32
    scf.if %2 {
      %c0_19 = arith.constant 0 : index
      %c0_20 = arith.constant 0 : index
      %c0_21 = arith.constant 0 : index
      %31 = vector.load %arg2[%c0_19, %c0_20, %c0_21] : memref<1x9x128xf32, #tpu.memory_space<vmem>>, vector<1x9x128xf32>
      %32 = vector.shape_cast %31 : vector<1x9x128xf32> to vector<9x128xf32>
      %c0_22 = arith.constant 0 : index
      %c0_23 = arith.constant 0 : index
      %33 = vector.load %arg3[%c0_22, %c0_23] : memref<1x128xf32, #tpu.memory_space<vmem>>, vector<1x128xf32>
      %c0_24 = arith.constant 0 : index
      %c0_25 = arith.constant 0 : index
      %34 = vector.load %arg4[%c0_24, %c0_25] : memref<1x128xf32, #tpu.memory_space<vmem>>, vector<1x128xf32>
      %cst_26 = arith.constant dense<0.000000e+00> : vector<9xf32>
      %35 = vector.multi_reduction <add>, %32, %cst_26 [1] : vector<9x128xf32> to vector<9xf32>
      %36 = vector.shape_cast %35 : vector<9xf32> to vector<9x1xf32>
      %cst_27 = arith.constant 1.280000e+02 : f32
      %37 = vector.broadcast %cst_27 : f32 to vector<9x1xf32>
      %38 = arith.divf %36, %37 : vector<9x1xf32>
      %39 = vector.broadcast %38 : vector<9x1xf32> to vector<9x128xf32>
      %40 = arith.subf %32, %39 : vector<9x128xf32>
      %41 = arith.mulf %40, %40 : vector<9x128xf32>
      %cst_28 = arith.constant dense<0.000000e+00> : vector<9xf32>
      %42 = vector.multi_reduction <add>, %41, %cst_28 [1] : vector<9x128xf32> to vector<9xf32>
      %43 = vector.shape_cast %42 : vector<9xf32> to vector<9x1xf32>
      %cst_29 = arith.constant 1.280000e+02 : f32
      %44 = vector.broadcast %cst_29 : f32 to vector<9x1xf32>
      %45 = arith.divf %43, %44 : vector<9x1xf32>
      %cst_30 = arith.constant 9.99999997E-7 : f32
      %46 = vector.broadcast %cst_30 : f32 to vector<9x1xf32>
      %47 = arith.addf %45, %46 : vector<9x1xf32>
      %48 = math.rsqrt %47 : vector<9x1xf32>
      %49 = vector.broadcast %48 : vector<9x1xf32> to vector<9x128xf32>
      %50 = arith.mulf %40, %49 : vector<9x128xf32>
      %51 = vector.broadcast %33 : vector<1x128xf32> to vector<9x128xf32>
      %52 = arith.mulf %50, %51 : vector<9x128xf32>
      %53 = vector.broadcast %34 : vector<1x128xf32> to vector<9x128xf32>
      %54 = arith.addf %52, %53 : vector<9x128xf32>
      %55 = arith.truncf %54 : vector<9x128xf32> to vector<9x128xbf16>
      %c0_31 = arith.constant 0 : index
      %c0_32 = arith.constant 0 : index
      %56 = vector.load %arg14[%c0_31, %c0_32] : memref<9x128xbf16, #tpu.memory_space<vmem>>, vector<9x128xbf16>
      tpu.vector_store %arg14[%c0_31, %c0_32], %55 {strides = array<i32>} : memref<9x128xbf16, #tpu.memory_space<vmem>>, vector<9x128xbf16>,
      %cst_33 = arith.constant 0.000000e+00 : f32
      %57 = vector.broadcast %cst_33 : f32 to vector<9x128xf32>
      %c0_34 = arith.constant 0 : index
      %c0_35 = arith.constant 0 : index
      %58 = vector.load %arg15[%c0_34, %c0_35] : memref<9x128xf32, #tpu.memory_space<vmem>>, vector<9x128xf32>
      tpu.vector_store %arg15[%c0_34, %c0_35], %57 {strides = array<i32>} : memref<9x128xf32, #tpu.memory_space<vmem>>, vector<9x128xf32>,
    } else {
    }
    %c0 = arith.constant 0 : index
    %c0_1 = arith.constant 0 : index
    %3 = vector.load %arg14[%c0, %c0_1] : memref<9x128xbf16, #tpu.memory_space<vmem>>, vector<9x128xbf16>
    %c0_2 = arith.constant 0 : index
    %c0_3 = arith.constant 0 : index
    %4 = vector.load %arg5[%c0_2, %c0_3] : memref<128x512xbf16, #tpu.memory_space<vmem>>, vector<128x512xbf16>
    %cst = arith.constant dense<0.000000e+00> : vector<9x512xf32>
    %5 = tpu.matmul %3, %4, %cst {dimension_numbers = #tpu.dot_dimension_numbers<[1], [0], [0], [1], [0, 0, 1, 1], [], []>} : vector<9x128xbf16>, vector<128x512xbf16>, vector<9x512xf32> -> vector<9x512xf32>
    %c0_4 = arith.constant 0 : index
    %c0_5 = arith.constant 0 : index
    %6 = vector.load %arg6[%c0_4, %c0_5] : memref<1x512xf32, #tpu.memory_space<vmem>>, vector<1x512xf32>
    %7 = vector.broadcast %6 : vector<1x512xf32> to vector<9x512xf32>
    %8 = arith.addf %5, %7 : vector<9x512xf32>
    %9 = arith.mulf %8, %8 : vector<9x512xf32>
    %10 = arith.mulf %8, %9 : vector<9x512xf32>
    %cst_6 = arith.constant 4.471500e-02 : f32
    %11 = vector.broadcast %cst_6 : f32 to vector<9x512xf32>
    %12 = arith.mulf %11, %10 : vector<9x512xf32>
    %13 = arith.addf %8, %12 : vector<9x512xf32>
    %cst_7 = arith.constant 0.797884583 : f32
    %14 = vector.broadcast %cst_7 : f32 to vector<9x512xf32>
    %15 = arith.mulf %14, %13 : vector<9x512xf32>
    %16 = math.tanh %15 : vector<9x512xf32>
    %cst_8 = arith.constant 1.000000e+00 : f32
    %17 = vector.broadcast %cst_8 : f32 to vector<9x512xf32>
    %18 = arith.addf %17, %16 : vector<9x512xf32>
    %cst_9 = arith.constant 5.000000e-01 : f32
    %19 = vector.broadcast %cst_9 : f32 to vector<9x512xf32>
    %20 = arith.mulf %19, %18 : vector<9x512xf32>
    %21 = arith.mulf %8, %20 : vector<9x512xf32>
    %c0_10 = arith.constant 0 : index
    %c0_11 = arith.constant 0 : index
    %22 = vector.load %arg15[%c0_10, %c0_11] : memref<9x128xf32, #tpu.memory_space<vmem>>, vector<9x128xf32>
    %23 = arith.truncf %21 : vector<9x512xf32> to vector<9x512xbf16>
    %c0_12 = arith.constant 0 : index
    %c0_13 = arith.constant 0 : index
    %24 = vector.load %arg7[%c0_12, %c0_13] : memref<512x128xbf16, #tpu.memory_space<vmem>>, vector<512x128xbf16>
    %cst_14 = arith.constant dense<0.000000e+00> : vector<9x128xf32>
    %25 = tpu.matmul %23, %24, %cst_14 {dimension_numbers = #tpu.dot_dimension_numbers<[1], [0], [0], [1], [0, 0, 1, 1], [], []>} : vector<9x512xbf16>, vector<512x128xbf16>, vector<9x128xf32> -> vector<9x128xf32>
    %26 = arith.addf %22, %25 : vector<9x128xf32>
    %c0_15 = arith.constant 0 : index
    %c0_16 = arith.constant 0 : index
    %27 = vector.load %arg15[%c0_15, %c0_16] : memref<9x128xf32, #tpu.memory_space<vmem>>, vector<9x128xf32>
    tpu.vector_store %arg15[%c0_15, %c0_16], %26 {strides = array<i32>} : memref<9x128xf32, #tpu.memory_space<vmem>>, vector<9x128xf32>,
    %c0_i32_17 = arith.constant 0 : i32
    %28 = arith.cmpi eq, %arg1, %c0_i32_17 : i32
    %29 = arith.extui %28 : i1 to i32
    %c0_i32_18 = arith.constant 0 : i32
    %30 = arith.cmpi ne, %29, %c0_i32_18 : i32
    scf.if %30 {
      %c0_19 = arith.constant 0 : index
      %c0_20 = arith.constant 0 : index
      %c0_21 = arith.constant 0 : index
      %31 = vector.load %arg2[%c0_19, %c0_20, %c0_21] : memref<1x9x128xf32, #tpu.memory_space<vmem>>, vector<1x9x128xf32>
      %32 = vector.shape_cast %31 : vector<1x9x128xf32> to vector<9x128xf32>
      %c0_22 = arith.constant 0 : index
      %c0_23 = arith.constant 0 : index
      %33 = vector.load %arg15[%c0_22, %c0_23] : memref<9x128xf32, #tpu.memory_space<vmem>>, vector<9x128xf32>
      %34 = arith.addf %32, %33 : vector<9x128xf32>
      %c0_24 = arith.constant 0 : index
      %c0_25 = arith.constant 0 : index
      %35 = vector.load %arg8[%c0_24, %c0_25] : memref<1x128xf32, #tpu.memory_space<vmem>>, vector<1x128xf32>
      %36 = vector.broadcast %35 : vector<1x128xf32> to vector<9x128xf32>
      %37 = arith.addf %34, %36 : vector<9x128xf32>
      %c0_26 = arith.constant 0 : index
      %c0_27 = arith.constant 0 : index
      %c0_28 = arith.constant 0 : index
      %38 = vector.load %arg12[%c0_26, %c0_27, %c0_28] : memref<1x9x128xf32, #tpu.memory_space<vmem>>, vector<1x9x128xf32>
      %39 = vector.shape_cast %38 : vector<1x9x128xf32> to vector<9x128xf32>
      %40 = vector.shape_cast %37 : vector<9x128xf32> to vector<1x9x128xf32>
      tpu.vector_store %arg12[%c0_26, %c0_27, %c0_28], %40 {strides = array<i32>} : memref<1x9x128xf32, #tpu.memory_space<vmem>>, vector<1x9x128xf32>,
      %c0_29 = arith.constant 0 : index
      %c0_30 = arith.constant 0 : index
      %41 = vector.load %arg9[%c0_29, %c0_30] : memref<1x128xf32, #tpu.memory_space<vmem>>, vector<1x128xf32>
      %c0_31 = arith.constant 0 : index
      %c0_32 = arith.constant 0 : index
      %42 = vector.load %arg10[%c0_31, %c0_32] : memref<1x128xf32, #tpu.memory_space<vmem>>, vector<1x128xf32>
      %cst_33 = arith.constant dense<0.000000e+00> : vector<9xf32>
      %43 = vector.multi_reduction <add>, %37, %cst_33 [1] : vector<9x128xf32> to vector<9xf32>
      %44 = vector.shape_cast %43 : vector<9xf32> to vector<9x1xf32>
      %cst_34 = arith.constant 1.280000e+02 : f32
      %45 = vector.broadcast %cst_34 : f32 to vector<9x1xf32>
      %46 = arith.divf %44, %45 : vector<9x1xf32>
      %47 = vector.broadcast %46 : vector<9x1xf32> to vector<9x128xf32>
      %48 = arith.subf %37, %47 : vector<9x128xf32>
      %49 = arith.mulf %48, %48 : vector<9x128xf32>
      %cst_35 = arith.constant dense<0.000000e+00> : vector<9xf32>
      %50 = vector.multi_reduction <add>, %49, %cst_35 [1] : vector<9x128xf32> to vector<9xf32>
      %51 = vector.shape_cast %50 : vector<9xf32> to vector<9x1xf32>
      %cst_36 = arith.constant 1.280000e+02 : f32
      %52 = vector.broadcast %cst_36 : f32 to vector<9x1xf32>
      %53 = arith.divf %51, %52 : vector<9x1xf32>
      %cst_37 = arith.constant 9.99999997E-7 : f32
      %54 = vector.broadcast %cst_37 : f32 to vector<9x1xf32>
      %55 = arith.addf %53, %54 : vector<9x1xf32>
      %56 = math.rsqrt %55 : vector<9x1xf32>
      %57 = vector.broadcast %56 : vector<9x1xf32> to vector<9x128xf32>
      %58 = arith.mulf %48, %57 : vector<9x128xf32>
      %59 = vector.broadcast %41 : vector<1x128xf32> to vector<9x128xf32>
      %60 = arith.mulf %58, %59 : vector<9x128xf32>
      %61 = vector.broadcast %42 : vector<1x128xf32> to vector<9x128xf32>
      %62 = arith.addf %60, %61 : vector<9x128xf32>
      %c0_38 = arith.constant 0 : index
      %c0_39 = arith.constant 0 : index
      %c0_40 = arith.constant 0 : index
      %63 = vector.load %arg11[%c0_38, %c0_39, %c0_40] : memref<1x9x128xf32, #tpu.memory_space<vmem>>, vector<1x9x128xf32>
      %64 = vector.shape_cast %63 : vector<1x9x128xf32> to vector<9x128xf32>
      %cst_41 = arith.constant 5.000000e-01 : f32
      %65 = vector.broadcast %cst_41 : f32 to vector<9x128xf32>
      %66 = arith.mulf %65, %62 : vector<9x128xf32>
      %67 = arith.addf %64, %66 : vector<9x128xf32>
      %c0_42 = arith.constant 0 : index
      %c0_43 = arith.constant 0 : index
      %c0_44 = arith.constant 0 : index
      %68 = vector.load %arg13[%c0_42, %c0_43, %c0_44] : memref<1x9x128xf32, #tpu.memory_space<vmem>>, vector<1x9x128xf32>
      %69 = vector.shape_cast %68 : vector<1x9x128xf32> to vector<9x128xf32>
      %70 = vector.shape_cast %67 : vector<9x128xf32> to vector<1x9x128xf32>
      tpu.vector_store %arg13[%c0_42, %c0_43, %c0_44], %70 {strides = array<i32>} : memref<1x9x128xf32, #tpu.memory_space<vmem>>, vector<1x9x128xf32>,
    } else {
    }
    return
  }
  func.func @transform_0(%arg0: i32, %arg1: i32) -> (i32, i32, i32) {
    %c0_i32 = arith.constant 0 : i32
    %c0_i32_0 = arith.constant 0 : i32
    %c0_i32_1 = arith.constant 0 : i32
    return %arg0, %c0_i32, %c0_i32_0 : i32, i32, i32
  }
  func.func @transform_1(%arg0: i32, %arg1: i32) -> (i32, i32) {
    %c0_i32 = arith.constant 0 : i32
    %c0_i32_0 = arith.constant 0 : i32
    %c0_i32_1 = arith.constant 0 : i32
    return %c0_i32, %c0_i32_0 : i32, i32
  }
  func.func @transform_2(%arg0: i32, %arg1: i32) -> (i32, i32) {
    %c0_i32 = arith.constant 0 : i32
    %c0_i32_0 = arith.constant 0 : i32
    %c0_i32_1 = arith.constant 0 : i32
    return %c0_i32, %c0_i32_0 : i32, i32
  }
  func.func @transform_3(%arg0: i32, %arg1: i32) -> (i32, i32) {
    %c0_i32 = arith.constant 0 : i32
    %c0_i32_0 = arith.constant 0 : i32
    return %c0_i32, %arg1 : i32, i32
  }
  func.func @transform_4(%arg0: i32, %arg1: i32) -> (i32, i32) {
    %c0_i32 = arith.constant 0 : i32
    %c0_i32_0 = arith.constant 0 : i32
    return %c0_i32, %arg1 : i32, i32
  }
  func.func @transform_5(%arg0: i32, %arg1: i32) -> (i32, i32) {
    %c0_i32 = arith.constant 0 : i32
    %c0_i32_0 = arith.constant 0 : i32
    return %arg1, %c0_i32 : i32, i32
  }
  func.func @transform_6(%arg0: i32, %arg1: i32) -> (i32, i32) {
    %c0_i32 = arith.constant 0 : i32
    %c0_i32_0 = arith.constant 0 : i32
    %c0_i32_1 = arith.constant 0 : i32
    return %c0_i32, %c0_i32_0 : i32, i32
  }
  func.func @transform_7(%arg0: i32, %arg1: i32) -> (i32, i32) {
    %c0_i32 = arith.constant 0 : i32
    %c0_i32_0 = arith.constant 0 : i32
    %c0_i32_1 = arith.constant 0 : i32
    return %c0_i32, %c0_i32_0 : i32, i32
  }
  func.func @transform_8(%arg0: i32, %arg1: i32) -> (i32, i32) {
    %c0_i32 = arith.constant 0 : i32
    %c0_i32_0 = arith.constant 0 : i32
    %c0_i32_1 = arith.constant 0 : i32
    return %c0_i32, %c0_i32_0 : i32, i32
  }
  func.func @transform_9(%arg0: i32, %arg1: i32) -> (i32, i32, i32) {
    %c0_i32 = arith.constant 0 : i32
    %c0_i32_0 = arith.constant 0 : i32
    %c0_i32_1 = arith.constant 0 : i32
    return %arg0, %c0_i32, %c0_i32_0 : i32, i32, i32
  }
  func.func @transform_10(%arg0: i32, %arg1: i32) -> (i32, i32, i32) {
    %c0_i32 = arith.constant 0 : i32
    %c0_i32_0 = arith.constant 0 : i32
    %c0_i32_1 = arith.constant 0 : i32
    return %arg0, %c0_i32, %c0_i32_0 : i32, i32, i32
  }
  func.func @transform_11(%arg0: i32, %arg1: i32) -> (i32, i32, i32) {
    %c0_i32 = arith.constant 0 : i32
    %c0_i32_0 = arith.constant 0 : i32
    %c0_i32_1 = arith.constant 0 : i32
    return %arg0, %c0_i32, %c0_i32_0 : i32, i32, i32
  }
}

module attributes {stable_mosaic.version = 11 : i64} {
  func.func @_mlp_kernel(%arg0: i32, %arg1: i32, %arg2: memref<1x9x128xf32, #tpu.memory_space<vmem>>, %arg3: memref<1x128xf32, #tpu.memory_space<vmem>>, %arg4: memref<1x128xf32, #tpu.memory_space<vmem>>, %arg5: memref<128x512xbf16, #tpu.memory_space<vmem>>, %arg6: memref<1x512xf32, #tpu.memory_space<vmem>>, %arg7: memref<512x128xbf16, #tpu.memory_space<vmem>>, %arg8: memref<1x128xf32, #tpu.memory_space<vmem>>, %arg9: memref<1x128xf32, #tpu.memory_space<vmem>>, %arg10: memref<1x128xf32, #tpu.memory_space<vmem>>, %arg11: memref<1x9x128xf32, #tpu.memory_space<vmem>>, %arg12: memref<1x9x128xf32, #tpu.memory_space<vmem>>, %arg13: memref<1x9x128xf32, #tpu.memory_space<vmem>>, %arg14: memref<9x128xbf16, #tpu.memory_space<vmem>>, %arg15: memref<9x128xf32, #tpu.memory_space<vmem>>) attributes {dimension_semantics = [#tpu.dimension_semantics<parallel>, #tpu.dimension_semantics<arbitrary>], iteration_bounds = array<i64: 2, 1>, scalar_prefetch = 0 : i64, scratch_operands = 2 : i64, tpu.core_type = #tpu.core_type<tc>, window_params = [{transform_indices = @transform_0, window_bounds = array<i64: 1, 9, 128>}, {pipeline_mode = #tpu.pipeline_mode<synchronous>, transform_indices = @transform_1, window_bounds = array<i64: 1, 128>}, {pipeline_mode = #tpu.pipeline_mode<synchronous>, transform_indices = @transform_2, window_bounds = array<i64: 1, 128>}, {transform_indices = @transform_3, window_bounds = array<i64: 128, 512>}, {transform_indices = @transform_4, window_bounds = array<i64: 1, 512>}, {transform_indices = @transform_5, window_bounds = array<i64: 512, 128>}, {pipeline_mode = #tpu.pipeline_mode<synchronous>, transform_indices = @transform_6, window_bounds = array<i64: 1, 128>}, {pipeline_mode = #tpu.pipeline_mode<synchronous>, transform_indices = @transform_7, window_bounds = array<i64: 1, 128>}, {pipeline_mode = #tpu.pipeline_mode<synchronous>, transform_indices = @transform_8, window_bounds = array<i64: 1, 128>}, {transform_indices = @transform_9, window_bounds = array<i64: 1, 9, 128>}, {transform_indices = @transform_10, window_bounds = array<i64: 1, 9, 128>}, {transform_indices = @transform_11, window_bounds = array<i64: 1, 9, 128>}]} {
    %c0_i32 = arith.constant 0 : i32
    %0 = arith.cmpi eq, %arg1, %c0_i32 : i32
    %1 = arith.extui %0 : i1 to i32
    %c0_i32_0 = arith.constant 0 : i32
    %2 = arith.cmpi ne, %1, %c0_i32_0 : i32
    scf.if %2 {
      %c0_19 = arith.constant 0 : index
      %c0_20 = arith.constant 0 : index
      %c0_21 = arith.constant 0 : index
      %31 = vector.load %arg2[%c0_19, %c0_20, %c0_21] : memref<1x9x128xf32, #tpu.memory_space<vmem>>, vector<1x9x128xf32>
      %32 = vector.shape_cast %31 : vector<1x9x128xf32> to vector<9x128xf32>
      %c0_22 = arith.constant 0 : index
      %c0_23 = arith.constant 0 : index
      %33 = vector.load %arg3[%c0_22, %c0_23] : memref<1x128xf32, #tpu.memory_space<vmem>>, vector<1x128xf32>
      %c0_24 = arith.constant 0 : index
      %c0_25 = arith.constant 0 : index
      %34 = vector.load %arg4[%c0_24, %c0_25] : memref<1x128xf32, #tpu.memory_space<vmem>>, vector<1x128xf32>
      %cst_26 = arith.constant dense<0.000000e+00> : vector<9xf32>
      %35 = vector.multi_reduction <add>, %32, %cst_26 [1] : vector<9x128xf32> to vector<9xf32>
      %36 = vector.shape_cast %35 : vector<9xf32> to vector<9x1xf32>
      %cst_27 = arith.constant 1.280000e+02 : f32
      %37 = vector.broadcast %cst_27 : f32 to vector<9x1xf32>
      %38 = arith.divf %36, %37 : vector<9x1xf32>
      %39 = vector.broadcast %38 : vector<9x1xf32> to vector<9x128xf32>
      %40 = arith.subf %32, %39 : vector<9x128xf32>
      %41 = arith.mulf %40, %40 : vector<9x128xf32>
      %cst_28 = arith.constant dense<0.000000e+00> : vector<9xf32>
      %42 = vector.multi_reduction <add>, %41, %cst_28 [1] : vector<9x128xf32> to vector<9xf32>
      %43 = vector.shape_cast %42 : vector<9xf32> to vector<9x1xf32>
      %cst_29 = arith.constant 1.280000e+02 : f32
      %44 = vector.broadcast %cst_29 : f32 to vector<9x1xf32>
      %45 = arith.divf %43, %44 : vector<9x1xf32>
      %cst_30 = arith.constant 9.99999997E-7 : f32
      %46 = vector.broadcast %cst_30 : f32 to vector<9x1xf32>
      %47 = arith.addf %45, %46 : vector<9x1xf32>
      %48 = math.rsqrt %47 : vector<9x1xf32>
      %49 = vector.broadcast %48 : vector<9x1xf32> to vector<9x128xf32>
      %50 = arith.mulf %40, %49 : vector<9x128xf32>
      %51 = vector.broadcast %33 : vector<1x128xf32> to vector<9x128xf32>
      %52 = arith.mulf %50, %51 : vector<9x128xf32>
      %53 = vector.broadcast %34 : vector<1x128xf32> to vector<9x128xf32>
      %54 = arith.addf %52, %53 : vector<9x128xf32>
      %55 = arith.truncf %54 : vector<9x128xf32> to vector<9x128xbf16>
      %c0_31 = arith.constant 0 : index
      %c0_32 = arith.constant 0 : index
      %56 = vector.load %arg14[%c0_31, %c0_32] : memref<9x128xbf16, #tpu.memory_space<vmem>>, vector<9x128xbf16>
      tpu.vector_store %arg14[%c0_31, %c0_32], %55 {strides = array<i32>} : memref<9x128xbf16, #tpu.memory_space<vmem>>, vector<9x128xbf16>,
      %cst_33 = arith.constant 0.000000e+00 : f32
      %57 = vector.broadcast %cst_33 : f32 to vector<9x128xf32>
      %c0_34 = arith.constant 0 : index
      %c0_35 = arith.constant 0 : index
      %58 = vector.load %arg15[%c0_34, %c0_35] : memref<9x128xf32, #tpu.memory_space<vmem>>, vector<9x128xf32>
      tpu.vector_store %arg15[%c0_34, %c0_35], %57 {strides = array<i32>} : memref<9x128xf32, #tpu.memory_space<vmem>>, vector<9x128xf32>,
    } else {
    }
    %c0 = arith.constant 0 : index
    %c0_1 = arith.constant 0 : index
    %3 = vector.load %arg14[%c0, %c0_1] : memref<9x128xbf16, #tpu.memory_space<vmem>>, vector<9x128xbf16>
    %c0_2 = arith.constant 0 : index
    %c0_3 = arith.constant 0 : index
    %4 = vector.load %arg5[%c0_2, %c0_3] : memref<128x512xbf16, #tpu.memory_space<vmem>>, vector<128x512xbf16>
    %cst = arith.constant dense<0.000000e+00> : vector<9x512xf32>
    %5 = tpu.matmul %3, %4, %cst {dimension_numbers = #tpu.dot_dimension_numbers<[1], [0], [0], [1], [0, 0, 1, 1], [], []>} : vector<9x128xbf16>, vector<128x512xbf16>, vector<9x512xf32> -> vector<9x512xf32>
    %c0_4 = arith.constant 0 : index
    %c0_5 = arith.constant 0 : index
    %6 = vector.load %arg6[%c0_4, %c0_5] : memref<1x512xf32, #tpu.memory_space<vmem>>, vector<1x512xf32>
    %7 = vector.broadcast %6 : vector<1x512xf32> to vector<9x512xf32>
    %8 = arith.addf %5, %7 : vector<9x512xf32>
    %9 = arith.mulf %8, %8 : vector<9x512xf32>
    %10 = arith.mulf %8, %9 : vector<9x512xf32>
    %cst_6 = arith.constant 4.471500e-02 : f32
    %11 = vector.broadcast %cst_6 : f32 to vector<9x512xf32>
    %12 = arith.mulf %11, %10 : vector<9x512xf32>
    %13 = arith.addf %8, %12 : vector<9x512xf32>
    %cst_7 = arith.constant 0.797884583 : f32
    %14 = vector.broadcast %cst_7 : f32 to vector<9x512xf32>
    %15 = arith.mulf %14, %13 : vector<9x512xf32>
    %16 = math.tanh %15 : vector<9x512xf32>
    %cst_8 = arith.constant 1.000000e+00 : f32
    %17 = vector.broadcast %cst_8 : f32 to vector<9x512xf32>
    %18 = arith.addf %17, %16 : vector<9x512xf32>
    %cst_9 = arith.constant 5.000000e-01 : f32
    %19 = vector.broadcast %cst_9 : f32 to vector<9x512xf32>
    %20 = arith.mulf %19, %18 : vector<9x512xf32>
    %21 = arith.mulf %8, %20 : vector<9x512xf32>
    %c0_10 = arith.constant 0 : index
    %c0_11 = arith.constant 0 : index
    %22 = vector.load %arg15[%c0_10, %c0_11] : memref<9x128xf32, #tpu.memory_space<vmem>>, vector<9x128xf32>
    %23 = arith.truncf %21 : vector<9x512xf32> to vector<9x512xbf16>
    %c0_12 = arith.constant 0 : index
    %c0_13 = arith.constant 0 : index
    %24 = vector.load %arg7[%c0_12, %c0_13] : memref<512x128xbf16, #tpu.memory_space<vmem>>, vector<512x128xbf16>
    %cst_14 = arith.constant dense<0.000000e+00> : vector<9x128xf32>
    %25 = tpu.matmul %23, %24, %cst_14 {dimension_numbers = #tpu.dot_dimension_numbers<[1], [0], [0], [1], [0, 0, 1, 1], [], []>} : vector<9x512xbf16>, vector<512x128xbf16>, vector<9x128xf32> -> vector<9x128xf32>
    %26 = arith.addf %22, %25 : vector<9x128xf32>
    %c0_15 = arith.constant 0 : index
    %c0_16 = arith.constant 0 : index
    %27 = vector.load %arg15[%c0_15, %c0_16] : memref<9x128xf32, #tpu.memory_space<vmem>>, vector<9x128xf32>
    tpu.vector_store %arg15[%c0_15, %c0_16], %26 {strides = array<i32>} : memref<9x128xf32, #tpu.memory_space<vmem>>, vector<9x128xf32>,
    %c0_i32_17 = arith.constant 0 : i32
    %28 = arith.cmpi eq, %arg1, %c0_i32_17 : i32
    %29 = arith.extui %28 : i1 to i32
    %c0_i32_18 = arith.constant 0 : i32
    %30 = arith.cmpi ne, %29, %c0_i32_18 : i32
    scf.if %30 {
      %c0_19 = arith.constant 0 : index
      %c0_20 = arith.constant 0 : index
      %c0_21 = arith.constant 0 : index
      %31 = vector.load %arg2[%c0_19, %c0_20, %c0_21] : memref<1x9x128xf32, #tpu.memory_space<vmem>>, vector<1x9x128xf32>
      %32 = vector.shape_cast %31 : vector<1x9x128xf32> to vector<9x128xf32>
      %c0_22 = arith.constant 0 : index
      %c0_23 = arith.constant 0 : index
      %33 = vector.load %arg15[%c0_22, %c0_23] : memref<9x128xf32, #tpu.memory_space<vmem>>, vector<9x128xf32>
      %34 = arith.addf %32, %33 : vector<9x128xf32>
      %c0_24 = arith.constant 0 : index
      %c0_25 = arith.constant 0 : index
      %35 = vector.load %arg8[%c0_24, %c0_25] : memref<1x128xf32, #tpu.memory_space<vmem>>, vector<1x128xf32>
      %36 = vector.broadcast %35 : vector<1x128xf32> to vector<9x128xf32>
      %37 = arith.addf %34, %36 : vector<9x128xf32>
      %c0_26 = arith.constant 0 : index
      %c0_27 = arith.constant 0 : index
      %c0_28 = arith.constant 0 : index
      %38 = vector.load %arg12[%c0_26, %c0_27, %c0_28] : memref<1x9x128xf32, #tpu.memory_space<vmem>>, vector<1x9x128xf32>
      %39 = vector.shape_cast %38 : vector<1x9x128xf32> to vector<9x128xf32>
      %40 = vector.shape_cast %37 : vector<9x128xf32> to vector<1x9x128xf32>
      tpu.vector_store %arg12[%c0_26, %c0_27, %c0_28], %40 {strides = array<i32>} : memref<1x9x128xf32, #tpu.memory_space<vmem>>, vector<1x9x128xf32>,
      %c0_29 = arith.constant 0 : index
      %c0_30 = arith.constant 0 : index
      %41 = vector.load %arg9[%c0_29, %c0_30] : memref<1x128xf32, #tpu.memory_space<vmem>>, vector<1x128xf32>
      %c0_31 = arith.constant 0 : index
      %c0_32 = arith.constant 0 : index
      %42 = vector.load %arg10[%c0_31, %c0_32] : memref<1x128xf32, #tpu.memory_space<vmem>>, vector<1x128xf32>
      %cst_33 = arith.constant dense<0.000000e+00> : vector<9xf32>
      %43 = vector.multi_reduction <add>, %37, %cst_33 [1] : vector<9x128xf32> to vector<9xf32>
      %44 = vector.shape_cast %43 : vector<9xf32> to vector<9x1xf32>
      %cst_34 = arith.constant 1.280000e+02 : f32
      %45 = vector.broadcast %cst_34 : f32 to vector<9x1xf32>
      %46 = arith.divf %44, %45 : vector<9x1xf32>
      %47 = vector.broadcast %46 : vector<9x1xf32> to vector<9x128xf32>
      %48 = arith.subf %37, %47 : vector<9x128xf32>
      %49 = arith.mulf %48, %48 : vector<9x128xf32>
      %cst_35 = arith.constant dense<0.000000e+00> : vector<9xf32>
      %50 = vector.multi_reduction <add>, %49, %cst_35 [1] : vector<9x128xf32> to vector<9xf32>
      %51 = vector.shape_cast %50 : vector<9xf32> to vector<9x1xf32>
      %cst_36 = arith.constant 1.280000e+02 : f32
      %52 = vector.broadcast %cst_36 : f32 to vector<9x1xf32>
      %53 = arith.divf %51, %52 : vector<9x1xf32>
      %cst_37 = arith.constant 9.99999997E-7 : f32
      %54 = vector.broadcast %cst_37 : f32 to vector<9x1xf32>
      %55 = arith.addf %53, %54 : vector<9x1xf32>
      %56 = math.rsqrt %55 : vector<9x1xf32>
      %57 = vector.broadcast %56 : vector<9x1xf32> to vector<9x128xf32>
      %58 = arith.mulf %48, %57 : vector<9x128xf32>
      %59 = vector.broadcast %41 : vector<1x128xf32> to vector<9x128xf32>
      %60 = arith.mulf %58, %59 : vector<9x128xf32>
      %61 = vector.broadcast %42 : vector<1x128xf32> to vector<9x128xf32>
      %62 = arith.addf %60, %61 : vector<9x128xf32>
      %c0_38 = arith.constant 0 : index
      %c0_39 = arith.constant 0 : index
      %c0_40 = arith.constant 0 : index
      %63 = vector.load %arg11[%c0_38, %c0_39, %c0_40] : memref<1x9x128xf32, #tpu.memory_space<vmem>>, vector<1x9x128xf32>
      %64 = vector.shape_cast %63 : vector<1x9x128xf32> to vector<9x128xf32>
      %cst_41 = arith.constant 5.000000e-01 : f32
      %65 = vector.broadcast %cst_41 : f32 to vector<9x128xf32>
      %66 = arith.mulf %65, %62 : vector<9x128xf32>
      %67 = arith.addf %64, %66 : vector<9x128xf32>
      %c0_42 = arith.constant 0 : index
      %c0_43 = arith.constant 0 : index
      %c0_44 = arith.constant 0 : index
      %68 = vector.load %arg13[%c0_42, %c0_43, %c0_44] : memref<1x9x128xf32, #tpu.memory_space<vmem>>, vector<1x9x128xf32>
      %69 = vector.shape_cast %68 : vector<1x9x128xf32> to vector<9x128xf32>
      %70 = vector.shape_cast %67 : vector<9x128xf32> to vector<1x9x128xf32>
      tpu.vector_store %arg13[%c0_42, %c0_43, %c0_44], %70 {strides = array<i32>} : memref<1x9x128xf32, #tpu.memory_space<vmem>>, vector<1x9x128xf32>,
    } else {
    }
    return
  }
  func.func @transform_0(%arg0: i32, %arg1: i32) -> (i32, i32, i32) {
    %c0_i32 = arith.constant 0 : i32
    %c0_i32_0 = arith.constant 0 : i32
    %c0_i32_1 = arith.constant 0 : i32
    return %arg0, %c0_i32, %c0_i32_0 : i32, i32, i32
  }
  func.func @transform_1(%arg0: i32, %arg1: i32) -> (i32, i32) {
    %c0_i32 = arith.constant 0 : i32
    %c0_i32_0 = arith.constant 0 : i32
    %c0_i32_1 = arith.constant 0 : i32
    return %c0_i32, %c0_i32_0 : i32, i32
  }
  func.func @transform_2(%arg0: i32, %arg1: i32) -> (i32, i32) {
    %c0_i32 = arith.constant 0 : i32
    %c0_i32_0 = arith.constant 0 : i32
    %c0_i32_1 = arith.constant 0 : i32
    return %c0_i32, %c0_i32_0 : i32, i32
  }
  func.func @transform_3(%arg0: i32, %arg1: i32) -> (i32, i32) {
    %c0_i32 = arith.constant 0 : i32
    %c0_i32_0 = arith.constant 0 : i32
    return %c0_i32, %arg1 : i32, i32
  }
  func.func @transform_4(%arg0: i32, %arg1: i32) -> (i32, i32) {
    %c0_i32 = arith.constant 0 : i32
    %c0_i32_0 = arith.constant 0 : i32
    return %c0_i32, %arg1 : i32, i32
  }
  func.func @transform_5(%arg0: i32, %arg1: i32) -> (i32, i32) {
    %c0_i32 = arith.constant 0 : i32
    %c0_i32_0 = arith.constant 0 : i32
    return %arg1, %c0_i32 : i32, i32
  }
  func.func @transform_6(%arg0: i32, %arg1: i32) -> (i32, i32) {
    %c0_i32 = arith.constant 0 : i32
    %c0_i32_0 = arith.constant 0 : i32
    %c0_i32_1 = arith.constant 0 : i32
    return %c0_i32, %c0_i32_0 : i32, i32
  }
  func.func @transform_7(%arg0: i32, %arg1: i32) -> (i32, i32) {
    %c0_i32 = arith.constant 0 : i32
    %c0_i32_0 = arith.constant 0 : i32
    %c0_i32_1 = arith.constant 0 : i32
    return %c0_i32, %c0_i32_0 : i32, i32
  }
  func.func @transform_8(%arg0: i32, %arg1: i32) -> (i32, i32) {
    %c0_i32 = arith.constant 0 : i32
    %c0_i32_0 = arith.constant 0 : i32
    %c0_i32_1 = arith.constant 0 : i32
    return %c0_i32, %c0_i32_0 : i32, i32
  }
  func.func @transform_9(%arg0: i32, %arg1: i32) -> (i32, i32, i32) {
    %c0_i32 = arith.constant 0 : i32
    %c0_i32_0 = arith.constant 0 : i32
    %c0_i32_1 = arith.constant 0 : i32
    return %arg0, %c0_i32, %c0_i32_0 : i32, i32, i32
  }
  func.func @transform_10(%arg0: i32, %arg1: i32) -> (i32, i32, i32) {
    %c0_i32 = arith.constant 0 : i32
    %c0_i32_0 = arith.constant 0 : i32
    %c0_i32_1 = arith.constant 0 : i32
    return %arg0, %c0_i32, %c0_i32_0 : i32, i32, i32
  }
  func.func @transform_11(%arg0: i32, %arg1: i32) -> (i32, i32, i32) {
    %c0_i32 = arith.constant 0 : i32
    %c0_i32_0 = arith.constant 0 : i32
    %c0_i32_1 = arith.constant 0 : i32
    return %arg0, %c0_i32, %c0_i32_0 : i32, i32, i32
  }
}

</mosaic_0001>

<llo_original>
// kernel: audiomae_forward.17
$region0: #{audiomae_forward.17}
  #allocation0 [shape = 'u32[]', space=smem, size = 0x4, offset = 0x4, fixed_abs, tag = 'smem constant byte address 0x4 - core index']
  #allocation1 [shape = 'u32[144,128]{1,0:T(1,128)}', space=vmem, size = 0x12000, scoped, tag = 'internal scratch']
  %s0 = inlined_call_operand.vmem [shape: f32[2,8,256], index: 0, kind: input, shape index: {}]
  %s1 = inlined_call_operand.vmem [shape: bf16[256,128], index: 1, kind: input, shape index: {}]
  %s2 = inlined_call_operand.vmem [shape: f32[1,128], index: 2, kind: input, shape index: {}]
  %s3 = inlined_call_operand.vmem [shape: f32[1,8,128], index: 3, kind: input, shape index: {}]
  %s4 = inlined_call_operand.vmem [shape: f32[2,8,128], index: 4, kind: output, shape index: {}]
  %s5 = sld [smem:[#allocation0]]
  $region49: #{audiomae_forward.17} parent=0
    _
  %s7 = ssub.s32 1, %s5
  %s8 = scalar_select 0, %s7, %s5
  loop: start=0, step=1, limit=4
  $region2: #{audiomae_forward.17} parent=0 // loop_pre_header
    _
  $region3: #{audiomae_forward.17} parent=0 // loop_header
    %s10 = sphi 0, %s14
    %p11 = scmp.ge.s32.totalorder %s10, 4
    %s17 = sphi 0, %s29
    %s18 = sphi 0, %s25
    %s19 = sphi 0, %s17
    %s20 = sphi 0, %s18
    %s21 = sphi 0, %s19
    %s22 = sphi 0, %s20
    %s32 = sphi 0, %s34
    %s35 = sphi 0, %s32
    %s36 = sphi 0, %s35
    %s52 = sphi 0, %s36
    %s58 = sphi 0, %s60
    %s61 = sphi 0, %s58
    %s62 = sphi 0, %s61
    %s78 = sphi 0, %s62
    %s84 = sphi 0, %s86
    %s87 = sphi 0, %s84
    %s88 = sphi 0, %s87
    %s104 = sphi 0, %s88
    %s110 = sphi 0, %s112
    %s113 = sphi 0, %s110
    %s114 = sphi 0, %s113
    %s130 = sphi 0, %s114
    %s138 = sphi 0, %s140
    %s141 = sphi 0, %s138
    %s142 = sphi 0, %s141
    %s158 = sphi 0, %s142
  $region4: #{audiomae_forward.17} parent=0 // loop_header_branch
    %13 = sbr.rel (%p11) target = $region8
  $region5: #{audiomae_forward.17} parent=0 // loop_body
    %s15 = ssub.s32 %s10, 1
    %s16 = ssub.s32 %s10, 2
    %s23 = sadd.s32 1, %s18
    %p24 = scmp.ge.s32.totalorder %s23, 1
    %s25 = scalar_select %p24, 0, %s23
    %s26 = sadd.s32 1, %s17
    %s27 = scalar_select %p24, %s26, %s17
    %p28 = scmp.ge.s32.totalorder %s27, 2
    %s29 = scalar_select %p28, 0, %s27
    %s30 = ssub.s32 %s17, %s29
    %p31 = scmp.eq.s32.totalorder %s30, 0
    %s33 = sadd.s32 %s32, 1
    %s34 = scalar_select %p31, %s32, %s33
    %p37 = pneg %p31
    %p38 = scmp.eq.s32.totalorder %s10, 1
    %p39 = por %p37, %p38
    %p40 = scmp.ne.s32.totalorder %s32, %s35
    %p41 = scmp.eq.s32.totalorder %s10, 0
    %p42 = por %p40, %p41
    %p43 = scmp.ne.s32.totalorder %s32, %s35
    %p44 = scmp.eq.s32.totalorder %s15, 1
    %p45 = por %p43, %p44
    %p46 = scmp.ne.s32.totalorder %s35, %s36
    %p47 = scmp.eq.s32.totalorder %s15, 0
    %p48 = por %p46, %p47
    %p49 = scmp.ne.s32.totalorder %s35, %s36
    %p50 = scmp.eq.s32.totalorder %s16, 1
    %p51 = por %p49, %p50
    %p53 = scmp.ne.s32.totalorder %s36, %s52
    %p54 = scmp.eq.s32.totalorder %s16, 0
    %p55 = por %p53, %p54
    %s56 = ssub.s32 %s18, %s25
    %p57 = scmp.eq.s32.totalorder %s56, 0
    %s59 = sadd.s32 %s58, 1
    %s60 = scalar_select %p57, %s58, %s59
    %p63 = pneg %p57
    %p64 = scmp.eq.s32.totalorder %s10, 1
    %p65 = por %p63, %p64
    %p66 = scmp.ne.s32.totalorder %s58, %s61
    %p67 = scmp.eq.s32.totalorder %s10, 0
    %p68 = por %p66, %p67
    %p69 = scmp.ne.s32.totalorder %s58, %s61
    %p70 = scmp.eq.s32.totalorder %s15, 1
    %p71 = por %p69, %p70
    %p72 = scmp.ne.s32.totalorder %s61, %s62
    %p73 = scmp.eq.s32.totalorder %s15, 0
    %p74 = por %p72, %p73
    %p75 = scmp.ne.s32.totalorder %s61, %s62
    %p76 = scmp.eq.s32.totalorder %s16, 1
    %p77 = por %p75, %p76
    %p79 = scmp.ne.s32.totalorder %s62, %s78
    %p80 = scmp.eq.s32.totalorder %s16, 0
    %p81 = por %p79, %p80
    %s82 = ssub.s32 %s18, %s25
    %p83 = scmp.eq.s32.totalorder %s82, 0
    %s85 = sadd.s32 %s84, 1
    %s86 = scalar_select %p83, %s84, %s85
    %p89 = pneg %p83
    %p90 = scmp.eq.s32.totalorder %s10, 1
    %p91 = por %p89, %p90
    %p92 = scmp.ne.s32.totalorder %s84, %s87
    %p93 = scmp.eq.s32.totalorder %s10, 0
    %p94 = por %p92, %p93
    %p95 = scmp.ne.s32.totalorder %s84, %s87
    %p96 = scmp.eq.s32.totalorder %s15, 1
    %p97 = por %p95, %p96
    %p98 = scmp.ne.s32.totalorder %s87, %s88
    %p99 = scmp.eq.s32.totalorder %s15, 0
    %p100 = por %p98, %p99
    %p101 = scmp.ne.s32.totalorder %s87, %s88
    %p102 = scmp.eq.s32.totalorder %s16, 1
    %p103 = por %p101, %p102
    %p105 = scmp.ne.s32.totalorder %s88, %s104
    %p106 = scmp.eq.s32.totalorder %s16, 0
    %p107 = por %p105, %p106
    %s108 = ssub.s32 %s18, %s25
    %p109 = scmp.eq.s32.totalorder %s108, 0
    %s111 = sadd.s32 %s110, 1
    %s112 = scalar_select %p109, %s110, %s111
    %p115 = pneg %p109
    %p116 = scmp.eq.s32.totalorder %s10, 1
    %p117 = por %p115, %p116
    %p118 = scmp.ne.s32.totalorder %s110, %s113
    %p119 = scmp.eq.s32.totalorder %s10, 0
    %p120 = por %p118, %p119
    %p121 = scmp.ne.s32.totalorder %s110, %s113
    %p122 = scmp.eq.s32.totalorder %s15, 1
    %p123 = por %p121, %p122
    %p124 = scmp.ne.s32.totalorder %s113, %s114
    %p125 = scmp.eq.s32.totalorder %s15, 0
    %p126 = por %p124, %p125
    %p127 = scmp.ne.s32.totalorder %s113, %s114
    %p128 = scmp.eq.s32.totalorder %s16, 1
    %p129 = por %p127, %p128
    %p131 = scmp.ne.s32.totalorder %s114, %s130
    %p132 = scmp.eq.s32.totalorder %s16, 0
    %p133 = por %p131, %p132
    %s134 = ssub.s32 %s17, %s29
    %s135 = ssub.s32 %s18, %s25
    %s136 = sor.u32 %s134, %s135
    %p137 = scmp.eq.s32.totalorder %s136, 0
    %s139 = sadd.s32 %s138, 1
    %s140 = scalar_select %p137, %s138, %s139
    %p143 = pneg %p137
    %p144 = scmp.eq.s32.totalorder %s10, 1
    %p145 = por %p143, %p144
    %p146 = scmp.ne.s32.totalorder %s138, %s141
    %p147 = scmp.eq.s32.totalorder %s10, 0
    %p148 = por %p146, %p147
    %p149 = scmp.ne.s32.totalorder %s138, %s141
    %p150 = scmp.eq.s32.totalorder %s15, 1
    %p151 = por %p149, %p150
    %p152 = scmp.ne.s32.totalorder %s141, %s142
    %p153 = scmp.eq.s32.totalorder %s15, 0
    %p154 = por %p152, %p153
    %p155 = scmp.ne.s32.totalorder %s141, %s142
    %p156 = scmp.eq.s32.totalorder %s16, 1
    %p157 = por %p155, %p156
    %p159 = scmp.ne.s32.totalorder %s142, %s158
    %p160 = scmp.eq.s32.totalorder %s16, 0
    %p161 = por %p159, %p160
    %p162 = scmp.le.s32.totalorder 1, %s10
    %p163 = scmp.lt.s32.totalorder %s10, 3
    %p164 = pnand %p162, %p163
    %p165 = pneg %p164
    // Predicated region
    $region9: #{audiomae_forward.17} parent=5 // pred_check
      _
    $region10: #{audiomae_forward.17} parent=5 // pred_check_branch
      %167 = sbr.rel (%p164) target = $region12
    $region11: #{audiomae_forward.17} parent=5 // pred_region
      %s168 = ssub.s32 %s10, 1
      // Predicated region
      $region13: #{audiomae_forward.17} parent=11 // pred_check
        %p169 = pneg %p74
      $region14: #{audiomae_forward.17} parent=11 // pred_check_branch
        %171 = sbr.rel (%p169) target = $region16
      $region15: #{audiomae_forward.17} parent=11 // pred_region
        %p172 = scmp.lt.s32.totalorder %s20, 0
        %s173 = scalar_select %p172, %s20, 0
        %s174 = smul.addr %s173, 4
        %s175 = scalar_lea.vmem %s1, %s174
      $region16: #{audiomae_forward.17} parent=11 // pred_fallthru
        _
      // Predicated region
      $region17: #{audiomae_forward.17} parent=11 // pred_check
        %p176 = pneg %p100
      $region18: #{audiomae_forward.17} parent=11 // pred_check_branch
        %178 = sbr.rel (%p176) target = $region20
      $region19: #{audiomae_forward.17} parent=11 // pred_region
        %p179 = scmp.lt.s32.totalorder %s20, 0
        %s180 = scalar_select %p179, %s20, 0
        %s181 = scalar_lea.vmem %s2, %s180
      $region20: #{audiomae_forward.17} parent=11 // pred_fallthru
        _
      // Predicated region
      $region21: #{audiomae_forward.17} parent=11 // pred_check
        %p182 = pneg %p126
      $region22: #{audiomae_forward.17} parent=11 // pred_check_branch
        %184 = sbr.rel (%p182) target = $region24
      $region23: #{audiomae_forward.17} parent=11 // pred_region
        %p185 = scmp.lt.s32.totalorder %s20, 0
        %s186 = scalar_select %p185, %s20, 0
        %s187 = smul.addr %s186, 8
        %s188 = scalar_lea.vmem %s3, %s187
      $region24: #{audiomae_forward.17} parent=11 // pred_fallthru
        _
    $region12: #{audiomae_forward.17} parent=5 // pred_fallthru
      _
    %p189 = scmp.lt.s32.totalorder %s10, 2
    // Predicated region
    $region25: #{audiomae_forward.17} parent=5 // pred_check
      %p190 = pneg %p189
    $region26: #{audiomae_forward.17} parent=5 // pred_check_branch
      %192 = sbr.rel (%p190) target = $region28
    $region27: #{audiomae_forward.17} parent=5 // pred_region
      // Predicated region
      $region29: #{audiomae_forward.17} parent=27 // pred_check
        %p193 = pneg %p42
      $region30: #{audiomae_forward.17} parent=27 // pred_check_branch
        %195 = sbr.rel (%p193) target = $region32
      $region31: #{audiomae_forward.17} parent=27 // pred_region
        %p196 = scmp.lt.s32.totalorder %s17, 1
        %s197 = scalar_select %p196, %s17, 1
        %s198 = smul.addr %s197, 2
        %s199 = smul.addr %s198, 8
        %s200 = scalar_lea.vmem %s0, %s199
      $region32: #{audiomae_forward.17} parent=27 // pred_fallthru
        _
    $region28: #{audiomae_forward.17} parent=5 // pred_fallthru
      _
    %p201 = scmp.le.s32.totalorder 1, %s10
    %p202 = scmp.lt.s32.totalorder %s10, 3
    %p203 = pnand %p201, %p202
    %p204 = pneg %p203
    // Predicated region
    $region33: #{audiomae_forward.17} parent=5 // pred_check
      _
    $region34: #{audiomae_forward.17} parent=5 // pred_check_branch
      %206 = sbr.rel (%p203) target = $region36
    $region35: #{audiomae_forward.17} parent=5 // pred_region
      %s207 = ssub.s32 %s10, 1
      %p208 = scmp.lt.s32.totalorder %s19, 1
      %s209 = scalar_select %p208, %s19, 1
      %s210 = smul.addr %s209, 2
      %s211 = smul.addr %s210, 8
      %s212 = scalar_lea.vmem %s0, %s211
      %p213 = pneg %p48
      %p214 = pneg %p45
      %p215 = scmp.lt.s32.totalorder %s20, 0
      %s216 = scalar_select %p215, %s20, 0
      %s217 = smul.addr %s216, 4
      %s218 = scalar_lea.vmem %s1, %s217
      %p219 = pneg %p74
      %p220 = pneg %p71
      %p221 = scmp.lt.s32.totalorder %s20, 0
      %s222 = scalar_select %p221, %s20, 0
      %s223 = scalar_lea.vmem %s2, %s222
      %p224 = pneg %p100
      %p225 = pneg %p97
      %p226 = scmp.lt.s32.totalorder %s20, 0
      %s227 = scalar_select %p226, %s20, 0
      %s228 = smul.addr %s227, 8
      %s229 = scalar_lea.vmem %s3, %s228
      %p230 = pneg %p126
      %p231 = pneg %p123
      %p232 = pneg %p154
      %p233 = pneg %p151
      %p234 = scmp.lt.s32.totalorder %s19, 1
      %s235 = scalar_select %p234, %s19, 1
      %p236 = scmp.lt.s32.totalorder %s20, 0
      %s237 = scalar_select %p236, %s20, 0
      %s238 = sadd.s32 %s237, %s235
      %s239 = smul.addr %s238, 8
      %s240 = scalar_lea.vmem %s4, %s239
      %p241 = scmp.lt.s32.totalorder %s19, 1
      %s242 = scalar_select %p241, %s19, 1
      %s243 = smul.addr %s242, 2
      %s244 = smul.addr %s243, 8
      %s245 = scalar_lea.vmem %s0, %s244
      %p246 = scmp.lt.s32.totalorder %s20, 0
      %s247 = scalar_select %p246, %s20, 0
      %s248 = smul.addr %s247, 4
      %s249 = scalar_lea.vmem %s1, %s248
      %p250 = scmp.lt.s32.totalorder %s20, 0
      %s251 = scalar_select %p250, %s20, 0
      %s252 = scalar_lea.vmem %s2, %s251
      %p253 = scmp.lt.s32.totalorder %s20, 0
      %s254 = scalar_select %p253, %s20, 0
      %s255 = smul.addr %s254, 8
      %s256 = scalar_lea.vmem %s3, %s255
      %p257 = scmp.lt.s32.totalorder %s19, 1
      %s258 = scalar_select %p257, %s19, 1
      %p259 = scmp.lt.s32.totalorder %s20, 0
      %s260 = scalar_select %p259, %s20, 0
      %s261 = sadd.s32 %s260, %s258
      %s262 = smul.addr %s261, 8
      %s263 = scalar_lea.vmem %s4, %s262
      %v265 = vld [vmem:[%s245] sm:$0xff]
      %v266 = vld [vmem:[%s245 + $0x8] sm:$0xff]
      %v267 = vpack.c.bf16 %v265, %v265
      %v268 = vpack.c.bf16 %v266, %v266
      %v269 = vld [vmem:[%s249] sm:$0xf]
      %v270 = vld [vmem:[%s249 + $0x4] sm:$0xf]
      %v271 = vld [vmem:[%s249 + $0x8] sm:$0xf]
      %v272 = vld [vmem:[%s249 + $0xc] sm:$0xf]
      %v273 = vld [vmem:[%s249 + $0x10] sm:$0xf]
      %v274 = vld [vmem:[%s249 + $0x14] sm:$0xf]
      %v275 = vld [vmem:[%s249 + $0x18] sm:$0xf]
      %v276 = vld [vmem:[%s249 + $0x1c] sm:$0xf]
      %v277 = vld [vmem:[%s249 + $0x20] sm:$0xf]
      %v278 = vld [vmem:[%s249 + $0x24] sm:$0xf]
      %v279 = vld [vmem:[%s249 + $0x28] sm:$0xf]
      %v280 = vld [vmem:[%s249 + $0x2c] sm:$0xf]
      %v281 = vld [vmem:[%s249 + $0x30] sm:$0xf]
      %v282 = vld [vmem:[%s249 + $0x34] sm:$0xf]
      %v283 = vld [vmem:[%s249 + $0x38] sm:$0xf]
      %v284 = vld [vmem:[%s249 + $0x3c] sm:$0xf]
      %v285 = vld [vmem:[%s249 + $0x40] sm:$0xf]
      %v286 = vld [vmem:[%s249 + $0x44] sm:$0xf]
      %v287 = vld [vmem:[%s249 + $0x48] sm:$0xf]
      %v288 = vld [vmem:[%s249 + $0x4c] sm:$0xf]
      %v289 = vld [vmem:[%s249 + $0x50] sm:$0xf]
      %v290 = vld [vmem:[%s249 + $0x54] sm:$0xf]
      %v291 = vld [vmem:[%s249 + $0x58] sm:$0xf]
      %v292 = vld [vmem:[%s249 + $0x5c] sm:$0xf]
      %v293 = vld [vmem:[%s249 + $0x60] sm:$0xf]
      %v294 = vld [vmem:[%s249 + $0x64] sm:$0xf]
      %v295 = vld [vmem:[%s249 + $0x68] sm:$0xf]
      %v296 = vld [vmem:[%s249 + $0x6c] sm:$0xf]
      %v297 = vld [vmem:[%s249 + $0x70] sm:$0xf]
      %v298 = vld [vmem:[%s249 + $0x74] sm:$0xf]
      %v299 = vld [vmem:[%s249 + $0x78] sm:$0xf]
      %v300 = vld [vmem:[%s249 + $0x7c] sm:$0xf]
      %v301 = vld [vmem:[%s252] sm:$0x1]
      %v303 = vlaneseq
      %v304 = vshrl.u32 %v303, 7
      %v305 = vsub.s32 0, %v304
      %v306 = vrot.slane %v301, %v305
      %v340 = vunpack.c.l.b16 %v269
      %v341 = vunpack.c.l.b16 %v270
      %v342 = vunpack.c.l.b16 %v271
      %v343 = vunpack.c.l.b16 %v272
      %v344 = vunpack.c.l.b16 %v273
      %v345 = vunpack.c.l.b16 %v274
      %v346 = vunpack.c.l.b16 %v275
      %v347 = vunpack.c.l.b16 %v276
      %v348 = vunpack.c.l.b16 %v277
      %v349 = vunpack.c.l.b16 %v278
      %v350 = vunpack.c.l.b16 %v279
      %v351 = vunpack.c.l.b16 %v280
      %v352 = vunpack.c.l.b16 %v281
      %v353 = vunpack.c.l.b16 %v282
      %v354 = vunpack.c.l.b16 %v283
      %v355 = vunpack.c.l.b16 %v284
      %v356 = vunpack.c.l.b16 %v285
      %v357 = vunpack.c.l.b16 %v286
      %v358 = vunpack.c.l.b16 %v287
      %v359 = vunpack.c.l.b16 %v288
      %v360 = vunpack.c.l.b16 %v289
      %v361 = vunpack.c.l.b16 %v290
      %v362 = vunpack.c.l.b16 %v291
      %v363 = vunpack.c.l.b16 %v292
      %v364 = vunpack.c.l.b16 %v293
      %v365 = vunpack.c.l.b16 %v294
      %v366 = vunpack.c.l.b16 %v295
      %v367 = vunpack.c.l.b16 %v296
      %v368 = vunpack.c.l.b16 %v297
      %v369 = vunpack.c.l.b16 %v298
      %v370 = vunpack.c.l.b16 %v299
      %v371 = vunpack.c.l.b16 %v300
      %v372 = vpack.c.b16 %v341, %v340
      %v373 = vpack.c.b16 %v343, %v342
      %v374 = vpack.c.b16 %v345, %v344
      %v375 = vpack.c.b16 %v347, %v346
      %v376 = vpack.c.b16 %v349, %v348
      %v377 = vpack.c.b16 %v351, %v350
      %v378 = vpack.c.b16 %v353, %v352
      %v379 = vpack.c.b16 %v355, %v354
      %v380 = vpack.c.b16 %v357, %v356
      %v381 = vpack.c.b16 %v359, %v358
      %v382 = vpack.c.b16 %v361, %v360
      %v383 = vpack.c.b16 %v363, %v362
      %v384 = vpack.c.b16 %v365, %v364
      %v385 = vpack.c.b16 %v367, %v366
      %v386 = vpack.c.b16 %v369, %v368
      %v387 = vpack.c.b16 %v371, %v370
      %404 = vmatprep.subr.bf16.mxu0 0
      %405 = vmatpush1.bf16.msra.mxu0 %v372
      %406 = vmatprep.subr.bf16.mxu0 0
      %407 = vmatpush1.bf16.msra.mxu0 %v373
      %408 = vmatprep.subr.bf16.mxu0 0
      %409 = vmatpush1.bf16.msra.mxu0 %v374
      %410 = vmatprep.subr.bf16.mxu0 0
      %411 = vmatpush1.bf16.msra.mxu0 %v375
      %412 = vmatprep.subr.bf16.mxu0 0
      %413 = vmatpush1.bf16.msra.mxu0 %v376
      %414 = vmatprep.subr.bf16.mxu0 0
      %415 = vmatpush1.bf16.msra.mxu0 %v377
      %416 = vmatprep.subr.bf16.mxu0 0
      %417 = vmatpush1.bf16.msra.mxu0 %v378
      %418 = vmatprep.subr.bf16.mxu0 0
      %419 = vmatpush1.bf16.msra.mxu0 %v379
      %420 = vmatprep.subr.bf16.mxu0 0
      %421 = vmatpush1.bf16.msra.mxu0 %v380
      %422 = vmatprep.subr.bf16.mxu0 0
      %423 = vmatpush1.bf16.msra.mxu0 %v381
      %424 = vmatprep.subr.bf16.mxu0 0
      %425 = vmatpush1.bf16.msra.mxu0 %v382
      %426 = vmatprep.subr.bf16.mxu0 0
      %427 = vmatpush1.bf16.msra.mxu0 %v383
      %428 = vmatprep.subr.bf16.mxu0 0
      %429 = vmatpush1.bf16.msra.mxu0 %v384
      %430 = vmatprep.subr.bf16.mxu0 0
      %431 = vmatpush1.bf16.msra.mxu0 %v385
      %432 = vmatprep.subr.bf16.mxu0 0
      %433 = vmatpush1.bf16.msra.mxu0 %v386
      %434 = vmatprep.subr.bf16.mxu0 0
      %435 = vmatpush1.bf16.msra.mxu0 %v387
      %436 = vmatprep.mubr.bf16.mxu0 %v268
      %437 = vmatmul.mubr.bf16.gmra.mrb[0].mxu0 %v267
      %v438 = vpop.f32.mrb[0].mxu0
      %v439 = vadd.f32 %v306, %v438
      %v440 = vpop.f32.mrb[0].mxu0
      %v441 = vpop.f32.mrb[0].mxu0
      %v442 = vpop.f32.mrb[0].mxu0
      %443 = vdwg.mxu0
      %v444 = vld [vmem:[%s256] sm:$0xff]
      %v445 = vadd.f32 %v439, %v444
      %446 = vst [vmem:[%s263] sm:$0xff] %v445
      %p447 = scmp.lt.s32.totalorder %s19, 1
      %s448 = scalar_select %p447, %s19, 1
      %p449 = scmp.lt.s32.totalorder %s20, 0
      %s450 = scalar_select %p449, %s20, 0
      %s451 = sadd.s32 %s450, %s448
      %s452 = smul.addr %s451, 8
      %s453 = scalar_lea.vmem %s4, %s452
      // Predicated region
      $region37: #{audiomae_forward.17} parent=35 // pred_check
        %p454 = pneg %p151
      $region38: #{audiomae_forward.17} parent=35 // pred_check_branch
        %456 = sbr.rel (%p454) target = $region40
      $region39: #{audiomae_forward.17} parent=35 // pred_region
        _
      $region40: #{audiomae_forward.17} parent=35 // pred_fallthru
        _
    $region36: #{audiomae_forward.17} parent=5 // pred_fallthru
      _
    %p457 = scmp.le.s32.totalorder 2, %s10
    // Predicated region
    $region41: #{audiomae_forward.17} parent=5 // pred_check
      %p458 = pneg %p457
    $region42: #{audiomae_forward.17} parent=5 // pred_check_branch
      %460 = sbr.rel (%p458) target = $region44
    $region43: #{audiomae_forward.17} parent=5 // pred_region
      %s461 = ssub.s32 %s10, 2
      // Predicated region
      $region45: #{audiomae_forward.17} parent=43 // pred_check
        %p462 = pneg %p157
      $region46: #{audiomae_forward.17} parent=43 // pred_check_branch
        %464 = sbr.rel (%p462) target = $region48
      $region47: #{audiomae_forward.17} parent=43 // pred_region
        %p465 = scmp.lt.s32.totalorder %s21, 1
        %s466 = scalar_select %p465, %s21, 1
        %p467 = scmp.lt.s32.totalorder %s22, 0
        %s468 = scalar_select %p467, %s22, 0
        %s469 = sadd.s32 %s468, %s466
        %s470 = smul.addr %s469, 8
        %s471 = scalar_lea.vmem %s4, %s470
      $region48: #{audiomae_forward.17} parent=43 // pred_fallthru
        _
    $region44: #{audiomae_forward.17} parent=5 // pred_fallthru
      _
  $region6: #{audiomae_forward.17} parent=0 // loop_footer
    %s14 = sadd.s32 1, %s10
  $region7: #{audiomae_forward.17} parent=0 // loop_footer_branch
    %9 = sbr.rel target = $region3
  $region8: #{audiomae_forward.17} parent=0 // loop_exit
    _

// kernel: audiomae_forward.20
$region0: #{audiomae_forward.20}
  #allocation0 [shape = 'u32[]', space=smem, size = 0x4, offset = 0x4, fixed_abs, tag = 'smem constant byte address 0x4 - core index']
  #allocation1 [shape = 'u32[144,128]{1,0:T(1,128)}', space=vmem, size = 0x12000, scoped, tag = 'internal scratch']
  %s0 = inlined_call_operand.vmem [shape: bf16[2,9,128], index: 0, kind: input, shape index: {}]
  %s1 = inlined_call_operand.vmem [shape: bf16[128,128], index: 1, kind: input, shape index: {}]
  %s2 = inlined_call_operand.vmem [shape: f32[1,128], index: 2, kind: input, shape index: {}]
  %s3 = inlined_call_operand.vmem [shape: f32[2,9,128], index: 3, kind: input, shape index: {}]
  %s4 = inlined_call_operand.vmem [shape: f32[2,9,128], index: 4, kind: output, shape index: {}]
  %s5 = sld [smem:[#allocation0]]
  $region49: #{audiomae_forward.20} parent=0
    _
  %s7 = ssub.s32 1, %s5
  %s8 = scalar_select 0, %s7, %s5
  loop: start=0, step=1, limit=4
  $region2: #{audiomae_forward.20} parent=0 // loop_pre_header
    _
  $region3: #{audiomae_forward.20} parent=0 // loop_header
    %s10 = sphi 0, %s14
    %p11 = scmp.ge.s32.totalorder %s10, 4
    %s17 = sphi 0, %s29
    %s18 = sphi 0, %s25
    %s19 = sphi 0, %s17
    %s20 = sphi 0, %s18
    %s21 = sphi 0, %s19
    %s22 = sphi 0, %s20
    %s32 = sphi 0, %s34
    %s35 = sphi 0, %s32
    %s36 = sphi 0, %s35
    %s52 = sphi 0, %s36
    %s58 = sphi 0, %s60
    %s61 = sphi 0, %s58
    %s62 = sphi 0, %s61
    %s78 = sphi 0, %s62
    %s84 = sphi 0, %s86
    %s87 = sphi 0, %s84
    %s88 = sphi 0, %s87
    %s104 = sphi 0, %s88
    %s112 = sphi 0, %s114
    %s115 = sphi 0, %s112
    %s116 = sphi 0, %s115
    %s132 = sphi 0, %s116
    %s140 = sphi 0, %s142
    %s143 = sphi 0, %s140
    %s144 = sphi 0, %s143
    %s160 = sphi 0, %s144
  $region4: #{audiomae_forward.20} parent=0 // loop_header_branch
    %13 = sbr.rel (%p11) target = $region8
  $region5: #{audiomae_forward.20} parent=0 // loop_body
    %s15 = ssub.s32 %s10, 1
    %s16 = ssub.s32 %s10, 2
    %s23 = sadd.s32 1, %s18
    %p24 = scmp.ge.s32.totalorder %s23, 1
    %s25 = scalar_select %p24, 0, %s23
    %s26 = sadd.s32 1, %s17
    %s27 = scalar_select %p24, %s26, %s17
    %p28 = scmp.ge.s32.totalorder %s27, 2
    %s29 = scalar_select %p28, 0, %s27
    %s30 = ssub.s32 %s17, %s29
    %p31 = scmp.eq.s32.totalorder %s30, 0
    %s33 = sadd.s32 %s32, 1
    %s34 = scalar_select %p31, %s32, %s33
    %p37 = pneg %p31
    %p38 = scmp.eq.s32.totalorder %s10, 1
    %p39 = por %p37, %p38
    %p40 = scmp.ne.s32.totalorder %s32, %s35
    %p41 = scmp.eq.s32.totalorder %s10, 0
    %p42 = por %p40, %p41
    %p43 = scmp.ne.s32.totalorder %s32, %s35
    %p44 = scmp.eq.s32.totalorder %s15, 1
    %p45 = por %p43, %p44
    %p46 = scmp.ne.s32.totalorder %s35, %s36
    %p47 = scmp.eq.s32.totalorder %s15, 0
    %p48 = por %p46, %p47
    %p49 = scmp.ne.s32.totalorder %s35, %s36
    %p50 = scmp.eq.s32.totalorder %s16, 1
    %p51 = por %p49, %p50
    %p53 = scmp.ne.s32.totalorder %s36, %s52
    %p54 = scmp.eq.s32.totalorder %s16, 0
    %p55 = por %p53, %p54
    %s56 = ssub.s32 %s18, %s25
    %p57 = scmp.eq.s32.totalorder %s56, 0
    %s59 = sadd.s32 %s58, 1
    %s60 = scalar_select %p57, %s58, %s59
    %p63 = pneg %p57
    %p64 = scmp.eq.s32.totalorder %s10, 1
    %p65 = por %p63, %p64
    %p66 = scmp.ne.s32.totalorder %s58, %s61
    %p67 = scmp.eq.s32.totalorder %s10, 0
    %p68 = por %p66, %p67
    %p69 = scmp.ne.s32.totalorder %s58, %s61
    %p70 = scmp.eq.s32.totalorder %s15, 1
    %p71 = por %p69, %p70
    %p72 = scmp.ne.s32.totalorder %s61, %s62
    %p73 = scmp.eq.s32.totalorder %s15, 0
    %p74 = por %p72, %p73
    %p75 = scmp.ne.s32.totalorder %s61, %s62
    %p76 = scmp.eq.s32.totalorder %s16, 1
    %p77 = por %p75, %p76
    %p79 = scmp.ne.s32.totalorder %s62, %s78
    %p80 = scmp.eq.s32.totalorder %s16, 0
    %p81 = por %p79, %p80
    %s82 = ssub.s32 %s18, %s25
    %p83 = scmp.eq.s32.totalorder %s82, 0
    %s85 = sadd.s32 %s84, 1
    %s86 = scalar_select %p83, %s84, %s85
    %p89 = pneg %p83
    %p90 = scmp.eq.s32.totalorder %s10, 1
    %p91 = por %p89, %p90
    %p92 = scmp.ne.s32.totalorder %s84, %s87
    %p93 = scmp.eq.s32.totalorder %s10, 0
    %p94 = por %p92, %p93
    %p95 = scmp.ne.s32.totalorder %s84, %s87
    %p96 = scmp.eq.s32.totalorder %s15, 1
    %p97 = por %p95, %p96
    %p98 = scmp.ne.s32.totalorder %s87, %s88
    %p99 = scmp.eq.s32.totalorder %s15, 0
    %p100 = por %p98, %p99
    %p101 = scmp.ne.s32.totalorder %s87, %s88
    %p102 = scmp.eq.s32.totalorder %s16, 1
    %p103 = por %p101, %p102
    %p105 = scmp.ne.s32.totalorder %s88, %s104
    %p106 = scmp.eq.s32.totalorder %s16, 0
    %p107 = por %p105, %p106
    %s108 = ssub.s32 %s17, %s29
    %s109 = ssub.s32 %s18, %s25
    %s110 = sor.u32 %s108, %s109
    %p111 = scmp.eq.s32.totalorder %s110, 0
    %s113 = sadd.s32 %s112, 1
    %s114 = scalar_select %p111, %s112, %s113
    %p117 = pneg %p111
    %p118 = scmp.eq.s32.totalorder %s10, 1
    %p119 = por %p117, %p118
    %p120 = scmp.ne.s32.totalorder %s112, %s115
    %p121 = scmp.eq.s32.totalorder %s10, 0
    %p122 = por %p120, %p121
    %p123 = scmp.ne.s32.totalorder %s112, %s115
    %p124 = scmp.eq.s32.totalorder %s15, 1
    %p125 = por %p123, %p124
    %p126 = scmp.ne.s32.totalorder %s115, %s116
    %p127 = scmp.eq.s32.totalorder %s15, 0
    %p128 = por %p126, %p127
    %p129 = scmp.ne.s32.totalorder %s115, %s116
    %p130 = scmp.eq.s32.totalorder %s16, 1
    %p131 = por %p129, %p130
    %p133 = scmp.ne.s32.totalorder %s116, %s132
    %p134 = scmp.eq.s32.totalorder %s16, 0
    %p135 = por %p133, %p134
    %s136 = ssub.s32 %s17, %s29
    %s137 = ssub.s32 %s18, %s25
    %s138 = sor.u32 %s136, %s137
    %p139 = scmp.eq.s32.totalorder %s138, 0
    %s141 = sadd.s32 %s140, 1
    %s142 = scalar_select %p139, %s140, %s141
    %p145 = pneg %p139
    %p146 = scmp.eq.s32.totalorder %s10, 1
    %p147 = por %p145, %p146
    %p148 = scmp.ne.s32.totalorder %s140, %s143
    %p149 = scmp.eq.s32.totalorder %s10, 0
    %p150 = por %p148, %p149
    %p151 = scmp.ne.s32.totalorder %s140, %s143
    %p152 = scmp.eq.s32.totalorder %s15, 1
    %p153 = por %p151, %p152
    %p154 = scmp.ne.s32.totalorder %s143, %s144
    %p155 = scmp.eq.s32.totalorder %s15, 0
    %p156 = por %p154, %p155
    %p157 = scmp.ne.s32.totalorder %s143, %s144
    %p158 = scmp.eq.s32.totalorder %s16, 1
    %p159 = por %p157, %p158
    %p161 = scmp.ne.s32.totalorder %s144, %s160
    %p162 = scmp.eq.s32.totalorder %s16, 0
    %p163 = por %p161, %p162
    %p164 = scmp.le.s32.totalorder 1, %s10
    %p165 = scmp.lt.s32.totalorder %s10, 3
    %p166 = pnand %p164, %p165
    %p167 = pneg %p166
    // Predicated region
    $region9: #{audiomae_forward.20} parent=5 // pred_check
      _
    $region10: #{audiomae_forward.20} parent=5 // pred_check_branch
      %169 = sbr.rel (%p166) target = $region12
    $region11: #{audiomae_forward.20} parent=5 // pred_region
      %s170 = ssub.s32 %s10, 1
      // Predicated region
      $region13: #{audiomae_forward.20} parent=11 // pred_check
        %p171 = pneg %p74
      $region14: #{audiomae_forward.20} parent=11 // pred_check_branch
        %173 = sbr.rel (%p171) target = $region16
      $region15: #{audiomae_forward.20} parent=11 // pred_region
        %p174 = scmp.lt.s32.totalorder %s20, 0
        %s175 = scalar_select %p174, %s20, 0
        %s176 = smul.addr %s175, 4
        %s177 = scalar_lea.vmem %s1, %s176
      $region16: #{audiomae_forward.20} parent=11 // pred_fallthru
        _
      // Predicated region
      $region17: #{audiomae_forward.20} parent=11 // pred_check
        %p178 = pneg %p100
      $region18: #{audiomae_forward.20} parent=11 // pred_check_branch
        %180 = sbr.rel (%p178) target = $region20
      $region19: #{audiomae_forward.20} parent=11 // pred_region
        %p181 = scmp.lt.s32.totalorder %s20, 0
        %s182 = scalar_select %p181, %s20, 0
        %s183 = scalar_lea.vmem %s2, %s182
      $region20: #{audiomae_forward.20} parent=11 // pred_fallthru
        _
    $region12: #{audiomae_forward.20} parent=5 // pred_fallthru
      _
    %p184 = scmp.lt.s32.totalorder %s10, 2
    // Predicated region
    $region21: #{audiomae_forward.20} parent=5 // pred_check
      %p185 = pneg %p184
    $region22: #{audiomae_forward.20} parent=5 // pred_check_branch
      %187 = sbr.rel (%p185) target = $region24
    $region23: #{audiomae_forward.20} parent=5 // pred_region
      // Predicated region
      $region25: #{audiomae_forward.20} parent=23 // pred_check
        %p188 = pneg %p42
      $region26: #{audiomae_forward.20} parent=23 // pred_check_branch
        %190 = sbr.rel (%p188) target = $region28
      $region27: #{audiomae_forward.20} parent=23 // pred_region
        %p191 = scmp.lt.s32.totalorder %s17, 1
        %s192 = scalar_select %p191, %s17, 1
        %s193 = smul.addr %s192, 2
        %s194 = smul.addr %s193, 4
        %s195 = scalar_lea.vmem %s0, %s194
      $region28: #{audiomae_forward.20} parent=23 // pred_fallthru
        _
      // Predicated region
      $region29: #{audiomae_forward.20} parent=23 // pred_check
        %p196 = pneg %p122
      $region30: #{audiomae_forward.20} parent=23 // pred_check_branch
        %198 = sbr.rel (%p196) target = $region32
      $region31: #{audiomae_forward.20} parent=23 // pred_region
        %p199 = scmp.lt.s32.totalorder %s17, 1
        %s200 = scalar_select %p199, %s17, 1
        %p201 = scmp.lt.s32.totalorder %s18, 0
        %s202 = scalar_select %p201, %s18, 0
        %s203 = smul.addr %s200, 2
        %s204 = sadd.s32 %s202, %s203
        %s205 = smul.addr %s204, 8
        %s206 = scalar_lea.vmem %s3, %s205
      $region32: #{audiomae_forward.20} parent=23 // pred_fallthru
        _
    $region24: #{audiomae_forward.20} parent=5 // pred_fallthru
      _
    %p207 = scmp.le.s32.totalorder 1, %s10
    %p208 = scmp.lt.s32.totalorder %s10, 3
    %p209 = pnand %p207, %p208
    %p210 = pneg %p209
    // Predicated region
    $region33: #{audiomae_forward.20} parent=5 // pred_check
      _
    $region34: #{audiomae_forward.20} parent=5 // pred_check_branch
      %212 = sbr.rel (%p209) target = $region36
    $region35: #{audiomae_forward.20} parent=5 // pred_region
      %s213 = ssub.s32 %s10, 1
      %p214 = scmp.lt.s32.totalorder %s19, 1
      %s215 = scalar_select %p214, %s19, 1
      %s216 = smul.addr %s215, 2
      %s217 = smul.addr %s216, 4
      %s218 = scalar_lea.vmem %s0, %s217
      %p219 = pneg %p48
      %p220 = pneg %p45
      %p221 = scmp.lt.s32.totalorder %s20, 0
      %s222 = scalar_select %p221, %s20, 0
      %s223 = smul.addr %s222, 4
      %s224 = scalar_lea.vmem %s1, %s223
      %p225 = pneg %p74
      %p226 = pneg %p71
      %p227 = scmp.lt.s32.totalorder %s20, 0
      %s228 = scalar_select %p227, %s20, 0
      %s229 = scalar_lea.vmem %s2, %s228
      %p230 = pneg %p100
      %p231 = pneg %p97
      %p232 = scmp.lt.s32.totalorder %s19, 1
      %s233 = scalar_select %p232, %s19, 1
      %p234 = scmp.lt.s32.totalorder %s20, 0
      %s235 = scalar_select %p234, %s20, 0
      %s236 = smul.addr %s233, 2
      %s237 = sadd.s32 %s235, %s236
      %s238 = smul.addr %s237, 8
      %s239 = scalar_lea.vmem %s3, %s238
      %p240 = pneg %p128
      %p241 = pneg %p125
      %p242 = pneg %p156
      %p243 = pneg %p153
      %p244 = scmp.lt.s32.totalorder %s19, 1
      %s245 = scalar_select %p244, %s19, 1
      %p246 = scmp.lt.s32.totalorder %s20, 0
      %s247 = scalar_select %p246, %s20, 0
      %s248 = smul.addr %s245, 2
      %s249 = sadd.s32 %s247, %s248
      %s250 = smul.addr %s249, 8
      %s251 = scalar_lea.vmem %s4, %s250
      %p252 = scmp.lt.s32.totalorder %s19, 1
      %s253 = scalar_select %p252, %s19, 1
      %s254 = smul.addr %s253, 2
      %s255 = smul.addr %s254, 4
      %s256 = scalar_lea.vmem %s0, %s255
      %p257 = scmp.lt.s32.totalorder %s20, 0
      %s258 = scalar_select %p257, %s20, 0
      %s259 = smul.addr %s258, 4
      %s260 = scalar_lea.vmem %s1, %s259
      %p261 = scmp.lt.s32.totalorder %s20, 0
      %s262 = scalar_select %p261, %s20, 0
      %s263 = scalar_lea.vmem %s2, %s262
      %p264 = scmp.lt.s32.totalorder %s19, 1
      %s265 = scalar_select %p264, %s19, 1
      %p266 = scmp.lt.s32.totalorder %s20, 0
      %s267 = scalar_select %p266, %s20, 0
      %s268 = smul.addr %s265, 2
      %s269 = sadd.s32 %s267, %s268
      %s270 = smul.addr %s269, 8
      %s271 = scalar_lea.vmem %s3, %s270
      %p272 = scmp.lt.s32.totalorder %s19, 1
      %s273 = scalar_select %p272, %s19, 1
      %p274 = scmp.lt.s32.totalorder %s20, 0
      %s275 = scalar_select %p274, %s20, 0
      %s276 = smul.addr %s273, 2
      %s277 = sadd.s32 %s275, %s276
      %s278 = smul.addr %s277, 8
      %s279 = scalar_lea.vmem %s4, %s278
      %v281 = vld [vmem:[%s256] sm:$0xf]
      %v282 = vld [vmem:[%s256 + $0x4] sm:$0x1]
      %v283 = vld [vmem:[%s260] sm:$0xf]
      %v284 = vld [vmem:[%s260 + $0x4] sm:$0xf]
      %v285 = vld [vmem:[%s260 + $0x8] sm:$0xf]
      %v286 = vld [vmem:[%s260 + $0xc] sm:$0xf]
      %v287 = vld [vmem:[%s260 + $0x10] sm:$0xf]
      %v288 = vld [vmem:[%s260 + $0x14] sm:$0xf]
      %v289 = vld [vmem:[%s260 + $0x18] sm:$0xf]
      %v290 = vld [vmem:[%s260 + $0x1c] sm:$0xf]
      %v291 = vld [vmem:[%s260 + $0x20] sm:$0xf]
      %v292 = vld [vmem:[%s260 + $0x24] sm:$0xf]
      %v293 = vld [vmem:[%s260 + $0x28] sm:$0xf]
      %v294 = vld [vmem:[%s260 + $0x2c] sm:$0xf]
      %v295 = vld [vmem:[%s260 + $0x30] sm:$0xf]
      %v296 = vld [vmem:[%s260 + $0x34] sm:$0xf]
      %v297 = vld [vmem:[%s260 + $0x38] sm:$0xf]
      %v298 = vld [vmem:[%s260 + $0x3c] sm:$0xf]
      %v299 = vld [vmem:[%s263] sm:$0x1]
      %v301 = vlaneseq
      %v302 = vshrl.u32 %v301, 7
      %v303 = vsub.s32 0, %v302
      %v304 = vrot.slane %v299, %v303
      %v308 = vunpack.c.l.b16 %v281
      %v309 = vunpack.c.l.b16 %v282
      %v310 = vpack.c.b16 %v309, %v308
      %v328 = vunpack.c.l.b16 %v283
      %v329 = vunpack.c.l.b16 %v284
      %v330 = vunpack.c.l.b16 %v285
      %v331 = vunpack.c.l.b16 %v286
      %v332 = vunpack.c.l.b16 %v287
      %v333 = vunpack.c.l.b16 %v288
      %v334 = vunpack.c.l.b16 %v289
      %v335 = vunpack.c.l.b16 %v290
      %v336 = vunpack.c.l.b16 %v291
      %v337 = vunpack.c.l.b16 %v292
      %v338 = vunpack.c.l.b16 %v293
      %v339 = vunpack.c.l.b16 %v294
      %v340 = vunpack.c.l.b16 %v295
      %v341 = vunpack.c.l.b16 %v296
      %v342 = vunpack.c.l.b16 %v297
      %v343 = vunpack.c.l.b16 %v298
      %v344 = vpack.c.b16 %v329, %v328
      %v345 = vpack.c.b16 %v331, %v330
      %v346 = vpack.c.b16 %v333, %v332
      %v347 = vpack.c.b16 %v335, %v334
      %v348 = vpack.c.b16 %v337, %v336
      %v349 = vpack.c.b16 %v339, %v338
      %v350 = vpack.c.b16 %v341, %v340
      %v351 = vpack.c.b16 %v343, %v342
      %360 = vmatprep.subr.bf16.mxu0 0
      %361 = vmatpush1.bf16.msra.mxu0 %v344
      %362 = vmatprep.subr.bf16.mxu0 0
      %363 = vmatpush1.bf16.msra.mxu0 %v345
      %364 = vmatprep.subr.bf16.mxu0 0
      %365 = vmatpush1.bf16.msra.mxu0 %v346
      %366 = vmatprep.subr.bf16.mxu0 0
      %367 = vmatpush1.bf16.msra.mxu0 %v347
      %368 = vmatprep.subr.bf16.mxu0 0
      %369 = vmatpush1.bf16.msra.mxu0 %v348
      %370 = vmatprep.subr.bf16.mxu0 0
      %371 = vmatpush1.bf16.msra.mxu0 %v349
      %372 = vmatprep.subr.bf16.mxu0 0
      %373 = vmatpush1.bf16.msra.mxu0 %v350
      %374 = vmatprep.subr.bf16.mxu0 0
      %375 = vmatpush1.bf16.msra.mxu0 %v351
      %376 = vmatprep.subr.bf16.mxu0 0
      %377 = vmatpush1.bf16.msra.mxu0 0
      %378 = vmatprep.subr.bf16.mxu0 0
      %379 = vmatpush1.bf16.msra.mxu0 0
      %380 = vmatprep.subr.bf16.mxu0 0
      %381 = vmatpush1.bf16.msra.mxu0 0
      %382 = vmatprep.subr.bf16.mxu0 0
      %383 = vmatpush1.bf16.msra.mxu0 0
      %384 = vmatprep.subr.bf16.mxu0 0
      %385 = vmatpush1.bf16.msra.mxu0 0
      %386 = vmatprep.subr.bf16.mxu0 0
      %387 = vmatpush1.bf16.msra.mxu0 0
      %388 = vmatprep.subr.bf16.mxu0 0
      %389 = vmatpush1.bf16.msra.mxu0 0
      %390 = vmatprep.subr.bf16.mxu0 0
      %391 = vmatpush1.bf16.msra.mxu0 0
      %392 = vmatprep.mubr.bf16.mxu0 0
      %393 = vmatmul.mubr.bf16.gmra.mrb[0].mxu0 %v310
      %v394 = vpop.f32.mrb[0].mxu0
      %v395 = vadd.f32 %v304, %v394
      %v396 = vpop.f32.mrb[0].mxu0
      %v397 = vpop.f32.mrb[0].mxu0
      %v398 = vadd.f32 %v304, %v397
      %v399 = vpop.f32.mrb[0].mxu0
      %400 = vdwg.mxu0
      %v401 = vld [vmem:[%s271] sm:$0xff]
      %v402 = vld [vmem:[%s271 + $0x8] sm:$0x1]
      %v403 = vadd.f32 %v395, %v401
      %v404 = vadd.f32 %v398, %v402
      %405 = vst [vmem:[%s279] sm:$0xff] %v403
      %406 = vst [vmem:[%s279 + $0x8] sm:$0x1] %v404
      %p407 = scmp.lt.s32.totalorder %s19, 1
      %s408 = scalar_select %p407, %s19, 1
      %p409 = scmp.lt.s32.totalorder %s20, 0
      %s410 = scalar_select %p409, %s20, 0
      %s411 = smul.addr %s408, 2
      %s412 = sadd.s32 %s410, %s411
      %s413 = smul.addr %s412, 8
      %s414 = scalar_lea.vmem %s4, %s413
      // Predicated region
      $region37: #{audiomae_forward.20} parent=35 // pred_check
        %p415 = pneg %p153
      $region38: #{audiomae_forward.20} parent=35 // pred_check_branch
        %417 = sbr.rel (%p415) target = $region40
      $region39: #{audiomae_forward.20} parent=35 // pred_region
        _
      $region40: #{audiomae_forward.20} parent=35 // pred_fallthru
        _
    $region36: #{audiomae_forward.20} parent=5 // pred_fallthru
      _
    %p418 = scmp.le.s32.totalorder 2, %s10
    // Predicated region
    $region41: #{audiomae_forward.20} parent=5 // pred_check
      %p419 = pneg %p418
    $region42: #{audiomae_forward.20} parent=5 // pred_check_branch
      %421 = sbr.rel (%p419) target = $region44
    $region43: #{audiomae_forward.20} parent=5 // pred_region
      %s422 = ssub.s32 %s10, 2
      // Predicated region
      $region45: #{audiomae_forward.20} parent=43 // pred_check
        %p423 = pneg %p159
      $region46: #{audiomae_forward.20} parent=43 // pred_check_branch
        %425 = sbr.rel (%p423) target = $region48
      $region47: #{audiomae_forward.20} parent=43 // pred_region
        %p426 = scmp.lt.s32.totalorder %s21, 1
        %s427 = scalar_select %p426, %s21, 1
        %p428 = scmp.lt.s32.totalorder %s22, 0
        %s429 = scalar_select %p428, %s22, 0
        %s430 = smul.addr %s427, 2
        %s431 = sadd.s32 %s429, %s430
        %s432 = smul.addr %s431, 8
        %s433 = scalar_lea.vmem %s4, %s432
      $region48: #{audiomae_forward.20} parent=43 // pred_fallthru
        _
    $region44: #{audiomae_forward.20} parent=5 // pred_fallthru
      _
  $region6: #{audiomae_forward.20} parent=0 // loop_footer
    %s14 = sadd.s32 1, %s10
  $region7: #{audiomae_forward.20} parent=0 // loop_footer_branch
    %9 = sbr.rel target = $region3
  $region8: #{audiomae_forward.20} parent=0 // loop_exit
    _

// kernel: audiomae_forward.19
$region0: #{audiomae_forward.19}
  #allocation0 [shape = 'u32[]', space=smem, size = 0x4, offset = 0x4, fixed_abs, tag = 'smem constant byte address 0x4 - core index']
  #allocation1 [shape = 'u32[144,128]{1,0:T(1,128)}', space=vmem, size = 0x12000, scoped, tag = 'internal scratch']
  %s0 = inlined_call_operand.vmem [shape: bf16[2,9,384], index: 0, kind: input, shape index: {}, may-alias: {0,1,2}]
  %s1 = inlined_call_operand.vmem [shape: bf16[2,9,384], index: 1, kind: input, shape index: {}, may-alias: {0,1,2}]
  %s2 = inlined_call_operand.vmem [shape: bf16[2,9,384], index: 2, kind: input, shape index: {}, may-alias: {0,1,2}]
  %s3 = inlined_call_operand.vmem [shape: bf16[2,9,128], index: 3, kind: output, shape index: {}]
  %s4 = sld [smem:[#allocation0]]
  $region168: #{audiomae_forward.19} parent=0
    _
  %s6 = ssub.s32 1, %s4
  %s7 = scalar_select 0, %s6, %s4
  $region1: #{audiomae_forward.19} parent=0
    #allocation2 [shape = 'u8[8192]{0}', space=vmem, size = 0x2000, scoped, tag = 'input window, operand 0']
    #allocation3 [shape = 'u8[8192]{0}', space=vmem, size = 0x2000, scoped, tag = 'input window, operand 1']
    #allocation4 [shape = 'u8[8192]{0}', space=vmem, size = 0x2000, scoped, tag = 'input window, operand 2']
    loop: start=0, step=1, limit=4
    $region2: #{audiomae_forward.19} parent=1 // loop_pre_header
      _
    $region3: #{audiomae_forward.19} parent=1 // loop_header
      %s9 = sphi 0, %s13
      %p10 = scmp.ge.s32.totalorder %s9, 4
      %s16 = sphi 0, %s28
      %s17 = sphi 0, %s24
      %s18 = sphi 0, %s16
      %s19 = sphi 0, %s17
      %s20 = sphi 0, %s18
      %s21 = sphi 0, %s19
      %s33 = sphi 0, %s35
      %s36 = sphi 0, %s33
      %s37 = sphi 0, %s36
      %s53 = sphi 0, %s37
      %s63 = sphi 0, %s65
      %s66 = sphi 0, %s63
      %s67 = sphi 0, %s66
      %s83 = sphi 0, %s67
      %s93 = sphi 0, %s95
      %s96 = sphi 0, %s93
      %s97 = sphi 0, %s96
      %s113 = sphi 0, %s97
      %s121 = sphi 0, %s123
      %s124 = sphi 0, %s121
      %s125 = sphi 0, %s124
      %s141 = sphi 0, %s125
    $region4: #{audiomae_forward.19} parent=1 // loop_header_branch
      %12 = sbr.rel (%p10) target = $region8
    $region5: #{audiomae_forward.19} parent=1 // loop_body
      %s14 = ssub.s32 %s9, 1
      %s15 = ssub.s32 %s9, 2
      %s22 = sadd.s32 1, %s17
      %p23 = scmp.ge.s32.totalorder %s22, 1
      %s24 = scalar_select %p23, 0, %s22
      %s25 = sadd.s32 1, %s16
      %s26 = scalar_select %p23, %s25, %s16
      %p27 = scmp.ge.s32.totalorder %s26, 2
      %s28 = scalar_select %p27, 0, %s26
      %s29 = ssub.s32 %s16, %s28
      %s30 = ssub.s32 %s17, %s24
      %s31 = sor.u32 %s29, %s30
      %p32 = scmp.eq.s32.totalorder %s31, 0
      %s34 = sadd.s32 %s33, 1
      %s35 = scalar_select %p32, %s33, %s34
      %p38 = pneg %p32
      %p39 = scmp.eq.s32.totalorder %s9, 1
      %p40 = por %p38, %p39
      %p41 = scmp.ne.s32.totalorder %s33, %s36
      %p42 = scmp.eq.s32.totalorder %s9, 0
      %p43 = por %p41, %p42
      %p44 = scmp.ne.s32.totalorder %s33, %s36
      %p45 = scmp.eq.s32.totalorder %s14, 1
      %p46 = por %p44, %p45
      %p47 = scmp.ne.s32.totalorder %s36, %s37
      %p48 = scmp.eq.s32.totalorder %s14, 0
      %p49 = por %p47, %p48
      %p50 = scmp.ne.s32.totalorder %s36, %s37
      %p51 = scmp.eq.s32.totalorder %s15, 1
      %p52 = por %p50, %p51
      %p54 = scmp.ne.s32.totalorder %s37, %s53
      %p55 = scmp.eq.s32.totalorder %s15, 0
      %p56 = por %p54, %p55
      %s57 = sadd.s32 %s17, 1
      %s58 = sadd.s32 %s24, 1
      %s59 = ssub.s32 %s16, %s28
      %s60 = ssub.s32 %s57, %s58
      %s61 = sor.u32 %s59, %s60
      %p62 = scmp.eq.s32.totalorder %s61, 0
      %s64 = sadd.s32 %s63, 1
      %s65 = scalar_select %p62, %s63, %s64
      %p68 = pneg %p62
      %p69 = scmp.eq.s32.totalorder %s9, 1
      %p70 = por %p68, %p69
      %p71 = scmp.ne.s32.totalorder %s63, %s66
      %p72 = scmp.eq.s32.totalorder %s9, 0
      %p73 = por %p71, %p72
      %p74 = scmp.ne.s32.totalorder %s63, %s66
      %p75 = scmp.eq.s32.totalorder %s14, 1
      %p76 = por %p74, %p75
      %p77 = scmp.ne.s32.totalorder %s66, %s67
      %p78 = scmp.eq.s32.totalorder %s14, 0
      %p79 = por %p77, %p78
      %p80 = scmp.ne.s32.totalorder %s66, %s67
      %p81 = scmp.eq.s32.totalorder %s15, 1
      %p82 = por %p80, %p81
      %p84 = scmp.ne.s32.totalorder %s67, %s83
      %p85 = scmp.eq.s32.totalorder %s15, 0
      %p86 = por %p84, %p85
      %s87 = sadd.s32 %s17, 2
      %s88 = sadd.s32 %s24, 2
      %s89 = ssub.s32 %s16, %s28
      %s90 = ssub.s32 %s87, %s88
      %s91 = sor.u32 %s89, %s90
      %p92 = scmp.eq.s32.totalorder %s91, 0
      %s94 = sadd.s32 %s93, 1
      %s95 = scalar_select %p92, %s93, %s94
      %p98 = pneg %p92
      %p99 = scmp.eq.s32.totalorder %s9, 1
      %p100 = por %p98, %p99
      %p101 = scmp.ne.s32.totalorder %s93, %s96
      %p102 = scmp.eq.s32.totalorder %s9, 0
      %p103 = por %p101, %p102
      %p104 = scmp.ne.s32.totalorder %s93, %s96
      %p105 = scmp.eq.s32.totalorder %s14, 1
      %p106 = por %p104, %p105
      %p107 = scmp.ne.s32.totalorder %s96, %s97
      %p108 = scmp.eq.s32.totalorder %s14, 0
      %p109 = por %p107, %p108
      %p110 = scmp.ne.s32.totalorder %s96, %s97
      %p111 = scmp.eq.s32.totalorder %s15, 1
      %p112 = por %p110, %p111
      %p114 = scmp.ne.s32.totalorder %s97, %s113
      %p115 = scmp.eq.s32.totalorder %s15, 0
      %p116 = por %p114, %p115
      %s117 = ssub.s32 %s16, %s28
      %s118 = ssub.s32 %s17, %s24
      %s119 = sor.u32 %s117, %s118
      %p120 = scmp.eq.s32.totalorder %s119, 0
      %s122 = sadd.s32 %s121, 1
      %s123 = scalar_select %p120, %s121, %s122
      %p126 = pneg %p120
      %p127 = scmp.eq.s32.totalorder %s9, 1
      %p128 = por %p126, %p127
      %p129 = scmp.ne.s32.totalorder %s121, %s124
      %p130 = scmp.eq.s32.totalorder %s9, 0
      %p131 = por %p129, %p130
      %p132 = scmp.ne.s32.totalorder %s121, %s124
      %p133 = scmp.eq.s32.totalorder %s14, 1
      %p134 = por %p132, %p133
      %p135 = scmp.ne.s32.totalorder %s124, %s125
      %p136 = scmp.eq.s32.totalorder %s14, 0
      %p137 = por %p135, %p136
      %p138 = scmp.ne.s32.totalorder %s124, %s125
      %p139 = scmp.eq.s32.totalorder %s15, 1
      %p140 = por %p138, %p139
      %p142 = scmp.ne.s32.totalorder %s125, %s141
      %p143 = scmp.eq.s32.totalorder %s15, 0
      %p144 = por %p142, %p143
      %p145 = scmp.le.s32.totalorder 1, %s9
      %p146 = scmp.lt.s32.totalorder %s9, 3
      %p147 = pnand %p145, %p146
      %p148 = pneg %p147
      // Predicated region
      $region9: #{audiomae_forward.19} parent=5 // pred_check
        _
      $region10: #{audiomae_forward.19} parent=5 // pred_check_branch
        %150 = sbr.rel (%p147) target = $region12
      $region11: #{audiomae_forward.19} parent=5 // pred_region
        %s151 = ssub.s32 %s9, 1
      $region12: #{audiomae_forward.19} parent=5 // pred_fallthru
        _
      %p152 = scmp.lt.s32.totalorder %s9, 2
      // Predicated region
      $region13: #{audiomae_forward.19} parent=5 // pred_check
        %p153 = pneg %p152
      $region14: #{audiomae_forward.19} parent=5 // pred_check_branch
        %155 = sbr.rel (%p153) target = $region16
      $region15: #{audiomae_forward.19} parent=5 // pred_region
        // Predicated region
        $region17: #{audiomae_forward.19} parent=15 // pred_check
          %p156 = pneg %p43
        $region18: #{audiomae_forward.19} parent=15 // pred_check_branch
          %158 = sbr.rel (%p156) target = $region20
        $region19: #{audiomae_forward.19} parent=15 // pred_region
          %s159 = sand.u32 %s33, 1
          %s160 = sand.u32 %s33, 1
          %s161 = smul.addr %s160, 8
          %s162 = scalar_lea.vmem [#allocation2], %s161
          %s163 = smul.addr %s16, 6
          %s164 = sadd.s32 %s17, %s163
          %s165 = smul.addr %s164, 4
          %s166 = scalar_lea.vmem %s0, %s165
          // Predicated region
          $region21: #{audiomae_forward.19} parent=19 // pred_check
            _
          $region22: #{audiomae_forward.19} parent=19 // pred_check_branch
            %168 = sbr.rel (0) target = $region24
          $region23: #{audiomae_forward.19} parent=19 // pred_region
            // Predicated region
            $region25: #{audiomae_forward.19} parent=23 // pred_check
              _
            $region26: #{audiomae_forward.19} parent=23 // pred_check_branch
              %170 = sbr.rel target = $region28
            $region27: #{audiomae_forward.19} parent=23 // pred_region
              // Predicated region
              $region40: #{audiomae_forward.19} parent=27 // pred_check
                _
              $region41: #{audiomae_forward.19} parent=27 // pred_check_branch
                %187 = sbr.rel (0) target = $region43
              $region42: #{audiomae_forward.19} parent=27 // pred_region
                loop: start=0, step=1, limit=1
                $region44: #{audiomae_forward.19} parent=42 // loop_pre_header
                  _
                $region45: #{audiomae_forward.19} parent=42 // loop_header
                  %s189 = sphi 0, %s193
                  %p190 = scmp.ge.s32.totalorder %s189, 1
                  %s194 = sphi %s166, %s166
                  %s195 = sphi %s162, %s162
                $region46: #{audiomae_forward.19} parent=42 // loop_header_branch
                  %192 = sbr.rel (%p190) target = $region50
                $region47: #{audiomae_forward.19} parent=42 // loop_body
                  _
                $region48: #{audiomae_forward.19} parent=42 // loop_footer
                  %s193 = sadd.s32 1, %s189
                $region49: #{audiomae_forward.19} parent=42 // loop_footer_branch
                  %188 = sbr.rel target = $region45
                $region50: #{audiomae_forward.19} parent=42 // loop_exit
                  _
                loop: start=0, step=1, limit=1
                $region51: #{audiomae_forward.19} parent=42 // loop_pre_header
                  _
                $region52: #{audiomae_forward.19} parent=42 // loop_header
                  %s198 = sphi 0, %s202
                  %p199 = scmp.ge.s32.totalorder %s198, 1
                  %s203 = sphi %s166, %s166
                  %s204 = sphi %s162, %s162
                $region53: #{audiomae_forward.19} parent=42 // loop_header_branch
                  %201 = sbr.rel (%p199) target = $region57
                $region54: #{audiomae_forward.19} parent=42 // loop_body
                  %v205 = vld [vmem:[%s203] sm:$0xf]
                  %206 = vst [vmem:[%s204] sm:$0xf] %v205
                  %v207 = vld [vmem:[%s203 + $0xc] sm:$0xf]
                  %208 = vst [vmem:[%s204 + $0x4] sm:$0xf] %v207
                $region55: #{audiomae_forward.19} parent=42 // loop_footer
                  %s202 = sadd.s32 1, %s198
                $region56: #{audiomae_forward.19} parent=42 // loop_footer_branch
                  %197 = sbr.rel target = $region52
                $region57: #{audiomae_forward.19} parent=42 // loop_exit
                  _
              $region43: #{audiomae_forward.19} parent=27 // pred_fallthru
                _
            $region28: #{audiomae_forward.19} parent=23 // pred_fallthru
              _
            // Predicated region
            $region29: #{audiomae_forward.19} parent=23 // pred_check
              _
            $region30: #{audiomae_forward.19} parent=23 // pred_check_branch
              %172 = sbr.rel (0) target = $region32
            $region31: #{audiomae_forward.19} parent=23 // pred_region
              loop: start=0, step=1, limit=1
              $region33: #{audiomae_forward.19} parent=31 // loop_pre_header
                _
              $region34: #{audiomae_forward.19} parent=31 // loop_header
                %s175 = sphi 0, %s179
                %p176 = scmp.ge.s32.totalorder %s175, 1
                %s180 = sphi %s166, %s166
                %s181 = sphi %s162, %s162
              $region35: #{audiomae_forward.19} parent=31 // loop_header_branch
                %178 = sbr.rel (%p176) target = $region39
              $region36: #{audiomae_forward.19} parent=31 // loop_body
                %v182 = vld [vmem:[%s180] sm:$0xf]
                %183 = vst [vmem:[%s181] sm:$0xf] %v182
                %v184 = vld [vmem:[%s180 + $0xc] sm:$0xf]
                %185 = vst [vmem:[%s181 + $0x4] sm:$0xf] %v184
              $region37: #{audiomae_forward.19} parent=31 // loop_footer
                %s179 = sadd.s32 1, %s175
              $region38: #{audiomae_forward.19} parent=31 // loop_footer_branch
                %174 = sbr.rel target = $region34
              $region39: #{audiomae_forward.19} parent=31 // loop_exit
                _
            $region32: #{audiomae_forward.19} parent=23 // pred_fallthru
              _
          $region24: #{audiomae_forward.19} parent=19 // pred_fallthru
            _
          %209 = vnop
        $region20: #{audiomae_forward.19} parent=15 // pred_fallthru
          _
        // Predicated region
        $region58: #{audiomae_forward.19} parent=15 // pred_check
          %p210 = pneg %p73
        $region59: #{audiomae_forward.19} parent=15 // pred_check_branch
          %212 = sbr.rel (%p210) target = $region61
        $region60: #{audiomae_forward.19} parent=15 // pred_region
          %s213 = sand.u32 %s63, 1
          %s214 = sand.u32 %s63, 1
          %s215 = smul.addr %s214, 8
          %s216 = scalar_lea.vmem [#allocation3], %s215
          %s217 = sadd.s32 %s17, 1
          %s218 = smul.addr %s16, 6
          %s219 = sadd.s32 %s217, %s218
          %s220 = smul.addr %s219, 4
          %s221 = scalar_lea.vmem %s1, %s220
          // Predicated region
          $region62: #{audiomae_forward.19} parent=60 // pred_check
            _
          $region63: #{audiomae_forward.19} parent=60 // pred_check_branch
            %223 = sbr.rel (0) target = $region65
          $region64: #{audiomae_forward.19} parent=60 // pred_region
            // Predicated region
            $region66: #{audiomae_forward.19} parent=64 // pred_check
              _
            $region67: #{audiomae_forward.19} parent=64 // pred_check_branch
              %225 = sbr.rel target = $region69
            $region68: #{audiomae_forward.19} parent=64 // pred_region
              // Predicated region
              $region81: #{audiomae_forward.19} parent=68 // pred_check
                _
              $region82: #{audiomae_forward.19} parent=68 // pred_check_branch
                %242 = sbr.rel (0) target = $region84
              $region83: #{audiomae_forward.19} parent=68 // pred_region
                loop: start=0, step=1, limit=1
                $region85: #{audiomae_forward.19} parent=83 // loop_pre_header
                  _
                $region86: #{audiomae_forward.19} parent=83 // loop_header
                  %s244 = sphi 0, %s248
                  %p245 = scmp.ge.s32.totalorder %s244, 1
                  %s249 = sphi %s221, %s221
                  %s250 = sphi %s216, %s216
                $region87: #{audiomae_forward.19} parent=83 // loop_header_branch
                  %247 = sbr.rel (%p245) target = $region91
                $region88: #{audiomae_forward.19} parent=83 // loop_body
                  _
                $region89: #{audiomae_forward.19} parent=83 // loop_footer
                  %s248 = sadd.s32 1, %s244
                $region90: #{audiomae_forward.19} parent=83 // loop_footer_branch
                  %243 = sbr.rel target = $region86
                $region91: #{audiomae_forward.19} parent=83 // loop_exit
                  _
                loop: start=0, step=1, limit=1
                $region92: #{audiomae_forward.19} parent=83 // loop_pre_header
                  _
                $region93: #{audiomae_forward.19} parent=83 // loop_header
                  %s253 = sphi 0, %s257
                  %p254 = scmp.ge.s32.totalorder %s253, 1
                  %s258 = sphi %s221, %s221
                  %s259 = sphi %s216, %s216
                $region94: #{audiomae_forward.19} parent=83 // loop_header_branch
                  %256 = sbr.rel (%p254) target = $region98
                $region95: #{audiomae_forward.19} parent=83 // loop_body
                  %v260 = vld [vmem:[%s258] sm:$0xf]
                  %261 = vst [vmem:[%s259] sm:$0xf] %v260
                  %v262 = vld [vmem:[%s258 + $0xc] sm:$0xf]
                  %263 = vst [vmem:[%s259 + $0x4] sm:$0xf] %v262
                $region96: #{audiomae_forward.19} parent=83 // loop_footer
                  %s257 = sadd.s32 1, %s253
                $region97: #{audiomae_forward.19} parent=83 // loop_footer_branch
                  %252 = sbr.rel target = $region93
                $region98: #{audiomae_forward.19} parent=83 // loop_exit
                  _
              $region84: #{audiomae_forward.19} parent=68 // pred_fallthru
                _
            $region69: #{audiomae_forward.19} parent=64 // pred_fallthru
              _
            // Predicated region
            $region70: #{audiomae_forward.19} parent=64 // pred_check
              _
            $region71: #{audiomae_forward.19} parent=64 // pred_check_branch
              %227 = sbr.rel (0) target = $region73
            $region72: #{audiomae_forward.19} parent=64 // pred_region
              loop: start=0, step=1, limit=1
              $region74: #{audiomae_forward.19} parent=72 // loop_pre_header
                _
              $region75: #{audiomae_forward.19} parent=72 // loop_header
                %s230 = sphi 0, %s234
                %p231 = scmp.ge.s32.totalorder %s230, 1
                %s235 = sphi %s221, %s221
                %s236 = sphi %s216, %s216
              $region76: #{audiomae_forward.19} parent=72 // loop_header_branch
                %233 = sbr.rel (%p231) target = $region80
              $region77: #{audiomae_forward.19} parent=72 // loop_body
                %v237 = vld [vmem:[%s235] sm:$0xf]
                %238 = vst [vmem:[%s236] sm:$0xf] %v237
                %v239 = vld [vmem:[%s235 + $0xc] sm:$0xf]
                %240 = vst [vmem:[%s236 + $0x4] sm:$0xf] %v239
              $region78: #{audiomae_forward.19} parent=72 // loop_footer
                %s234 = sadd.s32 1, %s230
              $region79: #{audiomae_forward.19} parent=72 // loop_footer_branch
                %229 = sbr.rel target = $region75
              $region80: #{audiomae_forward.19} parent=72 // loop_exit
                _
            $region73: #{audiomae_forward.19} parent=64 // pred_fallthru
              _
          $region65: #{audiomae_forward.19} parent=60 // pred_fallthru
            _
          %264 = vnop
        $region61: #{audiomae_forward.19} parent=15 // pred_fallthru
          _
        // Predicated region
        $region99: #{audiomae_forward.19} parent=15 // pred_check
          %p265 = pneg %p103
        $region100: #{audiomae_forward.19} parent=15 // pred_check_branch
          %267 = sbr.rel (%p265) target = $region102
        $region101: #{audiomae_forward.19} parent=15 // pred_region
          %s268 = sand.u32 %s93, 1
          %s269 = sand.u32 %s93, 1
          %s270 = smul.addr %s269, 8
          %s271 = scalar_lea.vmem [#allocation4], %s270
          %s272 = sadd.s32 %s17, 2
          %s273 = smul.addr %s16, 6
          %s274 = sadd.s32 %s272, %s273
          %s275 = smul.addr %s274, 4
          %s276 = scalar_lea.vmem %s2, %s275
          // Predicated region
          $region103: #{audiomae_forward.19} parent=101 // pred_check
            _
          $region104: #{audiomae_forward.19} parent=101 // pred_check_branch
            %278 = sbr.rel (0) target = $region106
          $region105: #{audiomae_forward.19} parent=101 // pred_region
            // Predicated region
            $region107: #{audiomae_forward.19} parent=105 // pred_check
              _
            $region108: #{audiomae_forward.19} parent=105 // pred_check_branch
              %280 = sbr.rel target = $region110
            $region109: #{audiomae_forward.19} parent=105 // pred_region
              // Predicated region
              $region122: #{audiomae_forward.19} parent=109 // pred_check
                _
              $region123: #{audiomae_forward.19} parent=109 // pred_check_branch
                %297 = sbr.rel (0) target = $region125
              $region124: #{audiomae_forward.19} parent=109 // pred_region
                loop: start=0, step=1, limit=1
                $region126: #{audiomae_forward.19} parent=124 // loop_pre_header
                  _
                $region127: #{audiomae_forward.19} parent=124 // loop_header
                  %s299 = sphi 0, %s303
                  %p300 = scmp.ge.s32.totalorder %s299, 1
                  %s304 = sphi %s276, %s276
                  %s305 = sphi %s271, %s271
                $region128: #{audiomae_forward.19} parent=124 // loop_header_branch
                  %302 = sbr.rel (%p300) target = $region132
                $region129: #{audiomae_forward.19} parent=124 // loop_body
                  _
                $region130: #{audiomae_forward.19} parent=124 // loop_footer
                  %s303 = sadd.s32 1, %s299
                $region131: #{audiomae_forward.19} parent=124 // loop_footer_branch
                  %298 = sbr.rel target = $region127
                $region132: #{audiomae_forward.19} parent=124 // loop_exit
                  _
                loop: start=0, step=1, limit=1
                $region133: #{audiomae_forward.19} parent=124 // loop_pre_header
                  _
                $region134: #{audiomae_forward.19} parent=124 // loop_header
                  %s308 = sphi 0, %s312
                  %p309 = scmp.ge.s32.totalorder %s308, 1
                  %s313 = sphi %s276, %s276
                  %s314 = sphi %s271, %s271
                $region135: #{audiomae_forward.19} parent=124 // loop_header_branch
                  %311 = sbr.rel (%p309) target = $region139
                $region136: #{audiomae_forward.19} parent=124 // loop_body
                  %v315 = vld [vmem:[%s313] sm:$0xf]
                  %316 = vst [vmem:[%s314] sm:$0xf] %v315
                  %v317 = vld [vmem:[%s313 + $0xc] sm:$0xf]
                  %318 = vst [vmem:[%s314 + $0x4] sm:$0xf] %v317
                $region137: #{audiomae_forward.19} parent=124 // loop_footer
                  %s312 = sadd.s32 1, %s308
                $region138: #{audiomae_forward.19} parent=124 // loop_footer_branch
                  %307 = sbr.rel target = $region134
                $region139: #{audiomae_forward.19} parent=124 // loop_exit
                  _
              $region125: #{audiomae_forward.19} parent=109 // pred_fallthru
                _
            $region110: #{audiomae_forward.19} parent=105 // pred_fallthru
              _
            // Predicated region
            $region111: #{audiomae_forward.19} parent=105 // pred_check
              _
            $region112: #{audiomae_forward.19} parent=105 // pred_check_branch
              %282 = sbr.rel (0) target = $region114
            $region113: #{audiomae_forward.19} parent=105 // pred_region
              loop: start=0, step=1, limit=1
              $region115: #{audiomae_forward.19} parent=113 // loop_pre_header
                _
              $region116: #{audiomae_forward.19} parent=113 // loop_header
                %s285 = sphi 0, %s289
                %p286 = scmp.ge.s32.totalorder %s285, 1
                %s290 = sphi %s276, %s276
                %s291 = sphi %s271, %s271
              $region117: #{audiomae_forward.19} parent=113 // loop_header_branch
                %288 = sbr.rel (%p286) target = $region121
              $region118: #{audiomae_forward.19} parent=113 // loop_body
                %v292 = vld [vmem:[%s290] sm:$0xf]
                %293 = vst [vmem:[%s291] sm:$0xf] %v292
                %v294 = vld [vmem:[%s290 + $0xc] sm:$0xf]
                %295 = vst [vmem:[%s291 + $0x4] sm:$0xf] %v294
              $region119: #{audiomae_forward.19} parent=113 // loop_footer
                %s289 = sadd.s32 1, %s285
              $region120: #{audiomae_forward.19} parent=113 // loop_footer_branch
                %284 = sbr.rel target = $region116
              $region121: #{audiomae_forward.19} parent=113 // loop_exit
                _
            $region114: #{audiomae_forward.19} parent=105 // pred_fallthru
              _
          $region106: #{audiomae_forward.19} parent=101 // pred_fallthru
            _
          %319 = vnop
        $region102: #{audiomae_forward.19} parent=15 // pred_fallthru
          _
      $region16: #{audiomae_forward.19} parent=5 // pred_fallthru
        _
      %p320 = scmp.le.s32.totalorder 1, %s9
      %p321 = scmp.lt.s32.totalorder %s9, 3
      %p322 = pnand %p320, %p321
      %p323 = pneg %p322
      // Predicated region
      $region140: #{audiomae_forward.19} parent=5 // pred_check
        _
      $region141: #{audiomae_forward.19} parent=5 // pred_check_branch
        %325 = sbr.rel (%p322) target = $region143
      $region142: #{audiomae_forward.19} parent=5 // pred_region
        %s326 = ssub.s32 %s9, 1
        %s327 = sand.u32 %s36, 1
        %s328 = sand.u32 %s36, 1
        %s329 = smul.addr %s328, 8
        %s330 = scalar_lea.vmem [#allocation2], %s329
        // Predicated region
        $region144: #{audiomae_forward.19} parent=142 // pred_check
          %p331 = pneg %p49
        $region145: #{audiomae_forward.19} parent=142 // pred_check_branch
          %333 = sbr.rel (%p331) target = $region147
        $region146: #{audiomae_forward.19} parent=142 // pred_region
          _
        $region147: #{audiomae_forward.19} parent=142 // pred_fallthru
          _
        %s334 = sand.u32 %s66, 1
        %s335 = sand.u32 %s66, 1
        %s336 = smul.addr %s335, 8
        %s337 = scalar_lea.vmem [#allocation3], %s336
        // Predicated region
        $region148: #{audiomae_forward.19} parent=142 // pred_check
          %p338 = pneg %p79
        $region149: #{audiomae_forward.19} parent=142 // pred_check_branch
          %340 = sbr.rel (%p338) target = $region151
        $region150: #{audiomae_forward.19} parent=142 // pred_region
          _
        $region151: #{audiomae_forward.19} parent=142 // pred_fallthru
          _
        %s341 = sand.u32 %s96, 1
        %s342 = sand.u32 %s96, 1
        %s343 = smul.addr %s342, 8
        %s344 = scalar_lea.vmem [#allocation4], %s343
        // Predicated region
        $region152: #{audiomae_forward.19} parent=142 // pred_check
          %p345 = pneg %p109
        $region153: #{audiomae_forward.19} parent=142 // pred_check_branch
          %347 = sbr.rel (%p345) target = $region155
        $region154: #{audiomae_forward.19} parent=142 // pred_region
          _
        $region155: #{audiomae_forward.19} parent=142 // pred_fallthru
          _
        %s348 = sand.u32 %s36, 1
        %s349 = sand.u32 %s36, 1
        %s350 = smul.addr %s349, 8
        %s351 = scalar_lea.vmem [#allocation2], %s350
        %p352 = pneg %p49
        %p353 = pneg %p46
        %s354 = sand.u32 %s66, 1
        %s355 = sand.u32 %s66, 1
        %s356 = smul.addr %s355, 8
        %s357 = scalar_lea.vmem [#allocation3], %s356
        %p358 = pneg %p79
        %p359 = pneg %p76
        %s360 = sand.u32 %s96, 1
        %s361 = sand.u32 %s96, 1
        %s362 = smul.addr %s361, 8
        %s363 = scalar_lea.vmem [#allocation4], %s362
        %p364 = pneg %p109
        %p365 = pneg %p106
        %p366 = pneg %p137
        %p367 = pneg %p134
        %p368 = scmp.lt.s32.totalorder %s18, 1
        %s369 = scalar_select %p368, %s18, 1
        %p370 = scmp.lt.s32.totalorder %s19, 0
        %s371 = scalar_select %p370, %s19, 0
        %s372 = smul.addr %s369, 2
        %s373 = sadd.s32 %s371, %s372
        %s374 = smul.addr %s373, 4
        %s375 = scalar_lea.vmem %s3, %s374
        %s376 = sadd.s32 %s19, 1
        %s377 = sadd.s32 %s19, 2
        %p378 = scmp.lt.s32.totalorder %s18, 1
        %s379 = scalar_select %p378, %s18, 1
        %p380 = scmp.lt.s32.totalorder %s19, 0
        %s381 = scalar_select %p380, %s19, 0
        %s382 = smul.addr %s379, 2
        %s383 = sadd.s32 %s381, %s382
        %s384 = smul.addr %s383, 4
        %s385 = scalar_lea.vmem %s3, %s384
        %v388 = vld [vmem:[%s330] sm:$0xf]
        %v389 = vld [vmem:[%s330 + $0x4] sm:$0x1]
        %v390 = vld [vmem:[%s337] sm:$0xf]
        %v391 = vld [vmem:[%s337 + $0x4] sm:$0x1]
        %v392 = vld [vmem:[%s344] sm:$0xf]
        %v393 = vld [vmem:[%s344 + $0x4] sm:$0x1]
        %v394 = vmul.bf16 %v388, 1040203264
        %v395 = vmul.bf16 %v389, 1040203264
        %v398 = vunpack.c.l.b16 %v394
        %v399 = vunpack.c.l.b16 %v395
        %v400 = vpack.c.b16 %v399, %v398
        %v403 = vunpack.c.l.b16 %v390
        %v404 = vunpack.c.l.b16 %v391
        %v405 = vpack.c.b16 %v404, %v403
        %vm406 = vcmask 523264
        %v408 = vsel %vm406, %v400, 0
        %v411 = vsel %vm406, %v405, 0
        %413 = vmatprep.subr.bf16.mxu0 0
        %414 = vmatpush1.bf16.xpose.msra.mxu0 %v411
        %415 = vmatprep.subr.bf16.mxu0 0
        %416 = vmatpush1.bf16.xpose.msra.mxu0 0
        %417 = vmatprep.subr.bf16.mxu0 0
        %418 = vmatpush1.bf16.xpose.msra.mxu0 0
        %419 = vmatprep.subr.bf16.mxu0 0
        %420 = vmatpush1.bf16.xpose.msra.mxu0 0
        %421 = vmatprep.subr.bf16.mxu0 0
        %422 = vmatpush1.bf16.xpose.msra.mxu0 0
        %423 = vmatprep.subr.bf16.mxu0 0
        %424 = vmatpush1.bf16.xpose.msra.mxu0 0
        %425 = vmatprep.subr.bf16.mxu0 0
        %426 = vmatpush1.bf16.xpose.msra.mxu0 0
        %427 = vmatprep.subr.bf16.mxu0 0
        %428 = vmatpush1.bf16.xpose.msra.mxu0 0
        %429 = vmatprep.subr.bf16.mxu0 0
        %430 = vmatpush1.bf16.xpose.msra.mxu0 0
        %431 = vmatprep.subr.bf16.mxu0 0
        %432 = vmatpush1.bf16.xpose.msra.mxu0 0
        %433 = vmatprep.subr.bf16.mxu0 0
        %434 = vmatpush1.bf16.xpose.msra.mxu0 0
        %435 = vmatprep.subr.bf16.mxu0 0
        %436 = vmatpush1.bf16.xpose.msra.mxu0 0
        %437 = vmatprep.subr.bf16.mxu0 0
        %438 = vmatpush1.bf16.xpose.msra.mxu0 0
        %439 = vmatprep.subr.bf16.mxu0 0
        %440 = vmatpush1.bf16.xpose.msra.mxu0 0
        %441 = vmatprep.subr.bf16.mxu0 0
        %442 = vmatpush1.bf16.xpose.msra.mxu0 0
        %443 = vmatprep.subr.bf16.mxu0 0
        %444 = vmatpush1.bf16.xpose.msra.mxu0 0
        %445 = vmatprep.mubr.bf16.mxu0 0
        %446 = vmatmul.mubr.bf16.gmra.mrb[0].mxu0 %v408
        %v447 = vpop.f32.mrb[0].mxu0
        %v448 = vadd.f32 0.0, %v447
        %v449 = vpop.f32.mrb[0].mxu0
        %v450 = vpop.f32.mrb[0].mxu0
        %v451 = vadd.f32 0.0, %v450
        %v452 = vpop.f32.mrb[0].mxu0
        %453 = vdwg.mxu0
        %vm454 = vcmask 72704
        %v455 = vsel %vm454, %v448, -inf
        %456 = vmax.xlane.f32.xlu0 %v455
        %v457 = vpop.xlane.xlu0 %456
        %vm458 = vcmask 65536
        %v459 = vsel %vm458, %v451, -inf
        %460 = vmax.xlane.f32.xlu0 %v459
        %v461 = vpop.xlane.xlu0 %460
        %v462 = vsub.f32 %v448, %v457
        %v463 = vsub.f32 %v451, %v461
        %v464 = vmul.f32 %v462, 1.442695
        %v465 = vpow.pop %v464
        %v466 = vmul.f32 %v463, 1.442695
        %v467 = vpow.pop %v466
        %v468 = vpack.c.bf16 %v467, %v465
        %v471 = vunpack.c.l.b16 %v392
        %v472 = vunpack.c.l.b16 %v393
        %v473 = vpack.c.b16 %v472, %v471
        %v475 = vsel %vm454, %v468, 0
        %vm477 = vcmask 1043456
        %vm478 = vcmask 1044480
        %v479 = vsel %vm477, 4294967295, 65535
        %v480 = vsel %vm478, %v479, 0
        %v482 = vand.u32 %v473, %v480
        %484 = vmatprep.subr.bf16.mxu0 0
        %485 = vmatpush1.bf16.msra.mxu0 %v482
        %486 = vmatprep.subr.bf16.mxu0 0
        %487 = vmatpush1.bf16.msra.mxu0 0
        %488 = vmatprep.subr.bf16.mxu0 0
        %489 = vmatpush1.bf16.msra.mxu0 0
        %490 = vmatprep.subr.bf16.mxu0 0
        %491 = vmatpush1.bf16.msra.mxu0 0
        %492 = vmatprep.subr.bf16.mxu0 0
        %493 = vmatpush1.bf16.msra.mxu0 0
        %494 = vmatprep.subr.bf16.mxu0 0
        %495 = vmatpush1.bf16.msra.mxu0 0
        %496 = vmatprep.subr.bf16.mxu0 0
        %497 = vmatpush1.bf16.msra.mxu0 0
        %498 = vmatprep.subr.bf16.mxu0 0
        %499 = vmatpush1.bf16.msra.mxu0 0
        %500 = vmatprep.subr.bf16.mxu0 0
        %501 = vmatpush1.bf16.msra.mxu0 0
        %502 = vmatprep.subr.bf16.mxu0 0
        %503 = vmatpush1.bf16.msra.mxu0 0
        %504 = vmatprep.subr.bf16.mxu0 0
        %505 = vmatpush1.bf16.msra.mxu0 0
        %506 = vmatprep.subr.bf16.mxu0 0
        %507 = vmatpush1.bf16.msra.mxu0 0
        %508 = vmatprep.subr.bf16.mxu0 0
        %509 = vmatpush1.bf16.msra.mxu0 0
        %510 = vmatprep.subr.bf16.mxu0 0
        %511 = vmatpush1.bf16.msra.mxu0 0
        %512 = vmatprep.subr.bf16.mxu0 0
        %513 = vmatpush1.bf16.msra.mxu0 0
        %514 = vmatprep.subr.bf16.mxu0 0
        %515 = vmatpush1.bf16.msra.mxu0 0
        %516 = vmatprep.mubr.bf16.mxu0 0
        %517 = vmatmul.mubr.bf16.gmra.mrb[0].mxu0 %v475
        %v518 = vpop.f32.mrb[0].mxu0
        %v519 = vadd.f32 0.0, %v518
        %v520 = vpop.f32.mrb[0].mxu0
        %v521 = vpop.f32.mrb[0].mxu0
        %v522 = vadd.f32 0.0, %v521
        %v523 = vpop.f32.mrb[0].mxu0
        %524 = vdwg.mxu0
        %v525 = vsel %vm454, %v465, 0.0
        %526 = vadd.xlane.f32.xlu0 %v525
        %v527 = vpop.xlane.xlu0 %526
        %v528 = vsel %vm458, %v467, 0.0
        %529 = vadd.xlane.f32.xlu0 %v528
        %v530 = vpop.xlane.xlu0 %529
        %v531 = vrcp.pop %v527
        %v532 = vrcp.pop %v530
        %v533 = vmul.f32 %v519, %v531
        %v534 = vmul.f32 %v522, %v532
        %v535 = vpack.c.bf16 %v534, %v533
        %v537 = vunpack.c.l.b16 %v535
        %v538 = vunpack.c.h.b16 %v535
        %v539 = vpack.c.b16 %v537, %v537
        %v540 = vpack.c.b16 %v538, %v538
        %vm543 = vcmask 519168
        %544 = vst.msk [vmem:[%s385] sm:$0xf] %vm543, %v539
        %vm545 = vcmask 516096
        %vm546 = vsmask.f32 256
        %vm547 = vmand %vm545, %vm546
        %v548 = vld [vmem:[%s385 + $0x4] sm:$0x1]
        %v549 = vsel %vm547, %v540, %v548
        %550 = vst [vmem:[%s385 + $0x4] sm:$0x1] %v549
        %551 = vrot.lane.b32.xlu0 %v400, 64
        %v552 = vpop.permute.xlu0 %551
        %553 = vrot.lane.b32.xlu0 %v405, 64
        %v554 = vpop.permute.xlu0 %553
        %v556 = vsel %vm406, %v552, 0
        %v559 = vsel %vm406, %v554, 0
        %561 = vmatprep.subr.bf16.mxu0 0
        %562 = vmatpush1.bf16.xpose.msra.mxu0 %v559
        %563 = vmatprep.subr.bf16.mxu0 0
        %564 = vmatpush1.bf16.xpose.msra.mxu0 0
        %565 = vmatprep.subr.bf16.mxu0 0
        %566 = vmatpush1.bf16.xpose.msra.mxu0 0
        %567 = vmatprep.subr.bf16.mxu0 0
        %568 = vmatpush1.bf16.xpose.msra.mxu0 0
        %569 = vmatprep.subr.bf16.mxu0 0
        %570 = vmatpush1.bf16.xpose.msra.mxu0 0
        %571 = vmatprep.subr.bf16.mxu0 0
        %572 = vmatpush1.bf16.xpose.msra.mxu0 0
        %573 = vmatprep.subr.bf16.mxu0 0
        %574 = vmatpush1.bf16.xpose.msra.mxu0 0
        %575 = vmatprep.subr.bf16.mxu0 0
        %576 = vmatpush1.bf16.xpose.msra.mxu0 0
        %577 = vmatprep.subr.bf16.mxu0 0
        %578 = vmatpush1.bf16.xpose.msra.mxu0 0
        %579 = vmatprep.subr.bf16.mxu0 0
        %580 = vmatpush1.bf16.xpose.msra.mxu0 0
        %581 = vmatprep.subr.bf16.mxu0 0
        %582 = vmatpush1.bf16.xpose.msra.mxu0 0
        %583 = vmatprep.subr.bf16.mxu0 0
        %584 = vmatpush1.bf16.xpose.msra.mxu0 0
        %585 = vmatprep.subr.bf16.mxu0 0
        %586 = vmatpush1.bf16.xpose.msra.mxu0 0
        %587 = vmatprep.subr.bf16.mxu0 0
        %588 = vmatpush1.bf16.xpose.msra.mxu0 0
        %589 = vmatprep.subr.bf16.mxu0 0
        %590 = vmatpush1.bf16.xpose.msra.mxu0 0
        %591 = vmatprep.subr.bf16.mxu0 0
        %592 = vmatpush1.bf16.xpose.msra.mxu0 0
        %593 = vmatprep.mubr.bf16.mxu0 0
        %594 = vmatmul.mubr.bf16.gmra.mrb[0].mxu0 %v556
        %v595 = vpop.f32.mrb[0].mxu0
        %v596 = vadd.f32 0.0, %v595
        %v597 = vpop.f32.mrb[0].mxu0
        %v598 = vpop.f32.mrb[0].mxu0
        %v599 = vadd.f32 0.0, %v598
        %v600 = vpop.f32.mrb[0].mxu0
        %601 = vdwg.mxu0
        %v602 = vsel %vm454, %v596, -inf
        %603 = vmax.xlane.f32.xlu0 %v602
        %v604 = vpop.xlane.xlu0 %603
        %v605 = vsel %vm458, %v599, -inf
        %606 = vmax.xlane.f32.xlu0 %v605
        %v607 = vpop.xlane.xlu0 %606
        %v608 = vsub.f32 %v596, %v604
        %v609 = vsub.f32 %v599, %v607
        %v610 = vmul.f32 %v608, 1.442695
        %v611 = vpow.pop %v610
        %v612 = vmul.f32 %v609, 1.442695
        %v613 = vpow.pop %v612
        %v614 = vpack.c.bf16 %v613, %v611
        %615 = vrot.lane.b32.xlu0 %v473, 64
        %v616 = vpop.permute.xlu0 %615
        %v618 = vsel %vm454, %v614, 0
        %v621 = vand.u32 %v616, %v480
        %623 = vmatprep.subr.bf16.mxu0 0
        %624 = vmatpush1.bf16.msra.mxu0 %v621
        %625 = vmatprep.subr.bf16.mxu0 0
        %626 = vmatpush1.bf16.msra.mxu0 0
        %627 = vmatprep.subr.bf16.mxu0 0
        %628 = vmatpush1.bf16.msra.mxu0 0
        %629 = vmatprep.subr.bf16.mxu0 0
        %630 = vmatpush1.bf16.msra.mxu0 0
        %631 = vmatprep.subr.bf16.mxu0 0
        %632 = vmatpush1.bf16.msra.mxu0 0
        %633 = vmatprep.subr.bf16.mxu0 0
        %634 = vmatpush1.bf16.msra.mxu0 0
        %635 = vmatprep.subr.bf16.mxu0 0
        %636 = vmatpush1.bf16.msra.mxu0 0
        %637 = vmatprep.subr.bf16.mxu0 0
        %638 = vmatpush1.bf16.msra.mxu0 0
        %639 = vmatprep.subr.bf16.mxu0 0
        %640 = vmatpush1.bf16.msra.mxu0 0
        %641 = vmatprep.subr.bf16.mxu0 0
        %642 = vmatpush1.bf16.msra.mxu0 0
        %643 = vmatprep.subr.bf16.mxu0 0
        %644 = vmatpush1.bf16.msra.mxu0 0
        %645 = vmatprep.subr.bf16.mxu0 0
        %646 = vmatpush1.bf16.msra.mxu0 0
        %647 = vmatprep.subr.bf16.mxu0 0
        %648 = vmatpush1.bf16.msra.mxu0 0
        %649 = vmatprep.subr.bf16.mxu0 0
        %650 = vmatpush1.bf16.msra.mxu0 0
        %651 = vmatprep.subr.bf16.mxu0 0
        %652 = vmatpush1.bf16.msra.mxu0 0
        %653 = vmatprep.subr.bf16.mxu0 0
        %654 = vmatpush1.bf16.msra.mxu0 0
        %655 = vmatprep.mubr.bf16.mxu0 0
        %656 = vmatmul.mubr.bf16.gmra.mrb[0].mxu0 %v618
        %v657 = vpop.f32.mrb[0].mxu0
        %v658 = vadd.f32 0.0, %v657
        %v659 = vpop.f32.mrb[0].mxu0
        %v660 = vpop.f32.mrb[0].mxu0
        %v661 = vadd.f32 0.0, %v660
        %v662 = vpop.f32.mrb[0].mxu0
        %663 = vdwg.mxu0
        %v664 = vsel %vm454, %v611, 0.0
        %665 = vadd.xlane.f32.xlu0 %v664
        %v666 = vpop.xlane.xlu0 %665
        %v667 = vsel %vm458, %v613, 0.0
        %668 = vadd.xlane.f32.xlu0 %v667
        %v669 = vpop.xlane.xlu0 %668
        %v670 = vrcp.pop %v666
        %v671 = vrcp.pop %v669
        %v672 = vmul.f32 %v658, %v670
        %v673 = vmul.f32 %v661, %v671
        %v674 = vpack.c.bf16 %v673, %v672
        %v676 = vunpack.c.l.b16 %v674
        %v677 = vunpack.c.h.b16 %v674
        %v678 = vpack.c.b16 %v676, %v676
        %v679 = vpack.c.b16 %v677, %v677
        %680 = vrot.lane.b32.xlu0 %v678, 64
        %v681 = vpop.permute.xlu0 %680
        %682 = vrot.lane.b32.xlu0 %v679, 64
        %v683 = vpop.permute.xlu0 %682
        %vm686 = vcmask 1043968
        %687 = vst.msk [vmem:[%s385] sm:$0xf] %vm686, %v681
        %vm688 = vcmask 1040896
        %vm689 = vmand %vm688, %vm546
        %v690 = vld [vmem:[%s385 + $0x4] sm:$0x1]
        %v691 = vsel %vm689, %v683, %v690
        %692 = vst [vmem:[%s385 + $0x4] sm:$0x1] %v691
        %p693 = scmp.lt.s32.totalorder %s18, 1
        %s694 = scalar_select %p693, %s18, 1
        %p695 = scmp.lt.s32.totalorder %s19, 0
        %s696 = scalar_select %p695, %s19, 0
        %s697 = smul.addr %s694, 2
        %s698 = sadd.s32 %s696, %s697
        %s699 = smul.addr %s698, 4
        %s700 = scalar_lea.vmem %s3, %s699
        // Predicated region
        $region156: #{audiomae_forward.19} parent=142 // pred_check
          %p701 = pneg %p134
        $region157: #{audiomae_forward.19} parent=142 // pred_check_branch
          %703 = sbr.rel (%p701) target = $region159
        $region158: #{audiomae_forward.19} parent=142 // pred_region
          _
        $region159: #{audiomae_forward.19} parent=142 // pred_fallthru
          _
      $region143: #{audiomae_forward.19} parent=5 // pred_fallthru
        _
      %p704 = scmp.le.s32.totalorder 2, %s9
      // Predicated region
      $region160: #{audiomae_forward.19} parent=5 // pred_check
        %p705 = pneg %p704
      $region161: #{audiomae_forward.19} parent=5 // pred_check_branch
        %707 = sbr.rel (%p705) target = $region163
      $region162: #{audiomae_forward.19} parent=5 // pred_region
        %s708 = ssub.s32 %s9, 2
        // Predicated region
        $region164: #{audiomae_forward.19} parent=162 // pred_check
          %p709 = pneg %p140
        $region165: #{audiomae_forward.19} parent=162 // pred_check_branch
          %711 = sbr.rel (%p709) target = $region167
        $region166: #{audiomae_forward.19} parent=162 // pred_region
          %p712 = scmp.lt.s32.totalorder %s20, 1
          %s713 = scalar_select %p712, %s20, 1
          %p714 = scmp.lt.s32.totalorder %s21, 0
          %s715 = scalar_select %p714, %s21, 0
          %s716 = smul.addr %s713, 2
          %s717 = sadd.s32 %s715, %s716
          %s718 = smul.addr %s717, 4
          %s719 = scalar_lea.vmem %s3, %s718
        $region167: #{audiomae_forward.19} parent=162 // pred_fallthru
          _
      $region163: #{audiomae_forward.19} parent=5 // pred_fallthru
        _
    $region6: #{audiomae_forward.19} parent=1 // loop_footer
      %s13 = sadd.s32 1, %s9
    $region7: #{audiomae_forward.19} parent=1 // loop_footer_branch
      %8 = sbr.rel target = $region3
    $region8: #{audiomae_forward.19} parent=1 // loop_exit
      _

// kernel: audiomae_forward.18
$region0: #{audiomae_forward.18}
  #allocation0 [shape = 'u32[]', space=smem, size = 0x4, offset = 0x4, fixed_abs, tag = 'smem constant byte address 0x4 - core index']
  #allocation1 [shape = 'u32[144,128]{1,0:T(1,128)}', space=vmem, size = 0x12000, scoped, tag = 'internal scratch']
  #allocation2 [shape = 'bf16[9,128]{1,0:T(8,128)(2,1)}', space=vmem, size = 0x1000, scoped, tag = 'scratch operand']
  %s0 = inlined_call_operand.vmem [shape: f32[2,9,128], index: 0, kind: input, shape index: {}]
  %s1 = inlined_call_operand.vmem [shape: f32[1,128], index: 1, kind: input, shape index: {}]
  %s2 = inlined_call_operand.vmem [shape: f32[1,128], index: 2, kind: input, shape index: {}]
  %s3 = inlined_call_operand.vmem [shape: bf16[128,384], index: 3, kind: input, shape index: {}]
  %s4 = inlined_call_operand.vmem [shape: f32[1,384], index: 4, kind: input, shape index: {}]
  %s5 = inlined_call_operand.vmem [shape: bf16[2,9,384], index: 5, kind: output, shape index: {}]
  %s6 = sld [smem:[#allocation0]]
  $region57: #{audiomae_forward.18} parent=0
    _
  %s8 = ssub.s32 1, %s6
  %s9 = scalar_select 0, %s8, %s6
  loop: start=0, step=1, limit=4
  $region2: #{audiomae_forward.18} parent=0 // loop_pre_header
    _
  $region3: #{audiomae_forward.18} parent=0 // loop_header
    %s11 = sphi 0, %s15
    %p12 = scmp.ge.s32.totalorder %s11, 4
    %s18 = sphi 0, %s30
    %s19 = sphi 0, %s26
    %s20 = sphi 0, %s18
    %s21 = sphi 0, %s19
    %s22 = sphi 0, %s20
    %s23 = sphi 0, %s21
    %s33 = sphi 0, %s35
    %s36 = sphi 0, %s33
    %s37 = sphi 0, %s36
    %s53 = sphi 0, %s37
    %s57 = sphi 0, %s57
    %s59 = sphi 0, %s57
    %s60 = sphi 0, %s59
    %s74 = sphi 0, %s60
    %s78 = sphi 0, %s78
    %s80 = sphi 0, %s78
    %s81 = sphi 0, %s80
    %s95 = sphi 0, %s81
    %s101 = sphi 0, %s103
    %s104 = sphi 0, %s101
    %s105 = sphi 0, %s104
    %s121 = sphi 0, %s105
    %s127 = sphi 0, %s129
    %s130 = sphi 0, %s127
    %s131 = sphi 0, %s130
    %s147 = sphi 0, %s131
    %s155 = sphi 0, %s157
    %s158 = sphi 0, %s155
    %s159 = sphi 0, %s158
    %s175 = sphi 0, %s159
  $region4: #{audiomae_forward.18} parent=0 // loop_header_branch
    %14 = sbr.rel (%p12) target = $region8
  $region5: #{audiomae_forward.18} parent=0 // loop_body
    %s16 = ssub.s32 %s11, 1
    %s17 = ssub.s32 %s11, 2
    %s24 = sadd.s32 1, %s19
    %p25 = scmp.ge.s32.totalorder %s24, 1
    %s26 = scalar_select %p25, 0, %s24
    %s27 = sadd.s32 1, %s18
    %s28 = scalar_select %p25, %s27, %s18
    %p29 = scmp.ge.s32.totalorder %s28, 2
    %s30 = scalar_select %p29, 0, %s28
    %s31 = ssub.s32 %s18, %s30
    %p32 = scmp.eq.s32.totalorder %s31, 0
    %s34 = sadd.s32 %s33, 1
    %s35 = scalar_select %p32, %s33, %s34
    %p38 = pneg %p32
    %p39 = scmp.eq.s32.totalorder %s11, 1
    %p40 = por %p38, %p39
    %p41 = scmp.ne.s32.totalorder %s33, %s36
    %p42 = scmp.eq.s32.totalorder %s11, 0
    %p43 = por %p41, %p42
    %p44 = scmp.ne.s32.totalorder %s33, %s36
    %p45 = scmp.eq.s32.totalorder %s16, 1
    %p46 = por %p44, %p45
    %p47 = scmp.ne.s32.totalorder %s36, %s37
    %p48 = scmp.eq.s32.totalorder %s16, 0
    %p49 = por %p47, %p48
    %p50 = scmp.ne.s32.totalorder %s36, %s37
    %p51 = scmp.eq.s32.totalorder %s17, 1
    %p52 = por %p50, %p51
    %p54 = scmp.ne.s32.totalorder %s37, %s53
    %p55 = scmp.eq.s32.totalorder %s17, 0
    %p56 = por %p54, %p55
    %s58 = sadd.s32 %s57, 1
    %p61 = scmp.eq.s32.totalorder %s11, 1
    %p62 = scmp.ne.s32.totalorder %s57, %s59
    %p63 = scmp.eq.s32.totalorder %s11, 0
    %p64 = por %p62, %p63
    %p65 = scmp.ne.s32.totalorder %s57, %s59
    %p66 = scmp.eq.s32.totalorder %s16, 1
    %p67 = por %p65, %p66
    %p68 = scmp.ne.s32.totalorder %s59, %s60
    %p69 = scmp.eq.s32.totalorder %s16, 0
    %p70 = por %p68, %p69
    %p71 = scmp.ne.s32.totalorder %s59, %s60
    %p72 = scmp.eq.s32.totalorder %s17, 1
    %p73 = por %p71, %p72
    %p75 = scmp.ne.s32.totalorder %s60, %s74
    %p76 = scmp.eq.s32.totalorder %s17, 0
    %p77 = por %p75, %p76
    %s79 = sadd.s32 %s78, 1
    %p82 = scmp.eq.s32.totalorder %s11, 1
    %p83 = scmp.ne.s32.totalorder %s78, %s80
    %p84 = scmp.eq.s32.totalorder %s11, 0
    %p85 = por %p83, %p84
    %p86 = scmp.ne.s32.totalorder %s78, %s80
    %p87 = scmp.eq.s32.totalorder %s16, 1
    %p88 = por %p86, %p87
    %p89 = scmp.ne.s32.totalorder %s80, %s81
    %p90 = scmp.eq.s32.totalorder %s16, 0
    %p91 = por %p89, %p90
    %p92 = scmp.ne.s32.totalorder %s80, %s81
    %p93 = scmp.eq.s32.totalorder %s17, 1
    %p94 = por %p92, %p93
    %p96 = scmp.ne.s32.totalorder %s81, %s95
    %p97 = scmp.eq.s32.totalorder %s17, 0
    %p98 = por %p96, %p97
    %s99 = ssub.s32 %s19, %s26
    %p100 = scmp.eq.s32.totalorder %s99, 0
    %s102 = sadd.s32 %s101, 1
    %s103 = scalar_select %p100, %s101, %s102
    %p106 = pneg %p100
    %p107 = scmp.eq.s32.totalorder %s11, 1
    %p108 = por %p106, %p107
    %p109 = scmp.ne.s32.totalorder %s101, %s104
    %p110 = scmp.eq.s32.totalorder %s11, 0
    %p111 = por %p109, %p110
    %p112 = scmp.ne.s32.totalorder %s101, %s104
    %p113 = scmp.eq.s32.totalorder %s16, 1
    %p114 = por %p112, %p113
    %p115 = scmp.ne.s32.totalorder %s104, %s105
    %p116 = scmp.eq.s32.totalorder %s16, 0
    %p117 = por %p115, %p116
    %p118 = scmp.ne.s32.totalorder %s104, %s105
    %p119 = scmp.eq.s32.totalorder %s17, 1
    %p120 = por %p118, %p119
    %p122 = scmp.ne.s32.totalorder %s105, %s121
    %p123 = scmp.eq.s32.totalorder %s17, 0
    %p124 = por %p122, %p123
    %s125 = ssub.s32 %s19, %s26
    %p126 = scmp.eq.s32.totalorder %s125, 0
    %s128 = sadd.s32 %s127, 1
    %s129 = scalar_select %p126, %s127, %s128
    %p132 = pneg %p126
    %p133 = scmp.eq.s32.totalorder %s11, 1
    %p134 = por %p132, %p133
    %p135 = scmp.ne.s32.totalorder %s127, %s130
    %p136 = scmp.eq.s32.totalorder %s11, 0
    %p137 = por %p135, %p136
    %p138 = scmp.ne.s32.totalorder %s127, %s130
    %p139 = scmp.eq.s32.totalorder %s16, 1
    %p140 = por %p138, %p139
    %p141 = scmp.ne.s32.totalorder %s130, %s131
    %p142 = scmp.eq.s32.totalorder %s16, 0
    %p143 = por %p141, %p142
    %p144 = scmp.ne.s32.totalorder %s130, %s131
    %p145 = scmp.eq.s32.totalorder %s17, 1
    %p146 = por %p144, %p145
    %p148 = scmp.ne.s32.totalorder %s131, %s147
    %p149 = scmp.eq.s32.totalorder %s17, 0
    %p150 = por %p148, %p149
    %s151 = ssub.s32 %s18, %s30
    %s152 = ssub.s32 %s19, %s26
    %s153 = sor.u32 %s151, %s152
    %p154 = scmp.eq.s32.totalorder %s153, 0
    %s156 = sadd.s32 %s155, 1
    %s157 = scalar_select %p154, %s155, %s156
    %p160 = pneg %p154
    %p161 = scmp.eq.s32.totalorder %s11, 1
    %p162 = por %p160, %p161
    %p163 = scmp.ne.s32.totalorder %s155, %s158
    %p164 = scmp.eq.s32.totalorder %s11, 0
    %p165 = por %p163, %p164
    %p166 = scmp.ne.s32.totalorder %s155, %s158
    %p167 = scmp.eq.s32.totalorder %s16, 1
    %p168 = por %p166, %p167
    %p169 = scmp.ne.s32.totalorder %s158, %s159
    %p170 = scmp.eq.s32.totalorder %s16, 0
    %p171 = por %p169, %p170
    %p172 = scmp.ne.s32.totalorder %s158, %s159
    %p173 = scmp.eq.s32.totalorder %s17, 1
    %p174 = por %p172, %p173
    %p176 = scmp.ne.s32.totalorder %s159, %s175
    %p177 = scmp.eq.s32.totalorder %s17, 0
    %p178 = por %p176, %p177
    %p179 = scmp.le.s32.totalorder 1, %s11
    %p180 = scmp.lt.s32.totalorder %s11, 3
    %p181 = pnand %p179, %p180
    %p182 = pneg %p181
    // Predicated region
    $region9: #{audiomae_forward.18} parent=5 // pred_check
      _
    $region10: #{audiomae_forward.18} parent=5 // pred_check_branch
      %184 = sbr.rel (%p181) target = $region12
    $region11: #{audiomae_forward.18} parent=5 // pred_region
      %s185 = ssub.s32 %s11, 1
      // Predicated region
      $region13: #{audiomae_forward.18} parent=11 // pred_check
        %p186 = pneg %p70
      $region14: #{audiomae_forward.18} parent=11 // pred_check_branch
        %188 = sbr.rel (%p186) target = $region16
      $region15: #{audiomae_forward.18} parent=11 // pred_region
        _
      $region16: #{audiomae_forward.18} parent=11 // pred_fallthru
        _
      // Predicated region
      $region17: #{audiomae_forward.18} parent=11 // pred_check
        %p189 = pneg %p91
      $region18: #{audiomae_forward.18} parent=11 // pred_check_branch
        %191 = sbr.rel (%p189) target = $region20
      $region19: #{audiomae_forward.18} parent=11 // pred_region
        _
      $region20: #{audiomae_forward.18} parent=11 // pred_fallthru
        _
      // Predicated region
      $region21: #{audiomae_forward.18} parent=11 // pred_check
        %p192 = pneg %p117
      $region22: #{audiomae_forward.18} parent=11 // pred_check_branch
        %194 = sbr.rel (%p192) target = $region24
      $region23: #{audiomae_forward.18} parent=11 // pred_region
        %s195 = smul.u32 3, %s21
        %p196 = scmp.lt.s32.totalorder %s195, 2
        %s197 = scalar_select %p196, %s195, 2
        %s198 = smul.addr %s197, 4
        %s199 = scalar_lea.vmem %s3, %s198
        %s200 = smul.u32 3, %s21
      $region24: #{audiomae_forward.18} parent=11 // pred_fallthru
        _
      // Predicated region
      $region25: #{audiomae_forward.18} parent=11 // pred_check
        %p201 = pneg %p143
      $region26: #{audiomae_forward.18} parent=11 // pred_check_branch
        %203 = sbr.rel (%p201) target = $region28
      $region27: #{audiomae_forward.18} parent=11 // pred_region
        %s204 = smul.u32 3, %s21
        %p205 = scmp.lt.s32.totalorder %s204, 2
        %s206 = scalar_select %p205, %s204, 2
        %s207 = scalar_lea.vmem %s4, %s206
        %s208 = smul.u32 3, %s21
      $region28: #{audiomae_forward.18} parent=11 // pred_fallthru
        _
    $region12: #{audiomae_forward.18} parent=5 // pred_fallthru
      _
    %p209 = scmp.lt.s32.totalorder %s11, 2
    // Predicated region
    $region29: #{audiomae_forward.18} parent=5 // pred_check
      %p210 = pneg %p209
    $region30: #{audiomae_forward.18} parent=5 // pred_check_branch
      %212 = sbr.rel (%p210) target = $region32
    $region31: #{audiomae_forward.18} parent=5 // pred_region
      // Predicated region
      $region33: #{audiomae_forward.18} parent=31 // pred_check
        %p213 = pneg %p43
      $region34: #{audiomae_forward.18} parent=31 // pred_check_branch
        %215 = sbr.rel (%p213) target = $region36
      $region35: #{audiomae_forward.18} parent=31 // pred_region
        %p216 = scmp.lt.s32.totalorder %s18, 1
        %s217 = scalar_select %p216, %s18, 1
        %s218 = smul.addr %s217, 2
        %s219 = smul.addr %s218, 8
        %s220 = scalar_lea.vmem %s0, %s219
      $region36: #{audiomae_forward.18} parent=31 // pred_fallthru
        _
    $region32: #{audiomae_forward.18} parent=5 // pred_fallthru
      _
    %p221 = scmp.le.s32.totalorder 1, %s11
    %p222 = scmp.lt.s32.totalorder %s11, 3
    %p223 = pnand %p221, %p222
    %p224 = pneg %p223
    // Predicated region
    $region37: #{audiomae_forward.18} parent=5 // pred_check
      _
    $region38: #{audiomae_forward.18} parent=5 // pred_check_branch
      %226 = sbr.rel (%p223) target = $region40
    $region39: #{audiomae_forward.18} parent=5 // pred_region
      %s227 = ssub.s32 %s11, 1
      %p228 = scmp.lt.s32.totalorder %s20, 1
      %s229 = scalar_select %p228, %s20, 1
      %s230 = smul.addr %s229, 2
      %s231 = smul.addr %s230, 8
      %s232 = scalar_lea.vmem %s0, %s231
      %p233 = pneg %p49
      %p234 = pneg %p46
      %p235 = pneg %p70
      %p236 = pneg %p67
      %p237 = pneg %p91
      %p238 = pneg %p88
      %s239 = smul.u32 3, %s21
      %p240 = scmp.lt.s32.totalorder %s239, 2
      %s241 = scalar_select %p240, %s239, 2
      %s242 = smul.addr %s241, 4
      %s243 = scalar_lea.vmem %s3, %s242
      %p244 = pneg %p117
      %p245 = pneg %p114
      %s246 = smul.u32 3, %s21
      %p247 = scmp.lt.s32.totalorder %s246, 2
      %s248 = scalar_select %p247, %s246, 2
      %s249 = scalar_lea.vmem %s4, %s248
      %p250 = pneg %p143
      %p251 = pneg %p140
      %p252 = pneg %p171
      %p253 = pneg %p168
      %s254 = smul.u32 3, %s21
      %p255 = scmp.lt.s32.totalorder %s20, 1
      %s256 = scalar_select %p255, %s20, 1
      %p257 = scmp.lt.s32.totalorder %s254, 2
      %s258 = scalar_select %p257, %s254, 2
      %s259 = smul.addr %s256, 6
      %s260 = sadd.s32 %s258, %s259
      %s261 = smul.addr %s260, 4
      %s262 = scalar_lea.vmem %s5, %s261
      %p263 = scmp.lt.s32.totalorder %s20, 1
      %s264 = scalar_select %p263, %s20, 1
      %s265 = smul.addr %s264, 2
      %s266 = smul.addr %s265, 8
      %s267 = scalar_lea.vmem %s0, %s266
      %s268 = smul.u32 3, %s21
      %p269 = scmp.lt.s32.totalorder %s268, 2
      %s270 = scalar_select %p269, %s268, 2
      %s271 = smul.addr %s270, 4
      %s272 = scalar_lea.vmem %s3, %s271
      %s273 = smul.u32 3, %s21
      %s274 = smul.u32 3, %s21
      %p275 = scmp.lt.s32.totalorder %s274, 2
      %s276 = scalar_select %p275, %s274, 2
      %s277 = scalar_lea.vmem %s4, %s276
      %s278 = smul.u32 3, %s21
      %s279 = smul.u32 3, %s21
      %p280 = scmp.lt.s32.totalorder %s20, 1
      %s281 = scalar_select %p280, %s20, 1
      %p282 = scmp.lt.s32.totalorder %s279, 2
      %s283 = scalar_select %p282, %s279, 2
      %s284 = smul.addr %s281, 6
      %s285 = sadd.s32 %s283, %s284
      %s286 = smul.addr %s285, 4
      %s287 = scalar_lea.vmem %s5, %s286
      %s288 = smul.u32 3, %s21
      %p290 = scmp.eq.s32.totalorder %s21, 0
      // Predicated region
      $region41: #{audiomae_forward.18} parent=39 // pred_check
        %p291 = pneg %p290
      $region42: #{audiomae_forward.18} parent=39 // pred_check_branch
        %293 = sbr.rel (%p291) target = $region44
      $region43: #{audiomae_forward.18} parent=39 // pred_region
        %v294 = vld [vmem:[%s267] sm:$0xff]
        %v295 = vld [vmem:[%s267 + $0x8] sm:$0x1]
        %v296 = vld [vmem:[%s1] sm:$0x1]
        %v297 = vld [vmem:[%s2] sm:$0x1]
        %298 = vadd.xlane.f32.xlu0 %v294
        %v299 = vpop.xlane.xlu0 %298
        %vm300 = vcmask 1040384
        %v301 = vsel %vm300, %v295, 0.0
        %302 = vadd.xlane.f32.xlu0 %v301
        %v303 = vpop.xlane.xlu0 %302
        %v304 = vrcp.pop 128.0
        %v305 = vmul.f32 %v299, %v304
        %v306 = vmul.f32 %v303, %v304
        %v307 = vsub.f32 %v294, %v305
        %v308 = vsub.f32 %v295, %v306
        %v309 = vmul.f32 %v307, %v307
        %v310 = vmul.f32 %v308, %v308
        %311 = vadd.xlane.f32.xlu0 %v309
        %v312 = vpop.xlane.xlu0 %311
        %v313 = vsel %vm300, %v310, 0.0
        %314 = vadd.xlane.f32.xlu0 %v313
        %v315 = vpop.xlane.xlu0 %314
        %v316 = vmul.f32 %v312, %v304
        %v317 = vmul.f32 %v315, %v304
        %v318 = vadd.f32 %v316, 1e-06
        %v319 = vadd.f32 %v317, 1e-06
        %v320 = vrsqrt.pop %v318
        %v321 = vrsqrt.pop %v319
        %v322 = vmul.f32 %v307, %v320
        %v323 = vmul.f32 %v308, %v321
        %v325 = vlaneseq
        %v326 = vshrl.u32 %v325, 7
        %v327 = vsub.s32 0, %v326
        %v328 = vrot.slane %v296, %v327
        %v330 = vmul.f32 %v322, %v328
        %v331 = vmul.f32 %v323, %v328
        %v333 = vlaneseq
        %v334 = vshrl.u32 %v333, 7
        %v335 = vsub.s32 0, %v334
        %v336 = vrot.slane %v297, %v335
        %v338 = vadd.f32 %v330, %v336
        %v339 = vadd.f32 %v331, %v336
        %v340 = vpack.c.bf16 %v339, %v338
        %v342 = vunpack.c.l.b16 %v340
        %v343 = vunpack.c.h.b16 %v340
        %v344 = vpack.c.b16 %v342, %v342
        %v345 = vpack.c.b16 %v343, %v343
        %348 = vst [vmem:[#allocation2] sm:$0xf] %v344
        %vm349 = vcmask 1040384
        %vm350 = vsmask.f32 256
        %vm351 = vmand %vm349, %vm350
        %v352 = vld [vmem:[#allocation2 + $0x4] sm:$0x1]
        %v353 = vsel %vm351, %v345, %v352
        %354 = vst [vmem:[#allocation2 + $0x4] sm:$0x1] %v353
      $region44: #{audiomae_forward.18} parent=39 // pred_fallthru
        _
      %v355 = vld [vmem:[#allocation2] sm:$0xf]
      %v356 = vld [vmem:[#allocation2 + $0x4] sm:$0x1]
      %v357 = vld [vmem:[%s272] sm:$0xff]
      %v358 = vld [vmem:[%s272 + $0x8] sm:$0xf]
      %v359 = vld [vmem:[%s272 + $0xc] sm:$0xff]
      %v360 = vld [vmem:[%s272 + $0x14] sm:$0xf]
      %v361 = vld [vmem:[%s272 + $0x18] sm:$0xff]
      %v362 = vld [vmem:[%s272 + $0x20] sm:$0xf]
      %v363 = vld [vmem:[%s272 + $0x24] sm:$0xff]
      %v364 = vld [vmem:[%s272 + $0x2c] sm:$0xf]
      %v365 = vld [vmem:[%s272 + $0x30] sm:$0xff]
      %v366 = vld [vmem:[%s272 + $0x38] sm:$0xf]
      %v367 = vld [vmem:[%s272 + $0x3c] sm:$0xff]
      %v368 = vld [vmem:[%s272 + $0x44] sm:$0xf]
      %v369 = vld [vmem:[%s272 + $0x48] sm:$0xff]
      %v370 = vld [vmem:[%s272 + $0x50] sm:$0xf]
      %v371 = vld [vmem:[%s272 + $0x54] sm:$0xff]
      %v372 = vld [vmem:[%s272 + $0x5c] sm:$0xf]
      %v373 = vld [vmem:[%s272 + $0x60] sm:$0xff]
      %v374 = vld [vmem:[%s272 + $0x68] sm:$0xf]
      %v375 = vld [vmem:[%s272 + $0x6c] sm:$0xff]
      %v376 = vld [vmem:[%s272 + $0x74] sm:$0xf]
      %v377 = vld [vmem:[%s272 + $0x78] sm:$0xff]
      %v378 = vld [vmem:[%s272 + $0x80] sm:$0xf]
      %v379 = vld [vmem:[%s272 + $0x84] sm:$0xff]
      %v380 = vld [vmem:[%s272 + $0x8c] sm:$0xf]
      %v381 = vld [vmem:[%s272 + $0x90] sm:$0xff]
      %v382 = vld [vmem:[%s272 + $0x98] sm:$0xf]
      %v383 = vld [vmem:[%s272 + $0x9c] sm:$0xff]
      %v384 = vld [vmem:[%s272 + $0xa4] sm:$0xf]
      %v385 = vld [vmem:[%s272 + $0xa8] sm:$0xff]
      %v386 = vld [vmem:[%s272 + $0xb0] sm:$0xf]
      %v387 = vld [vmem:[%s272 + $0xb4] sm:$0xff]
      %v388 = vld [vmem:[%s272 + $0xbc] sm:$0xf]
      %v389 = vld [vmem:[%s277] sm:$0x7]
      %v391 = vlaneseq
      %v392 = vshrl.u32 %v391, 7
      %v393 = vsub.s32 0, %v392
      %v394 = vrot.slane %v389, %v393
      %v395 = vlaneseq
      %v396 = vshrl.u32 %v395, 7
      %v397 = vsub.s32 1, %v396
      %v398 = vrot.slane %v389, %v397
      %v399 = vlaneseq
      %v400 = vshrl.u32 %v399, 7
      %v401 = vsub.s32 2, %v400
      %v402 = vrot.slane %v389, %v401
      %v408 = vunpack.c.l.b16 %v355
      %v409 = vunpack.c.l.b16 %v356
      %v410 = vpack.c.b16 %v409, %v408
      %v444 = vunpack.c.l.b16 %v357
      %v445 = vunpack.c.h.b16 %v357
      %v446 = vunpack.c.l.b16 %v358
      %v447 = vunpack.c.l.b16 %v359
      %v448 = vunpack.c.h.b16 %v359
      %v449 = vunpack.c.l.b16 %v360
      %v450 = vunpack.c.l.b16 %v361
      %v451 = vunpack.c.h.b16 %v361
      %v452 = vunpack.c.l.b16 %v362
      %v453 = vunpack.c.l.b16 %v363
      %v454 = vunpack.c.h.b16 %v363
      %v455 = vunpack.c.l.b16 %v364
      %v456 = vunpack.c.l.b16 %v365
      %v457 = vunpack.c.h.b16 %v365
      %v458 = vunpack.c.l.b16 %v366
      %v459 = vunpack.c.l.b16 %v367
      %v460 = vunpack.c.h.b16 %v367
      %v461 = vunpack.c.l.b16 %v368
      %v462 = vunpack.c.l.b16 %v369
      %v463 = vunpack.c.h.b16 %v369
      %v464 = vunpack.c.l.b16 %v370
      %v465 = vunpack.c.l.b16 %v371
      %v466 = vunpack.c.h.b16 %v371
      %v467 = vunpack.c.l.b16 %v372
      %v468 = vunpack.c.l.b16 %v373
      %v469 = vunpack.c.h.b16 %v373
      %v470 = vunpack.c.l.b16 %v374
      %v471 = vunpack.c.l.b16 %v375
      %v472 = vunpack.c.h.b16 %v375
      %v473 = vunpack.c.l.b16 %v376
      %v474 = vunpack.c.l.b16 %v377
      %v475 = vunpack.c.h.b16 %v377
      %v476 = vunpack.c.l.b16 %v378
      %v477 = vunpack.c.l.b16 %v379
      %v478 = vunpack.c.h.b16 %v379
      %v479 = vunpack.c.l.b16 %v380
      %v480 = vunpack.c.l.b16 %v381
      %v481 = vunpack.c.h.b16 %v381
      %v482 = vunpack.c.l.b16 %v382
      %v483 = vunpack.c.l.b16 %v383
      %v484 = vunpack.c.h.b16 %v383
      %v485 = vunpack.c.l.b16 %v384
      %v486 = vunpack.c.l.b16 %v385
      %v487 = vunpack.c.h.b16 %v385
      %v488 = vunpack.c.l.b16 %v386
      %v489 = vunpack.c.l.b16 %v387
      %v490 = vunpack.c.h.b16 %v387
      %v491 = vunpack.c.l.b16 %v388
      %v492 = vpack.c.b16 %v447, %v444
      %v493 = vpack.c.b16 %v448, %v445
      %v494 = vpack.c.b16 %v449, %v446
      %v495 = vpack.c.b16 %v453, %v450
      %v496 = vpack.c.b16 %v454, %v451
      %v497 = vpack.c.b16 %v455, %v452
      %v498 = vpack.c.b16 %v459, %v456
      %v499 = vpack.c.b16 %v460, %v457
      %v500 = vpack.c.b16 %v461, %v458
      %v501 = vpack.c.b16 %v465, %v462
      %v502 = vpack.c.b16 %v466, %v463
      %v503 = vpack.c.b16 %v467, %v464
      %v504 = vpack.c.b16 %v471, %v468
      %v505 = vpack.c.b16 %v472, %v469
      %v506 = vpack.c.b16 %v473, %v470
      %v507 = vpack.c.b16 %v477, %v474
      %v508 = vpack.c.b16 %v478, %v475
      %v509 = vpack.c.b16 %v479, %v476
      %v510 = vpack.c.b16 %v483, %v480
      %v511 = vpack.c.b16 %v484, %v481
      %v512 = vpack.c.b16 %v485, %v482
      %v513 = vpack.c.b16 %v489, %v486
      %v514 = vpack.c.b16 %v490, %v487
      %v515 = vpack.c.b16 %v491, %v488
      %540 = vmatprep.subr.bf16.mxu0 %v493
      %541 = vmatpush1.bf16.msra.mxu0 %v492
      %542 = vmatprep.subr.bf16.mxu0 %v496
      %543 = vmatpush1.bf16.msra.mxu0 %v495
      %544 = vmatprep.subr.bf16.mxu0 %v499
      %545 = vmatpush1.bf16.msra.mxu0 %v498
      %546 = vmatprep.subr.bf16.mxu0 %v502
      %547 = vmatpush1.bf16.msra.mxu0 %v501
      %548 = vmatprep.subr.bf16.mxu0 %v505
      %549 = vmatpush1.bf16.msra.mxu0 %v504
      %550 = vmatprep.subr.bf16.mxu0 %v508
      %551 = vmatpush1.bf16.msra.mxu0 %v507
      %552 = vmatprep.subr.bf16.mxu0 %v511
      %553 = vmatpush1.bf16.msra.mxu0 %v510
      %554 = vmatprep.subr.bf16.mxu0 %v514
      %555 = vmatpush1.bf16.msra.mxu0 %v513
      %556 = vmatprep.subr.bf16.mxu0 0
      %557 = vmatpush1.bf16.msra.mxu0 0
      %558 = vmatprep.subr.bf16.mxu0 0
      %559 = vmatpush1.bf16.msra.mxu0 0
      %560 = vmatprep.subr.bf16.mxu0 0
      %561 = vmatpush1.bf16.msra.mxu0 0
      %562 = vmatprep.subr.bf16.mxu0 0
      %563 = vmatpush1.bf16.msra.mxu0 0
      %564 = vmatprep.subr.bf16.mxu0 0
      %565 = vmatpush1.bf16.msra.mxu0 0
      %566 = vmatprep.subr.bf16.mxu0 0
      %567 = vmatpush1.bf16.msra.mxu0 0
      %568 = vmatprep.subr.bf16.mxu0 0
      %569 = vmatpush1.bf16.msra.mxu0 0
      %570 = vmatprep.subr.bf16.mxu0 0
      %571 = vmatpush1.bf16.msra.mxu0 0
      %572 = vmatprep.mubr.bf16.mxu0 0
      %573 = vmatmul.mubr.bf16.gmra.mrb[0].mxu0 %v410
      %v574 = vpop.f32.mrb[0].mxu0
      %v575 = vadd.f32 %v394, %v574
      %v576 = vpop.f32.mrb[0].mxu0
      %v577 = vadd.f32 %v398, %v576
      %v578 = vpop.f32.mrb[0].mxu0
      %v579 = vadd.f32 %v394, %v578
      %v580 = vpop.f32.mrb[0].mxu0
      %v581 = vadd.f32 %v398, %v580
      %582 = vdwg.mxu0
      %583 = vmatprep.subr.bf16.mxu0 0
      %584 = vmatpush1.bf16.msra.mxu0 %v494
      %585 = vmatprep.subr.bf16.mxu0 0
      %586 = vmatpush1.bf16.msra.mxu0 %v497
      %587 = vmatprep.subr.bf16.mxu0 0
      %588 = vmatpush1.bf16.msra.mxu0 %v500
      %589 = vmatprep.subr.bf16.mxu0 0
      %590 = vmatpush1.bf16.msra.mxu0 %v503
      %591 = vmatprep.subr.bf16.mxu0 0
      %592 = vmatpush1.bf16.msra.mxu0 %v506
      %593 = vmatprep.subr.bf16.mxu0 0
      %594 = vmatpush1.bf16.msra.mxu0 %v509
      %595 = vmatprep.subr.bf16.mxu0 0
      %596 = vmatpush1.bf16.msra.mxu0 %v512
      %597 = vmatprep.subr.bf16.mxu0 0
      %598 = vmatpush1.bf16.msra.mxu0 %v515
      %599 = vmatprep.subr.bf16.mxu0 0
      %600 = vmatpush1.bf16.msra.mxu0 0
      %601 = vmatprep.subr.bf16.mxu0 0
      %602 = vmatpush1.bf16.msra.mxu0 0
      %603 = vmatprep.subr.bf16.mxu0 0
      %604 = vmatpush1.bf16.msra.mxu0 0
      %605 = vmatprep.subr.bf16.mxu0 0
      %606 = vmatpush1.bf16.msra.mxu0 0
      %607 = vmatprep.subr.bf16.mxu0 0
      %608 = vmatpush1.bf16.msra.mxu0 0
      %609 = vmatprep.subr.bf16.mxu0 0
      %610 = vmatpush1.bf16.msra.mxu0 0
      %611 = vmatprep.subr.bf16.mxu0 0
      %612 = vmatpush1.bf16.msra.mxu0 0
      %613 = vmatprep.subr.bf16.mxu0 0
      %614 = vmatpush1.bf16.msra.mxu0 0
      %615 = vmatprep.mubr.bf16.mxu0 0
      %616 = vmatmul.mubr.bf16.gmra.mrb[0].mxu0 %v410
      %v617 = vpop.f32.mrb[0].mxu0
      %v618 = vadd.f32 %v402, %v617
      %v619 = vpop.f32.mrb[0].mxu0
      %v620 = vpop.f32.mrb[0].mxu0
      %v621 = vadd.f32 %v402, %v620
      %v622 = vpop.f32.mrb[0].mxu0
      %623 = vdwg.mxu0
      %v624 = vpack.c.bf16 %v579, %v575
      %v625 = vpack.c.bf16 %v581, %v577
      %v626 = vpack.c.bf16 %v621, %v618
      %v630 = vunpack.c.l.b16 %v624
      %v631 = vunpack.c.l.b16 %v625
      %v632 = vunpack.c.l.b16 %v626
      %v633 = vunpack.c.h.b16 %v624
      %v634 = vunpack.c.h.b16 %v625
      %v635 = vunpack.c.h.b16 %v626
      %v636 = vpack.c.b16 %v631, %v630
      %v637 = vpack.c.b16 %v632, %v632
      %v638 = vpack.c.b16 %v634, %v633
      %v639 = vpack.c.b16 %v635, %v635
      %644 = vst [vmem:[%s287] sm:$0xff] %v636
      %645 = vst [vmem:[%s287 + $0x8] sm:$0xf] %v637
      %vm646 = vcmask 1040384
      %vm647 = vsmask.f32 256
      %vm648 = vmand %vm646, %vm647
      %vm649 = vcmask 1044484
      %vm650 = vsmask.f32 4352
      %vm651 = vmand %vm649, %vm650
      %vm652 = vmor %vm651, %vm648
      %v653 = vld [vmem:[%s287 + $0xc] sm:$0x11]
      %v654 = vsel %vm652, %v638, %v653
      %655 = vst [vmem:[%s287 + $0xc] sm:$0x11] %v654
      %v656 = vld [vmem:[%s287 + $0x14] sm:$0x1]
      %v657 = vsel %vm648, %v639, %v656
      %658 = vst [vmem:[%s287 + $0x14] sm:$0x1] %v657
      %s659 = smul.u32 3, %s21
      %p660 = scmp.lt.s32.totalorder %s20, 1
      %s661 = scalar_select %p660, %s20, 1
      %p662 = scmp.lt.s32.totalorder %s659, 2
      %s663 = scalar_select %p662, %s659, 2
      %s664 = smul.addr %s661, 6
      %s665 = sadd.s32 %s663, %s664
      %s666 = smul.addr %s665, 4
      %s667 = scalar_lea.vmem %s5, %s666
      // Predicated region
      $region45: #{audiomae_forward.18} parent=39 // pred_check
        %p668 = pneg %p168
      $region46: #{audiomae_forward.18} parent=39 // pred_check_branch
        %670 = sbr.rel (%p668) target = $region48
      $region47: #{audiomae_forward.18} parent=39 // pred_region
        %s671 = smul.u32 3, %s21
      $region48: #{audiomae_forward.18} parent=39 // pred_fallthru
        _
    $region40: #{audiomae_forward.18} parent=5 // pred_fallthru
      _
    %p672 = scmp.le.s32.totalorder 2, %s11
    // Predicated region
    $region49: #{audiomae_forward.18} parent=5 // pred_check
      %p673 = pneg %p672
    $region50: #{audiomae_forward.18} parent=5 // pred_check_branch
      %675 = sbr.rel (%p673) target = $region52
    $region51: #{audiomae_forward.18} parent=5 // pred_region
      %s676 = ssub.s32 %s11, 2
      // Predicated region
      $region53: #{audiomae_forward.18} parent=51 // pred_check
        %p677 = pneg %p174
      $region54: #{audiomae_forward.18} parent=51 // pred_check_branch
        %679 = sbr.rel (%p677) target = $region56
      $region55: #{audiomae_forward.18} parent=51 // pred_region
        %s680 = smul.u32 3, %s23
        %p681 = scmp.lt.s32.totalorder %s22, 1
        %s682 = scalar_select %p681, %s22, 1
        %p683 = scmp.lt.s32.totalorder %s680, 2
        %s684 = scalar_select %p683, %s680, 2
        %s685 = smul.addr %s682, 6
        %s686 = sadd.s32 %s684, %s685
        %s687 = smul.addr %s686, 4
        %s688 = scalar_lea.vmem %s5, %s687
      $region56: #{audiomae_forward.18} parent=51 // pred_fallthru
        _
    $region52: #{audiomae_forward.18} parent=5 // pred_fallthru
      _
  $region6: #{audiomae_forward.18} parent=0 // loop_footer
    %s15 = sadd.s32 1, %s11
  $region7: #{audiomae_forward.18} parent=0 // loop_footer_branch
    %10 = sbr.rel target = $region3
  $region8: #{audiomae_forward.18} parent=0 // loop_exit
    _

// kernel: audiomae_forward.21
$region0: #{audiomae_forward.21}
  #allocation0 [shape = 'u32[]', space=smem, size = 0x4, offset = 0x4, fixed_abs, tag = 'smem constant byte address 0x4 - core index']
  #allocation1 [shape = 'u32[144,128]{1,0:T(1,128)}', space=vmem, size = 0x12000, scoped, tag = 'internal scratch']
  #allocation2 [shape = 'bf16[9,128]{1,0:T(8,128)(2,1)}', space=vmem, size = 0x1000, scoped, tag = 'scratch operand']
  #allocation3 [shape = 'f32[9,128]{1,0:T(8,128)}', space=vmem, size = 0x2000, scoped, tag = 'scratch operand']
  %s0 = inlined_call_operand.vmem [shape: f32[2,9,128], index: 0, kind: input, shape index: {}]
  %s1 = inlined_call_operand.vmem [shape: f32[1,128], index: 1, kind: input, shape index: {}]
  %s2 = inlined_call_operand.vmem [shape: f32[1,128], index: 2, kind: input, shape index: {}]
  %s3 = inlined_call_operand.vmem [shape: bf16[128,512], index: 3, kind: input, shape index: {}]
  %s4 = inlined_call_operand.vmem [shape: f32[1,512], index: 4, kind: input, shape index: {}]
  %s5 = inlined_call_operand.vmem [shape: bf16[512,128], index: 5, kind: input, shape index: {}]
  %s6 = inlined_call_operand.vmem [shape: f32[1,128], index: 6, kind: input, shape index: {}]
  %s7 = inlined_call_operand.vmem [shape: f32[2,9,128], index: 7, kind: output, shape index: {}]
  %s8 = sld [smem:[#allocation0]]
  $region69: #{audiomae_forward.21} parent=0
    _
  %s10 = ssub.s32 1, %s8
  %s11 = scalar_select 0, %s10, %s8
  loop: start=0, step=1, limit=4
  $region2: #{audiomae_forward.21} parent=0 // loop_pre_header
    _
  $region3: #{audiomae_forward.21} parent=0 // loop_header
    %s13 = sphi 0, %s17
    %p14 = scmp.ge.s32.totalorder %s13, 4
    %s20 = sphi 0, %s32
    %s21 = sphi 0, %s28
    %s22 = sphi 0, %s20
    %s23 = sphi 0, %s21
    %s24 = sphi 0, %s22
    %s25 = sphi 0, %s23
    %s35 = sphi 0, %s37
    %s38 = sphi 0, %s35
    %s39 = sphi 0, %s38
    %s55 = sphi 0, %s39
    %s59 = sphi 0, %s59
    %s61 = sphi 0, %s59
    %s62 = sphi 0, %s61
    %s76 = sphi 0, %s62
    %s80 = sphi 0, %s80
    %s82 = sphi 0, %s80
    %s83 = sphi 0, %s82
    %s97 = sphi 0, %s83
    %s103 = sphi 0, %s105
    %s106 = sphi 0, %s103
    %s107 = sphi 0, %s106
    %s123 = sphi 0, %s107
    %s129 = sphi 0, %s131
    %s132 = sphi 0, %s129
    %s133 = sphi 0, %s132
    %s149 = sphi 0, %s133
    %s155 = sphi 0, %s157
    %s158 = sphi 0, %s155
    %s159 = sphi 0, %s158
    %s175 = sphi 0, %s159
    %s179 = sphi 0, %s179
    %s181 = sphi 0, %s179
    %s182 = sphi 0, %s181
    %s196 = sphi 0, %s182
    %s202 = sphi 0, %s204
    %s205 = sphi 0, %s202
    %s206 = sphi 0, %s205
    %s222 = sphi 0, %s206
  $region4: #{audiomae_forward.21} parent=0 // loop_header_branch
    %16 = sbr.rel (%p14) target = $region8
  $region5: #{audiomae_forward.21} parent=0 // loop_body
    %s18 = ssub.s32 %s13, 1
    %s19 = ssub.s32 %s13, 2
    %s26 = sadd.s32 1, %s21
    %p27 = scmp.ge.s32.totalorder %s26, 1
    %s28 = scalar_select %p27, 0, %s26
    %s29 = sadd.s32 1, %s20
    %s30 = scalar_select %p27, %s29, %s20
    %p31 = scmp.ge.s32.totalorder %s30, 2
    %s32 = scalar_select %p31, 0, %s30
    %s33 = ssub.s32 %s20, %s32
    %p34 = scmp.eq.s32.totalorder %s33, 0
    %s36 = sadd.s32 %s35, 1
    %s37 = scalar_select %p34, %s35, %s36
    %p40 = pneg %p34
    %p41 = scmp.eq.s32.totalorder %s13, 1
    %p42 = por %p40, %p41
    %p43 = scmp.ne.s32.totalorder %s35, %s38
    %p44 = scmp.eq.s32.totalorder %s13, 0
    %p45 = por %p43, %p44
    %p46 = scmp.ne.s32.totalorder %s35, %s38
    %p47 = scmp.eq.s32.totalorder %s18, 1
    %p48 = por %p46, %p47
    %p49 = scmp.ne.s32.totalorder %s38, %s39
    %p50 = scmp.eq.s32.totalorder %s18, 0
    %p51 = por %p49, %p50
    %p52 = scmp.ne.s32.totalorder %s38, %s39
    %p53 = scmp.eq.s32.totalorder %s19, 1
    %p54 = por %p52, %p53
    %p56 = scmp.ne.s32.totalorder %s39, %s55
    %p57 = scmp.eq.s32.totalorder %s19, 0
    %p58 = por %p56, %p57
    %s60 = sadd.s32 %s59, 1
    %p63 = scmp.eq.s32.totalorder %s13, 1
    %p64 = scmp.ne.s32.totalorder %s59, %s61
    %p65 = scmp.eq.s32.totalorder %s13, 0
    %p66 = por %p64, %p65
    %p67 = scmp.ne.s32.totalorder %s59, %s61
    %p68 = scmp.eq.s32.totalorder %s18, 1
    %p69 = por %p67, %p68
    %p70 = scmp.ne.s32.totalorder %s61, %s62
    %p71 = scmp.eq.s32.totalorder %s18, 0
    %p72 = por %p70, %p71
    %p73 = scmp.ne.s32.totalorder %s61, %s62
    %p74 = scmp.eq.s32.totalorder %s19, 1
    %p75 = por %p73, %p74
    %p77 = scmp.ne.s32.totalorder %s62, %s76
    %p78 = scmp.eq.s32.totalorder %s19, 0
    %p79 = por %p77, %p78
    %s81 = sadd.s32 %s80, 1
    %p84 = scmp.eq.s32.totalorder %s13, 1
    %p85 = scmp.ne.s32.totalorder %s80, %s82
    %p86 = scmp.eq.s32.totalorder %s13, 0
    %p87 = por %p85, %p86
    %p88 = scmp.ne.s32.totalorder %s80, %s82
    %p89 = scmp.eq.s32.totalorder %s18, 1
    %p90 = por %p88, %p89
    %p91 = scmp.ne.s32.totalorder %s82, %s83
    %p92 = scmp.eq.s32.totalorder %s18, 0
    %p93 = por %p91, %p92
    %p94 = scmp.ne.s32.totalorder %s82, %s83
    %p95 = scmp.eq.s32.totalorder %s19, 1
    %p96 = por %p94, %p95
    %p98 = scmp.ne.s32.totalorder %s83, %s97
    %p99 = scmp.eq.s32.totalorder %s19, 0
    %p100 = por %p98, %p99
    %s101 = ssub.s32 %s21, %s28
    %p102 = scmp.eq.s32.totalorder %s101, 0
    %s104 = sadd.s32 %s103, 1
    %s105 = scalar_select %p102, %s103, %s104
    %p108 = pneg %p102
    %p109 = scmp.eq.s32.totalorder %s13, 1
    %p110 = por %p108, %p109
    %p111 = scmp.ne.s32.totalorder %s103, %s106
    %p112 = scmp.eq.s32.totalorder %s13, 0
    %p113 = por %p111, %p112
    %p114 = scmp.ne.s32.totalorder %s103, %s106
    %p115 = scmp.eq.s32.totalorder %s18, 1
    %p116 = por %p114, %p115
    %p117 = scmp.ne.s32.totalorder %s106, %s107
    %p118 = scmp.eq.s32.totalorder %s18, 0
    %p119 = por %p117, %p118
    %p120 = scmp.ne.s32.totalorder %s106, %s107
    %p121 = scmp.eq.s32.totalorder %s19, 1
    %p122 = por %p120, %p121
    %p124 = scmp.ne.s32.totalorder %s107, %s123
    %p125 = scmp.eq.s32.totalorder %s19, 0
    %p126 = por %p124, %p125
    %s127 = ssub.s32 %s21, %s28
    %p128 = scmp.eq.s32.totalorder %s127, 0
    %s130 = sadd.s32 %s129, 1
    %s131 = scalar_select %p128, %s129, %s130
    %p134 = pneg %p128
    %p135 = scmp.eq.s32.totalorder %s13, 1
    %p136 = por %p134, %p135
    %p137 = scmp.ne.s32.totalorder %s129, %s132
    %p138 = scmp.eq.s32.totalorder %s13, 0
    %p139 = por %p137, %p138
    %p140 = scmp.ne.s32.totalorder %s129, %s132
    %p141 = scmp.eq.s32.totalorder %s18, 1
    %p142 = por %p140, %p141
    %p143 = scmp.ne.s32.totalorder %s132, %s133
    %p144 = scmp.eq.s32.totalorder %s18, 0
    %p145 = por %p143, %p144
    %p146 = scmp.ne.s32.totalorder %s132, %s133
    %p147 = scmp.eq.s32.totalorder %s19, 1
    %p148 = por %p146, %p147
    %p150 = scmp.ne.s32.totalorder %s133, %s149
    %p151 = scmp.eq.s32.totalorder %s19, 0
    %p152 = por %p150, %p151
    %s153 = ssub.s32 %s21, %s28
    %p154 = scmp.eq.s32.totalorder %s153, 0
    %s156 = sadd.s32 %s155, 1
    %s157 = scalar_select %p154, %s155, %s156
    %p160 = pneg %p154
    %p161 = scmp.eq.s32.totalorder %s13, 1
    %p162 = por %p160, %p161
    %p163 = scmp.ne.s32.totalorder %s155, %s158
    %p164 = scmp.eq.s32.totalorder %s13, 0
    %p165 = por %p163, %p164
    %p166 = scmp.ne.s32.totalorder %s155, %s158
    %p167 = scmp.eq.s32.totalorder %s18, 1
    %p168 = por %p166, %p167
    %p169 = scmp.ne.s32.totalorder %s158, %s159
    %p170 = scmp.eq.s32.totalorder %s18, 0
    %p171 = por %p169, %p170
    %p172 = scmp.ne.s32.totalorder %s158, %s159
    %p173 = scmp.eq.s32.totalorder %s19, 1
    %p174 = por %p172, %p173
    %p176 = scmp.ne.s32.totalorder %s159, %s175
    %p177 = scmp.eq.s32.totalorder %s19, 0
    %p178 = por %p176, %p177
    %s180 = sadd.s32 %s179, 1
    %p183 = scmp.eq.s32.totalorder %s13, 1
    %p184 = scmp.ne.s32.totalorder %s179, %s181
    %p185 = scmp.eq.s32.totalorder %s13, 0
    %p186 = por %p184, %p185
    %p187 = scmp.ne.s32.totalorder %s179, %s181
    %p188 = scmp.eq.s32.totalorder %s18, 1
    %p189 = por %p187, %p188
    %p190 = scmp.ne.s32.totalorder %s181, %s182
    %p191 = scmp.eq.s32.totalorder %s18, 0
    %p192 = por %p190, %p191
    %p193 = scmp.ne.s32.totalorder %s181, %s182
    %p194 = scmp.eq.s32.totalorder %s19, 1
    %p195 = por %p193, %p194
    %p197 = scmp.ne.s32.totalorder %s182, %s196
    %p198 = scmp.eq.s32.totalorder %s19, 0
    %p199 = por %p197, %p198
    %s200 = ssub.s32 %s20, %s32
    %p201 = scmp.eq.s32.totalorder %s200, 0
    %s203 = sadd.s32 %s202, 1
    %s204 = scalar_select %p201, %s202, %s203
    %p207 = pneg %p201
    %p208 = scmp.eq.s32.totalorder %s13, 1
    %p209 = por %p207, %p208
    %p210 = scmp.ne.s32.totalorder %s202, %s205
    %p211 = scmp.eq.s32.totalorder %s13, 0
    %p212 = por %p210, %p211
    %p213 = scmp.ne.s32.totalorder %s202, %s205
    %p214 = scmp.eq.s32.totalorder %s18, 1
    %p215 = por %p213, %p214
    %p216 = scmp.ne.s32.totalorder %s205, %s206
    %p217 = scmp.eq.s32.totalorder %s18, 0
    %p218 = por %p216, %p217
    %p219 = scmp.ne.s32.totalorder %s205, %s206
    %p220 = scmp.eq.s32.totalorder %s19, 1
    %p221 = por %p219, %p220
    %p223 = scmp.ne.s32.totalorder %s206, %s222
    %p224 = scmp.eq.s32.totalorder %s19, 0
    %p225 = por %p223, %p224
    %p226 = scmp.le.s32.totalorder 1, %s13
    %p227 = scmp.lt.s32.totalorder %s13, 3
    %p228 = pnand %p226, %p227
    %p229 = pneg %p228
    // Predicated region
    $region9: #{audiomae_forward.21} parent=5 // pred_check
      _
    $region10: #{audiomae_forward.21} parent=5 // pred_check_branch
      %231 = sbr.rel (%p228) target = $region12
    $region11: #{audiomae_forward.21} parent=5 // pred_region
      %s232 = ssub.s32 %s13, 1
      // Predicated region
      $region13: #{audiomae_forward.21} parent=11 // pred_check
        %p233 = pneg %p72
      $region14: #{audiomae_forward.21} parent=11 // pred_check_branch
        %235 = sbr.rel (%p233) target = $region16
      $region15: #{audiomae_forward.21} parent=11 // pred_region
        _
      $region16: #{audiomae_forward.21} parent=11 // pred_fallthru
        _
      // Predicated region
      $region17: #{audiomae_forward.21} parent=11 // pred_check
        %p236 = pneg %p93
      $region18: #{audiomae_forward.21} parent=11 // pred_check_branch
        %238 = sbr.rel (%p236) target = $region20
      $region19: #{audiomae_forward.21} parent=11 // pred_region
        _
      $region20: #{audiomae_forward.21} parent=11 // pred_fallthru
        _
      // Predicated region
      $region21: #{audiomae_forward.21} parent=11 // pred_check
        %p239 = pneg %p119
      $region22: #{audiomae_forward.21} parent=11 // pred_check_branch
        %241 = sbr.rel (%p239) target = $region24
      $region23: #{audiomae_forward.21} parent=11 // pred_region
        %s242 = smul.u32 4, %s23
        %p243 = scmp.lt.s32.totalorder %s242, 3
        %s244 = scalar_select %p243, %s242, 3
        %s245 = smul.addr %s244, 4
        %s246 = scalar_lea.vmem %s3, %s245
        %s247 = smul.u32 4, %s23
      $region24: #{audiomae_forward.21} parent=11 // pred_fallthru
        _
      // Predicated region
      $region25: #{audiomae_forward.21} parent=11 // pred_check
        %p248 = pneg %p145
      $region26: #{audiomae_forward.21} parent=11 // pred_check_branch
        %250 = sbr.rel (%p248) target = $region28
      $region27: #{audiomae_forward.21} parent=11 // pred_region
        %s251 = smul.u32 4, %s23
        %p252 = scmp.lt.s32.totalorder %s251, 3
        %s253 = scalar_select %p252, %s251, 3
        %s254 = scalar_lea.vmem %s4, %s253
        %s255 = smul.u32 4, %s23
      $region28: #{audiomae_forward.21} parent=11 // pred_fallthru
        _
      // Predicated region
      $region29: #{audiomae_forward.21} parent=11 // pred_check
        %p256 = pneg %p171
      $region30: #{audiomae_forward.21} parent=11 // pred_check_branch
        %258 = sbr.rel (%p256) target = $region32
      $region31: #{audiomae_forward.21} parent=11 // pred_region
        %s259 = smul.u32 64, %s23
        %p260 = scmp.lt.s32.totalorder %s259, 63
        %s261 = scalar_select %p260, %s259, 63
        %s262 = smul.addr %s261, 4
        %s263 = scalar_lea.vmem %s5, %s262
        %s264 = smul.u32 64, %s23
      $region32: #{audiomae_forward.21} parent=11 // pred_fallthru
        _
      // Predicated region
      $region33: #{audiomae_forward.21} parent=11 // pred_check
        %p265 = pneg %p192
      $region34: #{audiomae_forward.21} parent=11 // pred_check_branch
        %267 = sbr.rel (%p265) target = $region36
      $region35: #{audiomae_forward.21} parent=11 // pred_region
        _
      $region36: #{audiomae_forward.21} parent=11 // pred_fallthru
        _
    $region12: #{audiomae_forward.21} parent=5 // pred_fallthru
      _
    %p268 = scmp.lt.s32.totalorder %s13, 2
    // Predicated region
    $region37: #{audiomae_forward.21} parent=5 // pred_check
      %p269 = pneg %p268
    $region38: #{audiomae_forward.21} parent=5 // pred_check_branch
      %271 = sbr.rel (%p269) target = $region40
    $region39: #{audiomae_forward.21} parent=5 // pred_region
      // Predicated region
      $region41: #{audiomae_forward.21} parent=39 // pred_check
        %p272 = pneg %p45
      $region42: #{audiomae_forward.21} parent=39 // pred_check_branch
        %274 = sbr.rel (%p272) target = $region44
      $region43: #{audiomae_forward.21} parent=39 // pred_region
        %p275 = scmp.lt.s32.totalorder %s20, 1
        %s276 = scalar_select %p275, %s20, 1
        %s277 = smul.addr %s276, 2
        %s278 = smul.addr %s277, 8
        %s279 = scalar_lea.vmem %s0, %s278
      $region44: #{audiomae_forward.21} parent=39 // pred_fallthru
        _
    $region40: #{audiomae_forward.21} parent=5 // pred_fallthru
      _
    %p280 = scmp.le.s32.totalorder 1, %s13
    %p281 = scmp.lt.s32.totalorder %s13, 3
    %p282 = pnand %p280, %p281
    %p283 = pneg %p282
    // Predicated region
    $region45: #{audiomae_forward.21} parent=5 // pred_check
      _
    $region46: #{audiomae_forward.21} parent=5 // pred_check_branch
      %285 = sbr.rel (%p282) target = $region48
    $region47: #{audiomae_forward.21} parent=5 // pred_region
      %s286 = ssub.s32 %s13, 1
      %p287 = scmp.lt.s32.totalorder %s22, 1
      %s288 = scalar_select %p287, %s22, 1
      %s289 = smul.addr %s288, 2
      %s290 = smul.addr %s289, 8
      %s291 = scalar_lea.vmem %s0, %s290
      %p292 = pneg %p51
      %p293 = pneg %p48
      %p294 = pneg %p72
      %p295 = pneg %p69
      %p296 = pneg %p93
      %p297 = pneg %p90
      %s298 = smul.u32 4, %s23
      %p299 = scmp.lt.s32.totalorder %s298, 3
      %s300 = scalar_select %p299, %s298, 3
      %s301 = smul.addr %s300, 4
      %s302 = scalar_lea.vmem %s3, %s301
      %p303 = pneg %p119
      %p304 = pneg %p116
      %s305 = smul.u32 4, %s23
      %p306 = scmp.lt.s32.totalorder %s305, 3
      %s307 = scalar_select %p306, %s305, 3
      %s308 = scalar_lea.vmem %s4, %s307
      %p309 = pneg %p145
      %p310 = pneg %p142
      %s311 = smul.u32 64, %s23
      %p312 = scmp.lt.s32.totalorder %s311, 63
      %s313 = scalar_select %p312, %s311, 63
      %s314 = smul.addr %s313, 4
      %s315 = scalar_lea.vmem %s5, %s314
      %p316 = pneg %p171
      %p317 = pneg %p168
      %p318 = pneg %p192
      %p319 = pneg %p189
      %p320 = pneg %p218
      %p321 = pneg %p215
      %p322 = scmp.lt.s32.totalorder %s22, 1
      %s323 = scalar_select %p322, %s22, 1
      %s324 = smul.addr %s323, 2
      %s325 = smul.addr %s324, 8
      %s326 = scalar_lea.vmem %s7, %s325
      %p327 = scmp.lt.s32.totalorder %s22, 1
      %s328 = scalar_select %p327, %s22, 1
      %s329 = smul.addr %s328, 2
      %s330 = smul.addr %s329, 8
      %s331 = scalar_lea.vmem %s0, %s330
      %s332 = smul.u32 4, %s23
      %p333 = scmp.lt.s32.totalorder %s332, 3
      %s334 = scalar_select %p333, %s332, 3
      %s335 = smul.addr %s334, 4
      %s336 = scalar_lea.vmem %s3, %s335
      %s337 = smul.u32 4, %s23
      %s338 = smul.u32 4, %s23
      %p339 = scmp.lt.s32.totalorder %s338, 3
      %s340 = scalar_select %p339, %s338, 3
      %s341 = scalar_lea.vmem %s4, %s340
      %s342 = smul.u32 4, %s23
      %s343 = smul.u32 64, %s23
      %p344 = scmp.lt.s32.totalorder %s343, 63
      %s345 = scalar_select %p344, %s343, 63
      %s346 = smul.addr %s345, 4
      %s347 = scalar_lea.vmem %s5, %s346
      %s348 = smul.u32 64, %s23
      %p349 = scmp.lt.s32.totalorder %s22, 1
      %s350 = scalar_select %p349, %s22, 1
      %s351 = smul.addr %s350, 2
      %s352 = smul.addr %s351, 8
      %s353 = scalar_lea.vmem %s7, %s352
      %p355 = scmp.eq.s32.totalorder %s23, 0
      // Predicated region
      $region49: #{audiomae_forward.21} parent=47 // pred_check
        %p356 = pneg %p355
      $region50: #{audiomae_forward.21} parent=47 // pred_check_branch
        %358 = sbr.rel (%p356) target = $region52
      $region51: #{audiomae_forward.21} parent=47 // pred_region
        %v359 = vld [vmem:[%s331] sm:$0xff]
        %v360 = vld [vmem:[%s331 + $0x8] sm:$0x1]
        %v361 = vld [vmem:[%s1] sm:$0x1]
        %v362 = vld [vmem:[%s2] sm:$0x1]
        %363 = vadd.xlane.f32.xlu0 %v359
        %v364 = vpop.xlane.xlu0 %363
        %vm365 = vcmask 1040384
        %v366 = vsel %vm365, %v360, 0.0
        %367 = vadd.xlane.f32.xlu0 %v366
        %v368 = vpop.xlane.xlu0 %367
        %v369 = vrcp.pop 128.0
        %v370 = vmul.f32 %v364, %v369
        %v371 = vmul.f32 %v368, %v369
        %v372 = vsub.f32 %v359, %v370
        %v373 = vsub.f32 %v360, %v371
        %v374 = vmul.f32 %v372, %v372
        %v375 = vmul.f32 %v373, %v373
        %376 = vadd.xlane.f32.xlu0 %v374
        %v377 = vpop.xlane.xlu0 %376
        %v378 = vsel %vm365, %v375, 0.0
        %379 = vadd.xlane.f32.xlu0 %v378
        %v380 = vpop.xlane.xlu0 %379
        %v381 = vmul.f32 %v377, %v369
        %v382 = vmul.f32 %v380, %v369
        %v383 = vadd.f32 %v381, 1e-06
        %v384 = vadd.f32 %v382, 1e-06
        %v385 = vrsqrt.pop %v383
        %v386 = vrsqrt.pop %v384
        %v387 = vmul.f32 %v372, %v385
        %v388 = vmul.f32 %v373, %v386
        %v390 = vlaneseq
        %v391 = vshrl.u32 %v390, 7
        %v392 = vsub.s32 0, %v391
        %v393 = vrot.slane %v361, %v392
        %v395 = vmul.f32 %v387, %v393
        %v396 = vmul.f32 %v388, %v393
        %v398 = vlaneseq
        %v399 = vshrl.u32 %v398, 7
        %v400 = vsub.s32 0, %v399
        %v401 = vrot.slane %v362, %v400
        %v403 = vadd.f32 %v395, %v401
        %v404 = vadd.f32 %v396, %v401
        %v405 = vpack.c.bf16 %v404, %v403
        %v407 = vunpack.c.l.b16 %v405
        %v408 = vunpack.c.h.b16 %v405
        %v409 = vpack.c.b16 %v407, %v407
        %v410 = vpack.c.b16 %v408, %v408
        %413 = vst [vmem:[#allocation2] sm:$0xf] %v409
        %vm414 = vcmask 1040384
        %vm415 = vsmask.f32 256
        %vm416 = vmand %vm414, %vm415
        %v417 = vld [vmem:[#allocation2 + $0x4] sm:$0x1]
        %v418 = vsel %vm416, %v410, %v417
        %419 = vst [vmem:[#allocation2 + $0x4] sm:$0x1] %v418
        %420 = vst [vmem:[#allocation3] sm:$0xff] 0.0
        %421 = vst [vmem:[#allocation3 + $0x8] sm:$0x1] 0.0
      $region52: #{audiomae_forward.21} parent=47 // pred_fallthru
        _
      %v422 = vld [vmem:[#allocation2] sm:$0xf]
      %v423 = vld [vmem:[#allocation2 + $0x4] sm:$0x1]
      %v424 = vld [vmem:[%s336] sm:$0xff]
      %v425 = vld [vmem:[%s336 + $0x8] sm:$0xff]
      %v426 = vld [vmem:[%s336 + $0x10] sm:$0xff]
      %v427 = vld [vmem:[%s336 + $0x18] sm:$0xff]
      %v428 = vld [vmem:[%s336 + $0x20] sm:$0xff]
      %v429 = vld [vmem:[%s336 + $0x28] sm:$0xff]
      %v430 = vld [vmem:[%s336 + $0x30] sm:$0xff]
      %v431 = vld [vmem:[%s336 + $0x38] sm:$0xff]
      %v432 = vld [vmem:[%s336 + $0x40] sm:$0xff]
      %v433 = vld [vmem:[%s336 + $0x48] sm:$0xff]
      %v434 = vld [vmem:[%s336 + $0x50] sm:$0xff]
      %v435 = vld [vmem:[%s336 + $0x58] sm:$0xff]
      %v436 = vld [vmem:[%s336 + $0x60] sm:$0xff]
      %v437 = vld [vmem:[%s336 + $0x68] sm:$0xff]
      %v438 = vld [vmem:[%s336 + $0x70] sm:$0xff]
      %v439 = vld [vmem:[%s336 + $0x78] sm:$0xff]
      %v440 = vld [vmem:[%s336 + $0x80] sm:$0xff]
      %v441 = vld [vmem:[%s336 + $0x88] sm:$0xff]
      %v442 = vld [vmem:[%s336 + $0x90] sm:$0xff]
      %v443 = vld [vmem:[%s336 + $0x98] sm:$0xff]
      %v444 = vld [vmem:[%s336 + $0xa0] sm:$0xff]
      %v445 = vld [vmem:[%s336 + $0xa8] sm:$0xff]
      %v446 = vld [vmem:[%s336 + $0xb0] sm:$0xff]
      %v447 = vld [vmem:[%s336 + $0xb8] sm:$0xff]
      %v448 = vld [vmem:[%s336 + $0xc0] sm:$0xff]
      %v449 = vld [vmem:[%s336 + $0xc8] sm:$0xff]
      %v450 = vld [vmem:[%s336 + $0xd0] sm:$0xff]
      %v451 = vld [vmem:[%s336 + $0xd8] sm:$0xff]
      %v452 = vld [vmem:[%s336 + $0xe0] sm:$0xff]
      %v453 = vld [vmem:[%s336 + $0xe8] sm:$0xff]
      %v454 = vld [vmem:[%s336 + $0xf0] sm:$0xff]
      %v455 = vld [vmem:[%s336 + $0xf8] sm:$0xff]
      %v456 = vld [vmem:[%s341] sm:$0xf]
      %v458 = vlaneseq
      %v459 = vshrl.u32 %v458, 7
      %v460 = vsub.s32 0, %v459
      %v461 = vrot.slane %v456, %v460
      %v462 = vlaneseq
      %v463 = vshrl.u32 %v462, 7
      %v464 = vsub.s32 1, %v463
      %v465 = vrot.slane %v456, %v464
      %v466 = vlaneseq
      %v467 = vshrl.u32 %v466, 7
      %v468 = vsub.s32 2, %v467
      %v469 = vrot.slane %v456, %v468
      %v470 = vlaneseq
      %v471 = vshrl.u32 %v470, 7
      %v472 = vsub.s32 3, %v471
      %v473 = vrot.slane %v456, %v472
      %v480 = vunpack.c.l.b16 %v422
      %v481 = vunpack.c.l.b16 %v423
      %v482 = vpack.c.b16 %v481, %v480
      %v516 = vunpack.c.l.b16 %v424
      %v517 = vunpack.c.h.b16 %v424
      %v518 = vunpack.c.l.b16 %v425
      %v519 = vunpack.c.h.b16 %v425
      %v520 = vunpack.c.l.b16 %v426
      %v521 = vunpack.c.h.b16 %v426
      %v522 = vunpack.c.l.b16 %v427
      %v523 = vunpack.c.h.b16 %v427
      %v524 = vunpack.c.l.b16 %v428
      %v525 = vunpack.c.h.b16 %v428
      %v526 = vunpack.c.l.b16 %v429
      %v527 = vunpack.c.h.b16 %v429
      %v528 = vunpack.c.l.b16 %v430
      %v529 = vunpack.c.h.b16 %v430
      %v530 = vunpack.c.l.b16 %v431
      %v531 = vunpack.c.h.b16 %v431
      %v532 = vunpack.c.l.b16 %v432
      %v533 = vunpack.c.h.b16 %v432
      %v534 = vunpack.c.l.b16 %v433
      %v535 = vunpack.c.h.b16 %v433
      %v536 = vunpack.c.l.b16 %v434
      %v537 = vunpack.c.h.b16 %v434
      %v538 = vunpack.c.l.b16 %v435
      %v539 = vunpack.c.h.b16 %v435
      %v540 = vunpack.c.l.b16 %v436
      %v541 = vunpack.c.h.b16 %v436
      %v542 = vunpack.c.l.b16 %v437
      %v543 = vunpack.c.h.b16 %v437
      %v544 = vunpack.c.l.b16 %v438
      %v545 = vunpack.c.h.b16 %v438
      %v546 = vunpack.c.l.b16 %v439
      %v547 = vunpack.c.h.b16 %v439
      %v548 = vunpack.c.l.b16 %v440
      %v549 = vunpack.c.h.b16 %v440
      %v550 = vunpack.c.l.b16 %v441
      %v551 = vunpack.c.h.b16 %v441
      %v552 = vunpack.c.l.b16 %v442
      %v553 = vunpack.c.h.b16 %v442
      %v554 = vunpack.c.l.b16 %v443
      %v555 = vunpack.c.h.b16 %v443
      %v556 = vunpack.c.l.b16 %v444
      %v557 = vunpack.c.h.b16 %v444
      %v558 = vunpack.c.l.b16 %v445
      %v559 = vunpack.c.h.b16 %v445
      %v560 = vunpack.c.l.b16 %v446
      %v561 = vunpack.c.h.b16 %v446
      %v562 = vunpack.c.l.b16 %v447
      %v563 = vunpack.c.h.b16 %v447
      %v564 = vunpack.c.l.b16 %v448
      %v565 = vunpack.c.h.b16 %v448
      %v566 = vunpack.c.l.b16 %v449
      %v567 = vunpack.c.h.b16 %v449
      %v568 = vunpack.c.l.b16 %v450
      %v569 = vunpack.c.h.b16 %v450
      %v570 = vunpack.c.l.b16 %v451
      %v571 = vunpack.c.h.b16 %v451
      %v572 = vunpack.c.l.b16 %v452
      %v573 = vunpack.c.h.b16 %v452
      %v574 = vunpack.c.l.b16 %v453
      %v575 = vunpack.c.h.b16 %v453
      %v576 = vunpack.c.l.b16 %v454
      %v577 = vunpack.c.h.b16 %v454
      %v578 = vunpack.c.l.b16 %v455
      %v579 = vunpack.c.h.b16 %v455
      %v580 = vpack.c.b16 %v520, %v516
      %v581 = vpack.c.b16 %v521, %v517
      %v582 = vpack.c.b16 %v522, %v518
      %v583 = vpack.c.b16 %v523, %v519
      %v584 = vpack.c.b16 %v528, %v524
      %v585 = vpack.c.b16 %v529, %v525
      %v586 = vpack.c.b16 %v530, %v526
      %v587 = vpack.c.b16 %v531, %v527
      %v588 = vpack.c.b16 %v536, %v532
      %v589 = vpack.c.b16 %v537, %v533
      %v590 = vpack.c.b16 %v538, %v534
      %v591 = vpack.c.b16 %v539, %v535
      %v592 = vpack.c.b16 %v544, %v540
      %v593 = vpack.c.b16 %v545, %v541
      %v594 = vpack.c.b16 %v546, %v542
      %v595 = vpack.c.b16 %v547, %v543
      %v596 = vpack.c.b16 %v552, %v548
      %v597 = vpack.c.b16 %v553, %v549
      %v598 = vpack.c.b16 %v554, %v550
      %v599 = vpack.c.b16 %v555, %v551
      %v600 = vpack.c.b16 %v560, %v556
      %v601 = vpack.c.b16 %v561, %v557
      %v602 = vpack.c.b16 %v562, %v558
      %v603 = vpack.c.b16 %v563, %v559
      %v604 = vpack.c.b16 %v568, %v564
      %v605 = vpack.c.b16 %v569, %v565
      %v606 = vpack.c.b16 %v570, %v566
      %v607 = vpack.c.b16 %v571, %v567
      %v608 = vpack.c.b16 %v576, %v572
      %v609 = vpack.c.b16 %v577, %v573
      %v610 = vpack.c.b16 %v578, %v574
      %v611 = vpack.c.b16 %v579, %v575
      %644 = vmatprep.subr.bf16.mxu0 %v581
      %645 = vmatpush1.bf16.msra.mxu0 %v580
      %646 = vmatprep.subr.bf16.mxu0 %v585
      %647 = vmatpush1.bf16.msra.mxu0 %v584
      %648 = vmatprep.subr.bf16.mxu0 %v589
      %649 = vmatpush1.bf16.msra.mxu0 %v588
      %650 = vmatprep.subr.bf16.mxu0 %v593
      %651 = vmatpush1.bf16.msra.mxu0 %v592
      %652 = vmatprep.subr.bf16.mxu0 %v597
      %653 = vmatpush1.bf16.msra.mxu0 %v596
      %654 = vmatprep.subr.bf16.mxu0 %v601
      %655 = vmatpush1.bf16.msra.mxu0 %v600
      %656 = vmatprep.subr.bf16.mxu0 %v605
      %657 = vmatpush1.bf16.msra.mxu0 %v604
      %658 = vmatprep.subr.bf16.mxu0 %v609
      %659 = vmatpush1.bf16.msra.mxu0 %v608
      %660 = vmatprep.subr.bf16.mxu0 0
      %661 = vmatpush1.bf16.msra.mxu0 0
      %662 = vmatprep.subr.bf16.mxu0 0
      %663 = vmatpush1.bf16.msra.mxu0 0
      %664 = vmatprep.subr.bf16.mxu0 0
      %665 = vmatpush1.bf16.msra.mxu0 0
      %666 = vmatprep.subr.bf16.mxu0 0
      %667 = vmatpush1.bf16.msra.mxu0 0
      %668 = vmatprep.subr.bf16.mxu0 0
      %669 = vmatpush1.bf16.msra.mxu0 0
      %670 = vmatprep.subr.bf16.mxu0 0
      %671 = vmatpush1.bf16.msra.mxu0 0
      %672 = vmatprep.subr.bf16.mxu0 0
      %673 = vmatpush1.bf16.msra.mxu0 0
      %674 = vmatprep.subr.bf16.mxu0 0
      %675 = vmatpush1.bf16.msra.mxu0 0
      %676 = vmatprep.mubr.bf16.mxu0 0
      %677 = vmatmul.mubr.bf16.gmra.mrb[0].mxu0 %v482
      %v678 = vpop.f32.mrb[0].mxu0
      %v679 = vadd.f32 %v461, %v678
      %v680 = vpop.f32.mrb[0].mxu0
      %v681 = vadd.f32 %v465, %v680
      %v682 = vpop.f32.mrb[0].mxu0
      %v683 = vadd.f32 %v461, %v682
      %v684 = vpop.f32.mrb[0].mxu0
      %v685 = vadd.f32 %v465, %v684
      %686 = vdwg.mxu0
      %687 = vmatprep.subr.bf16.mxu0 %v583
      %688 = vmatpush1.bf16.msra.mxu0 %v582
      %689 = vmatprep.subr.bf16.mxu0 %v587
      %690 = vmatpush1.bf16.msra.mxu0 %v586
      %691 = vmatprep.subr.bf16.mxu0 %v591
      %692 = vmatpush1.bf16.msra.mxu0 %v590
      %693 = vmatprep.subr.bf16.mxu0 %v595
      %694 = vmatpush1.bf16.msra.mxu0 %v594
      %695 = vmatprep.subr.bf16.mxu0 %v599
      %696 = vmatpush1.bf16.msra.mxu0 %v598
      %697 = vmatprep.subr.bf16.mxu0 %v603
      %698 = vmatpush1.bf16.msra.mxu0 %v602
      %699 = vmatprep.subr.bf16.mxu0 %v607
      %700 = vmatpush1.bf16.msra.mxu0 %v606
      %701 = vmatprep.subr.bf16.mxu0 %v611
      %702 = vmatpush1.bf16.msra.mxu0 %v610
      %703 = vmatprep.subr.bf16.mxu0 0
      %704 = vmatpush1.bf16.msra.mxu0 0
      %705 = vmatprep.subr.bf16.mxu0 0
      %706 = vmatpush1.bf16.msra.mxu0 0
      %707 = vmatprep.subr.bf16.mxu0 0
      %708 = vmatpush1.bf16.msra.mxu0 0
      %709 = vmatprep.subr.bf16.mxu0 0
      %710 = vmatpush1.bf16.msra.mxu0 0
      %711 = vmatprep.subr.bf16.mxu0 0
      %712 = vmatpush1.bf16.msra.mxu0 0
      %713 = vmatprep.subr.bf16.mxu0 0
      %714 = vmatpush1.bf16.msra.mxu0 0
      %715 = vmatprep.subr.bf16.mxu0 0
      %716 = vmatpush1.bf16.msra.mxu0 0
      %717 = vmatprep.subr.bf16.mxu0 0
      %718 = vmatpush1.bf16.msra.mxu0 0
      %719 = vmatprep.mubr.bf16.mxu0 0
      %720 = vmatmul.mubr.bf16.gmra.mrb[0].mxu0 %v482
      %v721 = vpop.f32.mrb[0].mxu0
      %v722 = vadd.f32 %v469, %v721
      %v723 = vpop.f32.mrb[0].mxu0
      %v724 = vadd.f32 %v473, %v723
      %v725 = vpop.f32.mrb[0].mxu0
      %v726 = vadd.f32 %v469, %v725
      %v727 = vpop.f32.mrb[0].mxu0
      %v728 = vadd.f32 %v473, %v727
      %729 = vdwg.mxu0
      %v730 = vmul.f32 %v679, %v679
      %v731 = vmul.f32 %v681, %v681
      %v732 = vmul.f32 %v722, %v722
      %v733 = vmul.f32 %v724, %v724
      %v734 = vmul.f32 %v683, %v683
      %v735 = vmul.f32 %v685, %v685
      %v736 = vmul.f32 %v726, %v726
      %v737 = vmul.f32 %v728, %v728
      %v738 = vmul.f32 %v679, %v730
      %v739 = vmul.f32 %v681, %v731
      %v740 = vmul.f32 %v722, %v732
      %v741 = vmul.f32 %v724, %v733
      %v742 = vmul.f32 %v683, %v734
      %v743 = vmul.f32 %v685, %v735
      %v744 = vmul.f32 %v726, %v736
      %v745 = vmul.f32 %v728, %v737
      %v746 = vmul.f32 %v738, 0.044715
      %v747 = vmul.f32 %v739, 0.044715
      %v748 = vmul.f32 %v740, 0.044715
      %v749 = vmul.f32 %v741, 0.044715
      %v750 = vmul.f32 %v742, 0.044715
      %v751 = vmul.f32 %v743, 0.044715
      %v752 = vmul.f32 %v744, 0.044715
      %v753 = vmul.f32 %v745, 0.044715
      %v754 = vadd.f32 %v679, %v746
      %v755 = vadd.f32 %v681, %v747
      %v756 = vadd.f32 %v722, %v748
      %v757 = vadd.f32 %v724, %v749
      %v758 = vadd.f32 %v683, %v750
      %v759 = vadd.f32 %v685, %v751
      %v760 = vadd.f32 %v726, %v752
      %v761 = vadd.f32 %v728, %v753
      %v762 = vmul.f32 %v754, 0.7978846
      %v763 = vmul.f32 %v755, 0.7978846
      %v764 = vmul.f32 %v756, 0.7978846
      %v765 = vmul.f32 %v757, 0.7978846
      %v766 = vmul.f32 %v758, 0.7978846
      %v767 = vmul.f32 %v759, 0.7978846
      %v768 = vmul.f32 %v760, 0.7978846
      %v769 = vmul.f32 %v761, 0.7978846
      %v770 = vtanh.pop %v762
      %v771 = vtanh.pop %v763
      %v772 = vtanh.pop %v764
      %v773 = vtanh.pop %v765
      %v774 = vtanh.pop %v766
      %v775 = vtanh.pop %v767
      %v776 = vtanh.pop %v768
      %v777 = vtanh.pop %v769
      %v778 = vadd.f32 %v770, 1.0
      %v779 = vadd.f32 %v771, 1.0
      %v780 = vadd.f32 %v772, 1.0
      %v781 = vadd.f32 %v773, 1.0
      %v782 = vadd.f32 %v774, 1.0
      %v783 = vadd.f32 %v775, 1.0
      %v784 = vadd.f32 %v776, 1.0
      %v785 = vadd.f32 %v777, 1.0
      %v786 = vmul.f32 %v778, 0.5
      %v787 = vmul.f32 %v779, 0.5
      %v788 = vmul.f32 %v780, 0.5
      %v789 = vmul.f32 %v781, 0.5
      %v790 = vmul.f32 %v782, 0.5
      %v791 = vmul.f32 %v783, 0.5
      %v792 = vmul.f32 %v784, 0.5
      %v793 = vmul.f32 %v785, 0.5
      %v794 = vmul.f32 %v679, %v786
      %v795 = vmul.f32 %v681, %v787
      %v796 = vmul.f32 %v722, %v788
      %v797 = vmul.f32 %v724, %v789
      %v798 = vmul.f32 %v683, %v790
      %v799 = vmul.f32 %v685, %v791
      %v800 = vmul.f32 %v726, %v792
      %v801 = vmul.f32 %v728, %v793
      %v802 = vld [vmem:[#allocation3] sm:$0xff]
      %v803 = vld [vmem:[#allocation3 + $0x8] sm:$0x1]
      %v804 = vpack.c.bf16 %v798, %v794
      %v805 = vpack.c.bf16 %v799, %v795
      %v806 = vpack.c.bf16 %v800, %v796
      %v807 = vpack.c.bf16 %v801, %v797
      %v808 = vld [vmem:[%s347] sm:$0xf]
      %v809 = vld [vmem:[%s347 + $0x4] sm:$0xf]
      %v810 = vld [vmem:[%s347 + $0x8] sm:$0xf]
      %v811 = vld [vmem:[%s347 + $0xc] sm:$0xf]
      %v812 = vld [vmem:[%s347 + $0x10] sm:$0xf]
      %v813 = vld [vmem:[%s347 + $0x14] sm:$0xf]
      %v814 = vld [vmem:[%s347 + $0x18] sm:$0xf]
      %v815 = vld [vmem:[%s347 + $0x1c] sm:$0xf]
      %v816 = vld [vmem:[%s347 + $0x20] sm:$0xf]
      %v817 = vld [vmem:[%s347 + $0x24] sm:$0xf]
      %v818 = vld [vmem:[%s347 + $0x28] sm:$0xf]
      %v819 = vld [vmem:[%s347 + $0x2c] sm:$0xf]
      %v820 = vld [vmem:[%s347 + $0x30] sm:$0xf]
      %v821 = vld [vmem:[%s347 + $0x34] sm:$0xf]
      %v822 = vld [vmem:[%s347 + $0x38] sm:$0xf]
      %v823 = vld [vmem:[%s347 + $0x3c] sm:$0xf]
      %v824 = vld [vmem:[%s347 + $0x40] sm:$0xf]
      %v825 = vld [vmem:[%s347 + $0x44] sm:$0xf]
      %v826 = vld [vmem:[%s347 + $0x48] sm:$0xf]
      %v827 = vld [vmem:[%s347 + $0x4c] sm:$0xf]
      %v828 = vld [vmem:[%s347 + $0x50] sm:$0xf]
      %v829 = vld [vmem:[%s347 + $0x54] sm:$0xf]
      %v830 = vld [vmem:[%s347 + $0x58] sm:$0xf]
      %v831 = vld [vmem:[%s347 + $0x5c] sm:$0xf]
      %v832 = vld [vmem:[%s347 + $0x60] sm:$0xf]
      %v833 = vld [vmem:[%s347 + $0x64] sm:$0xf]
      %v834 = vld [vmem:[%s347 + $0x68] sm:$0xf]
      %v835 = vld [vmem:[%s347 + $0x6c] sm:$0xf]
      %v836 = vld [vmem:[%s347 + $0x70] sm:$0xf]
      %v837 = vld [vmem:[%s347 + $0x74] sm:$0xf]
      %v838 = vld [vmem:[%s347 + $0x78] sm:$0xf]
      %v839 = vld [vmem:[%s347 + $0x7c] sm:$0xf]
      %v840 = vld [vmem:[%s347 + $0x80] sm:$0xf]
      %v841 = vld [vmem:[%s347 + $0x84] sm:$0xf]
      %v842 = vld [vmem:[%s347 + $0x88] sm:$0xf]
      %v843 = vld [vmem:[%s347 + $0x8c] sm:$0xf]
      %v844 = vld [vmem:[%s347 + $0x90] sm:$0xf]
      %v845 = vld [vmem:[%s347 + $0x94] sm:$0xf]
      %v846 = vld [vmem:[%s347 + $0x98] sm:$0xf]
      %v847 = vld [vmem:[%s347 + $0x9c] sm:$0xf]
      %v848 = vld [vmem:[%s347 + $0xa0] sm:$0xf]
      %v849 = vld [vmem:[%s347 + $0xa4] sm:$0xf]
      %v850 = vld [vmem:[%s347 + $0xa8] sm:$0xf]
      %v851 = vld [vmem:[%s347 + $0xac] sm:$0xf]
      %v852 = vld [vmem:[%s347 + $0xb0] sm:$0xf]
      %v853 = vld [vmem:[%s347 + $0xb4] sm:$0xf]
      %v854 = vld [vmem:[%s347 + $0xb8] sm:$0xf]
      %v855 = vld [vmem:[%s347 + $0xbc] sm:$0xf]
      %v856 = vld [vmem:[%s347 + $0xc0] sm:$0xf]
      %v857 = vld [vmem:[%s347 + $0xc4] sm:$0xf]
      %v858 = vld [vmem:[%s347 + $0xc8] sm:$0xf]
      %v859 = vld [vmem:[%s347 + $0xcc] sm:$0xf]
      %v860 = vld [vmem:[%s347 + $0xd0] sm:$0xf]
      %v861 = vld [vmem:[%s347 + $0xd4] sm:$0xf]
      %v862 = vld [vmem:[%s347 + $0xd8] sm:$0xf]
      %v863 = vld [vmem:[%s347 + $0xdc] sm:$0xf]
      %v864 = vld [vmem:[%s347 + $0xe0] sm:$0xf]
      %v865 = vld [vmem:[%s347 + $0xe4] sm:$0xf]
      %v866 = vld [vmem:[%s347 + $0xe8] sm:$0xf]
      %v867 = vld [vmem:[%s347 + $0xec] sm:$0xf]
      %v868 = vld [vmem:[%s347 + $0xf0] sm:$0xf]
      %v869 = vld [vmem:[%s347 + $0xf4] sm:$0xf]
      %v870 = vld [vmem:[%s347 + $0xf8] sm:$0xf]
      %v871 = vld [vmem:[%s347 + $0xfc] sm:$0xf]
      %v936 = vunpack.c.l.b16 %v808
      %v937 = vunpack.c.l.b16 %v809
      %v938 = vunpack.c.l.b16 %v810
      %v939 = vunpack.c.l.b16 %v811
      %v940 = vunpack.c.l.b16 %v812
      %v941 = vunpack.c.l.b16 %v813
      %v942 = vunpack.c.l.b16 %v814
      %v943 = vunpack.c.l.b16 %v815
      %v944 = vunpack.c.l.b16 %v816
      %v945 = vunpack.c.l.b16 %v817
      %v946 = vunpack.c.l.b16 %v818
      %v947 = vunpack.c.l.b16 %v819
      %v948 = vunpack.c.l.b16 %v820
      %v949 = vunpack.c.l.b16 %v821
      %v950 = vunpack.c.l.b16 %v822
      %v951 = vunpack.c.l.b16 %v823
      %v952 = vunpack.c.l.b16 %v824
      %v953 = vunpack.c.l.b16 %v825
      %v954 = vunpack.c.l.b16 %v826
      %v955 = vunpack.c.l.b16 %v827
      %v956 = vunpack.c.l.b16 %v828
      %v957 = vunpack.c.l.b16 %v829
      %v958 = vunpack.c.l.b16 %v830
      %v959 = vunpack.c.l.b16 %v831
      %v960 = vunpack.c.l.b16 %v832
      %v961 = vunpack.c.l.b16 %v833
      %v962 = vunpack.c.l.b16 %v834
      %v963 = vunpack.c.l.b16 %v835
      %v964 = vunpack.c.l.b16 %v836
      %v965 = vunpack.c.l.b16 %v837
      %v966 = vunpack.c.l.b16 %v838
      %v967 = vunpack.c.l.b16 %v839
      %v968 = vunpack.c.l.b16 %v840
      %v969 = vunpack.c.l.b16 %v841
      %v970 = vunpack.c.l.b16 %v842
      %v971 = vunpack.c.l.b16 %v843
      %v972 = vunpack.c.l.b16 %v844
      %v973 = vunpack.c.l.b16 %v845
      %v974 = vunpack.c.l.b16 %v846
      %v975 = vunpack.c.l.b16 %v847
      %v976 = vunpack.c.l.b16 %v848
      %v977 = vunpack.c.l.b16 %v849
      %v978 = vunpack.c.l.b16 %v850
      %v979 = vunpack.c.l.b16 %v851
      %v980 = vunpack.c.l.b16 %v852
      %v981 = vunpack.c.l.b16 %v853
      %v982 = vunpack.c.l.b16 %v854
      %v983 = vunpack.c.l.b16 %v855
      %v984 = vunpack.c.l.b16 %v856
      %v985 = vunpack.c.l.b16 %v857
      %v986 = vunpack.c.l.b16 %v858
      %v987 = vunpack.c.l.b16 %v859
      %v988 = vunpack.c.l.b16 %v860
      %v989 = vunpack.c.l.b16 %v861
      %v990 = vunpack.c.l.b16 %v862
      %v991 = vunpack.c.l.b16 %v863
      %v992 = vunpack.c.l.b16 %v864
      %v993 = vunpack.c.l.b16 %v865
      %v994 = vunpack.c.l.b16 %v866
      %v995 = vunpack.c.l.b16 %v867
      %v996 = vunpack.c.l.b16 %v868
      %v997 = vunpack.c.l.b16 %v869
      %v998 = vunpack.c.l.b16 %v870
      %v999 = vunpack.c.l.b16 %v871
      %v1000 = vpack.c.b16 %v937, %v936
      %v1001 = vpack.c.b16 %v939, %v938
      %v1002 = vpack.c.b16 %v941, %v940
      %v1003 = vpack.c.b16 %v943, %v942
      %v1004 = vpack.c.b16 %v945, %v944
      %v1005 = vpack.c.b16 %v947, %v946
      %v1006 = vpack.c.b16 %v949, %v948
      %v1007 = vpack.c.b16 %v951, %v950
      %v1008 = vpack.c.b16 %v953, %v952
      %v1009 = vpack.c.b16 %v955, %v954
      %v1010 = vpack.c.b16 %v957, %v956
      %v1011 = vpack.c.b16 %v959, %v958
      %v1012 = vpack.c.b16 %v961, %v960
      %v1013 = vpack.c.b16 %v963, %v962
      %v1014 = vpack.c.b16 %v965, %v964
      %v1015 = vpack.c.b16 %v967, %v966
      %v1016 = vpack.c.b16 %v969, %v968
      %v1017 = vpack.c.b16 %v971, %v970
      %v1018 = vpack.c.b16 %v973, %v972
      %v1019 = vpack.c.b16 %v975, %v974
      %v1020 = vpack.c.b16 %v977, %v976
      %v1021 = vpack.c.b16 %v979, %v978
      %v1022 = vpack.c.b16 %v981, %v980
      %v1023 = vpack.c.b16 %v983, %v982
      %v1024 = vpack.c.b16 %v985, %v984
      %v1025 = vpack.c.b16 %v987, %v986
      %v1026 = vpack.c.b16 %v989, %v988
      %v1027 = vpack.c.b16 %v991, %v990
      %v1028 = vpack.c.b16 %v993, %v992
      %v1029 = vpack.c.b16 %v995, %v994
      %v1030 = vpack.c.b16 %v997, %v996
      %v1031 = vpack.c.b16 %v999, %v998
      %1064 = vmatprep.subr.bf16.mxu0 0
      %1065 = vmatpush1.bf16.msra.mxu0 %v1000
      %1066 = vmatprep.subr.bf16.mxu0 0
      %1067 = vmatpush1.bf16.msra.mxu0 %v1001
      %1068 = vmatprep.subr.bf16.mxu0 0
      %1069 = vmatpush1.bf16.msra.mxu0 %v1002
      %1070 = vmatprep.subr.bf16.mxu0 0
      %1071 = vmatpush1.bf16.msra.mxu0 %v1003
      %1072 = vmatprep.subr.bf16.mxu0 0
      %1073 = vmatpush1.bf16.msra.mxu0 %v1004
      %1074 = vmatprep.subr.bf16.mxu0 0
      %1075 = vmatpush1.bf16.msra.mxu0 %v1005
      %1076 = vmatprep.subr.bf16.mxu0 0
      %1077 = vmatpush1.bf16.msra.mxu0 %v1006
      %1078 = vmatprep.subr.bf16.mxu0 0
      %1079 = vmatpush1.bf16.msra.mxu0 %v1007
      %1080 = vmatprep.subr.bf16.mxu0 0
      %1081 = vmatpush1.bf16.msra.mxu0 %v1008
      %1082 = vmatprep.subr.bf16.mxu0 0
      %1083 = vmatpush1.bf16.msra.mxu0 %v1009
      %1084 = vmatprep.subr.bf16.mxu0 0
      %1085 = vmatpush1.bf16.msra.mxu0 %v1010
      %1086 = vmatprep.subr.bf16.mxu0 0
      %1087 = vmatpush1.bf16.msra.mxu0 %v1011
      %1088 = vmatprep.subr.bf16.mxu0 0
      %1089 = vmatpush1.bf16.msra.mxu0 %v1012
      %1090 = vmatprep.subr.bf16.mxu0 0
      %1091 = vmatpush1.bf16.msra.mxu0 %v1013
      %1092 = vmatprep.subr.bf16.mxu0 0
      %1093 = vmatpush1.bf16.msra.mxu0 %v1014
      %1094 = vmatprep.subr.bf16.mxu0 0
      %1095 = vmatpush1.bf16.msra.mxu0 %v1015
      %1096 = vmatprep.mubr.bf16.mxu0 %v805
      %1097 = vmatmul.mubr.bf16.gmra.mrb[0].mxu0 %v804
      %v1098 = vpop.f32.mrb[0].mxu0
      %v1099 = vadd.f32 0.0, %v1098
      %v1100 = vpop.f32.mrb[0].mxu0
      %v1101 = vpop.f32.mrb[0].mxu0
      %v1102 = vadd.f32 0.0, %v1101
      %v1103 = vpop.f32.mrb[0].mxu0
      %1104 = vdwg.mxu0
      %1105 = vmatprep.subr.bf16.mxu0 0
      %1106 = vmatpush1.bf16.msra.mxu0 %v1016
      %1107 = vmatprep.subr.bf16.mxu0 0
      %1108 = vmatpush1.bf16.msra.mxu0 %v1017
      %1109 = vmatprep.subr.bf16.mxu0 0
      %1110 = vmatpush1.bf16.msra.mxu0 %v1018
      %1111 = vmatprep.subr.bf16.mxu0 0
      %1112 = vmatpush1.bf16.msra.mxu0 %v1019
      %1113 = vmatprep.subr.bf16.mxu0 0
      %1114 = vmatpush1.bf16.msra.mxu0 %v1020
      %1115 = vmatprep.subr.bf16.mxu0 0
      %1116 = vmatpush1.bf16.msra.mxu0 %v1021
      %1117 = vmatprep.subr.bf16.mxu0 0
      %1118 = vmatpush1.bf16.msra.mxu0 %v1022
      %1119 = vmatprep.subr.bf16.mxu0 0
      %1120 = vmatpush1.bf16.msra.mxu0 %v1023
      %1121 = vmatprep.subr.bf16.mxu0 0
      %1122 = vmatpush1.bf16.msra.mxu0 %v1024
      %1123 = vmatprep.subr.bf16.mxu0 0
      %1124 = vmatpush1.bf16.msra.mxu0 %v1025
      %1125 = vmatprep.subr.bf16.mxu0 0
      %1126 = vmatpush1.bf16.msra.mxu0 %v1026
      %1127 = vmatprep.subr.bf16.mxu0 0
      %1128 = vmatpush1.bf16.msra.mxu0 %v1027
      %1129 = vmatprep.subr.bf16.mxu0 0
      %1130 = vmatpush1.bf16.msra.mxu0 %v1028
      %1131 = vmatprep.subr.bf16.mxu0 0
      %1132 = vmatpush1.bf16.msra.mxu0 %v1029
      %1133 = vmatprep.subr.bf16.mxu0 0
      %1134 = vmatpush1.bf16.msra.mxu0 %v1030
      %1135 = vmatprep.subr.bf16.mxu0 0
      %1136 = vmatpush1.bf16.msra.mxu0 %v1031
      %1137 = vmatprep.mubr.bf16.mxu0 %v807
      %1138 = vmatmul.mubr.bf16.gmra.mrb[0].mxu0 %v806
      %v1139 = vpop.f32.mrb[0].mxu0
      %v1140 = vadd.f32 %v1099, %v1139
      %v1141 = vpop.f32.mrb[0].mxu0
      %v1142 = vpop.f32.mrb[0].mxu0
      %v1143 = vadd.f32 %v1102, %v1142
      %v1144 = vpop.f32.mrb[0].mxu0
      %1145 = vdwg.mxu0
      %v1146 = vadd.f32 %v802, %v1140
      %v1147 = vadd.f32 %v803, %v1143
      %1148 = vst [vmem:[#allocation3] sm:$0xff] %v1146
      %1149 = vst [vmem:[#allocation3 + $0x8] sm:$0x1] %v1147
      // Predicated region
      $region53: #{audiomae_forward.21} parent=47 // pred_check
        %p1150 = pneg %p355
      $region54: #{audiomae_forward.21} parent=47 // pred_check_branch
        %1152 = sbr.rel (%p1150) target = $region56
      $region55: #{audiomae_forward.21} parent=47 // pred_region
        %v1153 = vld [vmem:[%s331] sm:$0xff]
        %v1154 = vld [vmem:[%s331 + $0x8] sm:$0x1]
        %v1155 = vld [vmem:[#allocation3] sm:$0xff]
        %v1156 = vld [vmem:[#allocation3 + $0x8] sm:$0x1]
        %v1157 = vadd.f32 %v1153, %v1155
        %v1158 = vadd.f32 %v1154, %v1156
        %v1159 = vld [vmem:[%s6] sm:$0x1]
        %v1161 = vlaneseq
        %v1162 = vshrl.u32 %v1161, 7
        %v1163 = vsub.s32 0, %v1162
        %v1164 = vrot.slane %v1159, %v1163
        %v1166 = vadd.f32 %v1157, %v1164
        %v1167 = vadd.f32 %v1158, %v1164
        %1168 = vst [vmem:[%s353] sm:$0xff] %v1166
        %1169 = vst [vmem:[%s353 + $0x8] sm:$0x1] %v1167
      $region56: #{audiomae_forward.21} parent=47 // pred_fallthru
        _
      %p1170 = scmp.lt.s32.totalorder %s22, 1
      %s1171 = scalar_select %p1170, %s22, 1
      %s1172 = smul.addr %s1171, 2
      %s1173 = smul.addr %s1172, 8
      %s1174 = scalar_lea.vmem %s7, %s1173
      // Predicated region
      $region57: #{audiomae_forward.21} parent=47 // pred_check
        %p1175 = pneg %p215
      $region58: #{audiomae_forward.21} parent=47 // pred_check_branch
        %1177 = sbr.rel (%p1175) target = $region60
      $region59: #{audiomae_forward.21} parent=47 // pred_region
        _
      $region60: #{audiomae_forward.21} parent=47 // pred_fallthru
        _
    $region48: #{audiomae_forward.21} parent=5 // pred_fallthru
      _
    %p1178 = scmp.le.s32.totalorder 2, %s13
    // Predicated region
    $region61: #{audiomae_forward.21} parent=5 // pred_check
      %p1179 = pneg %p1178
    $region62: #{audiomae_forward.21} parent=5 // pred_check_branch
      %1181 = sbr.rel (%p1179) target = $region64
    $region63: #{audiomae_forward.21} parent=5 // pred_region
      %s1182 = ssub.s32 %s13, 2
      // Predicated region
      $region65: #{audiomae_forward.21} parent=63 // pred_check
        %p1183 = pneg %p221
      $region66: #{audiomae_forward.21} parent=63 // pred_check_branch
        %1185 = sbr.rel (%p1183) target = $region68
      $region67: #{audiomae_forward.21} parent=63 // pred_region
        %p1186 = scmp.lt.s32.totalorder %s24, 1
        %s1187 = scalar_select %p1186, %s24, 1
        %s1188 = smul.addr %s1187, 2
        %s1189 = smul.addr %s1188, 8
        %s1190 = scalar_lea.vmem %s7, %s1189
      $region68: #{audiomae_forward.21} parent=63 // pred_fallthru
        _
    $region64: #{audiomae_forward.21} parent=5 // pred_fallthru
      _
  $region6: #{audiomae_forward.21} parent=0 // loop_footer
    %s17 = sadd.s32 1, %s13
  $region7: #{audiomae_forward.21} parent=0 // loop_footer_branch
    %12 = sbr.rel target = $region3
  $region8: #{audiomae_forward.21} parent=0 // loop_exit
    _

// kernel: audiomae_forward.29
$region0: #{audiomae_forward.29}
  #allocation0 [shape = 'u32[]', space=smem, size = 0x4, offset = 0x4, fixed_abs, tag = 'smem constant byte address 0x4 - core index']
  #allocation1 [shape = 'u32[144,128]{1,0:T(1,128)}', space=vmem, size = 0x12000, scoped, tag = 'internal scratch']
  #allocation2 [shape = 'bf16[9,128]{1,0:T(8,128)(2,1)}', space=vmem, size = 0x1000, scoped, tag = 'scratch operand']
  #allocation3 [shape = 'f32[9,128]{1,0:T(8,128)}', space=vmem, size = 0x2000, scoped, tag = 'scratch operand']
  %s0 = inlined_call_operand.vmem [shape: f32[2,9,128], index: 0, kind: input, shape index: {}]
  %s1 = inlined_call_operand.vmem [shape: f32[1,128], index: 1, kind: input, shape index: {}]
  %s2 = inlined_call_operand.vmem [shape: f32[1,128], index: 2, kind: input, shape index: {}]
  %s3 = inlined_call_operand.vmem [shape: bf16[128,512], index: 3, kind: input, shape index: {}]
  %s4 = inlined_call_operand.vmem [shape: f32[1,512], index: 4, kind: input, shape index: {}]
  %s5 = inlined_call_operand.vmem [shape: bf16[512,128], index: 5, kind: input, shape index: {}]
  %s6 = inlined_call_operand.vmem [shape: f32[1,128], index: 6, kind: input, shape index: {}]
  %s7 = inlined_call_operand.vmem [shape: f32[1,128], index: 7, kind: input, shape index: {}]
  %s8 = inlined_call_operand.vmem [shape: f32[1,128], index: 8, kind: input, shape index: {}]
  %s9 = inlined_call_operand.vmem [shape: f32[2,9,128], index: 9, kind: input, shape index: {}, may-alias: {9,11}]
  %s10 = inlined_call_operand.vmem [shape: f32[2,9,128], index: 10, kind: output, shape index: {0}]
  %s11 = inlined_call_operand.vmem [shape: f32[2,9,128], index: 11, kind: output, shape index: {1}, may-alias: {9,11}]
  %12 = xla_tuple %s10, %s11
  %s13 = sld [smem:[#allocation0]]
  $region89: #{audiomae_forward.29} parent=0
    _
  %s15 = ssub.s32 1, %s13
  %s16 = scalar_select 0, %s15, %s13
  loop: start=0, step=1, limit=4
  $region2: #{audiomae_forward.29} parent=0 // loop_pre_header
    _
  $region3: #{audiomae_forward.29} parent=0 // loop_header
    %s18 = sphi 0, %s22
    %p19 = scmp.ge.s32.totalorder %s18, 4
    %s25 = sphi 0, %s37
    %s26 = sphi 0, %s33
    %s27 = sphi 0, %s25
    %s28 = sphi 0, %s26
    %s29 = sphi 0, %s27
    %s30 = sphi 0, %s28
    %s40 = sphi 0, %s42
    %s43 = sphi 0, %s40
    %s44 = sphi 0, %s43
    %s60 = sphi 0, %s44
    %s64 = sphi 0, %s64
    %s66 = sphi 0, %s64
    %s67 = sphi 0, %s66
    %s81 = sphi 0, %s67
    %s85 = sphi 0, %s85
    %s87 = sphi 0, %s85
    %s88 = sphi 0, %s87
    %s102 = sphi 0, %s88
    %s108 = sphi 0, %s110
    %s111 = sphi 0, %s108
    %s112 = sphi 0, %s111
    %s128 = sphi 0, %s112
    %s134 = sphi 0, %s136
    %s137 = sphi 0, %s134
    %s138 = sphi 0, %s137
    %s154 = sphi 0, %s138
    %s160 = sphi 0, %s162
    %s163 = sphi 0, %s160
    %s164 = sphi 0, %s163
    %s180 = sphi 0, %s164
    %s184 = sphi 0, %s184
    %s186 = sphi 0, %s184
    %s187 = sphi 0, %s186
    %s201 = sphi 0, %s187
    %s205 = sphi 0, %s205
    %s207 = sphi 0, %s205
    %s208 = sphi 0, %s207
    %s222 = sphi 0, %s208
    %s226 = sphi 0, %s226
    %s228 = sphi 0, %s226
    %s229 = sphi 0, %s228
    %s243 = sphi 0, %s229
    %s249 = sphi 0, %s251
    %s252 = sphi 0, %s249
    %s253 = sphi 0, %s252
    %s269 = sphi 0, %s253
    %s275 = sphi 0, %s277
    %s278 = sphi 0, %s275
    %s279 = sphi 0, %s278
    %s295 = sphi 0, %s279
    %s301 = sphi 0, %s303
    %s304 = sphi 0, %s301
    %s305 = sphi 0, %s304
    %s321 = sphi 0, %s305
  $region4: #{audiomae_forward.29} parent=0 // loop_header_branch
    %21 = sbr.rel (%p19) target = $region8
  $region5: #{audiomae_forward.29} parent=0 // loop_body
    %s23 = ssub.s32 %s18, 1
    %s24 = ssub.s32 %s18, 2
    %s31 = sadd.s32 1, %s26
    %p32 = scmp.ge.s32.totalorder %s31, 1
    %s33 = scalar_select %p32, 0, %s31
    %s34 = sadd.s32 1, %s25
    %s35 = scalar_select %p32, %s34, %s25
    %p36 = scmp.ge.s32.totalorder %s35, 2
    %s37 = scalar_select %p36, 0, %s35
    %s38 = ssub.s32 %s25, %s37
    %p39 = scmp.eq.s32.totalorder %s38, 0
    %s41 = sadd.s32 %s40, 1
    %s42 = scalar_select %p39, %s40, %s41
    %p45 = pneg %p39
    %p46 = scmp.eq.s32.totalorder %s18, 1
    %p47 = por %p45, %p46
    %p48 = scmp.ne.s32.totalorder %s40, %s43
    %p49 = scmp.eq.s32.totalorder %s18, 0
    %p50 = por %p48, %p49
    %p51 = scmp.ne.s32.totalorder %s40, %s43
    %p52 = scmp.eq.s32.totalorder %s23, 1
    %p53 = por %p51, %p52
    %p54 = scmp.ne.s32.totalorder %s43, %s44
    %p55 = scmp.eq.s32.totalorder %s23, 0
    %p56 = por %p54, %p55
    %p57 = scmp.ne.s32.totalorder %s43, %s44
    %p58 = scmp.eq.s32.totalorder %s24, 1
    %p59 = por %p57, %p58
    %p61 = scmp.ne.s32.totalorder %s44, %s60
    %p62 = scmp.eq.s32.totalorder %s24, 0
    %p63 = por %p61, %p62
    %s65 = sadd.s32 %s64, 1
    %p68 = scmp.eq.s32.totalorder %s18, 1
    %p69 = scmp.ne.s32.totalorder %s64, %s66
    %p70 = scmp.eq.s32.totalorder %s18, 0
    %p71 = por %p69, %p70
    %p72 = scmp.ne.s32.totalorder %s64, %s66
    %p73 = scmp.eq.s32.totalorder %s23, 1
    %p74 = por %p72, %p73
    %p75 = scmp.ne.s32.totalorder %s66, %s67
    %p76 = scmp.eq.s32.totalorder %s23, 0
    %p77 = por %p75, %p76
    %p78 = scmp.ne.s32.totalorder %s66, %s67
    %p79 = scmp.eq.s32.totalorder %s24, 1
    %p80 = por %p78, %p79
    %p82 = scmp.ne.s32.totalorder %s67, %s81
    %p83 = scmp.eq.s32.totalorder %s24, 0
    %p84 = por %p82, %p83
    %s86 = sadd.s32 %s85, 1
    %p89 = scmp.eq.s32.totalorder %s18, 1
    %p90 = scmp.ne.s32.totalorder %s85, %s87
    %p91 = scmp.eq.s32.totalorder %s18, 0
    %p92 = por %p90, %p91
    %p93 = scmp.ne.s32.totalorder %s85, %s87
    %p94 = scmp.eq.s32.totalorder %s23, 1
    %p95 = por %p93, %p94
    %p96 = scmp.ne.s32.totalorder %s87, %s88
    %p97 = scmp.eq.s32.totalorder %s23, 0
    %p98 = por %p96, %p97
    %p99 = scmp.ne.s32.totalorder %s87, %s88
    %p100 = scmp.eq.s32.totalorder %s24, 1
    %p101 = por %p99, %p100
    %p103 = scmp.ne.s32.totalorder %s88, %s102
    %p104 = scmp.eq.s32.totalorder %s24, 0
    %p105 = por %p103, %p104
    %s106 = ssub.s32 %s26, %s33
    %p107 = scmp.eq.s32.totalorder %s106, 0
    %s109 = sadd.s32 %s108, 1
    %s110 = scalar_select %p107, %s108, %s109
    %p113 = pneg %p107
    %p114 = scmp.eq.s32.totalorder %s18, 1
    %p115 = por %p113, %p114
    %p116 = scmp.ne.s32.totalorder %s108, %s111
    %p117 = scmp.eq.s32.totalorder %s18, 0
    %p118 = por %p116, %p117
    %p119 = scmp.ne.s32.totalorder %s108, %s111
    %p120 = scmp.eq.s32.totalorder %s23, 1
    %p121 = por %p119, %p120
    %p122 = scmp.ne.s32.totalorder %s111, %s112
    %p123 = scmp.eq.s32.totalorder %s23, 0
    %p124 = por %p122, %p123
    %p125 = scmp.ne.s32.totalorder %s111, %s112
    %p126 = scmp.eq.s32.totalorder %s24, 1
    %p127 = por %p125, %p126
    %p129 = scmp.ne.s32.totalorder %s112, %s128
    %p130 = scmp.eq.s32.totalorder %s24, 0
    %p131 = por %p129, %p130
    %s132 = ssub.s32 %s26, %s33
    %p133 = scmp.eq.s32.totalorder %s132, 0
    %s135 = sadd.s32 %s134, 1
    %s136 = scalar_select %p133, %s134, %s135
    %p139 = pneg %p133
    %p140 = scmp.eq.s32.totalorder %s18, 1
    %p141 = por %p139, %p140
    %p142 = scmp.ne.s32.totalorder %s134, %s137
    %p143 = scmp.eq.s32.totalorder %s18, 0
    %p144 = por %p142, %p143
    %p145 = scmp.ne.s32.totalorder %s134, %s137
    %p146 = scmp.eq.s32.totalorder %s23, 1
    %p147 = por %p145, %p146
    %p148 = scmp.ne.s32.totalorder %s137, %s138
    %p149 = scmp.eq.s32.totalorder %s23, 0
    %p150 = por %p148, %p149
    %p151 = scmp.ne.s32.totalorder %s137, %s138
    %p152 = scmp.eq.s32.totalorder %s24, 1
    %p153 = por %p151, %p152
    %p155 = scmp.ne.s32.totalorder %s138, %s154
    %p156 = scmp.eq.s32.totalorder %s24, 0
    %p157 = por %p155, %p156
    %s158 = ssub.s32 %s26, %s33
    %p159 = scmp.eq.s32.totalorder %s158, 0
    %s161 = sadd.s32 %s160, 1
    %s162 = scalar_select %p159, %s160, %s161
    %p165 = pneg %p159
    %p166 = scmp.eq.s32.totalorder %s18, 1
    %p167 = por %p165, %p166
    %p168 = scmp.ne.s32.totalorder %s160, %s163
    %p169 = scmp.eq.s32.totalorder %s18, 0
    %p170 = por %p168, %p169
    %p171 = scmp.ne.s32.totalorder %s160, %s163
    %p172 = scmp.eq.s32.totalorder %s23, 1
    %p173 = por %p171, %p172
    %p174 = scmp.ne.s32.totalorder %s163, %s164
    %p175 = scmp.eq.s32.totalorder %s23, 0
    %p176 = por %p174, %p175
    %p177 = scmp.ne.s32.totalorder %s163, %s164
    %p178 = scmp.eq.s32.totalorder %s24, 1
    %p179 = por %p177, %p178
    %p181 = scmp.ne.s32.totalorder %s164, %s180
    %p182 = scmp.eq.s32.totalorder %s24, 0
    %p183 = por %p181, %p182
    %s185 = sadd.s32 %s184, 1
    %p188 = scmp.eq.s32.totalorder %s18, 1
    %p189 = scmp.ne.s32.totalorder %s184, %s186
    %p190 = scmp.eq.s32.totalorder %s18, 0
    %p191 = por %p189, %p190
    %p192 = scmp.ne.s32.totalorder %s184, %s186
    %p193 = scmp.eq.s32.totalorder %s23, 1
    %p194 = por %p192, %p193
    %p195 = scmp.ne.s32.totalorder %s186, %s187
    %p196 = scmp.eq.s32.totalorder %s23, 0
    %p197 = por %p195, %p196
    %p198 = scmp.ne.s32.totalorder %s186, %s187
    %p199 = scmp.eq.s32.totalorder %s24, 1
    %p200 = por %p198, %p199
    %p202 = scmp.ne.s32.totalorder %s187, %s201
    %p203 = scmp.eq.s32.totalorder %s24, 0
    %p204 = por %p202, %p203
    %s206 = sadd.s32 %s205, 1
    %p209 = scmp.eq.s32.totalorder %s18, 1
    %p210 = scmp.ne.s32.totalorder %s205, %s207
    %p211 = scmp.eq.s32.totalorder %s18, 0
    %p212 = por %p210, %p211
    %p213 = scmp.ne.s32.totalorder %s205, %s207
    %p214 = scmp.eq.s32.totalorder %s23, 1
    %p215 = por %p213, %p214
    %p216 = scmp.ne.s32.totalorder %s207, %s208
    %p217 = scmp.eq.s32.totalorder %s23, 0
    %p218 = por %p216, %p217
    %p219 = scmp.ne.s32.totalorder %s207, %s208
    %p220 = scmp.eq.s32.totalorder %s24, 1
    %p221 = por %p219, %p220
    %p223 = scmp.ne.s32.totalorder %s208, %s222
    %p224 = scmp.eq.s32.totalorder %s24, 0
    %p225 = por %p223, %p224
    %s227 = sadd.s32 %s226, 1
    %p230 = scmp.eq.s32.totalorder %s18, 1
    %p231 = scmp.ne.s32.totalorder %s226, %s228
    %p232 = scmp.eq.s32.totalorder %s18, 0
    %p233 = por %p231, %p232
    %p234 = scmp.ne.s32.totalorder %s226, %s228
    %p235 = scmp.eq.s32.totalorder %s23, 1
    %p236 = por %p234, %p235
    %p237 = scmp.ne.s32.totalorder %s228, %s229
    %p238 = scmp.eq.s32.totalorder %s23, 0
    %p239 = por %p237, %p238
    %p240 = scmp.ne.s32.totalorder %s228, %s229
    %p241 = scmp.eq.s32.totalorder %s24, 1
    %p242 = por %p240, %p241
    %p244 = scmp.ne.s32.totalorder %s229, %s243
    %p245 = scmp.eq.s32.totalorder %s24, 0
    %p246 = por %p244, %p245
    %s247 = ssub.s32 %s25, %s37
    %p248 = scmp.eq.s32.totalorder %s247, 0
    %s250 = sadd.s32 %s249, 1
    %s251 = scalar_select %p248, %s249, %s250
    %p254 = pneg %p248
    %p255 = scmp.eq.s32.totalorder %s18, 1
    %p256 = por %p254, %p255
    %p257 = scmp.ne.s32.totalorder %s249, %s252
    %p258 = scmp.eq.s32.totalorder %s18, 0
    %p259 = por %p257, %p258
    %p260 = scmp.ne.s32.totalorder %s249, %s252
    %p261 = scmp.eq.s32.totalorder %s23, 1
    %p262 = por %p260, %p261
    %p263 = scmp.ne.s32.totalorder %s252, %s253
    %p264 = scmp.eq.s32.totalorder %s23, 0
    %p265 = por %p263, %p264
    %p266 = scmp.ne.s32.totalorder %s252, %s253
    %p267 = scmp.eq.s32.totalorder %s24, 1
    %p268 = por %p266, %p267
    %p270 = scmp.ne.s32.totalorder %s253, %s269
    %p271 = scmp.eq.s32.totalorder %s24, 0
    %p272 = por %p270, %p271
    %s273 = ssub.s32 %s25, %s37
    %p274 = scmp.eq.s32.totalorder %s273, 0
    %s276 = sadd.s32 %s275, 1
    %s277 = scalar_select %p274, %s275, %s276
    %p280 = pneg %p274
    %p281 = scmp.eq.s32.totalorder %s18, 1
    %p282 = por %p280, %p281
    %p283 = scmp.ne.s32.totalorder %s275, %s278
    %p284 = scmp.eq.s32.totalorder %s18, 0
    %p285 = por %p283, %p284
    %p286 = scmp.ne.s32.totalorder %s275, %s278
    %p287 = scmp.eq.s32.totalorder %s23, 1
    %p288 = por %p286, %p287
    %p289 = scmp.ne.s32.totalorder %s278, %s279
    %p290 = scmp.eq.s32.totalorder %s23, 0
    %p291 = por %p289, %p290
    %p292 = scmp.ne.s32.totalorder %s278, %s279
    %p293 = scmp.eq.s32.totalorder %s24, 1
    %p294 = por %p292, %p293
    %p296 = scmp.ne.s32.totalorder %s279, %s295
    %p297 = scmp.eq.s32.totalorder %s24, 0
    %p298 = por %p296, %p297
    %s299 = ssub.s32 %s25, %s37
    %p300 = scmp.eq.s32.totalorder %s299, 0
    %s302 = sadd.s32 %s301, 1
    %s303 = scalar_select %p300, %s301, %s302
    %p306 = pneg %p300
    %p307 = scmp.eq.s32.totalorder %s18, 1
    %p308 = por %p306, %p307
    %p309 = scmp.ne.s32.totalorder %s301, %s304
    %p310 = scmp.eq.s32.totalorder %s18, 0
    %p311 = por %p309, %p310
    %p312 = scmp.ne.s32.totalorder %s301, %s304
    %p313 = scmp.eq.s32.totalorder %s23, 1
    %p314 = por %p312, %p313
    %p315 = scmp.ne.s32.totalorder %s304, %s305
    %p316 = scmp.eq.s32.totalorder %s23, 0
    %p317 = por %p315, %p316
    %p318 = scmp.ne.s32.totalorder %s304, %s305
    %p319 = scmp.eq.s32.totalorder %s24, 1
    %p320 = por %p318, %p319
    %p322 = scmp.ne.s32.totalorder %s305, %s321
    %p323 = scmp.eq.s32.totalorder %s24, 0
    %p324 = por %p322, %p323
    %p325 = scmp.le.s32.totalorder 1, %s18
    %p326 = scmp.lt.s32.totalorder %s18, 3
    %p327 = pnand %p325, %p326
    %p328 = pneg %p327
    // Predicated region
    $region9: #{audiomae_forward.29} parent=5 // pred_check
      _
    $region10: #{audiomae_forward.29} parent=5 // pred_check_branch
      %330 = sbr.rel (%p327) target = $region12
    $region11: #{audiomae_forward.29} parent=5 // pred_region
      %s331 = ssub.s32 %s18, 1
      // Predicated region
      $region13: #{audiomae_forward.29} parent=11 // pred_check
        %p332 = pneg %p77
      $region14: #{audiomae_forward.29} parent=11 // pred_check_branch
        %334 = sbr.rel (%p332) target = $region16
      $region15: #{audiomae_forward.29} parent=11 // pred_region
        _
      $region16: #{audiomae_forward.29} parent=11 // pred_fallthru
        _
      // Predicated region
      $region17: #{audiomae_forward.29} parent=11 // pred_check
        %p335 = pneg %p98
      $region18: #{audiomae_forward.29} parent=11 // pred_check_branch
        %337 = sbr.rel (%p335) target = $region20
      $region19: #{audiomae_forward.29} parent=11 // pred_region
        _
      $region20: #{audiomae_forward.29} parent=11 // pred_fallthru
        _
      // Predicated region
      $region21: #{audiomae_forward.29} parent=11 // pred_check
        %p338 = pneg %p124
      $region22: #{audiomae_forward.29} parent=11 // pred_check_branch
        %340 = sbr.rel (%p338) target = $region24
      $region23: #{audiomae_forward.29} parent=11 // pred_region
        %s341 = smul.u32 4, %s28
        %p342 = scmp.lt.s32.totalorder %s341, 3
        %s343 = scalar_select %p342, %s341, 3
        %s344 = smul.addr %s343, 4
        %s345 = scalar_lea.vmem %s3, %s344
        %s346 = smul.u32 4, %s28
      $region24: #{audiomae_forward.29} parent=11 // pred_fallthru
        _
      // Predicated region
      $region25: #{audiomae_forward.29} parent=11 // pred_check
        %p347 = pneg %p150
      $region26: #{audiomae_forward.29} parent=11 // pred_check_branch
        %349 = sbr.rel (%p347) target = $region28
      $region27: #{audiomae_forward.29} parent=11 // pred_region
        %s350 = smul.u32 4, %s28
        %p351 = scmp.lt.s32.totalorder %s350, 3
        %s352 = scalar_select %p351, %s350, 3
        %s353 = scalar_lea.vmem %s4, %s352
        %s354 = smul.u32 4, %s28
      $region28: #{audiomae_forward.29} parent=11 // pred_fallthru
        _
      // Predicated region
      $region29: #{audiomae_forward.29} parent=11 // pred_check
        %p355 = pneg %p176
      $region30: #{audiomae_forward.29} parent=11 // pred_check_branch
        %357 = sbr.rel (%p355) target = $region32
      $region31: #{audiomae_forward.29} parent=11 // pred_region
        %s358 = smul.u32 64, %s28
        %p359 = scmp.lt.s32.totalorder %s358, 63
        %s360 = scalar_select %p359, %s358, 63
        %s361 = smul.addr %s360, 4
        %s362 = scalar_lea.vmem %s5, %s361
        %s363 = smul.u32 64, %s28
      $region32: #{audiomae_forward.29} parent=11 // pred_fallthru
        _
      // Predicated region
      $region33: #{audiomae_forward.29} parent=11 // pred_check
        %p364 = pneg %p197
      $region34: #{audiomae_forward.29} parent=11 // pred_check_branch
        %366 = sbr.rel (%p364) target = $region36
      $region35: #{audiomae_forward.29} parent=11 // pred_region
        _
      $region36: #{audiomae_forward.29} parent=11 // pred_fallthru
        _
      // Predicated region
      $region37: #{audiomae_forward.29} parent=11 // pred_check
        %p367 = pneg %p218
      $region38: #{audiomae_forward.29} parent=11 // pred_check_branch
        %369 = sbr.rel (%p367) target = $region40
      $region39: #{audiomae_forward.29} parent=11 // pred_region
        _
      $region40: #{audiomae_forward.29} parent=11 // pred_fallthru
        _
      // Predicated region
      $region41: #{audiomae_forward.29} parent=11 // pred_check
        %p370 = pneg %p239
      $region42: #{audiomae_forward.29} parent=11 // pred_check_branch
        %372 = sbr.rel (%p370) target = $region44
      $region43: #{audiomae_forward.29} parent=11 // pred_region
        _
      $region44: #{audiomae_forward.29} parent=11 // pred_fallthru
        _
    $region12: #{audiomae_forward.29} parent=5 // pred_fallthru
      _
    %p373 = scmp.lt.s32.totalorder %s18, 2
    // Predicated region
    $region45: #{audiomae_forward.29} parent=5 // pred_check
      %p374 = pneg %p373
    $region46: #{audiomae_forward.29} parent=5 // pred_check_branch
      %376 = sbr.rel (%p374) target = $region48
    $region47: #{audiomae_forward.29} parent=5 // pred_region
      // Predicated region
      $region49: #{audiomae_forward.29} parent=47 // pred_check
        %p377 = pneg %p50
      $region50: #{audiomae_forward.29} parent=47 // pred_check_branch
        %379 = sbr.rel (%p377) target = $region52
      $region51: #{audiomae_forward.29} parent=47 // pred_region
        %p380 = scmp.lt.s32.totalorder %s25, 1
        %s381 = scalar_select %p380, %s25, 1
        %s382 = smul.addr %s381, 2
        %s383 = smul.addr %s382, 8
        %s384 = scalar_lea.vmem %s0, %s383
      $region52: #{audiomae_forward.29} parent=47 // pred_fallthru
        _
      // Predicated region
      $region53: #{audiomae_forward.29} parent=47 // pred_check
        %p385 = pneg %p259
      $region54: #{audiomae_forward.29} parent=47 // pred_check_branch
        %387 = sbr.rel (%p385) target = $region56
      $region55: #{audiomae_forward.29} parent=47 // pred_region
        %p388 = scmp.lt.s32.totalorder %s25, 1
        %s389 = scalar_select %p388, %s25, 1
        %s390 = smul.addr %s389, 2
        %s391 = smul.addr %s390, 8
        %s392 = scalar_lea.vmem %s9, %s391
      $region56: #{audiomae_forward.29} parent=47 // pred_fallthru
        _
    $region48: #{audiomae_forward.29} parent=5 // pred_fallthru
      _
    %p393 = scmp.le.s32.totalorder 1, %s18
    %p394 = scmp.lt.s32.totalorder %s18, 3
    %p395 = pnand %p393, %p394
    %p396 = pneg %p395
    // Predicated region
    $region57: #{audiomae_forward.29} parent=5 // pred_check
      _
    $region58: #{audiomae_forward.29} parent=5 // pred_check_branch
      %398 = sbr.rel (%p395) target = $region60
    $region59: #{audiomae_forward.29} parent=5 // pred_region
      %s399 = ssub.s32 %s18, 1
      %p400 = scmp.lt.s32.totalorder %s27, 1
      %s401 = scalar_select %p400, %s27, 1
      %s402 = smul.addr %s401, 2
      %s403 = smul.addr %s402, 8
      %s404 = scalar_lea.vmem %s0, %s403
      %p405 = pneg %p56
      %p406 = pneg %p53
      %p407 = pneg %p77
      %p408 = pneg %p74
      %p409 = pneg %p98
      %p410 = pneg %p95
      %s411 = smul.u32 4, %s28
      %p412 = scmp.lt.s32.totalorder %s411, 3
      %s413 = scalar_select %p412, %s411, 3
      %s414 = smul.addr %s413, 4
      %s415 = scalar_lea.vmem %s3, %s414
      %p416 = pneg %p124
      %p417 = pneg %p121
      %s418 = smul.u32 4, %s28
      %p419 = scmp.lt.s32.totalorder %s418, 3
      %s420 = scalar_select %p419, %s418, 3
      %s421 = scalar_lea.vmem %s4, %s420
      %p422 = pneg %p150
      %p423 = pneg %p147
      %s424 = smul.u32 64, %s28
      %p425 = scmp.lt.s32.totalorder %s424, 63
      %s426 = scalar_select %p425, %s424, 63
      %s427 = smul.addr %s426, 4
      %s428 = scalar_lea.vmem %s5, %s427
      %p429 = pneg %p176
      %p430 = pneg %p173
      %p431 = pneg %p197
      %p432 = pneg %p194
      %p433 = pneg %p218
      %p434 = pneg %p215
      %p435 = pneg %p239
      %p436 = pneg %p236
      %p437 = scmp.lt.s32.totalorder %s27, 1
      %s438 = scalar_select %p437, %s27, 1
      %s439 = smul.addr %s438, 2
      %s440 = smul.addr %s439, 8
      %s441 = scalar_lea.vmem %s9, %s440
      %p442 = pneg %p265
      %p443 = pneg %p262
      %p444 = pneg %p291
      %p445 = pneg %p288
      %p446 = scmp.lt.s32.totalorder %s27, 1
      %s447 = scalar_select %p446, %s27, 1
      %s448 = smul.addr %s447, 2
      %s449 = smul.addr %s448, 8
      %s450 = scalar_lea.vmem %s10, %s449
      %p451 = pneg %p317
      %p452 = pneg %p314
      %p453 = scmp.lt.s32.totalorder %s27, 1
      %s454 = scalar_select %p453, %s27, 1
      %s455 = smul.addr %s454, 2
      %s456 = smul.addr %s455, 8
      %s457 = scalar_lea.vmem %s11, %s456
      %p458 = scmp.lt.s32.totalorder %s27, 1
      %s459 = scalar_select %p458, %s27, 1
      %s460 = smul.addr %s459, 2
      %s461 = smul.addr %s460, 8
      %s462 = scalar_lea.vmem %s0, %s461
      %s463 = smul.u32 4, %s28
      %p464 = scmp.lt.s32.totalorder %s463, 3
      %s465 = scalar_select %p464, %s463, 3
      %s466 = smul.addr %s465, 4
      %s467 = scalar_lea.vmem %s3, %s466
      %s468 = smul.u32 4, %s28
      %s469 = smul.u32 4, %s28
      %p470 = scmp.lt.s32.totalorder %s469, 3
      %s471 = scalar_select %p470, %s469, 3
      %s472 = scalar_lea.vmem %s4, %s471
      %s473 = smul.u32 4, %s28
      %s474 = smul.u32 64, %s28
      %p475 = scmp.lt.s32.totalorder %s474, 63
      %s476 = scalar_select %p475, %s474, 63
      %s477 = smul.addr %s476, 4
      %s478 = scalar_lea.vmem %s5, %s477
      %s479 = smul.u32 64, %s28
      %p480 = scmp.lt.s32.totalorder %s27, 1
      %s481 = scalar_select %p480, %s27, 1
      %s482 = smul.addr %s481, 2
      %s483 = smul.addr %s482, 8
      %s484 = scalar_lea.vmem %s9, %s483
      %p485 = scmp.lt.s32.totalorder %s27, 1
      %s486 = scalar_select %p485, %s27, 1
      %s487 = smul.addr %s486, 2
      %s488 = smul.addr %s487, 8
      %s489 = scalar_lea.vmem %s10, %s488
      %p490 = scmp.lt.s32.totalorder %s27, 1
      %s491 = scalar_select %p490, %s27, 1
      %s492 = smul.addr %s491, 2
      %s493 = smul.addr %s492, 8
      %s494 = scalar_lea.vmem %s11, %s493
      %p496 = scmp.eq.s32.totalorder %s28, 0
      // Predicated region
      $region61: #{audiomae_forward.29} parent=59 // pred_check
        %p497 = pneg %p496
      $region62: #{audiomae_forward.29} parent=59 // pred_check_branch
        %499 = sbr.rel (%p497) target = $region64
      $region63: #{audiomae_forward.29} parent=59 // pred_region
        %v500 = vld [vmem:[%s462] sm:$0xff]
        %v501 = vld [vmem:[%s462 + $0x8] sm:$0x1]
        %v502 = vld [vmem:[%s1] sm:$0x1]
        %v503 = vld [vmem:[%s2] sm:$0x1]
        %504 = vadd.xlane.f32.xlu0 %v500
        %v505 = vpop.xlane.xlu0 %504
        %vm506 = vcmask 1040384
        %v507 = vsel %vm506, %v501, 0.0
        %508 = vadd.xlane.f32.xlu0 %v507
        %v509 = vpop.xlane.xlu0 %508
        %v510 = vrcp.pop 128.0
        %v511 = vmul.f32 %v505, %v510
        %v512 = vmul.f32 %v509, %v510
        %v513 = vsub.f32 %v500, %v511
        %v514 = vsub.f32 %v501, %v512
        %v515 = vmul.f32 %v513, %v513
        %v516 = vmul.f32 %v514, %v514
        %517 = vadd.xlane.f32.xlu0 %v515
        %v518 = vpop.xlane.xlu0 %517
        %v519 = vsel %vm506, %v516, 0.0
        %520 = vadd.xlane.f32.xlu0 %v519
        %v521 = vpop.xlane.xlu0 %520
        %v522 = vmul.f32 %v518, %v510
        %v523 = vmul.f32 %v521, %v510
        %v524 = vadd.f32 %v522, 1e-06
        %v525 = vadd.f32 %v523, 1e-06
        %v526 = vrsqrt.pop %v524
        %v527 = vrsqrt.pop %v525
        %v528 = vmul.f32 %v513, %v526
        %v529 = vmul.f32 %v514, %v527
        %v531 = vlaneseq
        %v532 = vshrl.u32 %v531, 7
        %v533 = vsub.s32 0, %v532
        %v534 = vrot.slane %v502, %v533
        %v536 = vmul.f32 %v528, %v534
        %v537 = vmul.f32 %v529, %v534
        %v539 = vlaneseq
        %v540 = vshrl.u32 %v539, 7
        %v541 = vsub.s32 0, %v540
        %v542 = vrot.slane %v503, %v541
        %v544 = vadd.f32 %v536, %v542
        %v545 = vadd.f32 %v537, %v542
        %v546 = vpack.c.bf16 %v545, %v544
        %v548 = vunpack.c.l.b16 %v546
        %v549 = vunpack.c.h.b16 %v546
        %v550 = vpack.c.b16 %v548, %v548
        %v551 = vpack.c.b16 %v549, %v549
        %554 = vst [vmem:[#allocation2] sm:$0xf] %v550
        %vm555 = vcmask 1040384
        %vm556 = vsmask.f32 256
        %vm557 = vmand %vm555, %vm556
        %v558 = vld [vmem:[#allocation2 + $0x4] sm:$0x1]
        %v559 = vsel %vm557, %v551, %v558
        %560 = vst [vmem:[#allocation2 + $0x4] sm:$0x1] %v559
        %561 = vst [vmem:[#allocation3] sm:$0xff] 0.0
        %562 = vst [vmem:[#allocation3 + $0x8] sm:$0x1] 0.0
      $region64: #{audiomae_forward.29} parent=59 // pred_fallthru
        _
      %v563 = vld [vmem:[#allocation2] sm:$0xf]
      %v564 = vld [vmem:[#allocation2 + $0x4] sm:$0x1]
      %v565 = vld [vmem:[%s467] sm:$0xff]
      %v566 = vld [vmem:[%s467 + $0x8] sm:$0xff]
      %v567 = vld [vmem:[%s467 + $0x10] sm:$0xff]
      %v568 = vld [vmem:[%s467 + $0x18] sm:$0xff]
      %v569 = vld [vmem:[%s467 + $0x20] sm:$0xff]
      %v570 = vld [vmem:[%s467 + $0x28] sm:$0xff]
      %v571 = vld [vmem:[%s467 + $0x30] sm:$0xff]
      %v572 = vld [vmem:[%s467 + $0x38] sm:$0xff]
      %v573 = vld [vmem:[%s467 + $0x40] sm:$0xff]
      %v574 = vld [vmem:[%s467 + $0x48] sm:$0xff]
      %v575 = vld [vmem:[%s467 + $0x50] sm:$0xff]
      %v576 = vld [vmem:[%s467 + $0x58] sm:$0xff]
      %v577 = vld [vmem:[%s467 + $0x60] sm:$0xff]
      %v578 = vld [vmem:[%s467 + $0x68] sm:$0xff]
      %v579 = vld [vmem:[%s467 + $0x70] sm:$0xff]
      %v580 = vld [vmem:[%s467 + $0x78] sm:$0xff]
      %v581 = vld [vmem:[%s467 + $0x80] sm:$0xff]
      %v582 = vld [vmem:[%s467 + $0x88] sm:$0xff]
      %v583 = vld [vmem:[%s467 + $0x90] sm:$0xff]
      %v584 = vld [vmem:[%s467 + $0x98] sm:$0xff]
      %v585 = vld [vmem:[%s467 + $0xa0] sm:$0xff]
      %v586 = vld [vmem:[%s467 + $0xa8] sm:$0xff]
      %v587 = vld [vmem:[%s467 + $0xb0] sm:$0xff]
      %v588 = vld [vmem:[%s467 + $0xb8] sm:$0xff]
      %v589 = vld [vmem:[%s467 + $0xc0] sm:$0xff]
      %v590 = vld [vmem:[%s467 + $0xc8] sm:$0xff]
      %v591 = vld [vmem:[%s467 + $0xd0] sm:$0xff]
      %v592 = vld [vmem:[%s467 + $0xd8] sm:$0xff]
      %v593 = vld [vmem:[%s467 + $0xe0] sm:$0xff]
      %v594 = vld [vmem:[%s467 + $0xe8] sm:$0xff]
      %v595 = vld [vmem:[%s467 + $0xf0] sm:$0xff]
      %v596 = vld [vmem:[%s467 + $0xf8] sm:$0xff]
      %v597 = vld [vmem:[%s472] sm:$0xf]
      %v599 = vlaneseq
      %v600 = vshrl.u32 %v599, 7
      %v601 = vsub.s32 0, %v600
      %v602 = vrot.slane %v597, %v601
      %v603 = vlaneseq
      %v604 = vshrl.u32 %v603, 7
      %v605 = vsub.s32 1, %v604
      %v606 = vrot.slane %v597, %v605
      %v607 = vlaneseq
      %v608 = vshrl.u32 %v607, 7
      %v609 = vsub.s32 2, %v608
      %v610 = vrot.slane %v597, %v609
      %v611 = vlaneseq
      %v612 = vshrl.u32 %v611, 7
      %v613 = vsub.s32 3, %v612
      %v614 = vrot.slane %v597, %v613
      %v621 = vunpack.c.l.b16 %v563
      %v622 = vunpack.c.l.b16 %v564
      %v623 = vpack.c.b16 %v622, %v621
      %v657 = vunpack.c.l.b16 %v565
      %v658 = vunpack.c.h.b16 %v565
      %v659 = vunpack.c.l.b16 %v566
      %v660 = vunpack.c.h.b16 %v566
      %v661 = vunpack.c.l.b16 %v567
      %v662 = vunpack.c.h.b16 %v567
      %v663 = vunpack.c.l.b16 %v568
      %v664 = vunpack.c.h.b16 %v568
      %v665 = vunpack.c.l.b16 %v569
      %v666 = vunpack.c.h.b16 %v569
      %v667 = vunpack.c.l.b16 %v570
      %v668 = vunpack.c.h.b16 %v570
      %v669 = vunpack.c.l.b16 %v571
      %v670 = vunpack.c.h.b16 %v571
      %v671 = vunpack.c.l.b16 %v572
      %v672 = vunpack.c.h.b16 %v572
      %v673 = vunpack.c.l.b16 %v573
      %v674 = vunpack.c.h.b16 %v573
      %v675 = vunpack.c.l.b16 %v574
      %v676 = vunpack.c.h.b16 %v574
      %v677 = vunpack.c.l.b16 %v575
      %v678 = vunpack.c.h.b16 %v575
      %v679 = vunpack.c.l.b16 %v576
      %v680 = vunpack.c.h.b16 %v576
      %v681 = vunpack.c.l.b16 %v577
      %v682 = vunpack.c.h.b16 %v577
      %v683 = vunpack.c.l.b16 %v578
      %v684 = vunpack.c.h.b16 %v578
      %v685 = vunpack.c.l.b16 %v579
      %v686 = vunpack.c.h.b16 %v579
      %v687 = vunpack.c.l.b16 %v580
      %v688 = vunpack.c.h.b16 %v580
      %v689 = vunpack.c.l.b16 %v581
      %v690 = vunpack.c.h.b16 %v581
      %v691 = vunpack.c.l.b16 %v582
      %v692 = vunpack.c.h.b16 %v582
      %v693 = vunpack.c.l.b16 %v583
      %v694 = vunpack.c.h.b16 %v583
      %v695 = vunpack.c.l.b16 %v584
      %v696 = vunpack.c.h.b16 %v584
      %v697 = vunpack.c.l.b16 %v585
      %v698 = vunpack.c.h.b16 %v585
      %v699 = vunpack.c.l.b16 %v586
      %v700 = vunpack.c.h.b16 %v586
      %v701 = vunpack.c.l.b16 %v587
      %v702 = vunpack.c.h.b16 %v587
      %v703 = vunpack.c.l.b16 %v588
      %v704 = vunpack.c.h.b16 %v588
      %v705 = vunpack.c.l.b16 %v589
      %v706 = vunpack.c.h.b16 %v589
      %v707 = vunpack.c.l.b16 %v590
      %v708 = vunpack.c.h.b16 %v590
      %v709 = vunpack.c.l.b16 %v591
      %v710 = vunpack.c.h.b16 %v591
      %v711 = vunpack.c.l.b16 %v592
      %v712 = vunpack.c.h.b16 %v592
      %v713 = vunpack.c.l.b16 %v593
      %v714 = vunpack.c.h.b16 %v593
      %v715 = vunpack.c.l.b16 %v594
      %v716 = vunpack.c.h.b16 %v594
      %v717 = vunpack.c.l.b16 %v595
      %v718 = vunpack.c.h.b16 %v595
      %v719 = vunpack.c.l.b16 %v596
      %v720 = vunpack.c.h.b16 %v596
      %v721 = vpack.c.b16 %v661, %v657
      %v722 = vpack.c.b16 %v662, %v658
      %v723 = vpack.c.b16 %v663, %v659
      %v724 = vpack.c.b16 %v664, %v660
      %v725 = vpack.c.b16 %v669, %v665
      %v726 = vpack.c.b16 %v670, %v666
      %v727 = vpack.c.b16 %v671, %v667
      %v728 = vpack.c.b16 %v672, %v668
      %v729 = vpack.c.b16 %v677, %v673
      %v730 = vpack.c.b16 %v678, %v674
      %v731 = vpack.c.b16 %v679, %v675
      %v732 = vpack.c.b16 %v680, %v676
      %v733 = vpack.c.b16 %v685, %v681
      %v734 = vpack.c.b16 %v686, %v682
      %v735 = vpack.c.b16 %v687, %v683
      %v736 = vpack.c.b16 %v688, %v684
      %v737 = vpack.c.b16 %v693, %v689
      %v738 = vpack.c.b16 %v694, %v690
      %v739 = vpack.c.b16 %v695, %v691
      %v740 = vpack.c.b16 %v696, %v692
      %v741 = vpack.c.b16 %v701, %v697
      %v742 = vpack.c.b16 %v702, %v698
      %v743 = vpack.c.b16 %v703, %v699
      %v744 = vpack.c.b16 %v704, %v700
      %v745 = vpack.c.b16 %v709, %v705
      %v746 = vpack.c.b16 %v710, %v706
      %v747 = vpack.c.b16 %v711, %v707
      %v748 = vpack.c.b16 %v712, %v708
      %v749 = vpack.c.b16 %v717, %v713
      %v750 = vpack.c.b16 %v718, %v714
      %v751 = vpack.c.b16 %v719, %v715
      %v752 = vpack.c.b16 %v720, %v716
      %785 = vmatprep.subr.bf16.mxu0 %v722
      %786 = vmatpush1.bf16.msra.mxu0 %v721
      %787 = vmatprep.subr.bf16.mxu0 %v726
      %788 = vmatpush1.bf16.msra.mxu0 %v725
      %789 = vmatprep.subr.bf16.mxu0 %v730
      %790 = vmatpush1.bf16.msra.mxu0 %v729
      %791 = vmatprep.subr.bf16.mxu0 %v734
      %792 = vmatpush1.bf16.msra.mxu0 %v733
      %793 = vmatprep.subr.bf16.mxu0 %v738
      %794 = vmatpush1.bf16.msra.mxu0 %v737
      %795 = vmatprep.subr.bf16.mxu0 %v742
      %796 = vmatpush1.bf16.msra.mxu0 %v741
      %797 = vmatprep.subr.bf16.mxu0 %v746
      %798 = vmatpush1.bf16.msra.mxu0 %v745
      %799 = vmatprep.subr.bf16.mxu0 %v750
      %800 = vmatpush1.bf16.msra.mxu0 %v749
      %801 = vmatprep.subr.bf16.mxu0 0
      %802 = vmatpush1.bf16.msra.mxu0 0
      %803 = vmatprep.subr.bf16.mxu0 0
      %804 = vmatpush1.bf16.msra.mxu0 0
      %805 = vmatprep.subr.bf16.mxu0 0
      %806 = vmatpush1.bf16.msra.mxu0 0
      %807 = vmatprep.subr.bf16.mxu0 0
      %808 = vmatpush1.bf16.msra.mxu0 0
      %809 = vmatprep.subr.bf16.mxu0 0
      %810 = vmatpush1.bf16.msra.mxu0 0
      %811 = vmatprep.subr.bf16.mxu0 0
      %812 = vmatpush1.bf16.msra.mxu0 0
      %813 = vmatprep.subr.bf16.mxu0 0
      %814 = vmatpush1.bf16.msra.mxu0 0
      %815 = vmatprep.subr.bf16.mxu0 0
      %816 = vmatpush1.bf16.msra.mxu0 0
      %817 = vmatprep.mubr.bf16.mxu0 0
      %818 = vmatmul.mubr.bf16.gmra.mrb[0].mxu0 %v623
      %v819 = vpop.f32.mrb[0].mxu0
      %v820 = vadd.f32 %v602, %v819
      %v821 = vpop.f32.mrb[0].mxu0
      %v822 = vadd.f32 %v606, %v821
      %v823 = vpop.f32.mrb[0].mxu0
      %v824 = vadd.f32 %v602, %v823
      %v825 = vpop.f32.mrb[0].mxu0
      %v826 = vadd.f32 %v606, %v825
      %827 = vdwg.mxu0
      %828 = vmatprep.subr.bf16.mxu0 %v724
      %829 = vmatpush1.bf16.msra.mxu0 %v723
      %830 = vmatprep.subr.bf16.mxu0 %v728
      %831 = vmatpush1.bf16.msra.mxu0 %v727
      %832 = vmatprep.subr.bf16.mxu0 %v732
      %833 = vmatpush1.bf16.msra.mxu0 %v731
      %834 = vmatprep.subr.bf16.mxu0 %v736
      %835 = vmatpush1.bf16.msra.mxu0 %v735
      %836 = vmatprep.subr.bf16.mxu0 %v740
      %837 = vmatpush1.bf16.msra.mxu0 %v739
      %838 = vmatprep.subr.bf16.mxu0 %v744
      %839 = vmatpush1.bf16.msra.mxu0 %v743
      %840 = vmatprep.subr.bf16.mxu0 %v748
      %841 = vmatpush1.bf16.msra.mxu0 %v747
      %842 = vmatprep.subr.bf16.mxu0 %v752
      %843 = vmatpush1.bf16.msra.mxu0 %v751
      %844 = vmatprep.subr.bf16.mxu0 0
      %845 = vmatpush1.bf16.msra.mxu0 0
      %846 = vmatprep.subr.bf16.mxu0 0
      %847 = vmatpush1.bf16.msra.mxu0 0
      %848 = vmatprep.subr.bf16.mxu0 0
      %849 = vmatpush1.bf16.msra.mxu0 0
      %850 = vmatprep.subr.bf16.mxu0 0
      %851 = vmatpush1.bf16.msra.mxu0 0
      %852 = vmatprep.subr.bf16.mxu0 0
      %853 = vmatpush1.bf16.msra.mxu0 0
      %854 = vmatprep.subr.bf16.mxu0 0
      %855 = vmatpush1.bf16.msra.mxu0 0
      %856 = vmatprep.subr.bf16.mxu0 0
      %857 = vmatpush1.bf16.msra.mxu0 0
      %858 = vmatprep.subr.bf16.mxu0 0
      %859 = vmatpush1.bf16.msra.mxu0 0
      %860 = vmatprep.mubr.bf16.mxu0 0
      %861 = vmatmul.mubr.bf16.gmra.mrb[0].mxu0 %v623
      %v862 = vpop.f32.mrb[0].mxu0
      %v863 = vadd.f32 %v610, %v862
      %v864 = vpop.f32.mrb[0].mxu0
      %v865 = vadd.f32 %v614, %v864
      %v866 = vpop.f32.mrb[0].mxu0
      %v867 = vadd.f32 %v610, %v866
      %v868 = vpop.f32.mrb[0].mxu0
      %v869 = vadd.f32 %v614, %v868
      %870 = vdwg.mxu0
      %v871 = vmul.f32 %v820, %v820
      %v872 = vmul.f32 %v822, %v822
      %v873 = vmul.f32 %v863, %v863
      %v874 = vmul.f32 %v865, %v865
      %v875 = vmul.f32 %v824, %v824
      %v876 = vmul.f32 %v826, %v826
      %v877 = vmul.f32 %v867, %v867
      %v878 = vmul.f32 %v869, %v869
      %v879 = vmul.f32 %v820, %v871
      %v880 = vmul.f32 %v822, %v872
      %v881 = vmul.f32 %v863, %v873
      %v882 = vmul.f32 %v865, %v874
      %v883 = vmul.f32 %v824, %v875
      %v884 = vmul.f32 %v826, %v876
      %v885 = vmul.f32 %v867, %v877
      %v886 = vmul.f32 %v869, %v878
      %v887 = vmul.f32 %v879, 0.044715
      %v888 = vmul.f32 %v880, 0.044715
      %v889 = vmul.f32 %v881, 0.044715
      %v890 = vmul.f32 %v882, 0.044715
      %v891 = vmul.f32 %v883, 0.044715
      %v892 = vmul.f32 %v884, 0.044715
      %v893 = vmul.f32 %v885, 0.044715
      %v894 = vmul.f32 %v886, 0.044715
      %v895 = vadd.f32 %v820, %v887
      %v896 = vadd.f32 %v822, %v888
      %v897 = vadd.f32 %v863, %v889
      %v898 = vadd.f32 %v865, %v890
      %v899 = vadd.f32 %v824, %v891
      %v900 = vadd.f32 %v826, %v892
      %v901 = vadd.f32 %v867, %v893
      %v902 = vadd.f32 %v869, %v894
      %v903 = vmul.f32 %v895, 0.7978846
      %v904 = vmul.f32 %v896, 0.7978846
      %v905 = vmul.f32 %v897, 0.7978846
      %v906 = vmul.f32 %v898, 0.7978846
      %v907 = vmul.f32 %v899, 0.7978846
      %v908 = vmul.f32 %v900, 0.7978846
      %v909 = vmul.f32 %v901, 0.7978846
      %v910 = vmul.f32 %v902, 0.7978846
      %v911 = vtanh.pop %v903
      %v912 = vtanh.pop %v904
      %v913 = vtanh.pop %v905
      %v914 = vtanh.pop %v906
      %v915 = vtanh.pop %v907
      %v916 = vtanh.pop %v908
      %v917 = vtanh.pop %v909
      %v918 = vtanh.pop %v910
      %v919 = vadd.f32 %v911, 1.0
      %v920 = vadd.f32 %v912, 1.0
      %v921 = vadd.f32 %v913, 1.0
      %v922 = vadd.f32 %v914, 1.0
      %v923 = vadd.f32 %v915, 1.0
      %v924 = vadd.f32 %v916, 1.0
      %v925 = vadd.f32 %v917, 1.0
      %v926 = vadd.f32 %v918, 1.0
      %v927 = vmul.f32 %v919, 0.5
      %v928 = vmul.f32 %v920, 0.5
      %v929 = vmul.f32 %v921, 0.5
      %v930 = vmul.f32 %v922, 0.5
      %v931 = vmul.f32 %v923, 0.5
      %v932 = vmul.f32 %v924, 0.5
      %v933 = vmul.f32 %v925, 0.5
      %v934 = vmul.f32 %v926, 0.5
      %v935 = vmul.f32 %v820, %v927
      %v936 = vmul.f32 %v822, %v928
      %v937 = vmul.f32 %v863, %v929
      %v938 = vmul.f32 %v865, %v930
      %v939 = vmul.f32 %v824, %v931
      %v940 = vmul.f32 %v826, %v932
      %v941 = vmul.f32 %v867, %v933
      %v942 = vmul.f32 %v869, %v934
      %v943 = vld [vmem:[#allocation3] sm:$0xff]
      %v944 = vld [vmem:[#allocation3 + $0x8] sm:$0x1]
      %v945 = vpack.c.bf16 %v939, %v935
      %v946 = vpack.c.bf16 %v940, %v936
      %v947 = vpack.c.bf16 %v941, %v937
      %v948 = vpack.c.bf16 %v942, %v938
      %v949 = vld [vmem:[%s478] sm:$0xf]
      %v950 = vld [vmem:[%s478 + $0x4] sm:$0xf]
      %v951 = vld [vmem:[%s478 + $0x8] sm:$0xf]
      %v952 = vld [vmem:[%s478 + $0xc] sm:$0xf]
      %v953 = vld [vmem:[%s478 + $0x10] sm:$0xf]
      %v954 = vld [vmem:[%s478 + $0x14] sm:$0xf]
      %v955 = vld [vmem:[%s478 + $0x18] sm:$0xf]
      %v956 = vld [vmem:[%s478 + $0x1c] sm:$0xf]
      %v957 = vld [vmem:[%s478 + $0x20] sm:$0xf]
      %v958 = vld [vmem:[%s478 + $0x24] sm:$0xf]
      %v959 = vld [vmem:[%s478 + $0x28] sm:$0xf]
      %v960 = vld [vmem:[%s478 + $0x2c] sm:$0xf]
      %v961 = vld [vmem:[%s478 + $0x30] sm:$0xf]
      %v962 = vld [vmem:[%s478 + $0x34] sm:$0xf]
      %v963 = vld [vmem:[%s478 + $0x38] sm:$0xf]
      %v964 = vld [vmem:[%s478 + $0x3c] sm:$0xf]
      %v965 = vld [vmem:[%s478 + $0x40] sm:$0xf]
      %v966 = vld [vmem:[%s478 + $0x44] sm:$0xf]
      %v967 = vld [vmem:[%s478 + $0x48] sm:$0xf]
      %v968 = vld [vmem:[%s478 + $0x4c] sm:$0xf]
      %v969 = vld [vmem:[%s478 + $0x50] sm:$0xf]
      %v970 = vld [vmem:[%s478 + $0x54] sm:$0xf]
      %v971 = vld [vmem:[%s478 + $0x58] sm:$0xf]
      %v972 = vld [vmem:[%s478 + $0x5c] sm:$0xf]
      %v973 = vld [vmem:[%s478 + $0x60] sm:$0xf]
      %v974 = vld [vmem:[%s478 + $0x64] sm:$0xf]
      %v975 = vld [vmem:[%s478 + $0x68] sm:$0xf]
      %v976 = vld [vmem:[%s478 + $0x6c] sm:$0xf]
      %v977 = vld [vmem:[%s478 + $0x70] sm:$0xf]
      %v978 = vld [vmem:[%s478 + $0x74] sm:$0xf]
      %v979 = vld [vmem:[%s478 + $0x78] sm:$0xf]
      %v980 = vld [vmem:[%s478 + $0x7c] sm:$0xf]
      %v981 = vld [vmem:[%s478 + $0x80] sm:$0xf]
      %v982 = vld [vmem:[%s478 + $0x84] sm:$0xf]
      %v983 = vld [vmem:[%s478 + $0x88] sm:$0xf]
      %v984 = vld [vmem:[%s478 + $0x8c] sm:$0xf]
      %v985 = vld [vmem:[%s478 + $0x90] sm:$0xf]
      %v986 = vld [vmem:[%s478 + $0x94] sm:$0xf]
      %v987 = vld [vmem:[%s478 + $0x98] sm:$0xf]
      %v988 = vld [vmem:[%s478 + $0x9c] sm:$0xf]
      %v989 = vld [vmem:[%s478 + $0xa0] sm:$0xf]
      %v990 = vld [vmem:[%s478 + $0xa4] sm:$0xf]
      %v991 = vld [vmem:[%s478 + $0xa8] sm:$0xf]
      %v992 = vld [vmem:[%s478 + $0xac] sm:$0xf]
      %v993 = vld [vmem:[%s478 + $0xb0] sm:$0xf]
      %v994 = vld [vmem:[%s478 + $0xb4] sm:$0xf]
      %v995 = vld [vmem:[%s478 + $0xb8] sm:$0xf]
      %v996 = vld [vmem:[%s478 + $0xbc] sm:$0xf]
      %v997 = vld [vmem:[%s478 + $0xc0] sm:$0xf]
      %v998 = vld [vmem:[%s478 + $0xc4] sm:$0xf]
      %v999 = vld [vmem:[%s478 + $0xc8] sm:$0xf]
      %v1000 = vld [vmem:[%s478 + $0xcc] sm:$0xf]
      %v1001 = vld [vmem:[%s478 + $0xd0] sm:$0xf]
      %v1002 = vld [vmem:[%s478 + $0xd4] sm:$0xf]
      %v1003 = vld [vmem:[%s478 + $0xd8] sm:$0xf]
      %v1004 = vld [vmem:[%s478 + $0xdc] sm:$0xf]
      %v1005 = vld [vmem:[%s478 + $0xe0] sm:$0xf]
      %v1006 = vld [vmem:[%s478 + $0xe4] sm:$0xf]
      %v1007 = vld [vmem:[%s478 + $0xe8] sm:$0xf]
      %v1008 = vld [vmem:[%s478 + $0xec] sm:$0xf]
      %v1009 = vld [vmem:[%s478 + $0xf0] sm:$0xf]
      %v1010 = vld [vmem:[%s478 + $0xf4] sm:$0xf]
      %v1011 = vld [vmem:[%s478 + $0xf8] sm:$0xf]
      %v1012 = vld [vmem:[%s478 + $0xfc] sm:$0xf]
      %v1077 = vunpack.c.l.b16 %v949
      %v1078 = vunpack.c.l.b16 %v950
      %v1079 = vunpack.c.l.b16 %v951
      %v1080 = vunpack.c.l.b16 %v952
      %v1081 = vunpack.c.l.b16 %v953
      %v1082 = vunpack.c.l.b16 %v954
      %v1083 = vunpack.c.l.b16 %v955
      %v1084 = vunpack.c.l.b16 %v956
      %v1085 = vunpack.c.l.b16 %v957
      %v1086 = vunpack.c.l.b16 %v958
      %v1087 = vunpack.c.l.b16 %v959
      %v1088 = vunpack.c.l.b16 %v960
      %v1089 = vunpack.c.l.b16 %v961
      %v1090 = vunpack.c.l.b16 %v962
      %v1091 = vunpack.c.l.b16 %v963
      %v1092 = vunpack.c.l.b16 %v964
      %v1093 = vunpack.c.l.b16 %v965
      %v1094 = vunpack.c.l.b16 %v966
      %v1095 = vunpack.c.l.b16 %v967
      %v1096 = vunpack.c.l.b16 %v968
      %v1097 = vunpack.c.l.b16 %v969
      %v1098 = vunpack.c.l.b16 %v970
      %v1099 = vunpack.c.l.b16 %v971
      %v1100 = vunpack.c.l.b16 %v972
      %v1101 = vunpack.c.l.b16 %v973
      %v1102 = vunpack.c.l.b16 %v974
      %v1103 = vunpack.c.l.b16 %v975
      %v1104 = vunpack.c.l.b16 %v976
      %v1105 = vunpack.c.l.b16 %v977
      %v1106 = vunpack.c.l.b16 %v978
      %v1107 = vunpack.c.l.b16 %v979
      %v1108 = vunpack.c.l.b16 %v980
      %v1109 = vunpack.c.l.b16 %v981
      %v1110 = vunpack.c.l.b16 %v982
      %v1111 = vunpack.c.l.b16 %v983
      %v1112 = vunpack.c.l.b16 %v984
      %v1113 = vunpack.c.l.b16 %v985
      %v1114 = vunpack.c.l.b16 %v986
      %v1115 = vunpack.c.l.b16 %v987
      %v1116 = vunpack.c.l.b16 %v988
      %v1117 = vunpack.c.l.b16 %v989
      %v1118 = vunpack.c.l.b16 %v990
      %v1119 = vunpack.c.l.b16 %v991
      %v1120 = vunpack.c.l.b16 %v992
      %v1121 = vunpack.c.l.b16 %v993
      %v1122 = vunpack.c.l.b16 %v994
      %v1123 = vunpack.c.l.b16 %v995
      %v1124 = vunpack.c.l.b16 %v996
      %v1125 = vunpack.c.l.b16 %v997
      %v1126 = vunpack.c.l.b16 %v998
      %v1127 = vunpack.c.l.b16 %v999
      %v1128 = vunpack.c.l.b16 %v1000
      %v1129 = vunpack.c.l.b16 %v1001
      %v1130 = vunpack.c.l.b16 %v1002
      %v1131 = vunpack.c.l.b16 %v1003
      %v1132 = vunpack.c.l.b16 %v1004
      %v1133 = vunpack.c.l.b16 %v1005
      %v1134 = vunpack.c.l.b16 %v1006
      %v1135 = vunpack.c.l.b16 %v1007
      %v1136 = vunpack.c.l.b16 %v1008
      %v1137 = vunpack.c.l.b16 %v1009
      %v1138 = vunpack.c.l.b16 %v1010
      %v1139 = vunpack.c.l.b16 %v1011
      %v1140 = vunpack.c.l.b16 %v1012
      %v1141 = vpack.c.b16 %v1078, %v1077
      %v1142 = vpack.c.b16 %v1080, %v1079
      %v1143 = vpack.c.b16 %v1082, %v1081
      %v1144 = vpack.c.b16 %v1084, %v1083
      %v1145 = vpack.c.b16 %v1086, %v1085
      %v1146 = vpack.c.b16 %v1088, %v1087
      %v1147 = vpack.c.b16 %v1090, %v1089
      %v1148 = vpack.c.b16 %v1092, %v1091
      %v1149 = vpack.c.b16 %v1094, %v1093
      %v1150 = vpack.c.b16 %v1096, %v1095
      %v1151 = vpack.c.b16 %v1098, %v1097
      %v1152 = vpack.c.b16 %v1100, %v1099
      %v1153 = vpack.c.b16 %v1102, %v1101
      %v1154 = vpack.c.b16 %v1104, %v1103
      %v1155 = vpack.c.b16 %v1106, %v1105
      %v1156 = vpack.c.b16 %v1108, %v1107
      %v1157 = vpack.c.b16 %v1110, %v1109
      %v1158 = vpack.c.b16 %v1112, %v1111
      %v1159 = vpack.c.b16 %v1114, %v1113
      %v1160 = vpack.c.b16 %v1116, %v1115
      %v1161 = vpack.c.b16 %v1118, %v1117
      %v1162 = vpack.c.b16 %v1120, %v1119
      %v1163 = vpack.c.b16 %v1122, %v1121
      %v1164 = vpack.c.b16 %v1124, %v1123
      %v1165 = vpack.c.b16 %v1126, %v1125
      %v1166 = vpack.c.b16 %v1128, %v1127
      %v1167 = vpack.c.b16 %v1130, %v1129
      %v1168 = vpack.c.b16 %v1132, %v1131
      %v1169 = vpack.c.b16 %v1134, %v1133
      %v1170 = vpack.c.b16 %v1136, %v1135
      %v1171 = vpack.c.b16 %v1138, %v1137
      %v1172 = vpack.c.b16 %v1140, %v1139
      %1205 = vmatprep.subr.bf16.mxu0 0
      %1206 = vmatpush1.bf16.msra.mxu0 %v1141
      %1207 = vmatprep.subr.bf16.mxu0 0
      %1208 = vmatpush1.bf16.msra.mxu0 %v1142
      %1209 = vmatprep.subr.bf16.mxu0 0
      %1210 = vmatpush1.bf16.msra.mxu0 %v1143
      %1211 = vmatprep.subr.bf16.mxu0 0
      %1212 = vmatpush1.bf16.msra.mxu0 %v1144
      %1213 = vmatprep.subr.bf16.mxu0 0
      %1214 = vmatpush1.bf16.msra.mxu0 %v1145
      %1215 = vmatprep.subr.bf16.mxu0 0
      %1216 = vmatpush1.bf16.msra.mxu0 %v1146
      %1217 = vmatprep.subr.bf16.mxu0 0
      %1218 = vmatpush1.bf16.msra.mxu0 %v1147
      %1219 = vmatprep.subr.bf16.mxu0 0
      %1220 = vmatpush1.bf16.msra.mxu0 %v1148
      %1221 = vmatprep.subr.bf16.mxu0 0
      %1222 = vmatpush1.bf16.msra.mxu0 %v1149
      %1223 = vmatprep.subr.bf16.mxu0 0
      %1224 = vmatpush1.bf16.msra.mxu0 %v1150
      %1225 = vmatprep.subr.bf16.mxu0 0
      %1226 = vmatpush1.bf16.msra.mxu0 %v1151
      %1227 = vmatprep.subr.bf16.mxu0 0
      %1228 = vmatpush1.bf16.msra.mxu0 %v1152
      %1229 = vmatprep.subr.bf16.mxu0 0
      %1230 = vmatpush1.bf16.msra.mxu0 %v1153
      %1231 = vmatprep.subr.bf16.mxu0 0
      %1232 = vmatpush1.bf16.msra.mxu0 %v1154
      %1233 = vmatprep.subr.bf16.mxu0 0
      %1234 = vmatpush1.bf16.msra.mxu0 %v1155
      %1235 = vmatprep.subr.bf16.mxu0 0
      %1236 = vmatpush1.bf16.msra.mxu0 %v1156
      %1237 = vmatprep.mubr.bf16.mxu0 %v946
      %1238 = vmatmul.mubr.bf16.gmra.mrb[0].mxu0 %v945
      %v1239 = vpop.f32.mrb[0].mxu0
      %v1240 = vadd.f32 0.0, %v1239
      %v1241 = vpop.f32.mrb[0].mxu0
      %v1242 = vpop.f32.mrb[0].mxu0
      %v1243 = vadd.f32 0.0, %v1242
      %v1244 = vpop.f32.mrb[0].mxu0
      %1245 = vdwg.mxu0
      %1246 = vmatprep.subr.bf16.mxu0 0
      %1247 = vmatpush1.bf16.msra.mxu0 %v1157
      %1248 = vmatprep.subr.bf16.mxu0 0
      %1249 = vmatpush1.bf16.msra.mxu0 %v1158
      %1250 = vmatprep.subr.bf16.mxu0 0
      %1251 = vmatpush1.bf16.msra.mxu0 %v1159
      %1252 = vmatprep.subr.bf16.mxu0 0
      %1253 = vmatpush1.bf16.msra.mxu0 %v1160
      %1254 = vmatprep.subr.bf16.mxu0 0
      %1255 = vmatpush1.bf16.msra.mxu0 %v1161
      %1256 = vmatprep.subr.bf16.mxu0 0
      %1257 = vmatpush1.bf16.msra.mxu0 %v1162
      %1258 = vmatprep.subr.bf16.mxu0 0
      %1259 = vmatpush1.bf16.msra.mxu0 %v1163
      %1260 = vmatprep.subr.bf16.mxu0 0
      %1261 = vmatpush1.bf16.msra.mxu0 %v1164
      %1262 = vmatprep.subr.bf16.mxu0 0
      %1263 = vmatpush1.bf16.msra.mxu0 %v1165
      %1264 = vmatprep.subr.bf16.mxu0 0
      %1265 = vmatpush1.bf16.msra.mxu0 %v1166
      %1266 = vmatprep.subr.bf16.mxu0 0
      %1267 = vmatpush1.bf16.msra.mxu0 %v1167
      %1268 = vmatprep.subr.bf16.mxu0 0
      %1269 = vmatpush1.bf16.msra.mxu0 %v1168
      %1270 = vmatprep.subr.bf16.mxu0 0
      %1271 = vmatpush1.bf16.msra.mxu0 %v1169
      %1272 = vmatprep.subr.bf16.mxu0 0
      %1273 = vmatpush1.bf16.msra.mxu0 %v1170
      %1274 = vmatprep.subr.bf16.mxu0 0
      %1275 = vmatpush1.bf16.msra.mxu0 %v1171
      %1276 = vmatprep.subr.bf16.mxu0 0
      %1277 = vmatpush1.bf16.msra.mxu0 %v1172
      %1278 = vmatprep.mubr.bf16.mxu0 %v948
      %1279 = vmatmul.mubr.bf16.gmra.mrb[0].mxu0 %v947
      %v1280 = vpop.f32.mrb[0].mxu0
      %v1281 = vadd.f32 %v1240, %v1280
      %v1282 = vpop.f32.mrb[0].mxu0
      %v1283 = vpop.f32.mrb[0].mxu0
      %v1284 = vadd.f32 %v1243, %v1283
      %v1285 = vpop.f32.mrb[0].mxu0
      %1286 = vdwg.mxu0
      %v1287 = vadd.f32 %v943, %v1281
      %v1288 = vadd.f32 %v944, %v1284
      %1289 = vst [vmem:[#allocation3] sm:$0xff] %v1287
      %1290 = vst [vmem:[#allocation3 + $0x8] sm:$0x1] %v1288
      // Predicated region
      $region65: #{audiomae_forward.29} parent=59 // pred_check
        %p1291 = pneg %p496
      $region66: #{audiomae_forward.29} parent=59 // pred_check_branch
        %1293 = sbr.rel (%p1291) target = $region68
      $region67: #{audiomae_forward.29} parent=59 // pred_region
        %v1294 = vld [vmem:[%s462] sm:$0xff]
        %v1295 = vld [vmem:[%s462 + $0x8] sm:$0x1]
        %v1296 = vld [vmem:[#allocation3] sm:$0xff]
        %v1297 = vld [vmem:[#allocation3 + $0x8] sm:$0x1]
        %v1298 = vadd.f32 %v1294, %v1296
        %v1299 = vadd.f32 %v1295, %v1297
        %v1300 = vld [vmem:[%s6] sm:$0x1]
        %v1302 = vlaneseq
        %v1303 = vshrl.u32 %v1302, 7
        %v1304 = vsub.s32 0, %v1303
        %v1305 = vrot.slane %v1300, %v1304
        %v1307 = vadd.f32 %v1298, %v1305
        %v1308 = vadd.f32 %v1299, %v1305
        %1309 = vst [vmem:[%s489] sm:$0xff] %v1307
        %1310 = vst [vmem:[%s489 + $0x8] sm:$0x1] %v1308
        %v1311 = vld [vmem:[%s7] sm:$0x1]
        %v1312 = vld [vmem:[%s8] sm:$0x1]
        %1313 = vadd.xlane.f32.xlu0 %v1307
        %v1314 = vpop.xlane.xlu0 %1313
        %vm1315 = vcmask 1040384
        %v1316 = vsel %vm1315, %v1308, 0.0
        %1317 = vadd.xlane.f32.xlu0 %v1316
        %v1318 = vpop.xlane.xlu0 %1317
        %v1319 = vrcp.pop 128.0
        %v1320 = vmul.f32 %v1314, %v1319
        %v1321 = vmul.f32 %v1318, %v1319
        %v1322 = vsub.f32 %v1307, %v1320
        %v1323 = vsub.f32 %v1308, %v1321
        %v1324 = vmul.f32 %v1322, %v1322
        %v1325 = vmul.f32 %v1323, %v1323
        %1326 = vadd.xlane.f32.xlu0 %v1324
        %v1327 = vpop.xlane.xlu0 %1326
        %v1328 = vsel %vm1315, %v1325, 0.0
        %1329 = vadd.xlane.f32.xlu0 %v1328
        %v1330 = vpop.xlane.xlu0 %1329
        %v1331 = vmul.f32 %v1327, %v1319
        %v1332 = vmul.f32 %v1330, %v1319
        %v1333 = vadd.f32 %v1331, 1e-06
        %v1334 = vadd.f32 %v1332, 1e-06
        %v1335 = vrsqrt.pop %v1333
        %v1336 = vrsqrt.pop %v1334
        %v1337 = vmul.f32 %v1322, %v1335
        %v1338 = vmul.f32 %v1323, %v1336
        %v1340 = vlaneseq
        %v1341 = vshrl.u32 %v1340, 7
        %v1342 = vsub.s32 0, %v1341
        %v1343 = vrot.slane %v1311, %v1342
        %v1345 = vmul.f32 %v1337, %v1343
        %v1346 = vmul.f32 %v1338, %v1343
        %v1348 = vlaneseq
        %v1349 = vshrl.u32 %v1348, 7
        %v1350 = vsub.s32 0, %v1349
        %v1351 = vrot.slane %v1312, %v1350
        %v1353 = vadd.f32 %v1345, %v1351
        %v1354 = vadd.f32 %v1346, %v1351
        %v1355 = vld [vmem:[%s484] sm:$0xff]
        %v1356 = vld [vmem:[%s484 + $0x8] sm:$0x1]
        %v1357 = vmul.f32 %v1353, 0.5
        %v1358 = vmul.f32 %v1354, 0.5
        %v1359 = vadd.f32 %v1355, %v1357
        %v1360 = vadd.f32 %v1356, %v1358
        %1361 = vst [vmem:[%s494] sm:$0xff] %v1359
        %1362 = vst [vmem:[%s494 + $0x8] sm:$0x1] %v1360
      $region68: #{audiomae_forward.29} parent=59 // pred_fallthru
        _
      %p1363 = scmp.lt.s32.totalorder %s27, 1
      %s1364 = scalar_select %p1363, %s27, 1
      %s1365 = smul.addr %s1364, 2
      %s1366 = smul.addr %s1365, 8
      %s1367 = scalar_lea.vmem %s10, %s1366
      %p1368 = scmp.lt.s32.totalorder %s27, 1
      %s1369 = scalar_select %p1368, %s27, 1
      %s1370 = smul.addr %s1369, 2
      %s1371 = smul.addr %s1370, 8
      %s1372 = scalar_lea.vmem %s11, %s1371
      // Predicated region
      $region69: #{audiomae_forward.29} parent=59 // pred_check
        %p1373 = pneg %p288
      $region70: #{audiomae_forward.29} parent=59 // pred_check_branch
        %1375 = sbr.rel (%p1373) target = $region72
      $region71: #{audiomae_forward.29} parent=59 // pred_region
        _
      $region72: #{audiomae_forward.29} parent=59 // pred_fallthru
        _
      // Predicated region
      $region73: #{audiomae_forward.29} parent=59 // pred_check
        %p1376 = pneg %p314
      $region74: #{audiomae_forward.29} parent=59 // pred_check_branch
        %1378 = sbr.rel (%p1376) target = $region76
      $region75: #{audiomae_forward.29} parent=59 // pred_region
        _
      $region76: #{audiomae_forward.29} parent=59 // pred_fallthru
        _
    $region60: #{audiomae_forward.29} parent=5 // pred_fallthru
      _
    %p1379 = scmp.le.s32.totalorder 2, %s18
    // Predicated region
    $region77: #{audiomae_forward.29} parent=5 // pred_check
      %p1380 = pneg %p1379
    $region78: #{audiomae_forward.29} parent=5 // pred_check_branch
      %1382 = sbr.rel (%p1380) target = $region80
    $region79: #{audiomae_forward.29} parent=5 // pred_region
      %s1383 = ssub.s32 %s18, 2
      // Predicated region
      $region81: #{audiomae_forward.29} parent=79 // pred_check
        %p1384 = pneg %p294
      $region82: #{audiomae_forward.29} parent=79 // pred_check_branch
        %1386 = sbr.rel (%p1384) target = $region84
      $region83: #{audiomae_forward.29} parent=79 // pred_region
        %p1387 = scmp.lt.s32.totalorder %s29, 1
        %s1388 = scalar_select %p1387, %s29, 1
        %s1389 = smul.addr %s1388, 2
        %s1390 = smul.addr %s1389, 8
        %s1391 = scalar_lea.vmem %s10, %s1390
      $region84: #{audiomae_forward.29} parent=79 // pred_fallthru
        _
      // Predicated region
      $region85: #{audiomae_forward.29} parent=79 // pred_check
        %p1392 = pneg %p320
      $region86: #{audiomae_forward.29} parent=79 // pred_check_branch
        %1394 = sbr.rel (%p1392) target = $region88
      $region87: #{audiomae_forward.29} parent=79 // pred_region
        %p1395 = scmp.lt.s32.totalorder %s29, 1
        %s1396 = scalar_select %p1395, %s29, 1
        %s1397 = smul.addr %s1396, 2
        %s1398 = smul.addr %s1397, 8
        %s1399 = scalar_lea.vmem %s11, %s1398
      $region88: #{audiomae_forward.29} parent=79 // pred_fallthru
        _
    $region80: #{audiomae_forward.29} parent=5 // pred_fallthru
      _
  $region6: #{audiomae_forward.29} parent=0 // loop_footer
    %s22 = sadd.s32 1, %s18
  $region7: #{audiomae_forward.29} parent=0 // loop_footer_branch
    %17 = sbr.rel target = $region3
  $region8: #{audiomae_forward.29} parent=0 // loop_exit
    _

// kernel: audiomae_forward.33
$region0: #{audiomae_forward.33}
  #allocation0 [shape = 'u32[]', space=smem, size = 0x4, offset = 0x4, fixed_abs, tag = 'smem constant byte address 0x4 - core index']
  #allocation1 [shape = 'u32[144,128]{1,0:T(1,128)}', space=vmem, size = 0x12000, scoped, tag = 'internal scratch']
  #allocation2 [shape = 'bf16[9,128]{1,0:T(8,128)(2,1)}', space=vmem, size = 0x1000, scoped, tag = 'scratch operand']
  #allocation3 [shape = 'f32[9,128]{1,0:T(8,128)}', space=vmem, size = 0x2000, scoped, tag = 'scratch operand']
  %s0 = inlined_call_operand.vmem [shape: f32[2,9,128], index: 0, kind: input, shape index: {}]
  %s1 = inlined_call_operand.vmem [shape: f32[1,128], index: 1, kind: input, shape index: {}]
  %s2 = inlined_call_operand.vmem [shape: f32[1,128], index: 2, kind: input, shape index: {}]
  %s3 = inlined_call_operand.vmem [shape: bf16[128,512], index: 3, kind: input, shape index: {}]
  %s4 = inlined_call_operand.vmem [shape: f32[1,512], index: 4, kind: input, shape index: {}]
  %s5 = inlined_call_operand.vmem [shape: bf16[512,128], index: 5, kind: input, shape index: {}]
  %s6 = inlined_call_operand.vmem [shape: f32[1,128], index: 6, kind: input, shape index: {}]
  %s7 = inlined_call_operand.vmem [shape: f32[1,128], index: 7, kind: input, shape index: {}]
  %s8 = inlined_call_operand.vmem [shape: f32[1,128], index: 8, kind: input, shape index: {}]
  %s9 = inlined_call_operand.vmem [shape: f32[2,9,128], index: 9, kind: input, shape index: {}, may-alias: {9,11}]
  %s10 = inlined_call_operand.hbm [shape: f32[2,9,128], index: 10, kind: output, shape index: {0}]
  %s11 = inlined_call_operand.vmem [shape: f32[2,9,128], index: 11, kind: output, shape index: {1}, may-alias: {9,11}]
  %12 = xla_tuple %s10, %s11
  %s13 = sld [smem:[#allocation0]]
  $region89: #{audiomae_forward.33} parent=0
    _
  %s15 = ssub.s32 1, %s13
  %s16 = scalar_select 0, %s15, %s13
  $region1: #{audiomae_forward.33} parent=0
    #allocation4 [shape = 'u8[16384]{0}', space=vmem, size = 0x4000, scoped, tag = 'output window, operand 0']
    #allocation5 [shape = 's32[2]{0}', space=sflag, size = 0x8, scoped, tag = 'scoped memory for audiomae_forward.33']
    %17 = vsyncpa [#allocation5], 0
    %s18 = scalar_lea.sflag [#allocation5], 1
    %19 = vsyncpa %s18, 0
    loop: start=0, step=1, limit=4
    $region2: #{audiomae_forward.33} parent=1 // loop_pre_header
      _
    $region3: #{audiomae_forward.33} parent=1 // loop_header
      %s21 = sphi 0, %s25
      %p22 = scmp.ge.s32.totalorder %s21, 4
      %s28 = sphi 0, %s40
      %s29 = sphi 0, %s36
      %s30 = sphi 0, %s28
      %s31 = sphi 0, %s29
      %s32 = sphi 0, %s30
      %s33 = sphi 0, %s31
      %s43 = sphi 0, %s45
      %s46 = sphi 0, %s43
      %s47 = sphi 0, %s46
      %s63 = sphi 0, %s47
      %s67 = sphi 0, %s67
      %s69 = sphi 0, %s67
      %s70 = sphi 0, %s69
      %s84 = sphi 0, %s70
      %s88 = sphi 0, %s88
      %s90 = sphi 0, %s88
      %s91 = sphi 0, %s90
      %s105 = sphi 0, %s91
      %s111 = sphi 0, %s113
      %s114 = sphi 0, %s111
      %s115 = sphi 0, %s114
      %s131 = sphi 0, %s115
      %s137 = sphi 0, %s139
      %s140 = sphi 0, %s137
      %s141 = sphi 0, %s140
      %s157 = sphi 0, %s141
      %s163 = sphi 0, %s165
      %s166 = sphi 0, %s163
      %s167 = sphi 0, %s166
      %s183 = sphi 0, %s167
      %s187 = sphi 0, %s187
      %s189 = sphi 0, %s187
      %s190 = sphi 0, %s189
      %s204 = sphi 0, %s190
      %s208 = sphi 0, %s208
      %s210 = sphi 0, %s208
      %s211 = sphi 0, %s210
      %s225 = sphi 0, %s211
      %s229 = sphi 0, %s229
      %s231 = sphi 0, %s229
      %s232 = sphi 0, %s231
      %s246 = sphi 0, %s232
      %s252 = sphi 0, %s254
      %s255 = sphi 0, %s252
      %s256 = sphi 0, %s255
      %s272 = sphi 0, %s256
      %s278 = sphi 0, %s280
      %s281 = sphi 0, %s278
      %s282 = sphi 0, %s281
      %s298 = sphi 0, %s282
      %s304 = sphi 0, %s306
      %s307 = sphi 0, %s304
      %s308 = sphi 0, %s307
      %s324 = sphi 0, %s308
    $region4: #{audiomae_forward.33} parent=1 // loop_header_branch
      %24 = sbr.rel (%p22) target = $region8
    $region5: #{audiomae_forward.33} parent=1 // loop_body
      %s26 = ssub.s32 %s21, 1
      %s27 = ssub.s32 %s21, 2
      %s34 = sadd.s32 1, %s29
      %p35 = scmp.ge.s32.totalorder %s34, 1
      %s36 = scalar_select %p35, 0, %s34
      %s37 = sadd.s32 1, %s28
      %s38 = scalar_select %p35, %s37, %s28
      %p39 = scmp.ge.s32.totalorder %s38, 2
      %s40 = scalar_select %p39, 0, %s38
      %s41 = ssub.s32 %s28, %s40
      %p42 = scmp.eq.s32.totalorder %s41, 0
      %s44 = sadd.s32 %s43, 1
      %s45 = scalar_select %p42, %s43, %s44
      %p48 = pneg %p42
      %p49 = scmp.eq.s32.totalorder %s21, 1
      %p50 = por %p48, %p49
      %p51 = scmp.ne.s32.totalorder %s43, %s46
      %p52 = scmp.eq.s32.totalorder %s21, 0
      %p53 = por %p51, %p52
      %p54 = scmp.ne.s32.totalorder %s43, %s46
      %p55 = scmp.eq.s32.totalorder %s26, 1
      %p56 = por %p54, %p55
      %p57 = scmp.ne.s32.totalorder %s46, %s47
      %p58 = scmp.eq.s32.totalorder %s26, 0
      %p59 = por %p57, %p58
      %p60 = scmp.ne.s32.totalorder %s46, %s47
      %p61 = scmp.eq.s32.totalorder %s27, 1
      %p62 = por %p60, %p61
      %p64 = scmp.ne.s32.totalorder %s47, %s63
      %p65 = scmp.eq.s32.totalorder %s27, 0
      %p66 = por %p64, %p65
      %s68 = sadd.s32 %s67, 1
      %p71 = scmp.eq.s32.totalorder %s21, 1
      %p72 = scmp.ne.s32.totalorder %s67, %s69
      %p73 = scmp.eq.s32.totalorder %s21, 0
      %p74 = por %p72, %p73
      %p75 = scmp.ne.s32.totalorder %s67, %s69
      %p76 = scmp.eq.s32.totalorder %s26, 1
      %p77 = por %p75, %p76
      %p78 = scmp.ne.s32.totalorder %s69, %s70
      %p79 = scmp.eq.s32.totalorder %s26, 0
      %p80 = por %p78, %p79
      %p81 = scmp.ne.s32.totalorder %s69, %s70
      %p82 = scmp.eq.s32.totalorder %s27, 1
      %p83 = por %p81, %p82
      %p85 = scmp.ne.s32.totalorder %s70, %s84
      %p86 = scmp.eq.s32.totalorder %s27, 0
      %p87 = por %p85, %p86
      %s89 = sadd.s32 %s88, 1
      %p92 = scmp.eq.s32.totalorder %s21, 1
      %p93 = scmp.ne.s32.totalorder %s88, %s90
      %p94 = scmp.eq.s32.totalorder %s21, 0
      %p95 = por %p93, %p94
      %p96 = scmp.ne.s32.totalorder %s88, %s90
      %p97 = scmp.eq.s32.totalorder %s26, 1
      %p98 = por %p96, %p97
      %p99 = scmp.ne.s32.totalorder %s90, %s91
      %p100 = scmp.eq.s32.totalorder %s26, 0
      %p101 = por %p99, %p100
      %p102 = scmp.ne.s32.totalorder %s90, %s91
      %p103 = scmp.eq.s32.totalorder %s27, 1
      %p104 = por %p102, %p103
      %p106 = scmp.ne.s32.totalorder %s91, %s105
      %p107 = scmp.eq.s32.totalorder %s27, 0
      %p108 = por %p106, %p107
      %s109 = ssub.s32 %s29, %s36
      %p110 = scmp.eq.s32.totalorder %s109, 0
      %s112 = sadd.s32 %s111, 1
      %s113 = scalar_select %p110, %s111, %s112
      %p116 = pneg %p110
      %p117 = scmp.eq.s32.totalorder %s21, 1
      %p118 = por %p116, %p117
      %p119 = scmp.ne.s32.totalorder %s111, %s114
      %p120 = scmp.eq.s32.totalorder %s21, 0
      %p121 = por %p119, %p120
      %p122 = scmp.ne.s32.totalorder %s111, %s114
      %p123 = scmp.eq.s32.totalorder %s26, 1
      %p124 = por %p122, %p123
      %p125 = scmp.ne.s32.totalorder %s114, %s115
      %p126 = scmp.eq.s32.totalorder %s26, 0
      %p127 = por %p125, %p126
      %p128 = scmp.ne.s32.totalorder %s114, %s115
      %p129 = scmp.eq.s32.totalorder %s27, 1
      %p130 = por %p128, %p129
      %p132 = scmp.ne.s32.totalorder %s115, %s131
      %p133 = scmp.eq.s32.totalorder %s27, 0
      %p134 = por %p132, %p133
      %s135 = ssub.s32 %s29, %s36
      %p136 = scmp.eq.s32.totalorder %s135, 0
      %s138 = sadd.s32 %s137, 1
      %s139 = scalar_select %p136, %s137, %s138
      %p142 = pneg %p136
      %p143 = scmp.eq.s32.totalorder %s21, 1
      %p144 = por %p142, %p143
      %p145 = scmp.ne.s32.totalorder %s137, %s140
      %p146 = scmp.eq.s32.totalorder %s21, 0
      %p147 = por %p145, %p146
      %p148 = scmp.ne.s32.totalorder %s137, %s140
      %p149 = scmp.eq.s32.totalorder %s26, 1
      %p150 = por %p148, %p149
      %p151 = scmp.ne.s32.totalorder %s140, %s141
      %p152 = scmp.eq.s32.totalorder %s26, 0
      %p153 = por %p151, %p152
      %p154 = scmp.ne.s32.totalorder %s140, %s141
      %p155 = scmp.eq.s32.totalorder %s27, 1
      %p156 = por %p154, %p155
      %p158 = scmp.ne.s32.totalorder %s141, %s157
      %p159 = scmp.eq.s32.totalorder %s27, 0
      %p160 = por %p158, %p159
      %s161 = ssub.s32 %s29, %s36
      %p162 = scmp.eq.s32.totalorder %s161, 0
      %s164 = sadd.s32 %s163, 1
      %s165 = scalar_select %p162, %s163, %s164
      %p168 = pneg %p162
      %p169 = scmp.eq.s32.totalorder %s21, 1
      %p170 = por %p168, %p169
      %p171 = scmp.ne.s32.totalorder %s163, %s166
      %p172 = scmp.eq.s32.totalorder %s21, 0
      %p173 = por %p171, %p172
      %p174 = scmp.ne.s32.totalorder %s163, %s166
      %p175 = scmp.eq.s32.totalorder %s26, 1
      %p176 = por %p174, %p175
      %p177 = scmp.ne.s32.totalorder %s166, %s167
      %p178 = scmp.eq.s32.totalorder %s26, 0
      %p179 = por %p177, %p178
      %p180 = scmp.ne.s32.totalorder %s166, %s167
      %p181 = scmp.eq.s32.totalorder %s27, 1
      %p182 = por %p180, %p181
      %p184 = scmp.ne.s32.totalorder %s167, %s183
      %p185 = scmp.eq.s32.totalorder %s27, 0
      %p186 = por %p184, %p185
      %s188 = sadd.s32 %s187, 1
      %p191 = scmp.eq.s32.totalorder %s21, 1
      %p192 = scmp.ne.s32.totalorder %s187, %s189
      %p193 = scmp.eq.s32.totalorder %s21, 0
      %p194 = por %p192, %p193
      %p195 = scmp.ne.s32.totalorder %s187, %s189
      %p196 = scmp.eq.s32.totalorder %s26, 1
      %p197 = por %p195, %p196
      %p198 = scmp.ne.s32.totalorder %s189, %s190
      %p199 = scmp.eq.s32.totalorder %s26, 0
      %p200 = por %p198, %p199
      %p201 = scmp.ne.s32.totalorder %s189, %s190
      %p202 = scmp.eq.s32.totalorder %s27, 1
      %p203 = por %p201, %p202
      %p205 = scmp.ne.s32.totalorder %s190, %s204
      %p206 = scmp.eq.s32.totalorder %s27, 0
      %p207 = por %p205, %p206
      %s209 = sadd.s32 %s208, 1
      %p212 = scmp.eq.s32.totalorder %s21, 1
      %p213 = scmp.ne.s32.totalorder %s208, %s210
      %p214 = scmp.eq.s32.totalorder %s21, 0
      %p215 = por %p213, %p214
      %p216 = scmp.ne.s32.totalorder %s208, %s210
      %p217 = scmp.eq.s32.totalorder %s26, 1
      %p218 = por %p216, %p217
      %p219 = scmp.ne.s32.totalorder %s210, %s211
      %p220 = scmp.eq.s32.totalorder %s26, 0
      %p221 = por %p219, %p220
      %p222 = scmp.ne.s32.totalorder %s210, %s211
      %p223 = scmp.eq.s32.totalorder %s27, 1
      %p224 = por %p222, %p223
      %p226 = scmp.ne.s32.totalorder %s211, %s225
      %p227 = scmp.eq.s32.totalorder %s27, 0
      %p228 = por %p226, %p227
      %s230 = sadd.s32 %s229, 1
      %p233 = scmp.eq.s32.totalorder %s21, 1
      %p234 = scmp.ne.s32.totalorder %s229, %s231
      %p235 = scmp.eq.s32.totalorder %s21, 0
      %p236 = por %p234, %p235
      %p237 = scmp.ne.s32.totalorder %s229, %s231
      %p238 = scmp.eq.s32.totalorder %s26, 1
      %p239 = por %p237, %p238
      %p240 = scmp.ne.s32.totalorder %s231, %s232
      %p241 = scmp.eq.s32.totalorder %s26, 0
      %p242 = por %p240, %p241
      %p243 = scmp.ne.s32.totalorder %s231, %s232
      %p244 = scmp.eq.s32.totalorder %s27, 1
      %p245 = por %p243, %p244
      %p247 = scmp.ne.s32.totalorder %s232, %s246
      %p248 = scmp.eq.s32.totalorder %s27, 0
      %p249 = por %p247, %p248
      %s250 = ssub.s32 %s28, %s40
      %p251 = scmp.eq.s32.totalorder %s250, 0
      %s253 = sadd.s32 %s252, 1
      %s254 = scalar_select %p251, %s252, %s253
      %p257 = pneg %p251
      %p258 = scmp.eq.s32.totalorder %s21, 1
      %p259 = por %p257, %p258
      %p260 = scmp.ne.s32.totalorder %s252, %s255
      %p261 = scmp.eq.s32.totalorder %s21, 0
      %p262 = por %p260, %p261
      %p263 = scmp.ne.s32.totalorder %s252, %s255
      %p264 = scmp.eq.s32.totalorder %s26, 1
      %p265 = por %p263, %p264
      %p266 = scmp.ne.s32.totalorder %s255, %s256
      %p267 = scmp.eq.s32.totalorder %s26, 0
      %p268 = por %p266, %p267
      %p269 = scmp.ne.s32.totalorder %s255, %s256
      %p270 = scmp.eq.s32.totalorder %s27, 1
      %p271 = por %p269, %p270
      %p273 = scmp.ne.s32.totalorder %s256, %s272
      %p274 = scmp.eq.s32.totalorder %s27, 0
      %p275 = por %p273, %p274
      %s276 = ssub.s32 %s28, %s40
      %p277 = scmp.eq.s32.totalorder %s276, 0
      %s279 = sadd.s32 %s278, 1
      %s280 = scalar_select %p277, %s278, %s279
      %p283 = pneg %p277
      %p284 = scmp.eq.s32.totalorder %s21, 1
      %p285 = por %p283, %p284
      %p286 = scmp.ne.s32.totalorder %s278, %s281
      %p287 = scmp.eq.s32.totalorder %s21, 0
      %p288 = por %p286, %p287
      %p289 = scmp.ne.s32.totalorder %s278, %s281
      %p290 = scmp.eq.s32.totalorder %s26, 1
      %p291 = por %p289, %p290
      %p292 = scmp.ne.s32.totalorder %s281, %s282
      %p293 = scmp.eq.s32.totalorder %s26, 0
      %p294 = por %p292, %p293
      %p295 = scmp.ne.s32.totalorder %s281, %s282
      %p296 = scmp.eq.s32.totalorder %s27, 1
      %p297 = por %p295, %p296
      %p299 = scmp.ne.s32.totalorder %s282, %s298
      %p300 = scmp.eq.s32.totalorder %s27, 0
      %p301 = por %p299, %p300
      %s302 = ssub.s32 %s28, %s40
      %p303 = scmp.eq.s32.totalorder %s302, 0
      %s305 = sadd.s32 %s304, 1
      %s306 = scalar_select %p303, %s304, %s305
      %p309 = pneg %p303
      %p310 = scmp.eq.s32.totalorder %s21, 1
      %p311 = por %p309, %p310
      %p312 = scmp.ne.s32.totalorder %s304, %s307
      %p313 = scmp.eq.s32.totalorder %s21, 0
      %p314 = por %p312, %p313
      %p315 = scmp.ne.s32.totalorder %s304, %s307
      %p316 = scmp.eq.s32.totalorder %s26, 1
      %p317 = por %p315, %p316
      %p318 = scmp.ne.s32.totalorder %s307, %s308
      %p319 = scmp.eq.s32.totalorder %s26, 0
      %p320 = por %p318, %p319
      %p321 = scmp.ne.s32.totalorder %s307, %s308
      %p322 = scmp.eq.s32.totalorder %s27, 1
      %p323 = por %p321, %p322
      %p325 = scmp.ne.s32.totalorder %s308, %s324
      %p326 = scmp.eq.s32.totalorder %s27, 0
      %p327 = por %p325, %p326
      %p328 = scmp.le.s32.totalorder 1, %s21
      %p329 = scmp.lt.s32.totalorder %s21, 3
      %p330 = pnand %p328, %p329
      %p331 = pneg %p330
      // Predicated region
      $region9: #{audiomae_forward.33} parent=5 // pred_check
        _
      $region10: #{audiomae_forward.33} parent=5 // pred_check_branch
        %333 = sbr.rel (%p330) target = $region12
      $region11: #{audiomae_forward.33} parent=5 // pred_region
        %s334 = ssub.s32 %s21, 1
        // Predicated region
        $region13: #{audiomae_forward.33} parent=11 // pred_check
          %p335 = pneg %p80
        $region14: #{audiomae_forward.33} parent=11 // pred_check_branch
          %337 = sbr.rel (%p335) target = $region16
        $region15: #{audiomae_forward.33} parent=11 // pred_region
          _
        $region16: #{audiomae_forward.33} parent=11 // pred_fallthru
          _
        // Predicated region
        $region17: #{audiomae_forward.33} parent=11 // pred_check
          %p338 = pneg %p101
        $region18: #{audiomae_forward.33} parent=11 // pred_check_branch
          %340 = sbr.rel (%p338) target = $region20
        $region19: #{audiomae_forward.33} parent=11 // pred_region
          _
        $region20: #{audiomae_forward.33} parent=11 // pred_fallthru
          _
        // Predicated region
        $region21: #{audiomae_forward.33} parent=11 // pred_check
          %p341 = pneg %p127
        $region22: #{audiomae_forward.33} parent=11 // pred_check_branch
          %343 = sbr.rel (%p341) target = $region24
        $region23: #{audiomae_forward.33} parent=11 // pred_region
          %s344 = smul.u32 4, %s31
          %p345 = scmp.lt.s32.totalorder %s344, 3
          %s346 = scalar_select %p345, %s344, 3
          %s347 = smul.addr %s346, 4
          %s348 = scalar_lea.vmem %s3, %s347
          %s349 = smul.u32 4, %s31
        $region24: #{audiomae_forward.33} parent=11 // pred_fallthru
          _
        // Predicated region
        $region25: #{audiomae_forward.33} parent=11 // pred_check
          %p350 = pneg %p153
        $region26: #{audiomae_forward.33} parent=11 // pred_check_branch
          %352 = sbr.rel (%p350) target = $region28
        $region27: #{audiomae_forward.33} parent=11 // pred_region
          %s353 = smul.u32 4, %s31
          %p354 = scmp.lt.s32.totalorder %s353, 3
          %s355 = scalar_select %p354, %s353, 3
          %s356 = scalar_lea.vmem %s4, %s355
          %s357 = smul.u32 4, %s31
        $region28: #{audiomae_forward.33} parent=11 // pred_fallthru
          _
        // Predicated region
        $region29: #{audiomae_forward.33} parent=11 // pred_check
          %p358 = pneg %p179
        $region30: #{audiomae_forward.33} parent=11 // pred_check_branch
          %360 = sbr.rel (%p358) target = $region32
        $region31: #{audiomae_forward.33} parent=11 // pred_region
          %s361 = smul.u32 64, %s31
          %p362 = scmp.lt.s32.totalorder %s361, 63
          %s363 = scalar_select %p362, %s361, 63
          %s364 = smul.addr %s363, 4
          %s365 = scalar_lea.vmem %s5, %s364
          %s366 = smul.u32 64, %s31
        $region32: #{audiomae_forward.33} parent=11 // pred_fallthru
          _
        // Predicated region
        $region33: #{audiomae_forward.33} parent=11 // pred_check
          %p367 = pneg %p200
        $region34: #{audiomae_forward.33} parent=11 // pred_check_branch
          %369 = sbr.rel (%p367) target = $region36
        $region35: #{audiomae_forward.33} parent=11 // pred_region
          _
        $region36: #{audiomae_forward.33} parent=11 // pred_fallthru
          _
        // Predicated region
        $region37: #{audiomae_forward.33} parent=11 // pred_check
          %p370 = pneg %p221
        $region38: #{audiomae_forward.33} parent=11 // pred_check_branch
          %372 = sbr.rel (%p370) target = $region40
        $region39: #{audiomae_forward.33} parent=11 // pred_region
          _
        $region40: #{audiomae_forward.33} parent=11 // pred_fallthru
          _
        // Predicated region
        $region41: #{audiomae_forward.33} parent=11 // pred_check
          %p373 = pneg %p242
        $region42: #{audiomae_forward.33} parent=11 // pred_check_branch
          %375 = sbr.rel (%p373) target = $region44
        $region43: #{audiomae_forward.33} parent=11 // pred_region
          _
        $region44: #{audiomae_forward.33} parent=11 // pred_fallthru
          _
      $region12: #{audiomae_forward.33} parent=5 // pred_fallthru
        _
      %p376 = scmp.lt.s32.totalorder %s21, 2
      // Predicated region
      $region45: #{audiomae_forward.33} parent=5 // pred_check
        %p377 = pneg %p376
      $region46: #{audiomae_forward.33} parent=5 // pred_check_branch
        %379 = sbr.rel (%p377) target = $region48
      $region47: #{audiomae_forward.33} parent=5 // pred_region
        // Predicated region
        $region49: #{audiomae_forward.33} parent=47 // pred_check
          %p380 = pneg %p53
        $region50: #{audiomae_forward.33} parent=47 // pred_check_branch
          %382 = sbr.rel (%p380) target = $region52
        $region51: #{audiomae_forward.33} parent=47 // pred_region
          %p383 = scmp.lt.s32.totalorder %s28, 1
          %s384 = scalar_select %p383, %s28, 1
          %s385 = smul.addr %s384, 2
          %s386 = smul.addr %s385, 8
          %s387 = scalar_lea.vmem %s0, %s386
        $region52: #{audiomae_forward.33} parent=47 // pred_fallthru
          _
        // Predicated region
        $region53: #{audiomae_forward.33} parent=47 // pred_check
          %p388 = pneg %p262
        $region54: #{audiomae_forward.33} parent=47 // pred_check_branch
          %390 = sbr.rel (%p388) target = $region56
        $region55: #{audiomae_forward.33} parent=47 // pred_region
          %p391 = scmp.lt.s32.totalorder %s28, 1
          %s392 = scalar_select %p391, %s28, 1
          %s393 = smul.addr %s392, 2
          %s394 = smul.addr %s393, 8
          %s395 = scalar_lea.vmem %s9, %s394
        $region56: #{audiomae_forward.33} parent=47 // pred_fallthru
          _
      $region48: #{audiomae_forward.33} parent=5 // pred_fallthru
        _
      %p396 = scmp.le.s32.totalorder 1, %s21
      %p397 = scmp.lt.s32.totalorder %s21, 3
      %p398 = pnand %p396, %p397
      %p399 = pneg %p398
      // Predicated region
      $region57: #{audiomae_forward.33} parent=5 // pred_check
        _
      $region58: #{audiomae_forward.33} parent=5 // pred_check_branch
        %401 = sbr.rel (%p398) target = $region60
      $region59: #{audiomae_forward.33} parent=5 // pred_region
        %s402 = ssub.s32 %s21, 1
        %p403 = scmp.lt.s32.totalorder %s30, 1
        %s404 = scalar_select %p403, %s30, 1
        %s405 = smul.addr %s404, 2
        %s406 = smul.addr %s405, 8
        %s407 = scalar_lea.vmem %s0, %s406
        %p408 = pneg %p59
        %p409 = pneg %p56
        %p410 = pneg %p80
        %p411 = pneg %p77
        %p412 = pneg %p101
        %p413 = pneg %p98
        %s414 = smul.u32 4, %s31
        %p415 = scmp.lt.s32.totalorder %s414, 3
        %s416 = scalar_select %p415, %s414, 3
        %s417 = smul.addr %s416, 4
        %s418 = scalar_lea.vmem %s3, %s417
        %p419 = pneg %p127
        %p420 = pneg %p124
        %s421 = smul.u32 4, %s31
        %p422 = scmp.lt.s32.totalorder %s421, 3
        %s423 = scalar_select %p422, %s421, 3
        %s424 = scalar_lea.vmem %s4, %s423
        %p425 = pneg %p153
        %p426 = pneg %p150
        %s427 = smul.u32 64, %s31
        %p428 = scmp.lt.s32.totalorder %s427, 63
        %s429 = scalar_select %p428, %s427, 63
        %s430 = smul.addr %s429, 4
        %s431 = scalar_lea.vmem %s5, %s430
        %p432 = pneg %p179
        %p433 = pneg %p176
        %p434 = pneg %p200
        %p435 = pneg %p197
        %p436 = pneg %p221
        %p437 = pneg %p218
        %p438 = pneg %p242
        %p439 = pneg %p239
        %p440 = scmp.lt.s32.totalorder %s30, 1
        %s441 = scalar_select %p440, %s30, 1
        %s442 = smul.addr %s441, 2
        %s443 = smul.addr %s442, 8
        %s444 = scalar_lea.vmem %s9, %s443
        %p445 = pneg %p268
        %p446 = pneg %p265
        %p447 = pneg %p294
        %p448 = pneg %p291
        %s449 = sand.u32 %s281, 1
        %s450 = scalar_lea.sflag [#allocation5], %s449
        %s451 = sand.u32 %s281, 1
        %s452 = smul.addr %s451, 16
        %s453 = scalar_lea.vmem [#allocation4], %s452
        %p454 = pneg %p320
        %p455 = pneg %p317
        %p456 = scmp.lt.s32.totalorder %s30, 1
        %s457 = scalar_select %p456, %s30, 1
        %s458 = smul.addr %s457, 2
        %s459 = smul.addr %s458, 8
        %s460 = scalar_lea.vmem %s11, %s459
        %p461 = scmp.lt.s32.totalorder %s30, 1
        %s462 = scalar_select %p461, %s30, 1
        %s463 = smul.addr %s462, 2
        %s464 = smul.addr %s463, 8
        %s465 = scalar_lea.vmem %s0, %s464
        %s466 = smul.u32 4, %s31
        %p467 = scmp.lt.s32.totalorder %s466, 3
        %s468 = scalar_select %p467, %s466, 3
        %s469 = smul.addr %s468, 4
        %s470 = scalar_lea.vmem %s3, %s469
        %s471 = smul.u32 4, %s31
        %s472 = smul.u32 4, %s31
        %p473 = scmp.lt.s32.totalorder %s472, 3
        %s474 = scalar_select %p473, %s472, 3
        %s475 = scalar_lea.vmem %s4, %s474
        %s476 = smul.u32 4, %s31
        %s477 = smul.u32 64, %s31
        %p478 = scmp.lt.s32.totalorder %s477, 63
        %s479 = scalar_select %p478, %s477, 63
        %s480 = smul.addr %s479, 4
        %s481 = scalar_lea.vmem %s5, %s480
        %s482 = smul.u32 64, %s31
        %p483 = scmp.lt.s32.totalorder %s30, 1
        %s484 = scalar_select %p483, %s30, 1
        %s485 = smul.addr %s484, 2
        %s486 = smul.addr %s485, 8
        %s487 = scalar_lea.vmem %s9, %s486
        %p488 = scmp.lt.s32.totalorder %s30, 1
        %s489 = scalar_select %p488, %s30, 1
        %s490 = smul.addr %s489, 2
        %s491 = smul.addr %s490, 8
        %s492 = scalar_lea.vmem %s11, %s491
        %p494 = scmp.eq.s32.totalorder %s31, 0
        // Predicated region
        $region61: #{audiomae_forward.33} parent=59 // pred_check
          %p495 = pneg %p494
        $region62: #{audiomae_forward.33} parent=59 // pred_check_branch
          %497 = sbr.rel (%p495) target = $region64
        $region63: #{audiomae_forward.33} parent=59 // pred_region
          %v498 = vld [vmem:[%s465] sm:$0xff]
          %v499 = vld [vmem:[%s465 + $0x8] sm:$0x1]
          %v500 = vld [vmem:[%s1] sm:$0x1]
          %v501 = vld [vmem:[%s2] sm:$0x1]
          %502 = vadd.xlane.f32.xlu0 %v498
          %v503 = vpop.xlane.xlu0 %502
          %vm504 = vcmask 1040384
          %v505 = vsel %vm504, %v499, 0.0
          %506 = vadd.xlane.f32.xlu0 %v505
          %v507 = vpop.xlane.xlu0 %506
          %v508 = vrcp.pop 128.0
          %v509 = vmul.f32 %v503, %v508
          %v510 = vmul.f32 %v507, %v508
          %v511 = vsub.f32 %v498, %v509
          %v512 = vsub.f32 %v499, %v510
          %v513 = vmul.f32 %v511, %v511
          %v514 = vmul.f32 %v512, %v512
          %515 = vadd.xlane.f32.xlu0 %v513
          %v516 = vpop.xlane.xlu0 %515
          %v517 = vsel %vm504, %v514, 0.0
          %518 = vadd.xlane.f32.xlu0 %v517
          %v519 = vpop.xlane.xlu0 %518
          %v520 = vmul.f32 %v516, %v508
          %v521 = vmul.f32 %v519, %v508
          %v522 = vadd.f32 %v520, 1e-06
          %v523 = vadd.f32 %v521, 1e-06
          %v524 = vrsqrt.pop %v522
          %v525 = vrsqrt.pop %v523
          %v526 = vmul.f32 %v511, %v524
          %v527 = vmul.f32 %v512, %v525
          %v529 = vlaneseq
          %v530 = vshrl.u32 %v529, 7
          %v531 = vsub.s32 0, %v530
          %v532 = vrot.slane %v500, %v531
          %v534 = vmul.f32 %v526, %v532
          %v535 = vmul.f32 %v527, %v532
          %v537 = vlaneseq
          %v538 = vshrl.u32 %v537, 7
          %v539 = vsub.s32 0, %v538
          %v540 = vrot.slane %v501, %v539
          %v542 = vadd.f32 %v534, %v540
          %v543 = vadd.f32 %v535, %v540
          %v544 = vpack.c.bf16 %v543, %v542
          %v546 = vunpack.c.l.b16 %v544
          %v547 = vunpack.c.h.b16 %v544
          %v548 = vpack.c.b16 %v546, %v546
          %v549 = vpack.c.b16 %v547, %v547
          %552 = vst [vmem:[#allocation2] sm:$0xf] %v548
          %vm553 = vcmask 1040384
          %vm554 = vsmask.f32 256
          %vm555 = vmand %vm553, %vm554
          %v556 = vld [vmem:[#allocation2 + $0x4] sm:$0x1]
          %v557 = vsel %vm555, %v549, %v556
          %558 = vst [vmem:[#allocation2 + $0x4] sm:$0x1] %v557
          %559 = vst [vmem:[#allocation3] sm:$0xff] 0.0
          %560 = vst [vmem:[#allocation3 + $0x8] sm:$0x1] 0.0
        $region64: #{audiomae_forward.33} parent=59 // pred_fallthru
          _
        %v561 = vld [vmem:[#allocation2] sm:$0xf]
        %v562 = vld [vmem:[#allocation2 + $0x4] sm:$0x1]
        %v563 = vld [vmem:[%s470] sm:$0xff]
        %v564 = vld [vmem:[%s470 + $0x8] sm:$0xff]
        %v565 = vld [vmem:[%s470 + $0x10] sm:$0xff]
        %v566 = vld [vmem:[%s470 + $0x18] sm:$0xff]
        %v567 = vld [vmem:[%s470 + $0x20] sm:$0xff]
        %v568 = vld [vmem:[%s470 + $0x28] sm:$0xff]
        %v569 = vld [vmem:[%s470 + $0x30] sm:$0xff]
        %v570 = vld [vmem:[%s470 + $0x38] sm:$0xff]
        %v571 = vld [vmem:[%s470 + $0x40] sm:$0xff]
        %v572 = vld [vmem:[%s470 + $0x48] sm:$0xff]
        %v573 = vld [vmem:[%s470 + $0x50] sm:$0xff]
        %v574 = vld [vmem:[%s470 + $0x58] sm:$0xff]
        %v575 = vld [vmem:[%s470 + $0x60] sm:$0xff]
        %v576 = vld [vmem:[%s470 + $0x68] sm:$0xff]
        %v577 = vld [vmem:[%s470 + $0x70] sm:$0xff]
        %v578 = vld [vmem:[%s470 + $0x78] sm:$0xff]
        %v579 = vld [vmem:[%s470 + $0x80] sm:$0xff]
        %v580 = vld [vmem:[%s470 + $0x88] sm:$0xff]
        %v581 = vld [vmem:[%s470 + $0x90] sm:$0xff]
        %v582 = vld [vmem:[%s470 + $0x98] sm:$0xff]
        %v583 = vld [vmem:[%s470 + $0xa0] sm:$0xff]
        %v584 = vld [vmem:[%s470 + $0xa8] sm:$0xff]
        %v585 = vld [vmem:[%s470 + $0xb0] sm:$0xff]
        %v586 = vld [vmem:[%s470 + $0xb8] sm:$0xff]
        %v587 = vld [vmem:[%s470 + $0xc0] sm:$0xff]
        %v588 = vld [vmem:[%s470 + $0xc8] sm:$0xff]
        %v589 = vld [vmem:[%s470 + $0xd0] sm:$0xff]
        %v590 = vld [vmem:[%s470 + $0xd8] sm:$0xff]
        %v591 = vld [vmem:[%s470 + $0xe0] sm:$0xff]
        %v592 = vld [vmem:[%s470 + $0xe8] sm:$0xff]
        %v593 = vld [vmem:[%s470 + $0xf0] sm:$0xff]
        %v594 = vld [vmem:[%s470 + $0xf8] sm:$0xff]
        %v595 = vld [vmem:[%s475] sm:$0xf]
        %v597 = vlaneseq
        %v598 = vshrl.u32 %v597, 7
        %v599 = vsub.s32 0, %v598
        %v600 = vrot.slane %v595, %v599
        %v601 = vlaneseq
        %v602 = vshrl.u32 %v601, 7
        %v603 = vsub.s32 1, %v602
        %v604 = vrot.slane %v595, %v603
        %v605 = vlaneseq
        %v606 = vshrl.u32 %v605, 7
        %v607 = vsub.s32 2, %v606
        %v608 = vrot.slane %v595, %v607
        %v609 = vlaneseq
        %v610 = vshrl.u32 %v609, 7
        %v611 = vsub.s32 3, %v610
        %v612 = vrot.slane %v595, %v611
        %v619 = vunpack.c.l.b16 %v561
        %v620 = vunpack.c.l.b16 %v562
        %v621 = vpack.c.b16 %v620, %v619
        %v655 = vunpack.c.l.b16 %v563
        %v656 = vunpack.c.h.b16 %v563
        %v657 = vunpack.c.l.b16 %v564
        %v658 = vunpack.c.h.b16 %v564
        %v659 = vunpack.c.l.b16 %v565
        %v660 = vunpack.c.h.b16 %v565
        %v661 = vunpack.c.l.b16 %v566
        %v662 = vunpack.c.h.b16 %v566
        %v663 = vunpack.c.l.b16 %v567
        %v664 = vunpack.c.h.b16 %v567
        %v665 = vunpack.c.l.b16 %v568
        %v666 = vunpack.c.h.b16 %v568
        %v667 = vunpack.c.l.b16 %v569
        %v668 = vunpack.c.h.b16 %v569
        %v669 = vunpack.c.l.b16 %v570
        %v670 = vunpack.c.h.b16 %v570
        %v671 = vunpack.c.l.b16 %v571
        %v672 = vunpack.c.h.b16 %v571
        %v673 = vunpack.c.l.b16 %v572
        %v674 = vunpack.c.h.b16 %v572
        %v675 = vunpack.c.l.b16 %v573
        %v676 = vunpack.c.h.b16 %v573
        %v677 = vunpack.c.l.b16 %v574
        %v678 = vunpack.c.h.b16 %v574
        %v679 = vunpack.c.l.b16 %v575
        %v680 = vunpack.c.h.b16 %v575
        %v681 = vunpack.c.l.b16 %v576
        %v682 = vunpack.c.h.b16 %v576
        %v683 = vunpack.c.l.b16 %v577
        %v684 = vunpack.c.h.b16 %v577
        %v685 = vunpack.c.l.b16 %v578
        %v686 = vunpack.c.h.b16 %v578
        %v687 = vunpack.c.l.b16 %v579
        %v688 = vunpack.c.h.b16 %v579
        %v689 = vunpack.c.l.b16 %v580
        %v690 = vunpack.c.h.b16 %v580
        %v691 = vunpack.c.l.b16 %v581
        %v692 = vunpack.c.h.b16 %v581
        %v693 = vunpack.c.l.b16 %v582
        %v694 = vunpack.c.h.b16 %v582
        %v695 = vunpack.c.l.b16 %v583
        %v696 = vunpack.c.h.b16 %v583
        %v697 = vunpack.c.l.b16 %v584
        %v698 = vunpack.c.h.b16 %v584
        %v699 = vunpack.c.l.b16 %v585
        %v700 = vunpack.c.h.b16 %v585
        %v701 = vunpack.c.l.b16 %v586
        %v702 = vunpack.c.h.b16 %v586
        %v703 = vunpack.c.l.b16 %v587
        %v704 = vunpack.c.h.b16 %v587
        %v705 = vunpack.c.l.b16 %v588
        %v706 = vunpack.c.h.b16 %v588
        %v707 = vunpack.c.l.b16 %v589
        %v708 = vunpack.c.h.b16 %v589
        %v709 = vunpack.c.l.b16 %v590
        %v710 = vunpack.c.h.b16 %v590
        %v711 = vunpack.c.l.b16 %v591
        %v712 = vunpack.c.h.b16 %v591
        %v713 = vunpack.c.l.b16 %v592
        %v714 = vunpack.c.h.b16 %v592
        %v715 = vunpack.c.l.b16 %v593
        %v716 = vunpack.c.h.b16 %v593
        %v717 = vunpack.c.l.b16 %v594
        %v718 = vunpack.c.h.b16 %v594
        %v719 = vpack.c.b16 %v659, %v655
        %v720 = vpack.c.b16 %v660, %v656
        %v721 = vpack.c.b16 %v661, %v657
        %v722 = vpack.c.b16 %v662, %v658
        %v723 = vpack.c.b16 %v667, %v663
        %v724 = vpack.c.b16 %v668, %v664
        %v725 = vpack.c.b16 %v669, %v665
        %v726 = vpack.c.b16 %v670, %v666
        %v727 = vpack.c.b16 %v675, %v671
        %v728 = vpack.c.b16 %v676, %v672
        %v729 = vpack.c.b16 %v677, %v673
        %v730 = vpack.c.b16 %v678, %v674
        %v731 = vpack.c.b16 %v683, %v679
        %v732 = vpack.c.b16 %v684, %v680
        %v733 = vpack.c.b16 %v685, %v681
        %v734 = vpack.c.b16 %v686, %v682
        %v735 = vpack.c.b16 %v691, %v687
        %v736 = vpack.c.b16 %v692, %v688
        %v737 = vpack.c.b16 %v693, %v689
        %v738 = vpack.c.b16 %v694, %v690
        %v739 = vpack.c.b16 %v699, %v695
        %v740 = vpack.c.b16 %v700, %v696
        %v741 = vpack.c.b16 %v701, %v697
        %v742 = vpack.c.b16 %v702, %v698
        %v743 = vpack.c.b16 %v707, %v703
        %v744 = vpack.c.b16 %v708, %v704
        %v745 = vpack.c.b16 %v709, %v705
        %v746 = vpack.c.b16 %v710, %v706
        %v747 = vpack.c.b16 %v715, %v711
        %v748 = vpack.c.b16 %v716, %v712
        %v749 = vpack.c.b16 %v717, %v713
        %v750 = vpack.c.b16 %v718, %v714
        %783 = vmatprep.subr.bf16.mxu0 %v720
        %784 = vmatpush1.bf16.msra.mxu0 %v719
        %785 = vmatprep.subr.bf16.mxu0 %v724
        %786 = vmatpush1.bf16.msra.mxu0 %v723
        %787 = vmatprep.subr.bf16.mxu0 %v728
        %788 = vmatpush1.bf16.msra.mxu0 %v727
        %789 = vmatprep.subr.bf16.mxu0 %v732
        %790 = vmatpush1.bf16.msra.mxu0 %v731
        %791 = vmatprep.subr.bf16.mxu0 %v736
        %792 = vmatpush1.bf16.msra.mxu0 %v735
        %793 = vmatprep.subr.bf16.mxu0 %v740
        %794 = vmatpush1.bf16.msra.mxu0 %v739
        %795 = vmatprep.subr.bf16.mxu0 %v744
        %796 = vmatpush1.bf16.msra.mxu0 %v743
        %797 = vmatprep.subr.bf16.mxu0 %v748
        %798 = vmatpush1.bf16.msra.mxu0 %v747
        %799 = vmatprep.subr.bf16.mxu0 0
        %800 = vmatpush1.bf16.msra.mxu0 0
        %801 = vmatprep.subr.bf16.mxu0 0
        %802 = vmatpush1.bf16.msra.mxu0 0
        %803 = vmatprep.subr.bf16.mxu0 0
        %804 = vmatpush1.bf16.msra.mxu0 0
        %805 = vmatprep.subr.bf16.mxu0 0
        %806 = vmatpush1.bf16.msra.mxu0 0
        %807 = vmatprep.subr.bf16.mxu0 0
        %808 = vmatpush1.bf16.msra.mxu0 0
        %809 = vmatprep.subr.bf16.mxu0 0
        %810 = vmatpush1.bf16.msra.mxu0 0
        %811 = vmatprep.subr.bf16.mxu0 0
        %812 = vmatpush1.bf16.msra.mxu0 0
        %813 = vmatprep.subr.bf16.mxu0 0
        %814 = vmatpush1.bf16.msra.mxu0 0
        %815 = vmatprep.mubr.bf16.mxu0 0
        %816 = vmatmul.mubr.bf16.gmra.mrb[0].mxu0 %v621
        %v817 = vpop.f32.mrb[0].mxu0
        %v818 = vadd.f32 %v600, %v817
        %v819 = vpop.f32.mrb[0].mxu0
        %v820 = vadd.f32 %v604, %v819
        %v821 = vpop.f32.mrb[0].mxu0
        %v822 = vadd.f32 %v600, %v821
        %v823 = vpop.f32.mrb[0].mxu0
        %v824 = vadd.f32 %v604, %v823
        %825 = vdwg.mxu0
        %826 = vmatprep.subr.bf16.mxu0 %v722
        %827 = vmatpush1.bf16.msra.mxu0 %v721
        %828 = vmatprep.subr.bf16.mxu0 %v726
        %829 = vmatpush1.bf16.msra.mxu0 %v725
        %830 = vmatprep.subr.bf16.mxu0 %v730
        %831 = vmatpush1.bf16.msra.mxu0 %v729
        %832 = vmatprep.subr.bf16.mxu0 %v734
        %833 = vmatpush1.bf16.msra.mxu0 %v733
        %834 = vmatprep.subr.bf16.mxu0 %v738
        %835 = vmatpush1.bf16.msra.mxu0 %v737
        %836 = vmatprep.subr.bf16.mxu0 %v742
        %837 = vmatpush1.bf16.msra.mxu0 %v741
        %838 = vmatprep.subr.bf16.mxu0 %v746
        %839 = vmatpush1.bf16.msra.mxu0 %v745
        %840 = vmatprep.subr.bf16.mxu0 %v750
        %841 = vmatpush1.bf16.msra.mxu0 %v749
        %842 = vmatprep.subr.bf16.mxu0 0
        %843 = vmatpush1.bf16.msra.mxu0 0
        %844 = vmatprep.subr.bf16.mxu0 0
        %845 = vmatpush1.bf16.msra.mxu0 0
        %846 = vmatprep.subr.bf16.mxu0 0
        %847 = vmatpush1.bf16.msra.mxu0 0
        %848 = vmatprep.subr.bf16.mxu0 0
        %849 = vmatpush1.bf16.msra.mxu0 0
        %850 = vmatprep.subr.bf16.mxu0 0
        %851 = vmatpush1.bf16.msra.mxu0 0
        %852 = vmatprep.subr.bf16.mxu0 0
        %853 = vmatpush1.bf16.msra.mxu0 0
        %854 = vmatprep.subr.bf16.mxu0 0
        %855 = vmatpush1.bf16.msra.mxu0 0
        %856 = vmatprep.subr.bf16.mxu0 0
        %857 = vmatpush1.bf16.msra.mxu0 0
        %858 = vmatprep.mubr.bf16.mxu0 0
        %859 = vmatmul.mubr.bf16.gmra.mrb[0].mxu0 %v621
        %v860 = vpop.f32.mrb[0].mxu0
        %v861 = vadd.f32 %v608, %v860
        %v862 = vpop.f32.mrb[0].mxu0
        %v863 = vadd.f32 %v612, %v862
        %v864 = vpop.f32.mrb[0].mxu0
        %v865 = vadd.f32 %v608, %v864
        %v866 = vpop.f32.mrb[0].mxu0
        %v867 = vadd.f32 %v612, %v866
        %868 = vdwg.mxu0
        %v869 = vmul.f32 %v818, %v818
        %v870 = vmul.f32 %v820, %v820
        %v871 = vmul.f32 %v861, %v861
        %v872 = vmul.f32 %v863, %v863
        %v873 = vmul.f32 %v822, %v822
        %v874 = vmul.f32 %v824, %v824
        %v875 = vmul.f32 %v865, %v865
        %v876 = vmul.f32 %v867, %v867
        %v877 = vmul.f32 %v818, %v869
        %v878 = vmul.f32 %v820, %v870
        %v879 = vmul.f32 %v861, %v871
        %v880 = vmul.f32 %v863, %v872
        %v881 = vmul.f32 %v822, %v873
        %v882 = vmul.f32 %v824, %v874
        %v883 = vmul.f32 %v865, %v875
        %v884 = vmul.f32 %v867, %v876
        %v885 = vmul.f32 %v877, 0.044715
        %v886 = vmul.f32 %v878, 0.044715
        %v887 = vmul.f32 %v879, 0.044715
        %v888 = vmul.f32 %v880, 0.044715
        %v889 = vmul.f32 %v881, 0.044715
        %v890 = vmul.f32 %v882, 0.044715
        %v891 = vmul.f32 %v883, 0.044715
        %v892 = vmul.f32 %v884, 0.044715
        %v893 = vadd.f32 %v818, %v885
        %v894 = vadd.f32 %v820, %v886
        %v895 = vadd.f32 %v861, %v887
        %v896 = vadd.f32 %v863, %v888
        %v897 = vadd.f32 %v822, %v889
        %v898 = vadd.f32 %v824, %v890
        %v899 = vadd.f32 %v865, %v891
        %v900 = vadd.f32 %v867, %v892
        %v901 = vmul.f32 %v893, 0.7978846
        %v902 = vmul.f32 %v894, 0.7978846
        %v903 = vmul.f32 %v895, 0.7978846
        %v904 = vmul.f32 %v896, 0.7978846
        %v905 = vmul.f32 %v897, 0.7978846
        %v906 = vmul.f32 %v898, 0.7978846
        %v907 = vmul.f32 %v899, 0.7978846
        %v908 = vmul.f32 %v900, 0.7978846
        %v909 = vtanh.pop %v901
        %v910 = vtanh.pop %v902
        %v911 = vtanh.pop %v903
        %v912 = vtanh.pop %v904
        %v913 = vtanh.pop %v905
        %v914 = vtanh.pop %v906
        %v915 = vtanh.pop %v907
        %v916 = vtanh.pop %v908
        %v917 = vadd.f32 %v909, 1.0
        %v918 = vadd.f32 %v910, 1.0
        %v919 = vadd.f32 %v911, 1.0
        %v920 = vadd.f32 %v912, 1.0
        %v921 = vadd.f32 %v913, 1.0
        %v922 = vadd.f32 %v914, 1.0
        %v923 = vadd.f32 %v915, 1.0
        %v924 = vadd.f32 %v916, 1.0
        %v925 = vmul.f32 %v917, 0.5
        %v926 = vmul.f32 %v918, 0.5
        %v927 = vmul.f32 %v919, 0.5
        %v928 = vmul.f32 %v920, 0.5
        %v929 = vmul.f32 %v921, 0.5
        %v930 = vmul.f32 %v922, 0.5
        %v931 = vmul.f32 %v923, 0.5
        %v932 = vmul.f32 %v924, 0.5
        %v933 = vmul.f32 %v818, %v925
        %v934 = vmul.f32 %v820, %v926
        %v935 = vmul.f32 %v861, %v927
        %v936 = vmul.f32 %v863, %v928
        %v937 = vmul.f32 %v822, %v929
        %v938 = vmul.f32 %v824, %v930
        %v939 = vmul.f32 %v865, %v931
        %v940 = vmul.f32 %v867, %v932
        %v941 = vld [vmem:[#allocation3] sm:$0xff]
        %v942 = vld [vmem:[#allocation3 + $0x8] sm:$0x1]
        %v943 = vpack.c.bf16 %v937, %v933
        %v944 = vpack.c.bf16 %v938, %v934
        %v945 = vpack.c.bf16 %v939, %v935
        %v946 = vpack.c.bf16 %v940, %v936
        %v947 = vld [vmem:[%s481] sm:$0xf]
        %v948 = vld [vmem:[%s481 + $0x4] sm:$0xf]
        %v949 = vld [vmem:[%s481 + $0x8] sm:$0xf]
        %v950 = vld [vmem:[%s481 + $0xc] sm:$0xf]
        %v951 = vld [vmem:[%s481 + $0x10] sm:$0xf]
        %v952 = vld [vmem:[%s481 + $0x14] sm:$0xf]
        %v953 = vld [vmem:[%s481 + $0x18] sm:$0xf]
        %v954 = vld [vmem:[%s481 + $0x1c] sm:$0xf]
        %v955 = vld [vmem:[%s481 + $0x20] sm:$0xf]
        %v956 = vld [vmem:[%s481 + $0x24] sm:$0xf]
        %v957 = vld [vmem:[%s481 + $0x28] sm:$0xf]
        %v958 = vld [vmem:[%s481 + $0x2c] sm:$0xf]
        %v959 = vld [vmem:[%s481 + $0x30] sm:$0xf]
        %v960 = vld [vmem:[%s481 + $0x34] sm:$0xf]
        %v961 = vld [vmem:[%s481 + $0x38] sm:$0xf]
        %v962 = vld [vmem:[%s481 + $0x3c] sm:$0xf]
        %v963 = vld [vmem:[%s481 + $0x40] sm:$0xf]
        %v964 = vld [vmem:[%s481 + $0x44] sm:$0xf]
        %v965 = vld [vmem:[%s481 + $0x48] sm:$0xf]
        %v966 = vld [vmem:[%s481 + $0x4c] sm:$0xf]
        %v967 = vld [vmem:[%s481 + $0x50] sm:$0xf]
        %v968 = vld [vmem:[%s481 + $0x54] sm:$0xf]
        %v969 = vld [vmem:[%s481 + $0x58] sm:$0xf]
        %v970 = vld [vmem:[%s481 + $0x5c] sm:$0xf]
        %v971 = vld [vmem:[%s481 + $0x60] sm:$0xf]
        %v972 = vld [vmem:[%s481 + $0x64] sm:$0xf]
        %v973 = vld [vmem:[%s481 + $0x68] sm:$0xf]
        %v974 = vld [vmem:[%s481 + $0x6c] sm:$0xf]
        %v975 = vld [vmem:[%s481 + $0x70] sm:$0xf]
        %v976 = vld [vmem:[%s481 + $0x74] sm:$0xf]
        %v977 = vld [vmem:[%s481 + $0x78] sm:$0xf]
        %v978 = vld [vmem:[%s481 + $0x7c] sm:$0xf]
        %v979 = vld [vmem:[%s481 + $0x80] sm:$0xf]
        %v980 = vld [vmem:[%s481 + $0x84] sm:$0xf]
        %v981 = vld [vmem:[%s481 + $0x88] sm:$0xf]
        %v982 = vld [vmem:[%s481 + $0x8c] sm:$0xf]
        %v983 = vld [vmem:[%s481 + $0x90] sm:$0xf]
        %v984 = vld [vmem:[%s481 + $0x94] sm:$0xf]
        %v985 = vld [vmem:[%s481 + $0x98] sm:$0xf]
        %v986 = vld [vmem:[%s481 + $0x9c] sm:$0xf]
        %v987 = vld [vmem:[%s481 + $0xa0] sm:$0xf]
        %v988 = vld [vmem:[%s481 + $0xa4] sm:$0xf]
        %v989 = vld [vmem:[%s481 + $0xa8] sm:$0xf]
        %v990 = vld [vmem:[%s481 + $0xac] sm:$0xf]
        %v991 = vld [vmem:[%s481 + $0xb0] sm:$0xf]
        %v992 = vld [vmem:[%s481 + $0xb4] sm:$0xf]
        %v993 = vld [vmem:[%s481 + $0xb8] sm:$0xf]
        %v994 = vld [vmem:[%s481 + $0xbc] sm:$0xf]
        %v995 = vld [vmem:[%s481 + $0xc0] sm:$0xf]
        %v996 = vld [vmem:[%s481 + $0xc4] sm:$0xf]
        %v997 = vld [vmem:[%s481 + $0xc8] sm:$0xf]
        %v998 = vld [vmem:[%s481 + $0xcc] sm:$0xf]
        %v999 = vld [vmem:[%s481 + $0xd0] sm:$0xf]
        %v1000 = vld [vmem:[%s481 + $0xd4] sm:$0xf]
        %v1001 = vld [vmem:[%s481 + $0xd8] sm:$0xf]
        %v1002 = vld [vmem:[%s481 + $0xdc] sm:$0xf]
        %v1003 = vld [vmem:[%s481 + $0xe0] sm:$0xf]
        %v1004 = vld [vmem:[%s481 + $0xe4] sm:$0xf]
        %v1005 = vld [vmem:[%s481 + $0xe8] sm:$0xf]
        %v1006 = vld [vmem:[%s481 + $0xec] sm:$0xf]
        %v1007 = vld [vmem:[%s481 + $0xf0] sm:$0xf]
        %v1008 = vld [vmem:[%s481 + $0xf4] sm:$0xf]
        %v1009 = vld [vmem:[%s481 + $0xf8] sm:$0xf]
        %v1010 = vld [vmem:[%s481 + $0xfc] sm:$0xf]
        %v1075 = vunpack.c.l.b16 %v947
        %v1076 = vunpack.c.l.b16 %v948
        %v1077 = vunpack.c.l.b16 %v949
        %v1078 = vunpack.c.l.b16 %v950
        %v1079 = vunpack.c.l.b16 %v951
        %v1080 = vunpack.c.l.b16 %v952
        %v1081 = vunpack.c.l.b16 %v953
        %v1082 = vunpack.c.l.b16 %v954
        %v1083 = vunpack.c.l.b16 %v955
        %v1084 = vunpack.c.l.b16 %v956
        %v1085 = vunpack.c.l.b16 %v957
        %v1086 = vunpack.c.l.b16 %v958
        %v1087 = vunpack.c.l.b16 %v959
        %v1088 = vunpack.c.l.b16 %v960
        %v1089 = vunpack.c.l.b16 %v961
        %v1090 = vunpack.c.l.b16 %v962
        %v1091 = vunpack.c.l.b16 %v963
        %v1092 = vunpack.c.l.b16 %v964
        %v1093 = vunpack.c.l.b16 %v965
        %v1094 = vunpack.c.l.b16 %v966
        %v1095 = vunpack.c.l.b16 %v967
        %v1096 = vunpack.c.l.b16 %v968
        %v1097 = vunpack.c.l.b16 %v969
        %v1098 = vunpack.c.l.b16 %v970
        %v1099 = vunpack.c.l.b16 %v971
        %v1100 = vunpack.c.l.b16 %v972
        %v1101 = vunpack.c.l.b16 %v973
        %v1102 = vunpack.c.l.b16 %v974
        %v1103 = vunpack.c.l.b16 %v975
        %v1104 = vunpack.c.l.b16 %v976
        %v1105 = vunpack.c.l.b16 %v977
        %v1106 = vunpack.c.l.b16 %v978
        %v1107 = vunpack.c.l.b16 %v979
        %v1108 = vunpack.c.l.b16 %v980
        %v1109 = vunpack.c.l.b16 %v981
        %v1110 = vunpack.c.l.b16 %v982
        %v1111 = vunpack.c.l.b16 %v983
        %v1112 = vunpack.c.l.b16 %v984
        %v1113 = vunpack.c.l.b16 %v985
        %v1114 = vunpack.c.l.b16 %v986
        %v1115 = vunpack.c.l.b16 %v987
        %v1116 = vunpack.c.l.b16 %v988
        %v1117 = vunpack.c.l.b16 %v989
        %v1118 = vunpack.c.l.b16 %v990
        %v1119 = vunpack.c.l.b16 %v991
        %v1120 = vunpack.c.l.b16 %v992
        %v1121 = vunpack.c.l.b16 %v993
        %v1122 = vunpack.c.l.b16 %v994
        %v1123 = vunpack.c.l.b16 %v995
        %v1124 = vunpack.c.l.b16 %v996
        %v1125 = vunpack.c.l.b16 %v997
        %v1126 = vunpack.c.l.b16 %v998
        %v1127 = vunpack.c.l.b16 %v999
        %v1128 = vunpack.c.l.b16 %v1000
        %v1129 = vunpack.c.l.b16 %v1001
        %v1130 = vunpack.c.l.b16 %v1002
        %v1131 = vunpack.c.l.b16 %v1003
        %v1132 = vunpack.c.l.b16 %v1004
        %v1133 = vunpack.c.l.b16 %v1005
        %v1134 = vunpack.c.l.b16 %v1006
        %v1135 = vunpack.c.l.b16 %v1007
        %v1136 = vunpack.c.l.b16 %v1008
        %v1137 = vunpack.c.l.b16 %v1009
        %v1138 = vunpack.c.l.b16 %v1010
        %v1139 = vpack.c.b16 %v1076, %v1075
        %v1140 = vpack.c.b16 %v1078, %v1077
        %v1141 = vpack.c.b16 %v1080, %v1079
        %v1142 = vpack.c.b16 %v1082, %v1081
        %v1143 = vpack.c.b16 %v1084, %v1083
        %v1144 = vpack.c.b16 %v1086, %v1085
        %v1145 = vpack.c.b16 %v1088, %v1087
        %v1146 = vpack.c.b16 %v1090, %v1089
        %v1147 = vpack.c.b16 %v1092, %v1091
        %v1148 = vpack.c.b16 %v1094, %v1093
        %v1149 = vpack.c.b16 %v1096, %v1095
        %v1150 = vpack.c.b16 %v1098, %v1097
        %v1151 = vpack.c.b16 %v1100, %v1099
        %v1152 = vpack.c.b16 %v1102, %v1101
        %v1153 = vpack.c.b16 %v1104, %v1103
        %v1154 = vpack.c.b16 %v1106, %v1105
        %v1155 = vpack.c.b16 %v1108, %v1107
        %v1156 = vpack.c.b16 %v1110, %v1109
        %v1157 = vpack.c.b16 %v1112, %v1111
        %v1158 = vpack.c.b16 %v1114, %v1113
        %v1159 = vpack.c.b16 %v1116, %v1115
        %v1160 = vpack.c.b16 %v1118, %v1117
        %v1161 = vpack.c.b16 %v1120, %v1119
        %v1162 = vpack.c.b16 %v1122, %v1121
        %v1163 = vpack.c.b16 %v1124, %v1123
        %v1164 = vpack.c.b16 %v1126, %v1125
        %v1165 = vpack.c.b16 %v1128, %v1127
        %v1166 = vpack.c.b16 %v1130, %v1129
        %v1167 = vpack.c.b16 %v1132, %v1131
        %v1168 = vpack.c.b16 %v1134, %v1133
        %v1169 = vpack.c.b16 %v1136, %v1135
        %v1170 = vpack.c.b16 %v1138, %v1137
        %1203 = vmatprep.subr.bf16.mxu0 0
        %1204 = vmatpush1.bf16.msra.mxu0 %v1139
        %1205 = vmatprep.subr.bf16.mxu0 0
        %1206 = vmatpush1.bf16.msra.mxu0 %v1140
        %1207 = vmatprep.subr.bf16.mxu0 0
        %1208 = vmatpush1.bf16.msra.mxu0 %v1141
        %1209 = vmatprep.subr.bf16.mxu0 0
        %1210 = vmatpush1.bf16.msra.mxu0 %v1142
        %1211 = vmatprep.subr.bf16.mxu0 0
        %1212 = vmatpush1.bf16.msra.mxu0 %v1143
        %1213 = vmatprep.subr.bf16.mxu0 0
        %1214 = vmatpush1.bf16.msra.mxu0 %v1144
        %1215 = vmatprep.subr.bf16.mxu0 0
        %1216 = vmatpush1.bf16.msra.mxu0 %v1145
        %1217 = vmatprep.subr.bf16.mxu0 0
        %1218 = vmatpush1.bf16.msra.mxu0 %v1146
        %1219 = vmatprep.subr.bf16.mxu0 0
        %1220 = vmatpush1.bf16.msra.mxu0 %v1147
        %1221 = vmatprep.subr.bf16.mxu0 0
        %1222 = vmatpush1.bf16.msra.mxu0 %v1148
        %1223 = vmatprep.subr.bf16.mxu0 0
        %1224 = vmatpush1.bf16.msra.mxu0 %v1149
        %1225 = vmatprep.subr.bf16.mxu0 0
        %1226 = vmatpush1.bf16.msra.mxu0 %v1150
        %1227 = vmatprep.subr.bf16.mxu0 0
        %1228 = vmatpush1.bf16.msra.mxu0 %v1151
        %1229 = vmatprep.subr.bf16.mxu0 0
        %1230 = vmatpush1.bf16.msra.mxu0 %v1152
        %1231 = vmatprep.subr.bf16.mxu0 0
        %1232 = vmatpush1.bf16.msra.mxu0 %v1153
        %1233 = vmatprep.subr.bf16.mxu0 0
        %1234 = vmatpush1.bf16.msra.mxu0 %v1154
        %1235 = vmatprep.mubr.bf16.mxu0 %v944
        %1236 = vmatmul.mubr.bf16.gmra.mrb[0].mxu0 %v943
        %v1237 = vpop.f32.mrb[0].mxu0
        %v1238 = vadd.f32 0.0, %v1237
        %v1239 = vpop.f32.mrb[0].mxu0
        %v1240 = vpop.f32.mrb[0].mxu0
        %v1241 = vadd.f32 0.0, %v1240
        %v1242 = vpop.f32.mrb[0].mxu0
        %1243 = vdwg.mxu0
        %1244 = vmatprep.subr.bf16.mxu0 0
        %1245 = vmatpush1.bf16.msra.mxu0 %v1155
        %1246 = vmatprep.subr.bf16.mxu0 0
        %1247 = vmatpush1.bf16.msra.mxu0 %v1156
        %1248 = vmatprep.subr.bf16.mxu0 0
        %1249 = vmatpush1.bf16.msra.mxu0 %v1157
        %1250 = vmatprep.subr.bf16.mxu0 0
        %1251 = vmatpush1.bf16.msra.mxu0 %v1158
        %1252 = vmatprep.subr.bf16.mxu0 0
        %1253 = vmatpush1.bf16.msra.mxu0 %v1159
        %1254 = vmatprep.subr.bf16.mxu0 0
        %1255 = vmatpush1.bf16.msra.mxu0 %v1160
        %1256 = vmatprep.subr.bf16.mxu0 0
        %1257 = vmatpush1.bf16.msra.mxu0 %v1161
        %1258 = vmatprep.subr.bf16.mxu0 0
        %1259 = vmatpush1.bf16.msra.mxu0 %v1162
        %1260 = vmatprep.subr.bf16.mxu0 0
        %1261 = vmatpush1.bf16.msra.mxu0 %v1163
        %1262 = vmatprep.subr.bf16.mxu0 0
        %1263 = vmatpush1.bf16.msra.mxu0 %v1164
        %1264 = vmatprep.subr.bf16.mxu0 0
        %1265 = vmatpush1.bf16.msra.mxu0 %v1165
        %1266 = vmatprep.subr.bf16.mxu0 0
        %1267 = vmatpush1.bf16.msra.mxu0 %v1166
        %1268 = vmatprep.subr.bf16.mxu0 0
        %1269 = vmatpush1.bf16.msra.mxu0 %v1167
        %1270 = vmatprep.subr.bf16.mxu0 0
        %1271 = vmatpush1.bf16.msra.mxu0 %v1168
        %1272 = vmatprep.subr.bf16.mxu0 0
        %1273 = vmatpush1.bf16.msra.mxu0 %v1169
        %1274 = vmatprep.subr.bf16.mxu0 0
        %1275 = vmatpush1.bf16.msra.mxu0 %v1170
        %1276 = vmatprep.mubr.bf16.mxu0 %v946
        %1277 = vmatmul.mubr.bf16.gmra.mrb[0].mxu0 %v945
        %v1278 = vpop.f32.mrb[0].mxu0
        %v1279 = vadd.f32 %v1238, %v1278
        %v1280 = vpop.f32.mrb[0].mxu0
        %v1281 = vpop.f32.mrb[0].mxu0
        %v1282 = vadd.f32 %v1241, %v1281
        %v1283 = vpop.f32.mrb[0].mxu0
        %1284 = vdwg.mxu0
        %v1285 = vadd.f32 %v941, %v1279
        %v1286 = vadd.f32 %v942, %v1282
        %1287 = vst [vmem:[#allocation3] sm:$0xff] %v1285
        %1288 = vst [vmem:[#allocation3 + $0x8] sm:$0x1] %v1286
        // Predicated region
        $region65: #{audiomae_forward.33} parent=59 // pred_check
          %p1289 = pneg %p494
        $region66: #{audiomae_forward.33} parent=59 // pred_check_branch
          %1291 = sbr.rel (%p1289) target = $region68
        $region67: #{audiomae_forward.33} parent=59 // pred_region
          %v1292 = vld [vmem:[%s465] sm:$0xff]
          %v1293 = vld [vmem:[%s465 + $0x8] sm:$0x1]
          %v1294 = vld [vmem:[#allocation3] sm:$0xff]
          %v1295 = vld [vmem:[#allocation3 + $0x8] sm:$0x1]
          %v1296 = vadd.f32 %v1292, %v1294
          %v1297 = vadd.f32 %v1293, %v1295
          %v1298 = vld [vmem:[%s6] sm:$0x1]
          %v1300 = vlaneseq
          %v1301 = vshrl.u32 %v1300, 7
          %v1302 = vsub.s32 0, %v1301
          %v1303 = vrot.slane %v1298, %v1302
          %v1305 = vadd.f32 %v1296, %v1303
          %v1306 = vadd.f32 %v1297, %v1303
          %1307 = vst [vmem:[%s453] sm:$0xff] %v1305
          %1308 = vst [vmem:[%s453 + $0x8] sm:$0x1] %v1306
          %v1309 = vld [vmem:[%s7] sm:$0x1]
          %v1310 = vld [vmem:[%s8] sm:$0x1]
          %1311 = vadd.xlane.f32.xlu0 %v1305
          %v1312 = vpop.xlane.xlu0 %1311
          %vm1313 = vcmask 1040384
          %v1314 = vsel %vm1313, %v1306, 0.0
          %1315 = vadd.xlane.f32.xlu0 %v1314
          %v1316 = vpop.xlane.xlu0 %1315
          %v1317 = vrcp.pop 128.0
          %v1318 = vmul.f32 %v1312, %v1317
          %v1319 = vmul.f32 %v1316, %v1317
          %v1320 = vsub.f32 %v1305, %v1318
          %v1321 = vsub.f32 %v1306, %v1319
          %v1322 = vmul.f32 %v1320, %v1320
          %v1323 = vmul.f32 %v1321, %v1321
          %1324 = vadd.xlane.f32.xlu0 %v1322
          %v1325 = vpop.xlane.xlu0 %1324
          %v1326 = vsel %vm1313, %v1323, 0.0
          %1327 = vadd.xlane.f32.xlu0 %v1326
          %v1328 = vpop.xlane.xlu0 %1327
          %v1329 = vmul.f32 %v1325, %v1317
          %v1330 = vmul.f32 %v1328, %v1317
          %v1331 = vadd.f32 %v1329, 1e-06
          %v1332 = vadd.f32 %v1330, 1e-06
          %v1333 = vrsqrt.pop %v1331
          %v1334 = vrsqrt.pop %v1332
          %v1335 = vmul.f32 %v1320, %v1333
          %v1336 = vmul.f32 %v1321, %v1334
          %v1338 = vlaneseq
          %v1339 = vshrl.u32 %v1338, 7
          %v1340 = vsub.s32 0, %v1339
          %v1341 = vrot.slane %v1309, %v1340
          %v1343 = vmul.f32 %v1335, %v1341
          %v1344 = vmul.f32 %v1336, %v1341
          %v1346 = vlaneseq
          %v1347 = vshrl.u32 %v1346, 7
          %v1348 = vsub.s32 0, %v1347
          %v1349 = vrot.slane %v1310, %v1348
          %v1351 = vadd.f32 %v1343, %v1349
          %v1352 = vadd.f32 %v1344, %v1349
          %v1353 = vld [vmem:[%s487] sm:$0xff]
          %v1354 = vld [vmem:[%s487 + $0x8] sm:$0x1]
          %v1355 = vmul.f32 %v1351, 0.5
          %v1356 = vmul.f32 %v1352, 0.5
          %v1357 = vadd.f32 %v1353, %v1355
          %v1358 = vadd.f32 %v1354, %v1356
          %1359 = vst [vmem:[%s492] sm:$0xff] %v1357
          %1360 = vst [vmem:[%s492 + $0x8] sm:$0x1] %v1358
        $region68: #{audiomae_forward.33} parent=59 // pred_fallthru
          _
        %s1361 = sand.u32 %s281, 1
        %s1362 = scalar_lea.sflag [#allocation5], %s1361
        %s1363 = sand.u32 %s281, 1
        %s1364 = smul.addr %s1363, 16
        %s1365 = scalar_lea.vmem [#allocation4], %s1364
        %p1366 = scmp.lt.s32.totalorder %s30, 1
        %s1367 = scalar_select %p1366, %s30, 1
        %s1368 = smul.addr %s1367, 2
        %s1369 = smul.addr %s1368, 8
        %s1370 = scalar_lea.vmem %s11, %s1369
        // Predicated region
        $region69: #{audiomae_forward.33} parent=59 // pred_check
          %p1371 = pneg %p291
        $region70: #{audiomae_forward.33} parent=59 // pred_check_branch
          %1373 = sbr.rel (%p1371) target = $region72
        $region71: #{audiomae_forward.33} parent=59 // pred_region
          %s1375 = ssub.s32 256, 256
          %1376 = vsyncadd %s1362, %s1375
          %s1377 = smul.addr %s30, 2
          %s1378 = smul.addr %s1377, 128
          %s1379 = scalar_lea.hbm %s10, %s1378
          %s1380 = sshll.u32 %s1365, 4
          %s1381 = int_to_ptr.vmem [resolvable:$true] %s1380
          %1386 = dma.vmem_to_hbm [thread:$0]  %s1381, 256, %s1379, %s1362, 128, 128, 8
        $region72: #{audiomae_forward.33} parent=59 // pred_fallthru
          _
        // Predicated region
        $region73: #{audiomae_forward.33} parent=59 // pred_check
          %p1387 = pneg %p317
        $region74: #{audiomae_forward.33} parent=59 // pred_check_branch
          %1389 = sbr.rel (%p1387) target = $region76
        $region75: #{audiomae_forward.33} parent=59 // pred_region
          _
        $region76: #{audiomae_forward.33} parent=59 // pred_fallthru
          _
      $region60: #{audiomae_forward.33} parent=5 // pred_fallthru
        _
      %p1390 = scmp.le.s32.totalorder 2, %s21
      // Predicated region
      $region77: #{audiomae_forward.33} parent=5 // pred_check
        %p1391 = pneg %p1390
      $region78: #{audiomae_forward.33} parent=5 // pred_check_branch
        %1393 = sbr.rel (%p1391) target = $region80
      $region79: #{audiomae_forward.33} parent=5 // pred_region
        %s1394 = ssub.s32 %s21, 2
        // Predicated region
        $region81: #{audiomae_forward.33} parent=79 // pred_check
          %p1395 = pneg %p297
        $region82: #{audiomae_forward.33} parent=79 // pred_check_branch
          %1397 = sbr.rel (%p1395) target = $region84
        $region83: #{audiomae_forward.33} parent=79 // pred_region
          %s1398 = sand.u32 %s282, 1
          %s1399 = scalar_lea.sflag [#allocation5], %s1398
          %s1400 = sand.u32 %s282, 1
          %s1401 = smul.addr %s1400, 16
          %s1402 = scalar_lea.vmem [#allocation4], %s1401
          %1403 = dma.done %s1399, 256
        $region84: #{audiomae_forward.33} parent=79 // pred_fallthru
          _
        // Predicated region
        $region85: #{audiomae_forward.33} parent=79 // pred_check
          %p1404 = pneg %p323
        $region86: #{audiomae_forward.33} parent=79 // pred_check_branch
          %1406 = sbr.rel (%p1404) target = $region88
        $region87: #{audiomae_forward.33} parent=79 // pred_region
          %p1407 = scmp.lt.s32.totalorder %s32, 1
          %s1408 = scalar_select %p1407, %s32, 1
          %s1409 = smul.addr %s1408, 2
          %s1410 = smul.addr %s1409, 8
          %s1411 = scalar_lea.vmem %s11, %s1410
        $region88: #{audiomae_forward.33} parent=79 // pred_fallthru
          _
      $region80: #{audiomae_forward.33} parent=5 // pred_fallthru
        _
    $region6: #{audiomae_forward.33} parent=1 // loop_footer
      %s25 = sadd.s32 1, %s21
    $region7: #{audiomae_forward.33} parent=1 // loop_footer_branch
      %20 = sbr.rel target = $region3
    $region8: #{audiomae_forward.33} parent=1 // loop_exit
      _
    %1412 = vsyncpa [#allocation5], 1
    %s1413 = scalar_lea.sflag [#allocation5], 1
    %1414 = vsyncpa %s1413, 1

</llo_original>
